<compile_context>
chip_gen: v6e
topology: v6e:2x2x1
jax: 0.10.0
libtpu: 0.0.40
codegen_flags: <defaults>
</compile_context>

<pallas_src>
import functools

import jax
import jax.numpy as jnp
from jax.experimental import pallas as pl
from jax.experimental.pallas import tpu as pltpu


# --------------------------------------------------------------------------
# Pallas kernels
# --------------------------------------------------------------------------

def _gru_seq_kernel(gir_ref, giz_ref, gin_ref, whh_ref, bhn_ref, h0_ref, hs_ref):
    """Full-sequence GRU recurrence for one direction (grid axis = direction, 'parallel').

    gir/giz/gin: (T, B, H)  precomputed x @ W_i{r,z,n} + b_i{r,z,n} (+ b_h{r,z} folded in)
    whh:         (3, H, H)  per-gate recurrent weights (r, z, n), stored input-major
    bhn:         (1, H)     hidden bias of the candidate gate (must stay inside r*(...))
    h0:          (B, H)
    hs (out):    (T, B, H)  per-step hidden states
    """
    T = gir_ref.shape[0]
    # Loop-invariant loads hoisted out of the serial time loop.
    w_r = whh_ref[0]
    w_z = whh_ref[1]
    w_n = whh_ref[2]
    b_hn = bhn_ref[...]

    def step(t, h):
        gh_r = jnp.dot(h, w_r, preferred_element_type=jnp.float32)
        gh_z = jnp.dot(h, w_z, preferred_element_type=jnp.float32)
        gh_n = jnp.dot(h, w_n, preferred_element_type=jnp.float32)
        r = jax.nn.sigmoid(gir_ref[t] + gh_r)
        z = jax.nn.sigmoid(giz_ref[t] + gh_z)
        n = jnp.tanh(gin_ref[t] + r * (gh_n + b_hn))
        h_new = n + z * (h - n)          # == (1 - z) * n + z * h
        hs_ref[t] = h_new
        return h_new

    jax.lax.fori_loop(0, T, step, h0_ref[...], unroll=True)


def gru_seq(gi, w_hh, b_hn, h0):
    """Run a D-direction GRU over a full sequence in one pallas_call.

    gi:   (D, T, B, 3H)  precomputed input gates (gate order r, z, n)
    w_hh: (D, 3, H, H)
    b_hn: (D, 1, H)
    h0:   (D, B, H)
    returns (D, T, B, H) per-step hidden states (direction D processed in parallel).
    """
    D, T, B, H3 = gi.shape
    H = H3 // 3
    gi_r, gi_z, gi_n = gi[..., :H], gi[..., H:2 * H], gi[..., 2 * H:]
    seq_spec = pl.BlockSpec((None, T, B, H), lambda d: (d, 0, 0, 0))
    return pl.pallas_call(
        _gru_seq_kernel,
        out_shape=jax.ShapeDtypeStruct((D, T, B, H), jnp.float32),
        grid_spec=pltpu.PrefetchScalarGridSpec(
            num_scalar_prefetch=0,
            grid=(D,),
            in_specs=[
                seq_spec, seq_spec, seq_spec,
                pl.BlockSpec((None, 3, H, H), lambda d: (d, 0, 0, 0)),
                pl.BlockSpec((None, 1, H), lambda d: (d, 0, 0)),
                pl.BlockSpec((None, B, H), lambda d: (d, 0, 0)),
            ],
            out_specs=seq_spec,
        ),
        compiler_params=pltpu.CompilerParams(dimension_semantics=("parallel",)),
    )(gi_r, gi_z, gi_n, w_hh, b_hn, h0)


def _dec_epilogue_kernel(dec_ref, enc_ref, fcw_ref, fcb_ref, wd_ref, ww_ref, ob_ref, out_ref):
    """Fused decoder epilogue: fc(enc) + attention (no softmax / mask, per reference) + out proj.

    dec_ref: (B, Tt, H)   decoder GRU outputs (batch-major)
    enc_ref: (B, Ts, 2H)  raw bidirectional encoder outputs (batch-major)
    fcw/fcb: Linear(2H -> H)
    wd / ww: out_w split rows, each (H, V); ob: (1, V)
    out_ref: (B, Tt, V)
    """
    fcw = fcw_ref[...]
    fcb = fcb_ref[...]
    wd = wd_ref[...]
    ww = ww_ref[...]
    ob = ob_ref[...]
    B = dec_ref.shape[0]
    for b in range(B):                       # static unroll; all 2-D MXU dots, one launch total
        d = dec_ref[b]                                                       # (Tt, H)
        e = jnp.dot(enc_ref[b], fcw, preferred_element_type=jnp.float32) + fcb   # (Ts, H)
        # scores = dec @ enc^T  (masked_fill in the reference is a discarded no-op; no softmax)
        scores = jax.lax.dot_general(d, e, (((1,), (1,)), ((), ())),
                                     preferred_element_type=jnp.float32)     # (Tt, Ts)
        weighted = jnp.dot(scores, e, preferred_element_type=jnp.float32)    # (Tt, H)
        # cat([dec, weighted]) @ out_w + b  == dec @ out_w[:H] + weighted @ out_w[H:] + b
        out_ref[b] = (jnp.dot(d, wd, preferred_element_type=jnp.float32)
                      + jnp.dot(weighted, ww, preferred_element_type=jnp.float32) + ob)


def dec_epilogue(dec_b, enc2h_b, fc_w, fc_b, w_dec, w_wt, out_b):
    B, Tt, H = dec_b.shape
    V = w_dec.shape[1]
    return pl.pallas_call(
        _dec_epilogue_kernel,
        out_shape=jax.ShapeDtypeStruct((B, Tt, V), jnp.float32),
    )(dec_b, enc2h_b, fc_w, fc_b.reshape(1, -1), w_dec, w_wt, out_b.reshape(1, -1))


# --------------------------------------------------------------------------
# Parameters (stored directly in kernel-friendly layouts)
# --------------------------------------------------------------------------

def init_params(key, input_dim, output_dim, emd_size, hidden_size, num_layers, pad_idx):
    ks = iter(jax.random.split(key, 64))

    def unif(shape, scale):
        return jax.random.uniform(next(ks), shape, jnp.float32, -scale, scale)

    H, E = hidden_size, emd_size
    p = {}
    p['src_emb'] = jax.random.normal(next(ks), (input_dim, E), jnp.float32).at[pad_idx].set(0.0)
    p['trg_emb'] = jax.random.normal(next(ks), (output_dim, E), jnp.float32).at[pad_idx].set(0.0)

    s = 1.0 / (H ** 0.5)

    def gru_dir(din):
        w_ih = unif((din, 3 * H), s)          # (Din, 3H), gate order r|z|n, input-major
        w_hh = unif((H, 3 * H), s)            # (H, 3H)
        b_ih = unif((3 * H,), s)
        b_hh = unif((3 * H,), s)
        # fold b_hh_r, b_hh_z into the (precomputed) input-side bias; keep b_hh_n separate
        b_gi = b_ih + jnp.concatenate([b_hh[:2 * H], jnp.zeros((H,), jnp.float32)])
        w_hh_split = jnp.transpose(w_hh.reshape(H, 3, H), (1, 0, 2))   # (3, H, H)
        b_hn = b_hh[2 * H:].reshape(1, H)
        return dict(w_ih=w_ih, w_hh=w_hh_split, b_gi=b_gi, b_hn=b_hn)

    def stack_dirs(dirs):
        return {k: jnp.stack([d[k] for d in dirs], axis=0) for k in dirs[0]}

    enc = []
    for l in range(num_layers):
        din = E if l == 0 else 2 * H
        enc.append(stack_dirs([gru_dir(din), gru_dir(din)]))   # fwd, rev stacked on axis 0
    p['enc_gru'] = enc

    dec = []
    for l in range(num_layers):
        din = E if l == 0 else H
        dec.append(stack_dirs([gru_dir(din)]))                 # leading direction dim = 1
    p['dec_gru'] = dec

    s_fc = 1.0 / ((2 * H) ** 0.5)
    p['fc_w'] = unif((2 * H, H), s_fc)
    p['fc_b'] = unif((H,), s_fc)
    s_e2d = 1.0 / ((2 * num_layers) ** 0.5)
    p['e2d_w'] = unif((2 * num_layers, num_layers), s_e2d)
    p['e2d_b'] = unif((num_layers,), s_e2d)
    p['out_w'] = unif((2 * H, output_dim), s_fc)
    p['out_b'] = unif((output_dim,), s_fc)
    return p


# --------------------------------------------------------------------------
# Forward (plain-JAX glue: embeddings, gate precompute, tiny enc2dec projection)
# --------------------------------------------------------------------------

def encode(p, src, hidden_size, num_layers):
    Ts, B = src.shape
    H = hidden_size
    x = jnp.take(p['src_emb'], src, axis=0)            # (Ts, B, E); dropout == identity (eval)

    h_finals = []
    layer_in = x
    for l in range(num_layers):
        g = p['enc_gru'][l]
        # Stack directions: forward sees x, reverse sees time-flipped x.
        x_dir = jnp.stack([layer_in, layer_in[::-1]], axis=0)                 # (2, T, B, Din)
        # Hoisted input projection for ALL timesteps (one big matmul, off the serial path).
        gi = jnp.einsum('dtbi,dig->dtbg', x_dir, g['w_ih']) + g['b_gi'][:, None, None, :]
        hs = gru_seq(gi, g['w_hh'], g['b_hn'], jnp.zeros((2, B, H), jnp.float32))  # (2, T, B, H)
        out_f, out_r_flip = hs[0], hs[1]
        h_finals.append(out_f[-1])                      # layer l, forward final state
        h_finals.append(out_r_flip[-1])                 # layer l, reverse final state
        layer_in = jnp.concatenate([out_f, out_r_flip[::-1]], axis=-1)        # (T, B, 2H)

    enc_out_2h = layer_in                               # (Ts, B, 2H)  (fc fused into epilogue)
    h = jnp.stack(h_finals, axis=0)                     # (2L, B, H), torch h_n ordering

    # enc2dec Linear(2L -> L) over the (layer*direction) axis: tiny, do it in plain jnp.
    h_dec = jnp.einsum('kbh,kl->lbh', h, p['e2d_w']) + p['e2d_b'][:, None, None]   # (L, B, H)
    return enc_out_2h, h_dec


def decode(p, trg, enc_out_2h, h0, hidden_size, num_layers, output_dim):
    Tt, B = trg.shape
    H = hidden_size
    y = jnp.take(p['trg_emb'], trg, axis=0)             # (Tt, B, E); dropout == identity (eval)

    layer_in = y
    for l in range(num_layers):
        g = p['dec_gru'][l]
        gi = jnp.einsum('tbi,dig->dtbg', layer_in, g['w_ih']) + g['b_gi'][:, None, None, :]
        hs = gru_seq(gi, g['w_hh'], g['b_hn'], h0[l][None])                   # (1, Tt, B, H)
        layer_in = hs[0]
    dec_out = layer_in                                   # (Tt, B, H)

    # Fused epilogue kernel: fc(enc) + attention (raw scores, no softmax/mask) + out projection.
    logits_b = dec_epilogue(
        jnp.transpose(dec_out, (1, 0, 2)),               # (B, Tt, H)
        jnp.transpose(enc_out_2h, (1, 0, 2)),            # (B, Ts, 2H)
        p['fc_w'], p['fc_b'],
        p['out_w'][:H], p['out_w'][H:], p['out_b'])
    return jnp.transpose(logits_b, (1, 0, 2))            # (Tt, B, V)


def only_gru_forward(params, src, trg, hidden_size, num_layers, output_dim):
    """forward_mode == 'next_word': returns (trg_len, batch, output_dim)."""
    enc_out_2h, h_enc = encode(params, src, hidden_size, num_layers)
    return decode(params, trg, enc_out_2h, h_enc, hidden_size, num_layers, output_dim)


# --------------------------------------------------------------------------
if __name__ == "__main__":
    INPUT_DIM, OUTPUT_DIM = 50, 60
    EMD, HID, LAYERS = 32, 32, 2
    PAD_IDX, EOS_IDX = 0, 1
    SRC_LEN, TRG_LEN, BATCH = 10, 8, 4

    key = jax.random.PRNGKey(0)
    kp, ks, kt = jax.random.split(key, 3)
    params = init_params(kp, INPUT_DIM, OUTPUT_DIM, EMD, HID, LAYERS, PAD_IDX)
    src = jax.random.randint(ks, (SRC_LEN, BATCH), 1, INPUT_DIM, jnp.int32)   # src_len x batch
    trg = jax.random.randint(kt, (TRG_LEN, BATCH), 1, OUTPUT_DIM, jnp.int32)  # trg_len x batch

    fwd = jax.jit(functools.partial(only_gru_forward, hidden_size=HID,
                                    num_layers=LAYERS, output_dim=OUTPUT_DIM))
    out = fwd(params, src, trg)
    jax.block_until_ready(out)

    assert out.shape == (TRG_LEN, BATCH, OUTPUT_DIM), out.shape
    assert bool(jnp.all(jnp.isfinite(out)))
    print("KERNEL_OK")
</pallas_src>

<mosaic_0001>
module attributes {stable_mosaic.version = 11 : i64} {
  func.func @_gru_seq_kernel(%arg0: i32, %arg1: memref<1x10x4x32xf32, #tpu.memory_space<vmem>>, %arg2: memref<1x10x4x32xf32, #tpu.memory_space<vmem>>, %arg3: memref<1x10x4x32xf32, #tpu.memory_space<vmem>>, %arg4: memref<1x3x32x32xf32, #tpu.memory_space<vmem>>, %arg5: memref<1x1x32xf32, #tpu.memory_space<vmem>>, %arg6: memref<1x4x32xf32, #tpu.memory_space<vmem>>, %arg7: memref<1x10x4x32xf32, #tpu.memory_space<vmem>>) attributes {dimension_semantics = [#tpu.dimension_semantics<parallel>], iteration_bounds = array<i64: 2>, scalar_prefetch = 0 : i64, scratch_operands = 0 : i64, tpu.core_type = #tpu.core_type<tc>, window_params = [{transform_indices = @transform_0, window_bounds = array<i64: 1, 10, 4, 32>}, {transform_indices = @transform_1, window_bounds = array<i64: 1, 10, 4, 32>}, {transform_indices = @transform_2, window_bounds = array<i64: 1, 10, 4, 32>}, {transform_indices = @transform_3, window_bounds = array<i64: 1, 3, 32, 32>}, {transform_indices = @transform_4, window_bounds = array<i64: 1, 1, 32>}, {transform_indices = @transform_5, window_bounds = array<i64: 1, 4, 32>}, {transform_indices = @transform_6, window_bounds = array<i64: 1, 10, 4, 32>}]} {
    %c0 = arith.constant 0 : index
    %c0_0 = arith.constant 0 : index
    %c0_1 = arith.constant 0 : index
    %c0_2 = arith.constant 0 : index
    %0 = vector.load %arg4[%c0, %c0_0, %c0_1, %c0_2] : memref<1x3x32x32xf32, #tpu.memory_space<vmem>>, vector<1x1x32x32xf32>
    %1 = vector.shape_cast %0 : vector<1x1x32x32xf32> to vector<32x32xf32>
    %c0_3 = arith.constant 0 : index
    %c1 = arith.constant 1 : index
    %c0_4 = arith.constant 0 : index
    %c0_5 = arith.constant 0 : index
    %2 = vector.load %arg4[%c0_3, %c1, %c0_4, %c0_5] : memref<1x3x32x32xf32, #tpu.memory_space<vmem>>, vector<1x1x32x32xf32>
    %3 = vector.shape_cast %2 : vector<1x1x32x32xf32> to vector<32x32xf32>
    %c0_6 = arith.constant 0 : index
    %c2 = arith.constant 2 : index
    %c0_7 = arith.constant 0 : index
    %c0_8 = arith.constant 0 : index
    %4 = vector.load %arg4[%c0_6, %c2, %c0_7, %c0_8] : memref<1x3x32x32xf32, #tpu.memory_space<vmem>>, vector<1x1x32x32xf32>
    %5 = vector.shape_cast %4 : vector<1x1x32x32xf32> to vector<32x32xf32>
    %c0_9 = arith.constant 0 : index
    %c0_10 = arith.constant 0 : index
    %c0_11 = arith.constant 0 : index
    %6 = vector.load %arg5[%c0_9, %c0_10, %c0_11] : memref<1x1x32xf32, #tpu.memory_space<vmem>>, vector<1x1x32xf32>
    %7 = vector.shape_cast %6 : vector<1x1x32xf32> to vector<1x32xf32>
    %c0_12 = arith.constant 0 : index
    %c0_13 = arith.constant 0 : index
    %c0_14 = arith.constant 0 : index
    %8 = vector.load %arg6[%c0_12, %c0_13, %c0_14] : memref<1x4x32xf32, #tpu.memory_space<vmem>>, vector<1x4x32xf32>
    %9 = vector.shape_cast %8 : vector<1x4x32xf32> to vector<4x32xf32>
    %c0_i32 = arith.constant 0 : i32
    %cst = arith.constant dense<0.000000e+00> : vector<4x32xf32>
    %10 = tpu.matmul %9, %1, %cst {dimension_numbers = #tpu.dot_dimension_numbers<[1], [0], [0], [1], [0, 0, 1, 1], [], []>} : vector<4x32xf32>, vector<32x32xf32>, vector<4x32xf32> -> vector<4x32xf32>
    %cst_15 = arith.constant dense<0.000000e+00> : vector<4x32xf32>
    %11 = tpu.matmul %9, %3, %cst_15 {dimension_numbers = #tpu.dot_dimension_numbers<[1], [0], [0], [1], [0, 0, 1, 1], [], []>} : vector<4x32xf32>, vector<32x32xf32>, vector<4x32xf32> -> vector<4x32xf32>
    %cst_16 = arith.constant dense<0.000000e+00> : vector<4x32xf32>
    %12 = tpu.matmul %9, %5, %cst_16 {dimension_numbers = #tpu.dot_dimension_numbers<[1], [0], [0], [1], [0, 0, 1, 1], [], []>} : vector<4x32xf32>, vector<32x32xf32>, vector<4x32xf32> -> vector<4x32xf32>
    %c0_17 = arith.constant 0 : index
    %13 = arith.index_cast %c0_i32 : i32 to index
    %c0_18 = arith.constant 0 : index
    %c0_19 = arith.constant 0 : index
    %14 = vector.load %arg1[%c0_17, %13, %c0_18, %c0_19] : memref<1x10x4x32xf32, #tpu.memory_space<vmem>>, vector<1x1x4x32xf32>
    %15 = vector.shape_cast %14 : vector<1x1x4x32xf32> to vector<4x32xf32>
    %16 = arith.addf %15, %10 : vector<4x32xf32>
    %17 = arith.negf %16 : vector<4x32xf32>
    %18 = math.exp %17 : vector<4x32xf32>
    %cst_20 = arith.constant 1.000000e+00 : f32
    %19 = vector.broadcast %cst_20 : f32 to vector<4x32xf32>
    %20 = arith.addf %19, %18 : vector<4x32xf32>
    %21 = arith.divf %19, %20 : vector<4x32xf32>
    %c0_21 = arith.constant 0 : index
    %22 = arith.index_cast %c0_i32 : i32 to index
    %c0_22 = arith.constant 0 : index
    %c0_23 = arith.constant 0 : index
    %23 = vector.load %arg2[%c0_21, %22, %c0_22, %c0_23] : memref<1x10x4x32xf32, #tpu.memory_space<vmem>>, vector<1x1x4x32xf32>
    %24 = vector.shape_cast %23 : vector<1x1x4x32xf32> to vector<4x32xf32>
    %25 = arith.addf %24, %11 : vector<4x32xf32>
    %26 = arith.negf %25 : vector<4x32xf32>
    %27 = math.exp %26 : vector<4x32xf32>
    %cst_24 = arith.constant 1.000000e+00 : f32
    %28 = vector.broadcast %cst_24 : f32 to vector<4x32xf32>
    %29 = arith.addf %28, %27 : vector<4x32xf32>
    %30 = arith.divf %28, %29 : vector<4x32xf32>
    %c0_25 = arith.constant 0 : index
    %31 = arith.index_cast %c0_i32 : i32 to index
    %c0_26 = arith.constant 0 : index
    %c0_27 = arith.constant 0 : index
    %32 = vector.load %arg3[%c0_25, %31, %c0_26, %c0_27] : memref<1x10x4x32xf32, #tpu.memory_space<vmem>>, vector<1x1x4x32xf32>
    %33 = vector.shape_cast %32 : vector<1x1x4x32xf32> to vector<4x32xf32>
    %34 = vector.broadcast %7 : vector<1x32xf32> to vector<4x32xf32>
    %35 = arith.addf %12, %34 : vector<4x32xf32>
    %36 = arith.mulf %21, %35 : vector<4x32xf32>
    %37 = arith.addf %33, %36 : vector<4x32xf32>
    %38 = math.tanh %37 : vector<4x32xf32>
    %39 = arith.subf %9, %38 : vector<4x32xf32>
    %40 = arith.mulf %30, %39 : vector<4x32xf32>
    %41 = arith.addf %38, %40 : vector<4x32xf32>
    %c0_28 = arith.constant 0 : index
    %42 = arith.index_cast %c0_i32 : i32 to index
    %c0_29 = arith.constant 0 : index
    %c0_30 = arith.constant 0 : index
    %43 = vector.load %arg7[%c0_28, %42, %c0_29, %c0_30] : memref<1x10x4x32xf32, #tpu.memory_space<vmem>>, vector<1x1x4x32xf32>
    %44 = vector.shape_cast %43 : vector<1x1x4x32xf32> to vector<4x32xf32>
    %45 = vector.shape_cast %41 : vector<4x32xf32> to vector<1x1x4x32xf32>
    tpu.vector_store %arg7[%c0_28, %42, %c0_29, %c0_30], %45 {strides = array<i32>} : memref<1x10x4x32xf32, #tpu.memory_space<vmem>>, vector<1x1x4x32xf32>,
    %c1_i32 = arith.constant 1 : i32
    %cst_31 = arith.constant dense<0.000000e+00> : vector<4x32xf32>
    %46 = tpu.matmul %41, %1, %cst_31 {dimension_numbers = #tpu.dot_dimension_numbers<[1], [0], [0], [1], [0, 0, 1, 1], [], []>} : vector<4x32xf32>, vector<32x32xf32>, vector<4x32xf32> -> vector<4x32xf32>
    %cst_32 = arith.constant dense<0.000000e+00> : vector<4x32xf32>
    %47 = tpu.matmul %41, %3, %cst_32 {dimension_numbers = #tpu.dot_dimension_numbers<[1], [0], [0], [1], [0, 0, 1, 1], [], []>} : vector<4x32xf32>, vector<32x32xf32>, vector<4x32xf32> -> vector<4x32xf32>
    %cst_33 = arith.constant dense<0.000000e+00> : vector<4x32xf32>
    %48 = tpu.matmul %41, %5, %cst_33 {dimension_numbers = #tpu.dot_dimension_numbers<[1], [0], [0], [1], [0, 0, 1, 1], [], []>} : vector<4x32xf32>, vector<32x32xf32>, vector<4x32xf32> -> vector<4x32xf32>
    %c0_34 = arith.constant 0 : index
    %49 = arith.index_cast %c1_i32 : i32 to index
    %c0_35 = arith.constant 0 : index
    %c0_36 = arith.constant 0 : index
    %50 = vector.load %arg1[%c0_34, %49, %c0_35, %c0_36] : memref<1x10x4x32xf32, #tpu.memory_space<vmem>>, vector<1x1x4x32xf32>
    %51 = vector.shape_cast %50 : vector<1x1x4x32xf32> to vector<4x32xf32>
    %52 = arith.addf %51, %46 : vector<4x32xf32>
    %53 = arith.negf %52 : vector<4x32xf32>
    %54 = math.exp %53 : vector<4x32xf32>
    %cst_37 = arith.constant 1.000000e+00 : f32
    %55 = vector.broadcast %cst_37 : f32 to vector<4x32xf32>
    %56 = arith.addf %55, %54 : vector<4x32xf32>
    %57 = arith.divf %55, %56 : vector<4x32xf32>
    %c0_38 = arith.constant 0 : index
    %58 = arith.index_cast %c1_i32 : i32 to index
    %c0_39 = arith.constant 0 : index
    %c0_40 = arith.constant 0 : index
    %59 = vector.load %arg2[%c0_38, %58, %c0_39, %c0_40] : memref<1x10x4x32xf32, #tpu.memory_space<vmem>>, vector<1x1x4x32xf32>
    %60 = vector.shape_cast %59 : vector<1x1x4x32xf32> to vector<4x32xf32>
    %61 = arith.addf %60, %47 : vector<4x32xf32>
    %62 = arith.negf %61 : vector<4x32xf32>
    %63 = math.exp %62 : vector<4x32xf32>
    %cst_41 = arith.constant 1.000000e+00 : f32
    %64 = vector.broadcast %cst_41 : f32 to vector<4x32xf32>
    %65 = arith.addf %64, %63 : vector<4x32xf32>
    %66 = arith.divf %64, %65 : vector<4x32xf32>
    %c0_42 = arith.constant 0 : index
    %67 = arith.index_cast %c1_i32 : i32 to index
    %c0_43 = arith.constant 0 : index
    %c0_44 = arith.constant 0 : index
    %68 = vector.load %arg3[%c0_42, %67, %c0_43, %c0_44] : memref<1x10x4x32xf32, #tpu.memory_space<vmem>>, vector<1x1x4x32xf32>
    %69 = vector.shape_cast %68 : vector<1x1x4x32xf32> to vector<4x32xf32>
    %70 = vector.broadcast %7 : vector<1x32xf32> to vector<4x32xf32>
    %71 = arith.addf %48, %70 : vector<4x32xf32>
    %72 = arith.mulf %57, %71 : vector<4x32xf32>
    %73 = arith.addf %69, %72 : vector<4x32xf32>
    %74 = math.tanh %73 : vector<4x32xf32>
    %75 = arith.subf %41, %74 : vector<4x32xf32>
    %76 = arith.mulf %66, %75 : vector<4x32xf32>
    %77 = arith.addf %74, %76 : vector<4x32xf32>
    %c0_45 = arith.constant 0 : index
    %78 = arith.index_cast %c1_i32 : i32 to index
    %c0_46 = arith.constant 0 : index
    %c0_47 = arith.constant 0 : index
    %79 = vector.load %arg7[%c0_45, %78, %c0_46, %c0_47] : memref<1x10x4x32xf32, #tpu.memory_space<vmem>>, vector<1x1x4x32xf32>
    %80 = vector.shape_cast %79 : vector<1x1x4x32xf32> to vector<4x32xf32>
    %81 = vector.shape_cast %77 : vector<4x32xf32> to vector<1x1x4x32xf32>
    tpu.vector_store %arg7[%c0_45, %78, %c0_46, %c0_47], %81 {strides = array<i32>} : memref<1x10x4x32xf32, #tpu.memory_space<vmem>>, vector<1x1x4x32xf32>,
    %c2_i32 = arith.constant 2 : i32
    %cst_48 = arith.constant dense<0.000000e+00> : vector<4x32xf32>
    %82 = tpu.matmul %77, %1, %cst_48 {dimension_numbers = #tpu.dot_dimension_numbers<[1], [0], [0], [1], [0, 0, 1, 1], [], []>} : vector<4x32xf32>, vector<32x32xf32>, vector<4x32xf32> -> vector<4x32xf32>
    %cst_49 = arith.constant dense<0.000000e+00> : vector<4x32xf32>
    %83 = tpu.matmul %77, %3, %cst_49 {dimension_numbers = #tpu.dot_dimension_numbers<[1], [0], [0], [1], [0, 0, 1, 1], [], []>} : vector<4x32xf32>, vector<32x32xf32>, vector<4x32xf32> -> vector<4x32xf32>
    %cst_50 = arith.constant dense<0.000000e+00> : vector<4x32xf32>
    %84 = tpu.matmul %77, %5, %cst_50 {dimension_numbers = #tpu.dot_dimension_numbers<[1], [0], [0], [1], [0, 0, 1, 1], [], []>} : vector<4x32xf32>, vector<32x32xf32>, vector<4x32xf32> -> vector<4x32xf32>
    %c0_51 = arith.constant 0 : index
    %85 = arith.index_cast %c2_i32 : i32 to index
    %c0_52 = arith.constant 0 : index
    %c0_53 = arith.constant 0 : index
    %86 = vector.load %arg1[%c0_51, %85, %c0_52, %c0_53] : memref<1x10x4x32xf32, #tpu.memory_space<vmem>>, vector<1x1x4x32xf32>
    %87 = vector.shape_cast %86 : vector<1x1x4x32xf32> to vector<4x32xf32>
    %88 = arith.addf %87, %82 : vector<4x32xf32>
    %89 = arith.negf %88 : vector<4x32xf32>
    %90 = math.exp %89 : vector<4x32xf32>
    %cst_54 = arith.constant 1.000000e+00 : f32
    %91 = vector.broadcast %cst_54 : f32 to vector<4x32xf32>
    %92 = arith.addf %91, %90 : vector<4x32xf32>
    %93 = arith.divf %91, %92 : vector<4x32xf32>
    %c0_55 = arith.constant 0 : index
    %94 = arith.index_cast %c2_i32 : i32 to index
    %c0_56 = arith.constant 0 : index
    %c0_57 = arith.constant 0 : index
    %95 = vector.load %arg2[%c0_55, %94, %c0_56, %c0_57] : memref<1x10x4x32xf32, #tpu.memory_space<vmem>>, vector<1x1x4x32xf32>
    %96 = vector.shape_cast %95 : vector<1x1x4x32xf32> to vector<4x32xf32>
    %97 = arith.addf %96, %83 : vector<4x32xf32>
    %98 = arith.negf %97 : vector<4x32xf32>
    %99 = math.exp %98 : vector<4x32xf32>
    %cst_58 = arith.constant 1.000000e+00 : f32
    %100 = vector.broadcast %cst_58 : f32 to vector<4x32xf32>
    %101 = arith.addf %100, %99 : vector<4x32xf32>
    %102 = arith.divf %100, %101 : vector<4x32xf32>
    %c0_59 = arith.constant 0 : index
    %103 = arith.index_cast %c2_i32 : i32 to index
    %c0_60 = arith.constant 0 : index
    %c0_61 = arith.constant 0 : index
    %104 = vector.load %arg3[%c0_59, %103, %c0_60, %c0_61] : memref<1x10x4x32xf32, #tpu.memory_space<vmem>>, vector<1x1x4x32xf32>
    %105 = vector.shape_cast %104 : vector<1x1x4x32xf32> to vector<4x32xf32>
    %106 = vector.broadcast %7 : vector<1x32xf32> to vector<4x32xf32>
    %107 = arith.addf %84, %106 : vector<4x32xf32>
    %108 = arith.mulf %93, %107 : vector<4x32xf32>
    %109 = arith.addf %105, %108 : vector<4x32xf32>
    %110 = math.tanh %109 : vector<4x32xf32>
    %111 = arith.subf %77, %110 : vector<4x32xf32>
    %112 = arith.mulf %102, %111 : vector<4x32xf32>
    %113 = arith.addf %110, %112 : vector<4x32xf32>
    %c0_62 = arith.constant 0 : index
    %114 = arith.index_cast %c2_i32 : i32 to index
    %c0_63 = arith.constant 0 : index
    %c0_64 = arith.constant 0 : index
    %115 = vector.load %arg7[%c0_62, %114, %c0_63, %c0_64] : memref<1x10x4x32xf32, #tpu.memory_space<vmem>>, vector<1x1x4x32xf32>
    %116 = vector.shape_cast %115 : vector<1x1x4x32xf32> to vector<4x32xf32>
    %117 = vector.shape_cast %113 : vector<4x32xf32> to vector<1x1x4x32xf32>
    tpu.vector_store %arg7[%c0_62, %114, %c0_63, %c0_64], %117 {strides = array<i32>} : memref<1x10x4x32xf32, #tpu.memory_space<vmem>>, vector<1x1x4x32xf32>,
    %c3_i32 = arith.constant 3 : i32
    %cst_65 = arith.constant dense<0.000000e+00> : vector<4x32xf32>
    %118 = tpu.matmul %113, %1, %cst_65 {dimension_numbers = #tpu.dot_dimension_numbers<[1], [0], [0], [1], [0, 0, 1, 1], [], []>} : vector<4x32xf32>, vector<32x32xf32>, vector<4x32xf32> -> vector<4x32xf32>
    %cst_66 = arith.constant dense<0.000000e+00> : vector<4x32xf32>
    %119 = tpu.matmul %113, %3, %cst_66 {dimension_numbers = #tpu.dot_dimension_numbers<[1], [0], [0], [1], [0, 0, 1, 1], [], []>} : vector<4x32xf32>, vector<32x32xf32>, vector<4x32xf32> -> vector<4x32xf32>
    %cst_67 = arith.constant dense<0.000000e+00> : vector<4x32xf32>
    %120 = tpu.matmul %113, %5, %cst_67 {dimension_numbers = #tpu.dot_dimension_numbers<[1], [0], [0], [1], [0, 0, 1, 1], [], []>} : vector<4x32xf32>, vector<32x32xf32>, vector<4x32xf32> -> vector<4x32xf32>
    %c0_68 = arith.constant 0 : index
    %121 = arith.index_cast %c3_i32 : i32 to index
    %c0_69 = arith.constant 0 : index
    %c0_70 = arith.constant 0 : index
    %122 = vector.load %arg1[%c0_68, %121, %c0_69, %c0_70] : memref<1x10x4x32xf32, #tpu.memory_space<vmem>>, vector<1x1x4x32xf32>
    %123 = vector.shape_cast %122 : vector<1x1x4x32xf32> to vector<4x32xf32>
    %124 = arith.addf %123, %118 : vector<4x32xf32>
    %125 = arith.negf %124 : vector<4x32xf32>
    %126 = math.exp %125 : vector<4x32xf32>
    %cst_71 = arith.constant 1.000000e+00 : f32
    %127 = vector.broadcast %cst_71 : f32 to vector<4x32xf32>
    %128 = arith.addf %127, %126 : vector<4x32xf32>
    %129 = arith.divf %127, %128 : vector<4x32xf32>
    %c0_72 = arith.constant 0 : index
    %130 = arith.index_cast %c3_i32 : i32 to index
    %c0_73 = arith.constant 0 : index
    %c0_74 = arith.constant 0 : index
    %131 = vector.load %arg2[%c0_72, %130, %c0_73, %c0_74] : memref<1x10x4x32xf32, #tpu.memory_space<vmem>>, vector<1x1x4x32xf32>
    %132 = vector.shape_cast %131 : vector<1x1x4x32xf32> to vector<4x32xf32>
    %133 = arith.addf %132, %119 : vector<4x32xf32>
    %134 = arith.negf %133 : vector<4x32xf32>
    %135 = math.exp %134 : vector<4x32xf32>
    %cst_75 = arith.constant 1.000000e+00 : f32
    %136 = vector.broadcast %cst_75 : f32 to vector<4x32xf32>
    %137 = arith.addf %136, %135 : vector<4x32xf32>
    %138 = arith.divf %136, %137 : vector<4x32xf32>
    %c0_76 = arith.constant 0 : index
    %139 = arith.index_cast %c3_i32 : i32 to index
    %c0_77 = arith.constant 0 : index
    %c0_78 = arith.constant 0 : index
    %140 = vector.load %arg3[%c0_76, %139, %c0_77, %c0_78] : memref<1x10x4x32xf32, #tpu.memory_space<vmem>>, vector<1x1x4x32xf32>
    %141 = vector.shape_cast %140 : vector<1x1x4x32xf32> to vector<4x32xf32>
    %142 = vector.broadcast %7 : vector<1x32xf32> to vector<4x32xf32>
    %143 = arith.addf %120, %142 : vector<4x32xf32>
    %144 = arith.mulf %129, %143 : vector<4x32xf32>
    %145 = arith.addf %141, %144 : vector<4x32xf32>
    %146 = math.tanh %145 : vector<4x32xf32>
    %147 = arith.subf %113, %146 : vector<4x32xf32>
    %148 = arith.mulf %138, %147 : vector<4x32xf32>
    %149 = arith.addf %146, %148 : vector<4x32xf32>
    %c0_79 = arith.constant 0 : index
    %150 = arith.index_cast %c3_i32 : i32 to index
    %c0_80 = arith.constant 0 : index
    %c0_81 = arith.constant 0 : index
    %151 = vector.load %arg7[%c0_79, %150, %c0_80, %c0_81] : memref<1x10x4x32xf32, #tpu.memory_space<vmem>>, vector<1x1x4x32xf32>
    %152 = vector.shape_cast %151 : vector<1x1x4x32xf32> to vector<4x32xf32>
    %153 = vector.shape_cast %149 : vector<4x32xf32> to vector<1x1x4x32xf32>
    tpu.vector_store %arg7[%c0_79, %150, %c0_80, %c0_81], %153 {strides = array<i32>} : memref<1x10x4x32xf32, #tpu.memory_space<vmem>>, vector<1x1x4x32xf32>,
    %c4_i32 = arith.constant 4 : i32
    %cst_82 = arith.constant dense<0.000000e+00> : vector<4x32xf32>
    %154 = tpu.matmul %149, %1, %cst_82 {dimension_numbers = #tpu.dot_dimension_numbers<[1], [0], [0], [1], [0, 0, 1, 1], [], []>} : vector<4x32xf32>, vector<32x32xf32>, vector<4x32xf32> -> vector<4x32xf32>
    %cst_83 = arith.constant dense<0.000000e+00> : vector<4x32xf32>
    %155 = tpu.matmul %149, %3, %cst_83 {dimension_numbers = #tpu.dot_dimension_numbers<[1], [0], [0], [1], [0, 0, 1, 1], [], []>} : vector<4x32xf32>, vector<32x32xf32>, vector<4x32xf32> -> vector<4x32xf32>
    %cst_84 = arith.constant dense<0.000000e+00> : vector<4x32xf32>
    %156 = tpu.matmul %149, %5, %cst_84 {dimension_numbers = #tpu.dot_dimension_numbers<[1], [0], [0], [1], [0, 0, 1, 1], [], []>} : vector<4x32xf32>, vector<32x32xf32>, vector<4x32xf32> -> vector<4x32xf32>
    %c0_85 = arith.constant 0 : index
    %157 = arith.index_cast %c4_i32 : i32 to index
    %c0_86 = arith.constant 0 : index
    %c0_87 = arith.constant 0 : index
    %158 = vector.load %arg1[%c0_85, %157, %c0_86, %c0_87] : memref<1x10x4x32xf32, #tpu.memory_space<vmem>>, vector<1x1x4x32xf32>
    %159 = vector.shape_cast %158 : vector<1x1x4x32xf32> to vector<4x32xf32>
    %160 = arith.addf %159, %154 : vector<4x32xf32>
    %161 = arith.negf %160 : vector<4x32xf32>
    %162 = math.exp %161 : vector<4x32xf32>
    %cst_88 = arith.constant 1.000000e+00 : f32
    %163 = vector.broadcast %cst_88 : f32 to vector<4x32xf32>
    %164 = arith.addf %163, %162 : vector<4x32xf32>
    %165 = arith.divf %163, %164 : vector<4x32xf32>
    %c0_89 = arith.constant 0 : index
    %166 = arith.index_cast %c4_i32 : i32 to index
    %c0_90 = arith.constant 0 : index
    %c0_91 = arith.constant 0 : index
    %167 = vector.load %arg2[%c0_89, %166, %c0_90, %c0_91] : memref<1x10x4x32xf32, #tpu.memory_space<vmem>>, vector<1x1x4x32xf32>
    %168 = vector.shape_cast %167 : vector<1x1x4x32xf32> to vector<4x32xf32>
    %169 = arith.addf %168, %155 : vector<4x32xf32>
    %170 = arith.negf %169 : vector<4x32xf32>
    %171 = math.exp %170 : vector<4x32xf32>
    %cst_92 = arith.constant 1.000000e+00 : f32
    %172 = vector.broadcast %cst_92 : f32 to vector<4x32xf32>
    %173 = arith.addf %172, %171 : vector<4x32xf32>
    %174 = arith.divf %172, %173 : vector<4x32xf32>
    %c0_93 = arith.constant 0 : index
    %175 = arith.index_cast %c4_i32 : i32 to index
    %c0_94 = arith.constant 0 : index
    %c0_95 = arith.constant 0 : index
    %176 = vector.load %arg3[%c0_93, %175, %c0_94, %c0_95] : memref<1x10x4x32xf32, #tpu.memory_space<vmem>>, vector<1x1x4x32xf32>
    %177 = vector.shape_cast %176 : vector<1x1x4x32xf32> to vector<4x32xf32>
    %178 = vector.broadcast %7 : vector<1x32xf32> to vector<4x32xf32>
    %179 = arith.addf %156, %178 : vector<4x32xf32>
    %180 = arith.mulf %165, %179 : vector<4x32xf32>
    %181 = arith.addf %177, %180 : vector<4x32xf32>
    %182 = math.tanh %181 : vector<4x32xf32>
    %183 = arith.subf %149, %182 : vector<4x32xf32>
    %184 = arith.mulf %174, %183 : vector<4x32xf32>
    %185 = arith.addf %182, %184 : vector<4x32xf32>
    %c0_96 = arith.constant 0 : index
    %186 = arith.index_cast %c4_i32 : i32 to index
    %c0_97 = arith.constant 0 : index
    %c0_98 = arith.constant 0 : index
    %187 = vector.load %arg7[%c0_96, %186, %c0_97, %c0_98] : memref<1x10x4x32xf32, #tpu.memory_space<vmem>>, vector<1x1x4x32xf32>
    %188 = vector.shape_cast %187 : vector<1x1x4x32xf32> to vector<4x32xf32>
    %189 = vector.shape_cast %185 : vector<4x32xf32> to vector<1x1x4x32xf32>
    tpu.vector_store %arg7[%c0_96, %186, %c0_97, %c0_98], %189 {strides = array<i32>} : memref<1x10x4x32xf32, #tpu.memory_space<vmem>>, vector<1x1x4x32xf32>,
    %c5_i32 = arith.constant 5 : i32
    %cst_99 = arith.constant dense<0.000000e+00> : vector<4x32xf32>
    %190 = tpu.matmul %185, %1, %cst_99 {dimension_numbers = #tpu.dot_dimension_numbers<[1], [0], [0], [1], [0, 0, 1, 1], [], []>} : vector<4x32xf32>, vector<32x32xf32>, vector<4x32xf32> -> vector<4x32xf32>
    %cst_100 = arith.constant dense<0.000000e+00> : vector<4x32xf32>
    %191 = tpu.matmul %185, %3, %cst_100 {dimension_numbers = #tpu.dot_dimension_numbers<[1], [0], [0], [1], [0, 0, 1, 1], [], []>} : vector<4x32xf32>, vector<32x32xf32>, vector<4x32xf32> -> vector<4x32xf32>
    %cst_101 = arith.constant dense<0.000000e+00> : vector<4x32xf32>
    %192 = tpu.matmul %185, %5, %cst_101 {dimension_numbers = #tpu.dot_dimension_numbers<[1], [0], [0], [1], [0, 0, 1, 1], [], []>} : vector<4x32xf32>, vector<32x32xf32>, vector<4x32xf32> -> vector<4x32xf32>
    %c0_102 = arith.constant 0 : index
    %193 = arith.index_cast %c5_i32 : i32 to index
    %c0_103 = arith.constant 0 : index
    %c0_104 = arith.constant 0 : index
    %194 = vector.load %arg1[%c0_102, %193, %c0_103, %c0_104] : memref<1x10x4x32xf32, #tpu.memory_space<vmem>>, vector<1x1x4x32xf32>
    %195 = vector.shape_cast %194 : vector<1x1x4x32xf32> to vector<4x32xf32>
    %196 = arith.addf %195, %190 : vector<4x32xf32>
    %197 = arith.negf %196 : vector<4x32xf32>
    %198 = math.exp %197 : vector<4x32xf32>
    %cst_105 = arith.constant 1.000000e+00 : f32
    %199 = vector.broadcast %cst_105 : f32 to vector<4x32xf32>
    %200 = arith.addf %199, %198 : vector<4x32xf32>
    %201 = arith.divf %199, %200 : vector<4x32xf32>
    %c0_106 = arith.constant 0 : index
    %202 = arith.index_cast %c5_i32 : i32 to index
    %c0_107 = arith.constant 0 : index
    %c0_108 = arith.constant 0 : index
    %203 = vector.load %arg2[%c0_106, %202, %c0_107, %c0_108] : memref<1x10x4x32xf32, #tpu.memory_space<vmem>>, vector<1x1x4x32xf32>
    %204 = vector.shape_cast %203 : vector<1x1x4x32xf32> to vector<4x32xf32>
    %205 = arith.addf %204, %191 : vector<4x32xf32>
    %206 = arith.negf %205 : vector<4x32xf32>
    %207 = math.exp %206 : vector<4x32xf32>
    %cst_109 = arith.constant 1.000000e+00 : f32
    %208 = vector.broadcast %cst_109 : f32 to vector<4x32xf32>
    %209 = arith.addf %208, %207 : vector<4x32xf32>
    %210 = arith.divf %208, %209 : vector<4x32xf32>
    %c0_110 = arith.constant 0 : index
    %211 = arith.index_cast %c5_i32 : i32 to index
    %c0_111 = arith.constant 0 : index
    %c0_112 = arith.constant 0 : index
    %212 = vector.load %arg3[%c0_110, %211, %c0_111, %c0_112] : memref<1x10x4x32xf32, #tpu.memory_space<vmem>>, vector<1x1x4x32xf32>
    %213 = vector.shape_cast %212 : vector<1x1x4x32xf32> to vector<4x32xf32>
    %214 = vector.broadcast %7 : vector<1x32xf32> to vector<4x32xf32>
    %215 = arith.addf %192, %214 : vector<4x32xf32>
    %216 = arith.mulf %201, %215 : vector<4x32xf32>
    %217 = arith.addf %213, %216 : vector<4x32xf32>
    %218 = math.tanh %217 : vector<4x32xf32>
    %219 = arith.subf %185, %218 : vector<4x32xf32>
    %220 = arith.mulf %210, %219 : vector<4x32xf32>
    %221 = arith.addf %218, %220 : vector<4x32xf32>
    %c0_113 = arith.constant 0 : index
    %222 = arith.index_cast %c5_i32 : i32 to index
    %c0_114 = arith.constant 0 : index
    %c0_115 = arith.constant 0 : index
    %223 = vector.load %arg7[%c0_113, %222, %c0_114, %c0_115] : memref<1x10x4x32xf32, #tpu.memory_space<vmem>>, vector<1x1x4x32xf32>
    %224 = vector.shape_cast %223 : vector<1x1x4x32xf32> to vector<4x32xf32>
    %225 = vector.shape_cast %221 : vector<4x32xf32> to vector<1x1x4x32xf32>
    tpu.vector_store %arg7[%c0_113, %222, %c0_114, %c0_115], %225 {strides = array<i32>} : memref<1x10x4x32xf32, #tpu.memory_space<vmem>>, vector<1x1x4x32xf32>,
    %c6_i32 = arith.constant 6 : i32
    %cst_116 = arith.constant dense<0.000000e+00> : vector<4x32xf32>
    %226 = tpu.matmul %221, %1, %cst_116 {dimension_numbers = #tpu.dot_dimension_numbers<[1], [0], [0], [1], [0, 0, 1, 1], [], []>} : vector<4x32xf32>, vector<32x32xf32>, vector<4x32xf32> -> vector<4x32xf32>
    %cst_117 = arith.constant dense<0.000000e+00> : vector<4x32xf32>
    %227 = tpu.matmul %221, %3, %cst_117 {dimension_numbers = #tpu.dot_dimension_numbers<[1], [0], [0], [1], [0, 0, 1, 1], [], []>} : vector<4x32xf32>, vector<32x32xf32>, vector<4x32xf32> -> vector<4x32xf32>
    %cst_118 = arith.constant dense<0.000000e+00> : vector<4x32xf32>
    %228 = tpu.matmul %221, %5, %cst_118 {dimension_numbers = #tpu.dot_dimension_numbers<[1], [0], [0], [1], [0, 0, 1, 1], [], []>} : vector<4x32xf32>, vector<32x32xf32>, vector<4x32xf32> -> vector<4x32xf32>
    %c0_119 = arith.constant 0 : index
    %229 = arith.index_cast %c6_i32 : i32 to index
    %c0_120 = arith.constant 0 : index
    %c0_121 = arith.constant 0 : index
    %230 = vector.load %arg1[%c0_119, %229, %c0_120, %c0_121] : memref<1x10x4x32xf32, #tpu.memory_space<vmem>>, vector<1x1x4x32xf32>
    %231 = vector.shape_cast %230 : vector<1x1x4x32xf32> to vector<4x32xf32>
    %232 = arith.addf %231, %226 : vector<4x32xf32>
    %233 = arith.negf %232 : vector<4x32xf32>
    %234 = math.exp %233 : vector<4x32xf32>
    %cst_122 = arith.constant 1.000000e+00 : f32
    %235 = vector.broadcast %cst_122 : f32 to vector<4x32xf32>
    %236 = arith.addf %235, %234 : vector<4x32xf32>
    %237 = arith.divf %235, %236 : vector<4x32xf32>
    %c0_123 = arith.constant 0 : index
    %238 = arith.index_cast %c6_i32 : i32 to index
    %c0_124 = arith.constant 0 : index
    %c0_125 = arith.constant 0 : index
    %239 = vector.load %arg2[%c0_123, %238, %c0_124, %c0_125] : memref<1x10x4x32xf32, #tpu.memory_space<vmem>>, vector<1x1x4x32xf32>
    %240 = vector.shape_cast %239 : vector<1x1x4x32xf32> to vector<4x32xf32>
    %241 = arith.addf %240, %227 : vector<4x32xf32>
    %242 = arith.negf %241 : vector<4x32xf32>
    %243 = math.exp %242 : vector<4x32xf32>
    %cst_126 = arith.constant 1.000000e+00 : f32
    %244 = vector.broadcast %cst_126 : f32 to vector<4x32xf32>
    %245 = arith.addf %244, %243 : vector<4x32xf32>
    %246 = arith.divf %244, %245 : vector<4x32xf32>
    %c0_127 = arith.constant 0 : index
    %247 = arith.index_cast %c6_i32 : i32 to index
    %c0_128 = arith.constant 0 : index
    %c0_129 = arith.constant 0 : index
    %248 = vector.load %arg3[%c0_127, %247, %c0_128, %c0_129] : memref<1x10x4x32xf32, #tpu.memory_space<vmem>>, vector<1x1x4x32xf32>
    %249 = vector.shape_cast %248 : vector<1x1x4x32xf32> to vector<4x32xf32>
    %250 = vector.broadcast %7 : vector<1x32xf32> to vector<4x32xf32>
    %251 = arith.addf %228, %250 : vector<4x32xf32>
    %252 = arith.mulf %237, %251 : vector<4x32xf32>
    %253 = arith.addf %249, %252 : vector<4x32xf32>
    %254 = math.tanh %253 : vector<4x32xf32>
    %255 = arith.subf %221, %254 : vector<4x32xf32>
    %256 = arith.mulf %246, %255 : vector<4x32xf32>
    %257 = arith.addf %254, %256 : vector<4x32xf32>
    %c0_130 = arith.constant 0 : index
    %258 = arith.index_cast %c6_i32 : i32 to index
    %c0_131 = arith.constant 0 : index
    %c0_132 = arith.constant 0 : index
    %259 = vector.load %arg7[%c0_130, %258, %c0_131, %c0_132] : memref<1x10x4x32xf32, #tpu.memory_space<vmem>>, vector<1x1x4x32xf32>
    %260 = vector.shape_cast %259 : vector<1x1x4x32xf32> to vector<4x32xf32>
    %261 = vector.shape_cast %257 : vector<4x32xf32> to vector<1x1x4x32xf32>
    tpu.vector_store %arg7[%c0_130, %258, %c0_131, %c0_132], %261 {strides = array<i32>} : memref<1x10x4x32xf32, #tpu.memory_space<vmem>>, vector<1x1x4x32xf32>,
    %c7_i32 = arith.constant 7 : i32
    %cst_133 = arith.constant dense<0.000000e+00> : vector<4x32xf32>
    %262 = tpu.matmul %257, %1, %cst_133 {dimension_numbers = #tpu.dot_dimension_numbers<[1], [0], [0], [1], [0, 0, 1, 1], [], []>} : vector<4x32xf32>, vector<32x32xf32>, vector<4x32xf32> -> vector<4x32xf32>
    %cst_134 = arith.constant dense<0.000000e+00> : vector<4x32xf32>
    %263 = tpu.matmul %257, %3, %cst_134 {dimension_numbers = #tpu.dot_dimension_numbers<[1], [0], [0], [1], [0, 0, 1, 1], [], []>} : vector<4x32xf32>, vector<32x32xf32>, vector<4x32xf32> -> vector<4x32xf32>
    %cst_135 = arith.constant dense<0.000000e+00> : vector<4x32xf32>
    %264 = tpu.matmul %257, %5, %cst_135 {dimension_numbers = #tpu.dot_dimension_numbers<[1], [0], [0], [1], [0, 0, 1, 1], [], []>} : vector<4x32xf32>, vector<32x32xf32>, vector<4x32xf32> -> vector<4x32xf32>
    %c0_136 = arith.constant 0 : index
    %265 = arith.index_cast %c7_i32 : i32 to index
    %c0_137 = arith.constant 0 : index
    %c0_138 = arith.constant 0 : index
    %266 = vector.load %arg1[%c0_136, %265, %c0_137, %c0_138] : memref<1x10x4x32xf32, #tpu.memory_space<vmem>>, vector<1x1x4x32xf32>
    %267 = vector.shape_cast %266 : vector<1x1x4x32xf32> to vector<4x32xf32>
    %268 = arith.addf %267, %262 : vector<4x32xf32>
    %269 = arith.negf %268 : vector<4x32xf32>
    %270 = math.exp %269 : vector<4x32xf32>
    %cst_139 = arith.constant 1.000000e+00 : f32
    %271 = vector.broadcast %cst_139 : f32 to vector<4x32xf32>
    %272 = arith.addf %271, %270 : vector<4x32xf32>
    %273 = arith.divf %271, %272 : vector<4x32xf32>
    %c0_140 = arith.constant 0 : index
    %274 = arith.index_cast %c7_i32 : i32 to index
    %c0_141 = arith.constant 0 : index
    %c0_142 = arith.constant 0 : index
    %275 = vector.load %arg2[%c0_140, %274, %c0_141, %c0_142] : memref<1x10x4x32xf32, #tpu.memory_space<vmem>>, vector<1x1x4x32xf32>
    %276 = vector.shape_cast %275 : vector<1x1x4x32xf32> to vector<4x32xf32>
    %277 = arith.addf %276, %263 : vector<4x32xf32>
    %278 = arith.negf %277 : vector<4x32xf32>
    %279 = math.exp %278 : vector<4x32xf32>
    %cst_143 = arith.constant 1.000000e+00 : f32
    %280 = vector.broadcast %cst_143 : f32 to vector<4x32xf32>
    %281 = arith.addf %280, %279 : vector<4x32xf32>
    %282 = arith.divf %280, %281 : vector<4x32xf32>
    %c0_144 = arith.constant 0 : index
    %283 = arith.index_cast %c7_i32 : i32 to index
    %c0_145 = arith.constant 0 : index
    %c0_146 = arith.constant 0 : index
    %284 = vector.load %arg3[%c0_144, %283, %c0_145, %c0_146] : memref<1x10x4x32xf32, #tpu.memory_space<vmem>>, vector<1x1x4x32xf32>
    %285 = vector.shape_cast %284 : vector<1x1x4x32xf32> to vector<4x32xf32>
    %286 = vector.broadcast %7 : vector<1x32xf32> to vector<4x32xf32>
    %287 = arith.addf %264, %286 : vector<4x32xf32>
    %288 = arith.mulf %273, %287 : vector<4x32xf32>
    %289 = arith.addf %285, %288 : vector<4x32xf32>
    %290 = math.tanh %289 : vector<4x32xf32>
    %291 = arith.subf %257, %290 : vector<4x32xf32>
    %292 = arith.mulf %282, %291 : vector<4x32xf32>
    %293 = arith.addf %290, %292 : vector<4x32xf32>
    %c0_147 = arith.constant 0 : index
    %294 = arith.index_cast %c7_i32 : i32 to index
    %c0_148 = arith.constant 0 : index
    %c0_149 = arith.constant 0 : index
    %295 = vector.load %arg7[%c0_147, %294, %c0_148, %c0_149] : memref<1x10x4x32xf32, #tpu.memory_space<vmem>>, vector<1x1x4x32xf32>
    %296 = vector.shape_cast %295 : vector<1x1x4x32xf32> to vector<4x32xf32>
    %297 = vector.shape_cast %293 : vector<4x32xf32> to vector<1x1x4x32xf32>
    tpu.vector_store %arg7[%c0_147, %294, %c0_148, %c0_149], %297 {strides = array<i32>} : memref<1x10x4x32xf32, #tpu.memory_space<vmem>>, vector<1x1x4x32xf32>,
    %c8_i32 = arith.constant 8 : i32
    %cst_150 = arith.constant dense<0.000000e+00> : vector<4x32xf32>
    %298 = tpu.matmul %293, %1, %cst_150 {dimension_numbers = #tpu.dot_dimension_numbers<[1], [0], [0], [1], [0, 0, 1, 1], [], []>} : vector<4x32xf32>, vector<32x32xf32>, vector<4x32xf32> -> vector<4x32xf32>
    %cst_151 = arith.constant dense<0.000000e+00> : vector<4x32xf32>
    %299 = tpu.matmul %293, %3, %cst_151 {dimension_numbers = #tpu.dot_dimension_numbers<[1], [0], [0], [1], [0, 0, 1, 1], [], []>} : vector<4x32xf32>, vector<32x32xf32>, vector<4x32xf32> -> vector<4x32xf32>
    %cst_152 = arith.constant dense<0.000000e+00> : vector<4x32xf32>
    %300 = tpu.matmul %293, %5, %cst_152 {dimension_numbers = #tpu.dot_dimension_numbers<[1], [0], [0], [1], [0, 0, 1, 1], [], []>} : vector<4x32xf32>, vector<32x32xf32>, vector<4x32xf32> -> vector<4x32xf32>
    %c0_153 = arith.constant 0 : index
    %301 = arith.index_cast %c8_i32 : i32 to index
    %c0_154 = arith.constant 0 : index
    %c0_155 = arith.constant 0 : index
    %302 = vector.load %arg1[%c0_153, %301, %c0_154, %c0_155] : memref<1x10x4x32xf32, #tpu.memory_space<vmem>>, vector<1x1x4x32xf32>
    %303 = vector.shape_cast %302 : vector<1x1x4x32xf32> to vector<4x32xf32>
    %304 = arith.addf %303, %298 : vector<4x32xf32>
    %305 = arith.negf %304 : vector<4x32xf32>
    %306 = math.exp %305 : vector<4x32xf32>
    %cst_156 = arith.constant 1.000000e+00 : f32
    %307 = vector.broadcast %cst_156 : f32 to vector<4x32xf32>
    %308 = arith.addf %307, %306 : vector<4x32xf32>
    %309 = arith.divf %307, %308 : vector<4x32xf32>
    %c0_157 = arith.constant 0 : index
    %310 = arith.index_cast %c8_i32 : i32 to index
    %c0_158 = arith.constant 0 : index
    %c0_159 = arith.constant 0 : index
    %311 = vector.load %arg2[%c0_157, %310, %c0_158, %c0_159] : memref<1x10x4x32xf32, #tpu.memory_space<vmem>>, vector<1x1x4x32xf32>
    %312 = vector.shape_cast %311 : vector<1x1x4x32xf32> to vector<4x32xf32>
    %313 = arith.addf %312, %299 : vector<4x32xf32>
    %314 = arith.negf %313 : vector<4x32xf32>
    %315 = math.exp %314 : vector<4x32xf32>
    %cst_160 = arith.constant 1.000000e+00 : f32
    %316 = vector.broadcast %cst_160 : f32 to vector<4x32xf32>
    %317 = arith.addf %316, %315 : vector<4x32xf32>
    %318 = arith.divf %316, %317 : vector<4x32xf32>
    %c0_161 = arith.constant 0 : index
    %319 = arith.index_cast %c8_i32 : i32 to index
    %c0_162 = arith.constant 0 : index
    %c0_163 = arith.constant 0 : index
    %320 = vector.load %arg3[%c0_161, %319, %c0_162, %c0_163] : memref<1x10x4x32xf32, #tpu.memory_space<vmem>>, vector<1x1x4x32xf32>
    %321 = vector.shape_cast %320 : vector<1x1x4x32xf32> to vector<4x32xf32>
    %322 = vector.broadcast %7 : vector<1x32xf32> to vector<4x32xf32>
    %323 = arith.addf %300, %322 : vector<4x32xf32>
    %324 = arith.mulf %309, %323 : vector<4x32xf32>
    %325 = arith.addf %321, %324 : vector<4x32xf32>
    %326 = math.tanh %325 : vector<4x32xf32>
    %327 = arith.subf %293, %326 : vector<4x32xf32>
    %328 = arith.mulf %318, %327 : vector<4x32xf32>
    %329 = arith.addf %326, %328 : vector<4x32xf32>
    %c0_164 = arith.constant 0 : index
    %330 = arith.index_cast %c8_i32 : i32 to index
    %c0_165 = arith.constant 0 : index
    %c0_166 = arith.constant 0 : index
    %331 = vector.load %arg7[%c0_164, %330, %c0_165, %c0_166] : memref<1x10x4x32xf32, #tpu.memory_space<vmem>>, vector<1x1x4x32xf32>
    %332 = vector.shape_cast %331 : vector<1x1x4x32xf32> to vector<4x32xf32>
    %333 = vector.shape_cast %329 : vector<4x32xf32> to vector<1x1x4x32xf32>
    tpu.vector_store %arg7[%c0_164, %330, %c0_165, %c0_166], %333 {strides = array<i32>} : memref<1x10x4x32xf32, #tpu.memory_space<vmem>>, vector<1x1x4x32xf32>,
    %c9_i32 = arith.constant 9 : i32
    %cst_167 = arith.constant dense<0.000000e+00> : vector<4x32xf32>
    %334 = tpu.matmul %329, %1, %cst_167 {dimension_numbers = #tpu.dot_dimension_numbers<[1], [0], [0], [1], [0, 0, 1, 1], [], []>} : vector<4x32xf32>, vector<32x32xf32>, vector<4x32xf32> -> vector<4x32xf32>
    %cst_168 = arith.constant dense<0.000000e+00> : vector<4x32xf32>
    %335 = tpu.matmul %329, %3, %cst_168 {dimension_numbers = #tpu.dot_dimension_numbers<[1], [0], [0], [1], [0, 0, 1, 1], [], []>} : vector<4x32xf32>, vector<32x32xf32>, vector<4x32xf32> -> vector<4x32xf32>
    %cst_169 = arith.constant dense<0.000000e+00> : vector<4x32xf32>
    %336 = tpu.matmul %329, %5, %cst_169 {dimension_numbers = #tpu.dot_dimension_numbers<[1], [0], [0], [1], [0, 0, 1, 1], [], []>} : vector<4x32xf32>, vector<32x32xf32>, vector<4x32xf32> -> vector<4x32xf32>
    %c0_170 = arith.constant 0 : index
    %337 = arith.index_cast %c9_i32 : i32 to index
    %c0_171 = arith.constant 0 : index
    %c0_172 = arith.constant 0 : index
    %338 = vector.load %arg1[%c0_170, %337, %c0_171, %c0_172] : memref<1x10x4x32xf32, #tpu.memory_space<vmem>>, vector<1x1x4x32xf32>
    %339 = vector.shape_cast %338 : vector<1x1x4x32xf32> to vector<4x32xf32>
    %340 = arith.addf %339, %334 : vector<4x32xf32>
    %341 = arith.negf %340 : vector<4x32xf32>
    %342 = math.exp %341 : vector<4x32xf32>
    %cst_173 = arith.constant 1.000000e+00 : f32
    %343 = vector.broadcast %cst_173 : f32 to vector<4x32xf32>
    %344 = arith.addf %343, %342 : vector<4x32xf32>
    %345 = arith.divf %343, %344 : vector<4x32xf32>
    %c0_174 = arith.constant 0 : index
    %346 = arith.index_cast %c9_i32 : i32 to index
    %c0_175 = arith.constant 0 : index
    %c0_176 = arith.constant 0 : index
    %347 = vector.load %arg2[%c0_174, %346, %c0_175, %c0_176] : memref<1x10x4x32xf32, #tpu.memory_space<vmem>>, vector<1x1x4x32xf32>
    %348 = vector.shape_cast %347 : vector<1x1x4x32xf32> to vector<4x32xf32>
    %349 = arith.addf %348, %335 : vector<4x32xf32>
    %350 = arith.negf %349 : vector<4x32xf32>
    %351 = math.exp %350 : vector<4x32xf32>
    %cst_177 = arith.constant 1.000000e+00 : f32
    %352 = vector.broadcast %cst_177 : f32 to vector<4x32xf32>
    %353 = arith.addf %352, %351 : vector<4x32xf32>
    %354 = arith.divf %352, %353 : vector<4x32xf32>
    %c0_178 = arith.constant 0 : index
    %355 = arith.index_cast %c9_i32 : i32 to index
    %c0_179 = arith.constant 0 : index
    %c0_180 = arith.constant 0 : index
    %356 = vector.load %arg3[%c0_178, %355, %c0_179, %c0_180] : memref<1x10x4x32xf32, #tpu.memory_space<vmem>>, vector<1x1x4x32xf32>
    %357 = vector.shape_cast %356 : vector<1x1x4x32xf32> to vector<4x32xf32>
    %358 = vector.broadcast %7 : vector<1x32xf32> to vector<4x32xf32>
    %359 = arith.addf %336, %358 : vector<4x32xf32>
    %360 = arith.mulf %345, %359 : vector<4x32xf32>
    %361 = arith.addf %357, %360 : vector<4x32xf32>
    %362 = math.tanh %361 : vector<4x32xf32>
    %363 = arith.subf %329, %362 : vector<4x32xf32>
    %364 = arith.mulf %354, %363 : vector<4x32xf32>
    %365 = arith.addf %362, %364 : vector<4x32xf32>
    %c0_181 = arith.constant 0 : index
    %366 = arith.index_cast %c9_i32 : i32 to index
    %c0_182 = arith.constant 0 : index
    %c0_183 = arith.constant 0 : index
    %367 = vector.load %arg7[%c0_181, %366, %c0_182, %c0_183] : memref<1x10x4x32xf32, #tpu.memory_space<vmem>>, vector<1x1x4x32xf32>
    %368 = vector.shape_cast %367 : vector<1x1x4x32xf32> to vector<4x32xf32>
    %369 = vector.shape_cast %365 : vector<4x32xf32> to vector<1x1x4x32xf32>
    tpu.vector_store %arg7[%c0_181, %366, %c0_182, %c0_183], %369 {strides = array<i32>} : memref<1x10x4x32xf32, #tpu.memory_space<vmem>>, vector<1x1x4x32xf32>,
    %c10_i32 = arith.constant 10 : i32
    return
  }
  func.func @transform_0(%arg0: i32) -> (i32, i32, i32, i32) {
    %c0_i32 = arith.constant 0 : i32
    %c0_i32_0 = arith.constant 0 : i32
    %c0_i32_1 = arith.constant 0 : i32
    %c0_i32_2 = arith.constant 0 : i32
    return %arg0, %c0_i32, %c0_i32_0, %c0_i32_1 : i32, i32, i32, i32
  }
  func.func @transform_1(%arg0: i32) -> (i32, i32, i32, i32) {
    %c0_i32 = arith.constant 0 : i32
    %c0_i32_0 = arith.constant 0 : i32
    %c0_i32_1 = arith.constant 0 : i32
    %c0_i32_2 = arith.constant 0 : i32
    return %arg0, %c0_i32, %c0_i32_0, %c0_i32_1 : i32, i32, i32, i32
  }
  func.func @transform_2(%arg0: i32) -> (i32, i32, i32, i32) {
    %c0_i32 = arith.constant 0 : i32
    %c0_i32_0 = arith.constant 0 : i32
    %c0_i32_1 = arith.constant 0 : i32
    %c0_i32_2 = arith.constant 0 : i32
    return %arg0, %c0_i32, %c0_i32_0, %c0_i32_1 : i32, i32, i32, i32
  }
  func.func @transform_3(%arg0: i32) -> (i32, i32, i32, i32) {
    %c0_i32 = arith.constant 0 : i32
    %c0_i32_0 = arith.constant 0 : i32
    %c0_i32_1 = arith.constant 0 : i32
    %c0_i32_2 = arith.constant 0 : i32
    return %arg0, %c0_i32, %c0_i32_0, %c0_i32_1 : i32, i32, i32, i32
  }
  func.func @transform_4(%arg0: i32) -> (i32, i32, i32) {
    %c0_i32 = arith.constant 0 : i32
    %c0_i32_0 = arith.constant 0 : i32
    %c0_i32_1 = arith.constant 0 : i32
    return %arg0, %c0_i32, %c0_i32_0 : i32, i32, i32
  }
  func.func @transform_5(%arg0: i32) -> (i32, i32, i32) {
    %c0_i32 = arith.constant 0 : i32
    %c0_i32_0 = arith.constant 0 : i32
    %c0_i32_1 = arith.constant 0 : i32
    return %arg0, %c0_i32, %c0_i32_0 : i32, i32, i32
  }
  func.func @transform_6(%arg0: i32) -> (i32, i32, i32, i32) {
    %c0_i32 = arith.constant 0 : i32
    %c0_i32_0 = arith.constant 0 : i32
    %c0_i32_1 = arith.constant 0 : i32
    %c0_i32_2 = arith.constant 0 : i32
    return %arg0, %c0_i32, %c0_i32_0, %c0_i32_1 : i32, i32, i32, i32
  }
}

module attributes {stable_mosaic.version = 11 : i64} {
  func.func @_gru_seq_kernel(%arg0: i32, %arg1: memref<1x8x4x32xf32, #tpu.memory_space<vmem>>, %arg2: memref<1x8x4x32xf32, #tpu.memory_space<vmem>>, %arg3: memref<1x8x4x32xf32, #tpu.memory_space<vmem>>, %arg4: memref<1x3x32x32xf32, #tpu.memory_space<vmem>>, %arg5: memref<1x1x32xf32, #tpu.memory_space<vmem>>, %arg6: memref<1x4x32xf32, #tpu.memory_space<vmem>>, %arg7: memref<1x8x4x32xf32, #tpu.memory_space<vmem>>) attributes {dimension_semantics = [#tpu.dimension_semantics<parallel>], iteration_bounds = array<i64: 1>, scalar_prefetch = 0 : i64, scratch_operands = 0 : i64, tpu.core_type = #tpu.core_type<tc>, window_params = [{transform_indices = @transform_0, window_bounds = array<i64: 1, 8, 4, 32>}, {transform_indices = @transform_1, window_bounds = array<i64: 1, 8, 4, 32>}, {transform_indices = @transform_2, window_bounds = array<i64: 1, 8, 4, 32>}, {transform_indices = @transform_3, window_bounds = array<i64: 1, 3, 32, 32>}, {transform_indices = @transform_4, window_bounds = array<i64: 1, 1, 32>}, {transform_indices = @transform_5, window_bounds = array<i64: 1, 4, 32>}, {transform_indices = @transform_6, window_bounds = array<i64: 1, 8, 4, 32>}]} {
    %c0 = arith.constant 0 : index
    %c0_0 = arith.constant 0 : index
    %c0_1 = arith.constant 0 : index
    %c0_2 = arith.constant 0 : index
    %0 = vector.load %arg4[%c0, %c0_0, %c0_1, %c0_2] : memref<1x3x32x32xf32, #tpu.memory_space<vmem>>, vector<1x1x32x32xf32>
    %1 = vector.shape_cast %0 : vector<1x1x32x32xf32> to vector<32x32xf32>
    %c0_3 = arith.constant 0 : index
    %c1 = arith.constant 1 : index
    %c0_4 = arith.constant 0 : index
    %c0_5 = arith.constant 0 : index
    %2 = vector.load %arg4[%c0_3, %c1, %c0_4, %c0_5] : memref<1x3x32x32xf32, #tpu.memory_space<vmem>>, vector<1x1x32x32xf32>
    %3 = vector.shape_cast %2 : vector<1x1x32x32xf32> to vector<32x32xf32>
    %c0_6 = arith.constant 0 : index
    %c2 = arith.constant 2 : index
    %c0_7 = arith.constant 0 : index
    %c0_8 = arith.constant 0 : index
    %4 = vector.load %arg4[%c0_6, %c2, %c0_7, %c0_8] : memref<1x3x32x32xf32, #tpu.memory_space<vmem>>, vector<1x1x32x32xf32>
    %5 = vector.shape_cast %4 : vector<1x1x32x32xf32> to vector<32x32xf32>
    %c0_9 = arith.constant 0 : index
    %c0_10 = arith.constant 0 : index
    %c0_11 = arith.constant 0 : index
    %6 = vector.load %arg5[%c0_9, %c0_10, %c0_11] : memref<1x1x32xf32, #tpu.memory_space<vmem>>, vector<1x1x32xf32>
    %7 = vector.shape_cast %6 : vector<1x1x32xf32> to vector<1x32xf32>
    %c0_12 = arith.constant 0 : index
    %c0_13 = arith.constant 0 : index
    %c0_14 = arith.constant 0 : index
    %8 = vector.load %arg6[%c0_12, %c0_13, %c0_14] : memref<1x4x32xf32, #tpu.memory_space<vmem>>, vector<1x4x32xf32>
    %9 = vector.shape_cast %8 : vector<1x4x32xf32> to vector<4x32xf32>
    %c0_i32 = arith.constant 0 : i32
    %cst = arith.constant dense<0.000000e+00> : vector<4x32xf32>
    %10 = tpu.matmul %9, %1, %cst {dimension_numbers = #tpu.dot_dimension_numbers<[1], [0], [0], [1], [0, 0, 1, 1], [], []>} : vector<4x32xf32>, vector<32x32xf32>, vector<4x32xf32> -> vector<4x32xf32>
    %cst_15 = arith.constant dense<0.000000e+00> : vector<4x32xf32>
    %11 = tpu.matmul %9, %3, %cst_15 {dimension_numbers = #tpu.dot_dimension_numbers<[1], [0], [0], [1], [0, 0, 1, 1], [], []>} : vector<4x32xf32>, vector<32x32xf32>, vector<4x32xf32> -> vector<4x32xf32>
    %cst_16 = arith.constant dense<0.000000e+00> : vector<4x32xf32>
    %12 = tpu.matmul %9, %5, %cst_16 {dimension_numbers = #tpu.dot_dimension_numbers<[1], [0], [0], [1], [0, 0, 1, 1], [], []>} : vector<4x32xf32>, vector<32x32xf32>, vector<4x32xf32> -> vector<4x32xf32>
    %c0_17 = arith.constant 0 : index
    %13 = arith.index_cast %c0_i32 : i32 to index
    %c0_18 = arith.constant 0 : index
    %c0_19 = arith.constant 0 : index
    %14 = vector.load %arg1[%c0_17, %13, %c0_18, %c0_19] : memref<1x8x4x32xf32, #tpu.memory_space<vmem>>, vector<1x1x4x32xf32>
    %15 = vector.shape_cast %14 : vector<1x1x4x32xf32> to vector<4x32xf32>
    %16 = arith.addf %15, %10 : vector<4x32xf32>
    %17 = arith.negf %16 : vector<4x32xf32>
    %18 = math.exp %17 : vector<4x32xf32>
    %cst_20 = arith.constant 1.000000e+00 : f32
    %19 = vector.broadcast %cst_20 : f32 to vector<4x32xf32>
    %20 = arith.addf %19, %18 : vector<4x32xf32>
    %21 = arith.divf %19, %20 : vector<4x32xf32>
    %c0_21 = arith.constant 0 : index
    %22 = arith.index_cast %c0_i32 : i32 to index
    %c0_22 = arith.constant 0 : index
    %c0_23 = arith.constant 0 : index
    %23 = vector.load %arg2[%c0_21, %22, %c0_22, %c0_23] : memref<1x8x4x32xf32, #tpu.memory_space<vmem>>, vector<1x1x4x32xf32>
    %24 = vector.shape_cast %23 : vector<1x1x4x32xf32> to vector<4x32xf32>
    %25 = arith.addf %24, %11 : vector<4x32xf32>
    %26 = arith.negf %25 : vector<4x32xf32>
    %27 = math.exp %26 : vector<4x32xf32>
    %cst_24 = arith.constant 1.000000e+00 : f32
    %28 = vector.broadcast %cst_24 : f32 to vector<4x32xf32>
    %29 = arith.addf %28, %27 : vector<4x32xf32>
    %30 = arith.divf %28, %29 : vector<4x32xf32>
    %c0_25 = arith.constant 0 : index
    %31 = arith.index_cast %c0_i32 : i32 to index
    %c0_26 = arith.constant 0 : index
    %c0_27 = arith.constant 0 : index
    %32 = vector.load %arg3[%c0_25, %31, %c0_26, %c0_27] : memref<1x8x4x32xf32, #tpu.memory_space<vmem>>, vector<1x1x4x32xf32>
    %33 = vector.shape_cast %32 : vector<1x1x4x32xf32> to vector<4x32xf32>
    %34 = vector.broadcast %7 : vector<1x32xf32> to vector<4x32xf32>
    %35 = arith.addf %12, %34 : vector<4x32xf32>
    %36 = arith.mulf %21, %35 : vector<4x32xf32>
    %37 = arith.addf %33, %36 : vector<4x32xf32>
    %38 = math.tanh %37 : vector<4x32xf32>
    %39 = arith.subf %9, %38 : vector<4x32xf32>
    %40 = arith.mulf %30, %39 : vector<4x32xf32>
    %41 = arith.addf %38, %40 : vector<4x32xf32>
    %c0_28 = arith.constant 0 : index
    %42 = arith.index_cast %c0_i32 : i32 to index
    %c0_29 = arith.constant 0 : index
    %c0_30 = arith.constant 0 : index
    %43 = vector.load %arg7[%c0_28, %42, %c0_29, %c0_30] : memref<1x8x4x32xf32, #tpu.memory_space<vmem>>, vector<1x1x4x32xf32>
    %44 = vector.shape_cast %43 : vector<1x1x4x32xf32> to vector<4x32xf32>
    %45 = vector.shape_cast %41 : vector<4x32xf32> to vector<1x1x4x32xf32>
    tpu.vector_store %arg7[%c0_28, %42, %c0_29, %c0_30], %45 {strides = array<i32>} : memref<1x8x4x32xf32, #tpu.memory_space<vmem>>, vector<1x1x4x32xf32>,
    %c1_i32 = arith.constant 1 : i32
    %cst_31 = arith.constant dense<0.000000e+00> : vector<4x32xf32>
    %46 = tpu.matmul %41, %1, %cst_31 {dimension_numbers = #tpu.dot_dimension_numbers<[1], [0], [0], [1], [0, 0, 1, 1], [], []>} : vector<4x32xf32>, vector<32x32xf32>, vector<4x32xf32> -> vector<4x32xf32>
    %cst_32 = arith.constant dense<0.000000e+00> : vector<4x32xf32>
    %47 = tpu.matmul %41, %3, %cst_32 {dimension_numbers = #tpu.dot_dimension_numbers<[1], [0], [0], [1], [0, 0, 1, 1], [], []>} : vector<4x32xf32>, vector<32x32xf32>, vector<4x32xf32> -> vector<4x32xf32>
    %cst_33 = arith.constant dense<0.000000e+00> : vector<4x32xf32>
    %48 = tpu.matmul %41, %5, %cst_33 {dimension_numbers = #tpu.dot_dimension_numbers<[1], [0], [0], [1], [0, 0, 1, 1], [], []>} : vector<4x32xf32>, vector<32x32xf32>, vector<4x32xf32> -> vector<4x32xf32>
    %c0_34 = arith.constant 0 : index
    %49 = arith.index_cast %c1_i32 : i32 to index
    %c0_35 = arith.constant 0 : index
    %c0_36 = arith.constant 0 : index
    %50 = vector.load %arg1[%c0_34, %49, %c0_35, %c0_36] : memref<1x8x4x32xf32, #tpu.memory_space<vmem>>, vector<1x1x4x32xf32>
    %51 = vector.shape_cast %50 : vector<1x1x4x32xf32> to vector<4x32xf32>
    %52 = arith.addf %51, %46 : vector<4x32xf32>
    %53 = arith.negf %52 : vector<4x32xf32>
    %54 = math.exp %53 : vector<4x32xf32>
    %cst_37 = arith.constant 1.000000e+00 : f32
    %55 = vector.broadcast %cst_37 : f32 to vector<4x32xf32>
    %56 = arith.addf %55, %54 : vector<4x32xf32>
    %57 = arith.divf %55, %56 : vector<4x32xf32>
    %c0_38 = arith.constant 0 : index
    %58 = arith.index_cast %c1_i32 : i32 to index
    %c0_39 = arith.constant 0 : index
    %c0_40 = arith.constant 0 : index
    %59 = vector.load %arg2[%c0_38, %58, %c0_39, %c0_40] : memref<1x8x4x32xf32, #tpu.memory_space<vmem>>, vector<1x1x4x32xf32>
    %60 = vector.shape_cast %59 : vector<1x1x4x32xf32> to vector<4x32xf32>
    %61 = arith.addf %60, %47 : vector<4x32xf32>
    %62 = arith.negf %61 : vector<4x32xf32>
    %63 = math.exp %62 : vector<4x32xf32>
    %cst_41 = arith.constant 1.000000e+00 : f32
    %64 = vector.broadcast %cst_41 : f32 to vector<4x32xf32>
    %65 = arith.addf %64, %63 : vector<4x32xf32>
    %66 = arith.divf %64, %65 : vector<4x32xf32>
    %c0_42 = arith.constant 0 : index
    %67 = arith.index_cast %c1_i32 : i32 to index
    %c0_43 = arith.constant 0 : index
    %c0_44 = arith.constant 0 : index
    %68 = vector.load %arg3[%c0_42, %67, %c0_43, %c0_44] : memref<1x8x4x32xf32, #tpu.memory_space<vmem>>, vector<1x1x4x32xf32>
    %69 = vector.shape_cast %68 : vector<1x1x4x32xf32> to vector<4x32xf32>
    %70 = vector.broadcast %7 : vector<1x32xf32> to vector<4x32xf32>
    %71 = arith.addf %48, %70 : vector<4x32xf32>
    %72 = arith.mulf %57, %71 : vector<4x32xf32>
    %73 = arith.addf %69, %72 : vector<4x32xf32>
    %74 = math.tanh %73 : vector<4x32xf32>
    %75 = arith.subf %41, %74 : vector<4x32xf32>
    %76 = arith.mulf %66, %75 : vector<4x32xf32>
    %77 = arith.addf %74, %76 : vector<4x32xf32>
    %c0_45 = arith.constant 0 : index
    %78 = arith.index_cast %c1_i32 : i32 to index
    %c0_46 = arith.constant 0 : index
    %c0_47 = arith.constant 0 : index
    %79 = vector.load %arg7[%c0_45, %78, %c0_46, %c0_47] : memref<1x8x4x32xf32, #tpu.memory_space<vmem>>, vector<1x1x4x32xf32>
    %80 = vector.shape_cast %79 : vector<1x1x4x32xf32> to vector<4x32xf32>
    %81 = vector.shape_cast %77 : vector<4x32xf32> to vector<1x1x4x32xf32>
    tpu.vector_store %arg7[%c0_45, %78, %c0_46, %c0_47], %81 {strides = array<i32>} : memref<1x8x4x32xf32, #tpu.memory_space<vmem>>, vector<1x1x4x32xf32>,
    %c2_i32 = arith.constant 2 : i32
    %cst_48 = arith.constant dense<0.000000e+00> : vector<4x32xf32>
    %82 = tpu.matmul %77, %1, %cst_48 {dimension_numbers = #tpu.dot_dimension_numbers<[1], [0], [0], [1], [0, 0, 1, 1], [], []>} : vector<4x32xf32>, vector<32x32xf32>, vector<4x32xf32> -> vector<4x32xf32>
    %cst_49 = arith.constant dense<0.000000e+00> : vector<4x32xf32>
    %83 = tpu.matmul %77, %3, %cst_49 {dimension_numbers = #tpu.dot_dimension_numbers<[1], [0], [0], [1], [0, 0, 1, 1], [], []>} : vector<4x32xf32>, vector<32x32xf32>, vector<4x32xf32> -> vector<4x32xf32>
    %cst_50 = arith.constant dense<0.000000e+00> : vector<4x32xf32>
    %84 = tpu.matmul %77, %5, %cst_50 {dimension_numbers = #tpu.dot_dimension_numbers<[1], [0], [0], [1], [0, 0, 1, 1], [], []>} : vector<4x32xf32>, vector<32x32xf32>, vector<4x32xf32> -> vector<4x32xf32>
    %c0_51 = arith.constant 0 : index
    %85 = arith.index_cast %c2_i32 : i32 to index
    %c0_52 = arith.constant 0 : index
    %c0_53 = arith.constant 0 : index
    %86 = vector.load %arg1[%c0_51, %85, %c0_52, %c0_53] : memref<1x8x4x32xf32, #tpu.memory_space<vmem>>, vector<1x1x4x32xf32>
    %87 = vector.shape_cast %86 : vector<1x1x4x32xf32> to vector<4x32xf32>
    %88 = arith.addf %87, %82 : vector<4x32xf32>
    %89 = arith.negf %88 : vector<4x32xf32>
    %90 = math.exp %89 : vector<4x32xf32>
    %cst_54 = arith.constant 1.000000e+00 : f32
    %91 = vector.broadcast %cst_54 : f32 to vector<4x32xf32>
    %92 = arith.addf %91, %90 : vector<4x32xf32>
    %93 = arith.divf %91, %92 : vector<4x32xf32>
    %c0_55 = arith.constant 0 : index
    %94 = arith.index_cast %c2_i32 : i32 to index
    %c0_56 = arith.constant 0 : index
    %c0_57 = arith.constant 0 : index
    %95 = vector.load %arg2[%c0_55, %94, %c0_56, %c0_57] : memref<1x8x4x32xf32, #tpu.memory_space<vmem>>, vector<1x1x4x32xf32>
    %96 = vector.shape_cast %95 : vector<1x1x4x32xf32> to vector<4x32xf32>
    %97 = arith.addf %96, %83 : vector<4x32xf32>
    %98 = arith.negf %97 : vector<4x32xf32>
    %99 = math.exp %98 : vector<4x32xf32>
    %cst_58 = arith.constant 1.000000e+00 : f32
    %100 = vector.broadcast %cst_58 : f32 to vector<4x32xf32>
    %101 = arith.addf %100, %99 : vector<4x32xf32>
    %102 = arith.divf %100, %101 : vector<4x32xf32>
    %c0_59 = arith.constant 0 : index
    %103 = arith.index_cast %c2_i32 : i32 to index
    %c0_60 = arith.constant 0 : index
    %c0_61 = arith.constant 0 : index
    %104 = vector.load %arg3[%c0_59, %103, %c0_60, %c0_61] : memref<1x8x4x32xf32, #tpu.memory_space<vmem>>, vector<1x1x4x32xf32>
    %105 = vector.shape_cast %104 : vector<1x1x4x32xf32> to vector<4x32xf32>
    %106 = vector.broadcast %7 : vector<1x32xf32> to vector<4x32xf32>
    %107 = arith.addf %84, %106 : vector<4x32xf32>
    %108 = arith.mulf %93, %107 : vector<4x32xf32>
    %109 = arith.addf %105, %108 : vector<4x32xf32>
    %110 = math.tanh %109 : vector<4x32xf32>
    %111 = arith.subf %77, %110 : vector<4x32xf32>
    %112 = arith.mulf %102, %111 : vector<4x32xf32>
    %113 = arith.addf %110, %112 : vector<4x32xf32>
    %c0_62 = arith.constant 0 : index
    %114 = arith.index_cast %c2_i32 : i32 to index
    %c0_63 = arith.constant 0 : index
    %c0_64 = arith.constant 0 : index
    %115 = vector.load %arg7[%c0_62, %114, %c0_63, %c0_64] : memref<1x8x4x32xf32, #tpu.memory_space<vmem>>, vector<1x1x4x32xf32>
    %116 = vector.shape_cast %115 : vector<1x1x4x32xf32> to vector<4x32xf32>
    %117 = vector.shape_cast %113 : vector<4x32xf32> to vector<1x1x4x32xf32>
    tpu.vector_store %arg7[%c0_62, %114, %c0_63, %c0_64], %117 {strides = array<i32>} : memref<1x8x4x32xf32, #tpu.memory_space<vmem>>, vector<1x1x4x32xf32>,
    %c3_i32 = arith.constant 3 : i32
    %cst_65 = arith.constant dense<0.000000e+00> : vector<4x32xf32>
    %118 = tpu.matmul %113, %1, %cst_65 {dimension_numbers = #tpu.dot_dimension_numbers<[1], [0], [0], [1], [0, 0, 1, 1], [], []>} : vector<4x32xf32>, vector<32x32xf32>, vector<4x32xf32> -> vector<4x32xf32>
    %cst_66 = arith.constant dense<0.000000e+00> : vector<4x32xf32>
    %119 = tpu.matmul %113, %3, %cst_66 {dimension_numbers = #tpu.dot_dimension_numbers<[1], [0], [0], [1], [0, 0, 1, 1], [], []>} : vector<4x32xf32>, vector<32x32xf32>, vector<4x32xf32> -> vector<4x32xf32>
    %cst_67 = arith.constant dense<0.000000e+00> : vector<4x32xf32>
    %120 = tpu.matmul %113, %5, %cst_67 {dimension_numbers = #tpu.dot_dimension_numbers<[1], [0], [0], [1], [0, 0, 1, 1], [], []>} : vector<4x32xf32>, vector<32x32xf32>, vector<4x32xf32> -> vector<4x32xf32>
    %c0_68 = arith.constant 0 : index
    %121 = arith.index_cast %c3_i32 : i32 to index
    %c0_69 = arith.constant 0 : index
    %c0_70 = arith.constant 0 : index
    %122 = vector.load %arg1[%c0_68, %121, %c0_69, %c0_70] : memref<1x8x4x32xf32, #tpu.memory_space<vmem>>, vector<1x1x4x32xf32>
    %123 = vector.shape_cast %122 : vector<1x1x4x32xf32> to vector<4x32xf32>
    %124 = arith.addf %123, %118 : vector<4x32xf32>
    %125 = arith.negf %124 : vector<4x32xf32>
    %126 = math.exp %125 : vector<4x32xf32>
    %cst_71 = arith.constant 1.000000e+00 : f32
    %127 = vector.broadcast %cst_71 : f32 to vector<4x32xf32>
    %128 = arith.addf %127, %126 : vector<4x32xf32>
    %129 = arith.divf %127, %128 : vector<4x32xf32>
    %c0_72 = arith.constant 0 : index
    %130 = arith.index_cast %c3_i32 : i32 to index
    %c0_73 = arith.constant 0 : index
    %c0_74 = arith.constant 0 : index
    %131 = vector.load %arg2[%c0_72, %130, %c0_73, %c0_74] : memref<1x8x4x32xf32, #tpu.memory_space<vmem>>, vector<1x1x4x32xf32>
    %132 = vector.shape_cast %131 : vector<1x1x4x32xf32> to vector<4x32xf32>
    %133 = arith.addf %132, %119 : vector<4x32xf32>
    %134 = arith.negf %133 : vector<4x32xf32>
    %135 = math.exp %134 : vector<4x32xf32>
    %cst_75 = arith.constant 1.000000e+00 : f32
    %136 = vector.broadcast %cst_75 : f32 to vector<4x32xf32>
    %137 = arith.addf %136, %135 : vector<4x32xf32>
    %138 = arith.divf %136, %137 : vector<4x32xf32>
    %c0_76 = arith.constant 0 : index
    %139 = arith.index_cast %c3_i32 : i32 to index
    %c0_77 = arith.constant 0 : index
    %c0_78 = arith.constant 0 : index
    %140 = vector.load %arg3[%c0_76, %139, %c0_77, %c0_78] : memref<1x8x4x32xf32, #tpu.memory_space<vmem>>, vector<1x1x4x32xf32>
    %141 = vector.shape_cast %140 : vector<1x1x4x32xf32> to vector<4x32xf32>
    %142 = vector.broadcast %7 : vector<1x32xf32> to vector<4x32xf32>
    %143 = arith.addf %120, %142 : vector<4x32xf32>
    %144 = arith.mulf %129, %143 : vector<4x32xf32>
    %145 = arith.addf %141, %144 : vector<4x32xf32>
    %146 = math.tanh %145 : vector<4x32xf32>
    %147 = arith.subf %113, %146 : vector<4x32xf32>
    %148 = arith.mulf %138, %147 : vector<4x32xf32>
    %149 = arith.addf %146, %148 : vector<4x32xf32>
    %c0_79 = arith.constant 0 : index
    %150 = arith.index_cast %c3_i32 : i32 to index
    %c0_80 = arith.constant 0 : index
    %c0_81 = arith.constant 0 : index
    %151 = vector.load %arg7[%c0_79, %150, %c0_80, %c0_81] : memref<1x8x4x32xf32, #tpu.memory_space<vmem>>, vector<1x1x4x32xf32>
    %152 = vector.shape_cast %151 : vector<1x1x4x32xf32> to vector<4x32xf32>
    %153 = vector.shape_cast %149 : vector<4x32xf32> to vector<1x1x4x32xf32>
    tpu.vector_store %arg7[%c0_79, %150, %c0_80, %c0_81], %153 {strides = array<i32>} : memref<1x8x4x32xf32, #tpu.memory_space<vmem>>, vector<1x1x4x32xf32>,
    %c4_i32 = arith.constant 4 : i32
    %cst_82 = arith.constant dense<0.000000e+00> : vector<4x32xf32>
    %154 = tpu.matmul %149, %1, %cst_82 {dimension_numbers = #tpu.dot_dimension_numbers<[1], [0], [0], [1], [0, 0, 1, 1], [], []>} : vector<4x32xf32>, vector<32x32xf32>, vector<4x32xf32> -> vector<4x32xf32>
    %cst_83 = arith.constant dense<0.000000e+00> : vector<4x32xf32>
    %155 = tpu.matmul %149, %3, %cst_83 {dimension_numbers = #tpu.dot_dimension_numbers<[1], [0], [0], [1], [0, 0, 1, 1], [], []>} : vector<4x32xf32>, vector<32x32xf32>, vector<4x32xf32> -> vector<4x32xf32>
    %cst_84 = arith.constant dense<0.000000e+00> : vector<4x32xf32>
    %156 = tpu.matmul %149, %5, %cst_84 {dimension_numbers = #tpu.dot_dimension_numbers<[1], [0], [0], [1], [0, 0, 1, 1], [], []>} : vector<4x32xf32>, vector<32x32xf32>, vector<4x32xf32> -> vector<4x32xf32>
    %c0_85 = arith.constant 0 : index
    %157 = arith.index_cast %c4_i32 : i32 to index
    %c0_86 = arith.constant 0 : index
    %c0_87 = arith.constant 0 : index
    %158 = vector.load %arg1[%c0_85, %157, %c0_86, %c0_87] : memref<1x8x4x32xf32, #tpu.memory_space<vmem>>, vector<1x1x4x32xf32>
    %159 = vector.shape_cast %158 : vector<1x1x4x32xf32> to vector<4x32xf32>
    %160 = arith.addf %159, %154 : vector<4x32xf32>
    %161 = arith.negf %160 : vector<4x32xf32>
    %162 = math.exp %161 : vector<4x32xf32>
    %cst_88 = arith.constant 1.000000e+00 : f32
    %163 = vector.broadcast %cst_88 : f32 to vector<4x32xf32>
    %164 = arith.addf %163, %162 : vector<4x32xf32>
    %165 = arith.divf %163, %164 : vector<4x32xf32>
    %c0_89 = arith.constant 0 : index
    %166 = arith.index_cast %c4_i32 : i32 to index
    %c0_90 = arith.constant 0 : index
    %c0_91 = arith.constant 0 : index
    %167 = vector.load %arg2[%c0_89, %166, %c0_90, %c0_91] : memref<1x8x4x32xf32, #tpu.memory_space<vmem>>, vector<1x1x4x32xf32>
    %168 = vector.shape_cast %167 : vector<1x1x4x32xf32> to vector<4x32xf32>
    %169 = arith.addf %168, %155 : vector<4x32xf32>
    %170 = arith.negf %169 : vector<4x32xf32>
    %171 = math.exp %170 : vector<4x32xf32>
    %cst_92 = arith.constant 1.000000e+00 : f32
    %172 = vector.broadcast %cst_92 : f32 to vector<4x32xf32>
    %173 = arith.addf %172, %171 : vector<4x32xf32>
    %174 = arith.divf %172, %173 : vector<4x32xf32>
    %c0_93 = arith.constant 0 : index
    %175 = arith.index_cast %c4_i32 : i32 to index
    %c0_94 = arith.constant 0 : index
    %c0_95 = arith.constant 0 : index
    %176 = vector.load %arg3[%c0_93, %175, %c0_94, %c0_95] : memref<1x8x4x32xf32, #tpu.memory_space<vmem>>, vector<1x1x4x32xf32>
    %177 = vector.shape_cast %176 : vector<1x1x4x32xf32> to vector<4x32xf32>
    %178 = vector.broadcast %7 : vector<1x32xf32> to vector<4x32xf32>
    %179 = arith.addf %156, %178 : vector<4x32xf32>
    %180 = arith.mulf %165, %179 : vector<4x32xf32>
    %181 = arith.addf %177, %180 : vector<4x32xf32>
    %182 = math.tanh %181 : vector<4x32xf32>
    %183 = arith.subf %149, %182 : vector<4x32xf32>
    %184 = arith.mulf %174, %183 : vector<4x32xf32>
    %185 = arith.addf %182, %184 : vector<4x32xf32>
    %c0_96 = arith.constant 0 : index
    %186 = arith.index_cast %c4_i32 : i32 to index
    %c0_97 = arith.constant 0 : index
    %c0_98 = arith.constant 0 : index
    %187 = vector.load %arg7[%c0_96, %186, %c0_97, %c0_98] : memref<1x8x4x32xf32, #tpu.memory_space<vmem>>, vector<1x1x4x32xf32>
    %188 = vector.shape_cast %187 : vector<1x1x4x32xf32> to vector<4x32xf32>
    %189 = vector.shape_cast %185 : vector<4x32xf32> to vector<1x1x4x32xf32>
    tpu.vector_store %arg7[%c0_96, %186, %c0_97, %c0_98], %189 {strides = array<i32>} : memref<1x8x4x32xf32, #tpu.memory_space<vmem>>, vector<1x1x4x32xf32>,
    %c5_i32 = arith.constant 5 : i32
    %cst_99 = arith.constant dense<0.000000e+00> : vector<4x32xf32>
    %190 = tpu.matmul %185, %1, %cst_99 {dimension_numbers = #tpu.dot_dimension_numbers<[1], [0], [0], [1], [0, 0, 1, 1], [], []>} : vector<4x32xf32>, vector<32x32xf32>, vector<4x32xf32> -> vector<4x32xf32>
    %cst_100 = arith.constant dense<0.000000e+00> : vector<4x32xf32>
    %191 = tpu.matmul %185, %3, %cst_100 {dimension_numbers = #tpu.dot_dimension_numbers<[1], [0], [0], [1], [0, 0, 1, 1], [], []>} : vector<4x32xf32>, vector<32x32xf32>, vector<4x32xf32> -> vector<4x32xf32>
    %cst_101 = arith.constant dense<0.000000e+00> : vector<4x32xf32>
    %192 = tpu.matmul %185, %5, %cst_101 {dimension_numbers = #tpu.dot_dimension_numbers<[1], [0], [0], [1], [0, 0, 1, 1], [], []>} : vector<4x32xf32>, vector<32x32xf32>, vector<4x32xf32> -> vector<4x32xf32>
    %c0_102 = arith.constant 0 : index
    %193 = arith.index_cast %c5_i32 : i32 to index
    %c0_103 = arith.constant 0 : index
    %c0_104 = arith.constant 0 : index
    %194 = vector.load %arg1[%c0_102, %193, %c0_103, %c0_104] : memref<1x8x4x32xf32, #tpu.memory_space<vmem>>, vector<1x1x4x32xf32>
    %195 = vector.shape_cast %194 : vector<1x1x4x32xf32> to vector<4x32xf32>
    %196 = arith.addf %195, %190 : vector<4x32xf32>
    %197 = arith.negf %196 : vector<4x32xf32>
    %198 = math.exp %197 : vector<4x32xf32>
    %cst_105 = arith.constant 1.000000e+00 : f32
    %199 = vector.broadcast %cst_105 : f32 to vector<4x32xf32>
    %200 = arith.addf %199, %198 : vector<4x32xf32>
    %201 = arith.divf %199, %200 : vector<4x32xf32>
    %c0_106 = arith.constant 0 : index
    %202 = arith.index_cast %c5_i32 : i32 to index
    %c0_107 = arith.constant 0 : index
    %c0_108 = arith.constant 0 : index
    %203 = vector.load %arg2[%c0_106, %202, %c0_107, %c0_108] : memref<1x8x4x32xf32, #tpu.memory_space<vmem>>, vector<1x1x4x32xf32>
    %204 = vector.shape_cast %203 : vector<1x1x4x32xf32> to vector<4x32xf32>
    %205 = arith.addf %204, %191 : vector<4x32xf32>
    %206 = arith.negf %205 : vector<4x32xf32>
    %207 = math.exp %206 : vector<4x32xf32>
    %cst_109 = arith.constant 1.000000e+00 : f32
    %208 = vector.broadcast %cst_109 : f32 to vector<4x32xf32>
    %209 = arith.addf %208, %207 : vector<4x32xf32>
    %210 = arith.divf %208, %209 : vector<4x32xf32>
    %c0_110 = arith.constant 0 : index
    %211 = arith.index_cast %c5_i32 : i32 to index
    %c0_111 = arith.constant 0 : index
    %c0_112 = arith.constant 0 : index
    %212 = vector.load %arg3[%c0_110, %211, %c0_111, %c0_112] : memref<1x8x4x32xf32, #tpu.memory_space<vmem>>, vector<1x1x4x32xf32>
    %213 = vector.shape_cast %212 : vector<1x1x4x32xf32> to vector<4x32xf32>
    %214 = vector.broadcast %7 : vector<1x32xf32> to vector<4x32xf32>
    %215 = arith.addf %192, %214 : vector<4x32xf32>
    %216 = arith.mulf %201, %215 : vector<4x32xf32>
    %217 = arith.addf %213, %216 : vector<4x32xf32>
    %218 = math.tanh %217 : vector<4x32xf32>
    %219 = arith.subf %185, %218 : vector<4x32xf32>
    %220 = arith.mulf %210, %219 : vector<4x32xf32>
    %221 = arith.addf %218, %220 : vector<4x32xf32>
    %c0_113 = arith.constant 0 : index
    %222 = arith.index_cast %c5_i32 : i32 to index
    %c0_114 = arith.constant 0 : index
    %c0_115 = arith.constant 0 : index
    %223 = vector.load %arg7[%c0_113, %222, %c0_114, %c0_115] : memref<1x8x4x32xf32, #tpu.memory_space<vmem>>, vector<1x1x4x32xf32>
    %224 = vector.shape_cast %223 : vector<1x1x4x32xf32> to vector<4x32xf32>
    %225 = vector.shape_cast %221 : vector<4x32xf32> to vector<1x1x4x32xf32>
    tpu.vector_store %arg7[%c0_113, %222, %c0_114, %c0_115], %225 {strides = array<i32>} : memref<1x8x4x32xf32, #tpu.memory_space<vmem>>, vector<1x1x4x32xf32>,
    %c6_i32 = arith.constant 6 : i32
    %cst_116 = arith.constant dense<0.000000e+00> : vector<4x32xf32>
    %226 = tpu.matmul %221, %1, %cst_116 {dimension_numbers = #tpu.dot_dimension_numbers<[1], [0], [0], [1], [0, 0, 1, 1], [], []>} : vector<4x32xf32>, vector<32x32xf32>, vector<4x32xf32> -> vector<4x32xf32>
    %cst_117 = arith.constant dense<0.000000e+00> : vector<4x32xf32>
    %227 = tpu.matmul %221, %3, %cst_117 {dimension_numbers = #tpu.dot_dimension_numbers<[1], [0], [0], [1], [0, 0, 1, 1], [], []>} : vector<4x32xf32>, vector<32x32xf32>, vector<4x32xf32> -> vector<4x32xf32>
    %cst_118 = arith.constant dense<0.000000e+00> : vector<4x32xf32>
    %228 = tpu.matmul %221, %5, %cst_118 {dimension_numbers = #tpu.dot_dimension_numbers<[1], [0], [0], [1], [0, 0, 1, 1], [], []>} : vector<4x32xf32>, vector<32x32xf32>, vector<4x32xf32> -> vector<4x32xf32>
    %c0_119 = arith.constant 0 : index
    %229 = arith.index_cast %c6_i32 : i32 to index
    %c0_120 = arith.constant 0 : index
    %c0_121 = arith.constant 0 : index
    %230 = vector.load %arg1[%c0_119, %229, %c0_120, %c0_121] : memref<1x8x4x32xf32, #tpu.memory_space<vmem>>, vector<1x1x4x32xf32>
    %231 = vector.shape_cast %230 : vector<1x1x4x32xf32> to vector<4x32xf32>
    %232 = arith.addf %231, %226 : vector<4x32xf32>
    %233 = arith.negf %232 : vector<4x32xf32>
    %234 = math.exp %233 : vector<4x32xf32>
    %cst_122 = arith.constant 1.000000e+00 : f32
    %235 = vector.broadcast %cst_122 : f32 to vector<4x32xf32>
    %236 = arith.addf %235, %234 : vector<4x32xf32>
    %237 = arith.divf %235, %236 : vector<4x32xf32>
    %c0_123 = arith.constant 0 : index
    %238 = arith.index_cast %c6_i32 : i32 to index
    %c0_124 = arith.constant 0 : index
    %c0_125 = arith.constant 0 : index
    %239 = vector.load %arg2[%c0_123, %238, %c0_124, %c0_125] : memref<1x8x4x32xf32, #tpu.memory_space<vmem>>, vector<1x1x4x32xf32>
    %240 = vector.shape_cast %239 : vector<1x1x4x32xf32> to vector<4x32xf32>
    %241 = arith.addf %240, %227 : vector<4x32xf32>
    %242 = arith.negf %241 : vector<4x32xf32>
    %243 = math.exp %242 : vector<4x32xf32>
    %cst_126 = arith.constant 1.000000e+00 : f32
    %244 = vector.broadcast %cst_126 : f32 to vector<4x32xf32>
    %245 = arith.addf %244, %243 : vector<4x32xf32>
    %246 = arith.divf %244, %245 : vector<4x32xf32>
    %c0_127 = arith.constant 0 : index
    %247 = arith.index_cast %c6_i32 : i32 to index
    %c0_128 = arith.constant 0 : index
    %c0_129 = arith.constant 0 : index
    %248 = vector.load %arg3[%c0_127, %247, %c0_128, %c0_129] : memref<1x8x4x32xf32, #tpu.memory_space<vmem>>, vector<1x1x4x32xf32>
    %249 = vector.shape_cast %248 : vector<1x1x4x32xf32> to vector<4x32xf32>
    %250 = vector.broadcast %7 : vector<1x32xf32> to vector<4x32xf32>
    %251 = arith.addf %228, %250 : vector<4x32xf32>
    %252 = arith.mulf %237, %251 : vector<4x32xf32>
    %253 = arith.addf %249, %252 : vector<4x32xf32>
    %254 = math.tanh %253 : vector<4x32xf32>
    %255 = arith.subf %221, %254 : vector<4x32xf32>
    %256 = arith.mulf %246, %255 : vector<4x32xf32>
    %257 = arith.addf %254, %256 : vector<4x32xf32>
    %c0_130 = arith.constant 0 : index
    %258 = arith.index_cast %c6_i32 : i32 to index
    %c0_131 = arith.constant 0 : index
    %c0_132 = arith.constant 0 : index
    %259 = vector.load %arg7[%c0_130, %258, %c0_131, %c0_132] : memref<1x8x4x32xf32, #tpu.memory_space<vmem>>, vector<1x1x4x32xf32>
    %260 = vector.shape_cast %259 : vector<1x1x4x32xf32> to vector<4x32xf32>
    %261 = vector.shape_cast %257 : vector<4x32xf32> to vector<1x1x4x32xf32>
    tpu.vector_store %arg7[%c0_130, %258, %c0_131, %c0_132], %261 {strides = array<i32>} : memref<1x8x4x32xf32, #tpu.memory_space<vmem>>, vector<1x1x4x32xf32>,
    %c7_i32 = arith.constant 7 : i32
    %cst_133 = arith.constant dense<0.000000e+00> : vector<4x32xf32>
    %262 = tpu.matmul %257, %1, %cst_133 {dimension_numbers = #tpu.dot_dimension_numbers<[1], [0], [0], [1], [0, 0, 1, 1], [], []>} : vector<4x32xf32>, vector<32x32xf32>, vector<4x32xf32> -> vector<4x32xf32>
    %cst_134 = arith.constant dense<0.000000e+00> : vector<4x32xf32>
    %263 = tpu.matmul %257, %3, %cst_134 {dimension_numbers = #tpu.dot_dimension_numbers<[1], [0], [0], [1], [0, 0, 1, 1], [], []>} : vector<4x32xf32>, vector<32x32xf32>, vector<4x32xf32> -> vector<4x32xf32>
    %cst_135 = arith.constant dense<0.000000e+00> : vector<4x32xf32>
    %264 = tpu.matmul %257, %5, %cst_135 {dimension_numbers = #tpu.dot_dimension_numbers<[1], [0], [0], [1], [0, 0, 1, 1], [], []>} : vector<4x32xf32>, vector<32x32xf32>, vector<4x32xf32> -> vector<4x32xf32>
    %c0_136 = arith.constant 0 : index
    %265 = arith.index_cast %c7_i32 : i32 to index
    %c0_137 = arith.constant 0 : index
    %c0_138 = arith.constant 0 : index
    %266 = vector.load %arg1[%c0_136, %265, %c0_137, %c0_138] : memref<1x8x4x32xf32, #tpu.memory_space<vmem>>, vector<1x1x4x32xf32>
    %267 = vector.shape_cast %266 : vector<1x1x4x32xf32> to vector<4x32xf32>
    %268 = arith.addf %267, %262 : vector<4x32xf32>
    %269 = arith.negf %268 : vector<4x32xf32>
    %270 = math.exp %269 : vector<4x32xf32>
    %cst_139 = arith.constant 1.000000e+00 : f32
    %271 = vector.broadcast %cst_139 : f32 to vector<4x32xf32>
    %272 = arith.addf %271, %270 : vector<4x32xf32>
    %273 = arith.divf %271, %272 : vector<4x32xf32>
    %c0_140 = arith.constant 0 : index
    %274 = arith.index_cast %c7_i32 : i32 to index
    %c0_141 = arith.constant 0 : index
    %c0_142 = arith.constant 0 : index
    %275 = vector.load %arg2[%c0_140, %274, %c0_141, %c0_142] : memref<1x8x4x32xf32, #tpu.memory_space<vmem>>, vector<1x1x4x32xf32>
    %276 = vector.shape_cast %275 : vector<1x1x4x32xf32> to vector<4x32xf32>
    %277 = arith.addf %276, %263 : vector<4x32xf32>
    %278 = arith.negf %277 : vector<4x32xf32>
    %279 = math.exp %278 : vector<4x32xf32>
    %cst_143 = arith.constant 1.000000e+00 : f32
    %280 = vector.broadcast %cst_143 : f32 to vector<4x32xf32>
    %281 = arith.addf %280, %279 : vector<4x32xf32>
    %282 = arith.divf %280, %281 : vector<4x32xf32>
    %c0_144 = arith.constant 0 : index
    %283 = arith.index_cast %c7_i32 : i32 to index
    %c0_145 = arith.constant 0 : index
    %c0_146 = arith.constant 0 : index
    %284 = vector.load %arg3[%c0_144, %283, %c0_145, %c0_146] : memref<1x8x4x32xf32, #tpu.memory_space<vmem>>, vector<1x1x4x32xf32>
    %285 = vector.shape_cast %284 : vector<1x1x4x32xf32> to vector<4x32xf32>
    %286 = vector.broadcast %7 : vector<1x32xf32> to vector<4x32xf32>
    %287 = arith.addf %264, %286 : vector<4x32xf32>
    %288 = arith.mulf %273, %287 : vector<4x32xf32>
    %289 = arith.addf %285, %288 : vector<4x32xf32>
    %290 = math.tanh %289 : vector<4x32xf32>
    %291 = arith.subf %257, %290 : vector<4x32xf32>
    %292 = arith.mulf %282, %291 : vector<4x32xf32>
    %293 = arith.addf %290, %292 : vector<4x32xf32>
    %c0_147 = arith.constant 0 : index
    %294 = arith.index_cast %c7_i32 : i32 to index
    %c0_148 = arith.constant 0 : index
    %c0_149 = arith.constant 0 : index
    %295 = vector.load %arg7[%c0_147, %294, %c0_148, %c0_149] : memref<1x8x4x32xf32, #tpu.memory_space<vmem>>, vector<1x1x4x32xf32>
    %296 = vector.shape_cast %295 : vector<1x1x4x32xf32> to vector<4x32xf32>
    %297 = vector.shape_cast %293 : vector<4x32xf32> to vector<1x1x4x32xf32>
    tpu.vector_store %arg7[%c0_147, %294, %c0_148, %c0_149], %297 {strides = array<i32>} : memref<1x8x4x32xf32, #tpu.memory_space<vmem>>, vector<1x1x4x32xf32>,
    %c8_i32 = arith.constant 8 : i32
    return
  }
  func.func @transform_0(%arg0: i32) -> (i32, i32, i32, i32) {
    %c0_i32 = arith.constant 0 : i32
    %c0_i32_0 = arith.constant 0 : i32
    %c0_i32_1 = arith.constant 0 : i32
    %c0_i32_2 = arith.constant 0 : i32
    return %arg0, %c0_i32, %c0_i32_0, %c0_i32_1 : i32, i32, i32, i32
  }
  func.func @transform_1(%arg0: i32) -> (i32, i32, i32, i32) {
    %c0_i32 = arith.constant 0 : i32
    %c0_i32_0 = arith.constant 0 : i32
    %c0_i32_1 = arith.constant 0 : i32
    %c0_i32_2 = arith.constant 0 : i32
    return %arg0, %c0_i32, %c0_i32_0, %c0_i32_1 : i32, i32, i32, i32
  }
  func.func @transform_2(%arg0: i32) -> (i32, i32, i32, i32) {
    %c0_i32 = arith.constant 0 : i32
    %c0_i32_0 = arith.constant 0 : i32
    %c0_i32_1 = arith.constant 0 : i32
    %c0_i32_2 = arith.constant 0 : i32
    return %arg0, %c0_i32, %c0_i32_0, %c0_i32_1 : i32, i32, i32, i32
  }
  func.func @transform_3(%arg0: i32) -> (i32, i32, i32, i32) {
    %c0_i32 = arith.constant 0 : i32
    %c0_i32_0 = arith.constant 0 : i32
    %c0_i32_1 = arith.constant 0 : i32
    %c0_i32_2 = arith.constant 0 : i32
    return %arg0, %c0_i32, %c0_i32_0, %c0_i32_1 : i32, i32, i32, i32
  }
  func.func @transform_4(%arg0: i32) -> (i32, i32, i32) {
    %c0_i32 = arith.constant 0 : i32
    %c0_i32_0 = arith.constant 0 : i32
    %c0_i32_1 = arith.constant 0 : i32
    return %arg0, %c0_i32, %c0_i32_0 : i32, i32, i32
  }
  func.func @transform_5(%arg0: i32) -> (i32, i32, i32) {
    %c0_i32 = arith.constant 0 : i32
    %c0_i32_0 = arith.constant 0 : i32
    %c0_i32_1 = arith.constant 0 : i32
    return %arg0, %c0_i32, %c0_i32_0 : i32, i32, i32
  }
  func.func @transform_6(%arg0: i32) -> (i32, i32, i32, i32) {
    %c0_i32 = arith.constant 0 : i32
    %c0_i32_0 = arith.constant 0 : i32
    %c0_i32_1 = arith.constant 0 : i32
    %c0_i32_2 = arith.constant 0 : i32
    return %arg0, %c0_i32, %c0_i32_0, %c0_i32_1 : i32, i32, i32, i32
  }
}

module attributes {stable_mosaic.version = 11 : i64} {
  func.func @_dec_epilogue_kernel(%arg0: memref<4x8x32xf32, #tpu.memory_space<vmem>>, %arg1: memref<4x10x64xf32, #tpu.memory_space<vmem>>, %arg2: memref<64x32xf32, #tpu.memory_space<vmem>>, %arg3: memref<1x32xf32, #tpu.memory_space<vmem>>, %arg4: memref<32x60xf32, #tpu.memory_space<vmem>>, %arg5: memref<32x60xf32, #tpu.memory_space<vmem>>, %arg6: memref<1x60xf32, #tpu.memory_space<vmem>>, %arg7: memref<4x8x60xf32, #tpu.memory_space<vmem>>) attributes {dimension_semantics = [], scalar_prefetch = 0 : i64, scratch_operands = 0 : i64, tpu.core_type = #tpu.core_type<tc>} {
    %c0 = arith.constant 0 : index
    %c0_0 = arith.constant 0 : index
    %0 = vector.load %arg2[%c0, %c0_0] : memref<64x32xf32, #tpu.memory_space<vmem>>, vector<64x32xf32>
    %c0_1 = arith.constant 0 : index
    %c0_2 = arith.constant 0 : index
    %1 = vector.load %arg3[%c0_1, %c0_2] : memref<1x32xf32, #tpu.memory_space<vmem>>, vector<1x32xf32>
    %c0_3 = arith.constant 0 : index
    %c0_4 = arith.constant 0 : index
    %2 = vector.load %arg4[%c0_3, %c0_4] : memref<32x60xf32, #tpu.memory_space<vmem>>, vector<32x60xf32>
    %c0_5 = arith.constant 0 : index
    %c0_6 = arith.constant 0 : index
    %3 = vector.load %arg5[%c0_5, %c0_6] : memref<32x60xf32, #tpu.memory_space<vmem>>, vector<32x60xf32>
    %c0_7 = arith.constant 0 : index
    %c0_8 = arith.constant 0 : index
    %4 = vector.load %arg6[%c0_7, %c0_8] : memref<1x60xf32, #tpu.memory_space<vmem>>, vector<1x60xf32>
    %c0_9 = arith.constant 0 : index
    %c0_10 = arith.constant 0 : index
    %c0_11 = arith.constant 0 : index
    %5 = vector.load %arg0[%c0_9, %c0_10, %c0_11] : memref<4x8x32xf32, #tpu.memory_space<vmem>>, vector<1x8x32xf32>
    %6 = vector.shape_cast %5 : vector<1x8x32xf32> to vector<8x32xf32>
    %c0_12 = arith.constant 0 : index
    %c0_13 = arith.constant 0 : index
    %c0_14 = arith.constant 0 : index
    %7 = vector.load %arg1[%c0_12, %c0_13, %c0_14] : memref<4x10x64xf32, #tpu.memory_space<vmem>>, vector<1x10x64xf32>
    %8 = vector.shape_cast %7 : vector<1x10x64xf32> to vector<10x64xf32>
    %cst = arith.constant dense<0.000000e+00> : vector<10x32xf32>
    %9 = tpu.matmul %8, %0, %cst {dimension_numbers = #tpu.dot_dimension_numbers<[1], [0], [0], [1], [0, 0, 1, 1], [], []>} : vector<10x64xf32>, vector<64x32xf32>, vector<10x32xf32> -> vector<10x32xf32>
    %10 = vector.broadcast %1 : vector<1x32xf32> to vector<10x32xf32>
    %11 = arith.addf %9, %10 : vector<10x32xf32>
    %cst_15 = arith.constant dense<0.000000e+00> : vector<8x10xf32>
    %12 = tpu.matmul %6, %11, %cst_15 {dimension_numbers = #tpu.dot_dimension_numbers<[1], [1], [0], [0], [0, 0, 1, 0], [], []>} : vector<8x32xf32>, vector<10x32xf32>, vector<8x10xf32> -> vector<8x10xf32>
    %cst_16 = arith.constant dense<0.000000e+00> : vector<8x32xf32>
    %13 = tpu.matmul %12, %11, %cst_16 {dimension_numbers = #tpu.dot_dimension_numbers<[1], [0], [0], [1], [0, 0, 1, 1], [], []>} : vector<8x10xf32>, vector<10x32xf32>, vector<8x32xf32> -> vector<8x32xf32>
    %cst_17 = arith.constant dense<0.000000e+00> : vector<8x60xf32>
    %14 = tpu.matmul %6, %2, %cst_17 {dimension_numbers = #tpu.dot_dimension_numbers<[1], [0], [0], [1], [0, 0, 1, 1], [], []>} : vector<8x32xf32>, vector<32x60xf32>, vector<8x60xf32> -> vector<8x60xf32>
    %cst_18 = arith.constant dense<0.000000e+00> : vector<8x60xf32>
    %15 = tpu.matmul %13, %3, %cst_18 {dimension_numbers = #tpu.dot_dimension_numbers<[1], [0], [0], [1], [0, 0, 1, 1], [], []>} : vector<8x32xf32>, vector<32x60xf32>, vector<8x60xf32> -> vector<8x60xf32>
    %16 = arith.addf %14, %15 : vector<8x60xf32>
    %17 = vector.broadcast %4 : vector<1x60xf32> to vector<8x60xf32>
    %18 = arith.addf %16, %17 : vector<8x60xf32>
    %c0_19 = arith.constant 0 : index
    %c0_20 = arith.constant 0 : index
    %c0_21 = arith.constant 0 : index
    %19 = vector.load %arg7[%c0_19, %c0_20, %c0_21] : memref<4x8x60xf32, #tpu.memory_space<vmem>>, vector<1x8x60xf32>
    %20 = vector.shape_cast %19 : vector<1x8x60xf32> to vector<8x60xf32>
    %21 = vector.shape_cast %18 : vector<8x60xf32> to vector<1x8x60xf32>
    tpu.vector_store %arg7[%c0_19, %c0_20, %c0_21], %21 {strides = array<i32>} : memref<4x8x60xf32, #tpu.memory_space<vmem>>, vector<1x8x60xf32>,
    %c1 = arith.constant 1 : index
    %c0_22 = arith.constant 0 : index
    %c0_23 = arith.constant 0 : index
    %22 = vector.load %arg0[%c1, %c0_22, %c0_23] : memref<4x8x32xf32, #tpu.memory_space<vmem>>, vector<1x8x32xf32>
    %23 = vector.shape_cast %22 : vector<1x8x32xf32> to vector<8x32xf32>
    %c1_24 = arith.constant 1 : index
    %c0_25 = arith.constant 0 : index
    %c0_26 = arith.constant 0 : index
    %24 = vector.load %arg1[%c1_24, %c0_25, %c0_26] : memref<4x10x64xf32, #tpu.memory_space<vmem>>, vector<1x10x64xf32>
    %25 = vector.shape_cast %24 : vector<1x10x64xf32> to vector<10x64xf32>
    %cst_27 = arith.constant dense<0.000000e+00> : vector<10x32xf32>
    %26 = tpu.matmul %25, %0, %cst_27 {dimension_numbers = #tpu.dot_dimension_numbers<[1], [0], [0], [1], [0, 0, 1, 1], [], []>} : vector<10x64xf32>, vector<64x32xf32>, vector<10x32xf32> -> vector<10x32xf32>
    %27 = vector.broadcast %1 : vector<1x32xf32> to vector<10x32xf32>
    %28 = arith.addf %26, %27 : vector<10x32xf32>
    %cst_28 = arith.constant dense<0.000000e+00> : vector<8x10xf32>
    %29 = tpu.matmul %23, %28, %cst_28 {dimension_numbers = #tpu.dot_dimension_numbers<[1], [1], [0], [0], [0, 0, 1, 0], [], []>} : vector<8x32xf32>, vector<10x32xf32>, vector<8x10xf32> -> vector<8x10xf32>
    %cst_29 = arith.constant dense<0.000000e+00> : vector<8x32xf32>
    %30 = tpu.matmul %29, %28, %cst_29 {dimension_numbers = #tpu.dot_dimension_numbers<[1], [0], [0], [1], [0, 0, 1, 1], [], []>} : vector<8x10xf32>, vector<10x32xf32>, vector<8x32xf32> -> vector<8x32xf32>
    %cst_30 = arith.constant dense<0.000000e+00> : vector<8x60xf32>
    %31 = tpu.matmul %23, %2, %cst_30 {dimension_numbers = #tpu.dot_dimension_numbers<[1], [0], [0], [1], [0, 0, 1, 1], [], []>} : vector<8x32xf32>, vector<32x60xf32>, vector<8x60xf32> -> vector<8x60xf32>
    %cst_31 = arith.constant dense<0.000000e+00> : vector<8x60xf32>
    %32 = tpu.matmul %30, %3, %cst_31 {dimension_numbers = #tpu.dot_dimension_numbers<[1], [0], [0], [1], [0, 0, 1, 1], [], []>} : vector<8x32xf32>, vector<32x60xf32>, vector<8x60xf32> -> vector<8x60xf32>
    %33 = arith.addf %31, %32 : vector<8x60xf32>
    %34 = vector.broadcast %4 : vector<1x60xf32> to vector<8x60xf32>
    %35 = arith.addf %33, %34 : vector<8x60xf32>
    %c1_32 = arith.constant 1 : index
    %c0_33 = arith.constant 0 : index
    %c0_34 = arith.constant 0 : index
    %36 = vector.load %arg7[%c1_32, %c0_33, %c0_34] : memref<4x8x60xf32, #tpu.memory_space<vmem>>, vector<1x8x60xf32>
    %37 = vector.shape_cast %36 : vector<1x8x60xf32> to vector<8x60xf32>
    %38 = vector.shape_cast %35 : vector<8x60xf32> to vector<1x8x60xf32>
    tpu.vector_store %arg7[%c1_32, %c0_33, %c0_34], %38 {strides = array<i32>} : memref<4x8x60xf32, #tpu.memory_space<vmem>>, vector<1x8x60xf32>,
    %c2 = arith.constant 2 : index
    %c0_35 = arith.constant 0 : index
    %c0_36 = arith.constant 0 : index
    %39 = vector.load %arg0[%c2, %c0_35, %c0_36] : memref<4x8x32xf32, #tpu.memory_space<vmem>>, vector<1x8x32xf32>
    %40 = vector.shape_cast %39 : vector<1x8x32xf32> to vector<8x32xf32>
    %c2_37 = arith.constant 2 : index
    %c0_38 = arith.constant 0 : index
    %c0_39 = arith.constant 0 : index
    %41 = vector.load %arg1[%c2_37, %c0_38, %c0_39] : memref<4x10x64xf32, #tpu.memory_space<vmem>>, vector<1x10x64xf32>
    %42 = vector.shape_cast %41 : vector<1x10x64xf32> to vector<10x64xf32>
    %cst_40 = arith.constant dense<0.000000e+00> : vector<10x32xf32>
    %43 = tpu.matmul %42, %0, %cst_40 {dimension_numbers = #tpu.dot_dimension_numbers<[1], [0], [0], [1], [0, 0, 1, 1], [], []>} : vector<10x64xf32>, vector<64x32xf32>, vector<10x32xf32> -> vector<10x32xf32>
    %44 = vector.broadcast %1 : vector<1x32xf32> to vector<10x32xf32>
    %45 = arith.addf %43, %44 : vector<10x32xf32>
    %cst_41 = arith.constant dense<0.000000e+00> : vector<8x10xf32>
    %46 = tpu.matmul %40, %45, %cst_41 {dimension_numbers = #tpu.dot_dimension_numbers<[1], [1], [0], [0], [0, 0, 1, 0], [], []>} : vector<8x32xf32>, vector<10x32xf32>, vector<8x10xf32> -> vector<8x10xf32>
    %cst_42 = arith.constant dense<0.000000e+00> : vector<8x32xf32>
    %47 = tpu.matmul %46, %45, %cst_42 {dimension_numbers = #tpu.dot_dimension_numbers<[1], [0], [0], [1], [0, 0, 1, 1], [], []>} : vector<8x10xf32>, vector<10x32xf32>, vector<8x32xf32> -> vector<8x32xf32>
    %cst_43 = arith.constant dense<0.000000e+00> : vector<8x60xf32>
    %48 = tpu.matmul %40, %2, %cst_43 {dimension_numbers = #tpu.dot_dimension_numbers<[1], [0], [0], [1], [0, 0, 1, 1], [], []>} : vector<8x32xf32>, vector<32x60xf32>, vector<8x60xf32> -> vector<8x60xf32>
    %cst_44 = arith.constant dense<0.000000e+00> : vector<8x60xf32>
    %49 = tpu.matmul %47, %3, %cst_44 {dimension_numbers = #tpu.dot_dimension_numbers<[1], [0], [0], [1], [0, 0, 1, 1], [], []>} : vector<8x32xf32>, vector<32x60xf32>, vector<8x60xf32> -> vector<8x60xf32>
    %50 = arith.addf %48, %49 : vector<8x60xf32>
    %51 = vector.broadcast %4 : vector<1x60xf32> to vector<8x60xf32>
    %52 = arith.addf %50, %51 : vector<8x60xf32>
    %c2_45 = arith.constant 2 : index
    %c0_46 = arith.constant 0 : index
    %c0_47 = arith.constant 0 : index
    %53 = vector.load %arg7[%c2_45, %c0_46, %c0_47] : memref<4x8x60xf32, #tpu.memory_space<vmem>>, vector<1x8x60xf32>
    %54 = vector.shape_cast %53 : vector<1x8x60xf32> to vector<8x60xf32>
    %55 = vector.shape_cast %52 : vector<8x60xf32> to vector<1x8x60xf32>
    tpu.vector_store %arg7[%c2_45, %c0_46, %c0_47], %55 {strides = array<i32>} : memref<4x8x60xf32, #tpu.memory_space<vmem>>, vector<1x8x60xf32>,
    %c3 = arith.constant 3 : index
    %c0_48 = arith.constant 0 : index
    %c0_49 = arith.constant 0 : index
    %56 = vector.load %arg0[%c3, %c0_48, %c0_49] : memref<4x8x32xf32, #tpu.memory_space<vmem>>, vector<1x8x32xf32>
    %57 = vector.shape_cast %56 : vector<1x8x32xf32> to vector<8x32xf32>
    %c3_50 = arith.constant 3 : index
    %c0_51 = arith.constant 0 : index
    %c0_52 = arith.constant 0 : index
    %58 = vector.load %arg1[%c3_50, %c0_51, %c0_52] : memref<4x10x64xf32, #tpu.memory_space<vmem>>, vector<1x10x64xf32>
    %59 = vector.shape_cast %58 : vector<1x10x64xf32> to vector<10x64xf32>
    %cst_53 = arith.constant dense<0.000000e+00> : vector<10x32xf32>
    %60 = tpu.matmul %59, %0, %cst_53 {dimension_numbers = #tpu.dot_dimension_numbers<[1], [0], [0], [1], [0, 0, 1, 1], [], []>} : vector<10x64xf32>, vector<64x32xf32>, vector<10x32xf32> -> vector<10x32xf32>
    %61 = vector.broadcast %1 : vector<1x32xf32> to vector<10x32xf32>
    %62 = arith.addf %60, %61 : vector<10x32xf32>
    %cst_54 = arith.constant dense<0.000000e+00> : vector<8x10xf32>
    %63 = tpu.matmul %57, %62, %cst_54 {dimension_numbers = #tpu.dot_dimension_numbers<[1], [1], [0], [0], [0, 0, 1, 0], [], []>} : vector<8x32xf32>, vector<10x32xf32>, vector<8x10xf32> -> vector<8x10xf32>
    %cst_55 = arith.constant dense<0.000000e+00> : vector<8x32xf32>
    %64 = tpu.matmul %63, %62, %cst_55 {dimension_numbers = #tpu.dot_dimension_numbers<[1], [0], [0], [1], [0, 0, 1, 1], [], []>} : vector<8x10xf32>, vector<10x32xf32>, vector<8x32xf32> -> vector<8x32xf32>
    %cst_56 = arith.constant dense<0.000000e+00> : vector<8x60xf32>
    %65 = tpu.matmul %57, %2, %cst_56 {dimension_numbers = #tpu.dot_dimension_numbers<[1], [0], [0], [1], [0, 0, 1, 1], [], []>} : vector<8x32xf32>, vector<32x60xf32>, vector<8x60xf32> -> vector<8x60xf32>
    %cst_57 = arith.constant dense<0.000000e+00> : vector<8x60xf32>
    %66 = tpu.matmul %64, %3, %cst_57 {dimension_numbers = #tpu.dot_dimension_numbers<[1], [0], [0], [1], [0, 0, 1, 1], [], []>} : vector<8x32xf32>, vector<32x60xf32>, vector<8x60xf32> -> vector<8x60xf32>
    %67 = arith.addf %65, %66 : vector<8x60xf32>
    %68 = vector.broadcast %4 : vector<1x60xf32> to vector<8x60xf32>
    %69 = arith.addf %67, %68 : vector<8x60xf32>
    %c3_58 = arith.constant 3 : index
    %c0_59 = arith.constant 0 : index
    %c0_60 = arith.constant 0 : index
    %70 = vector.load %arg7[%c3_58, %c0_59, %c0_60] : memref<4x8x60xf32, #tpu.memory_space<vmem>>, vector<1x8x60xf32>
    %71 = vector.shape_cast %70 : vector<1x8x60xf32> to vector<8x60xf32>
    %72 = vector.shape_cast %69 : vector<8x60xf32> to vector<1x8x60xf32>
    tpu.vector_store %arg7[%c3_58, %c0_59, %c0_60], %72 {strides = array<i32>} : memref<4x8x60xf32, #tpu.memory_space<vmem>>, vector<1x8x60xf32>,
    return
  }
}

</mosaic_0001>

<llo_original>
// kernel: only_gru_forward.9
$region0: #{only_gru_forward.9}
  #allocation0 [shape = 'u32[]', space=smem, size = 0x4, offset = 0x4, fixed_abs, tag = 'smem constant byte address 0x4 - core index']
  #allocation1 [shape = 'u32[144,128]{1,0:T(1,128)}', space=vmem, size = 0x12000, scoped, tag = 'internal scratch']
  %s0 = inlined_call_operand.vmem [shape: f32[4,8,32], index: 0, kind: input, shape index: {}]
  %s1 = inlined_call_operand.vmem [shape: f32[4,10,64], index: 1, kind: input, shape index: {}]
  %s2 = inlined_call_operand.vmem [shape: f32[64,32], index: 2, kind: input, shape index: {}]
  %s3 = inlined_call_operand.vmem [shape: f32[1,32], index: 3, kind: input, shape index: {}]
  %s4 = inlined_call_operand.vmem [shape: f32[32,60], index: 4, kind: input, shape index: {}]
  %s5 = inlined_call_operand.vmem [shape: f32[32,60], index: 5, kind: input, shape index: {}]
  %s6 = inlined_call_operand.vmem [shape: f32[1,60], index: 6, kind: input, shape index: {}]
  %s7 = inlined_call_operand.vmem [shape: f32[4,8,60], index: 7, kind: output, shape index: {}]
  %s8 = sld [smem:[#allocation0]]
  $region38: #{only_gru_forward.9} parent=0
    _
  %s10 = ssub.s32 1, %s8
  %s11 = scalar_select 0, %s10, %s8
  // Predicated region
  $region2: #{only_gru_forward.9} parent=0 // pred_check
    _
  $region3: #{only_gru_forward.9} parent=0 // pred_check_branch
    %13 = sbr.rel (0) target = $region5
  $region4: #{only_gru_forward.9} parent=0 // pred_region
    _
  $region5: #{only_gru_forward.9} parent=0 // pred_fallthru
    _
  // Predicated region
  $region6: #{only_gru_forward.9} parent=0 // pred_check
    _
  $region7: #{only_gru_forward.9} parent=0 // pred_check_branch
    %15 = sbr.rel (0) target = $region9
  $region8: #{only_gru_forward.9} parent=0 // pred_region
    _
  $region9: #{only_gru_forward.9} parent=0 // pred_fallthru
    _
  // Predicated region
  $region10: #{only_gru_forward.9} parent=0 // pred_check
    _
  $region11: #{only_gru_forward.9} parent=0 // pred_check_branch
    %17 = sbr.rel (0) target = $region13
  $region12: #{only_gru_forward.9} parent=0 // pred_region
    _
  $region13: #{only_gru_forward.9} parent=0 // pred_fallthru
    _
  // Predicated region
  $region14: #{only_gru_forward.9} parent=0 // pred_check
    _
  $region15: #{only_gru_forward.9} parent=0 // pred_check_branch
    %19 = sbr.rel (0) target = $region17
  $region16: #{only_gru_forward.9} parent=0 // pred_region
    _
  $region17: #{only_gru_forward.9} parent=0 // pred_fallthru
    _
  // Predicated region
  $region18: #{only_gru_forward.9} parent=0 // pred_check
    _
  $region19: #{only_gru_forward.9} parent=0 // pred_check_branch
    %21 = sbr.rel (0) target = $region21
  $region20: #{only_gru_forward.9} parent=0 // pred_region
    _
  $region21: #{only_gru_forward.9} parent=0 // pred_fallthru
    _
  // Predicated region
  $region22: #{only_gru_forward.9} parent=0 // pred_check
    _
  $region23: #{only_gru_forward.9} parent=0 // pred_check_branch
    %23 = sbr.rel (0) target = $region25
  $region24: #{only_gru_forward.9} parent=0 // pred_region
    _
  $region25: #{only_gru_forward.9} parent=0 // pred_fallthru
    _
  // Predicated region
  $region26: #{only_gru_forward.9} parent=0 // pred_check
    _
  $region27: #{only_gru_forward.9} parent=0 // pred_check_branch
    %25 = sbr.rel (0) target = $region29
  $region28: #{only_gru_forward.9} parent=0 // pred_region
    _
  $region29: #{only_gru_forward.9} parent=0 // pred_fallthru
    _
  %v26 = vld [vmem:[%s2] sm:$0xff]
  %v27 = vld [vmem:[%s2 + $0x8] sm:$0xff]
  %v28 = vld [vmem:[%s2 + $0x10] sm:$0xff]
  %v29 = vld [vmem:[%s2 + $0x18] sm:$0xff]
  %v30 = vld [vmem:[%s2 + $0x20] sm:$0xff]
  %v31 = vld [vmem:[%s2 + $0x28] sm:$0xff]
  %v32 = vld [vmem:[%s2 + $0x30] sm:$0xff]
  %v33 = vld [vmem:[%s2 + $0x38] sm:$0xff]
  %v34 = vld [vmem:[%s3] sm:$0x1]
  %v35 = vld [vmem:[%s4] sm:$0xff]
  %v36 = vld [vmem:[%s4 + $0x8] sm:$0xff]
  %v37 = vld [vmem:[%s4 + $0x10] sm:$0xff]
  %v38 = vld [vmem:[%s4 + $0x18] sm:$0xff]
  %v39 = vld [vmem:[%s5] sm:$0xff]
  %v40 = vld [vmem:[%s5 + $0x8] sm:$0xff]
  %v41 = vld [vmem:[%s5 + $0x10] sm:$0xff]
  %v42 = vld [vmem:[%s5 + $0x18] sm:$0xff]
  %v43 = vld [vmem:[%s6] sm:$0x1]
  %v44 = vld [vmem:[%s0] sm:$0xff]
  %v45 = vld [vmem:[%s1] sm:$0xff]
  %v46 = vld [vmem:[%s1 + $0x8] sm:$0x3]
  %v48 = vlaneseq
  %v49 = vshrl.u32 %v48, 7
  %v50 = vsub.s32 0, %v49
  %v51 = vrot.slane %v34, %v50
  %vm53 = vcmask 523264
  %v55 = vsel %vm53, %v45, 0
  %v58 = vsel %vm53, %v46, 0
  %60 = vmatprep.subr.mxu0 0.0
  %61 = vmatpush1.msra.mxu0 0.0
  %62 = vmatprep.subr.mxu0 0.0
  %63 = vmatpush1.msra.mxu0 0.0
  %64 = vmatprep.subr.mxu0 0.0
  %65 = vmatpush1.msra.mxu0 0.0
  %66 = vmatprep.subr.mxu0 0.0
  %67 = vmatpush1.msra.mxu0 0.0
  %68 = vmatprep.subr.mxu0 0.0
  %69 = vmatpush1.msra.mxu0 0.0
  %70 = vmatprep.subr.mxu0 0.0
  %71 = vmatpush1.msra.mxu0 0.0
  %72 = vmatprep.subr.mxu0 0.0
  %73 = vmatpush1.msra.mxu0 0.0
  %74 = vmatprep.subr.mxu0 0.0
  %75 = vmatpush1.msra.mxu0 0.0
  %76 = vmatprep.subr.mxu0 0.0
  %77 = vmatpush1.msra.mxu0 %v33
  %78 = vmatprep.subr.mxu0 0.0
  %79 = vmatpush1.msra.mxu0 %v32
  %80 = vmatprep.subr.mxu0 0.0
  %81 = vmatpush1.msra.mxu0 %v31
  %82 = vmatprep.subr.mxu0 0.0
  %83 = vmatpush1.msra.mxu0 %v30
  %84 = vmatprep.subr.mxu0 0.0
  %85 = vmatpush1.msra.mxu0 %v29
  %86 = vmatprep.subr.mxu0 0.0
  %87 = vmatpush1.msra.mxu0 %v28
  %88 = vmatprep.subr.mxu0 0.0
  %89 = vmatpush1.msra.mxu0 %v27
  %90 = vmatprep.subr.mxu0 0.0
  %91 = vmatpush1.msra.mxu0 %v26
  %92 = vmatprep.subr.mxu0 0.0
  %93 = vmatpush2.msra.mxu0 0.0
  %94 = vmatprep.subr.mxu0 0.0
  %95 = vmatpush2.msra.mxu0 0.0
  %96 = vmatprep.subr.mxu0 0.0
  %97 = vmatpush2.msra.mxu0 0.0
  %98 = vmatprep.subr.mxu0 0.0
  %99 = vmatpush2.msra.mxu0 0.0
  %100 = vmatprep.subr.mxu0 0.0
  %101 = vmatpush2.msra.mxu0 0.0
  %102 = vmatprep.subr.mxu0 0.0
  %103 = vmatpush2.msra.mxu0 0.0
  %104 = vmatprep.subr.mxu0 0.0
  %105 = vmatpush2.msra.mxu0 0.0
  %106 = vmatprep.subr.mxu0 0.0
  %107 = vmatpush2.msra.mxu0 0.0
  %108 = vmatprep.subr.mxu0 0.0
  %109 = vmatpush2.msra.mxu0 0.0
  %110 = vmatprep.subr.mxu0 0.0
  %111 = vmatpush2.msra.mxu0 0.0
  %112 = vmatprep.subr.mxu0 0.0
  %113 = vmatpush2.msra.mxu0 0.0
  %114 = vmatprep.subr.mxu0 0.0
  %115 = vmatpush2.msra.mxu0 0.0
  %116 = vmatprep.subr.mxu0 0.0
  %117 = vmatpush2.msra.mxu0 0.0
  %118 = vmatprep.subr.mxu0 0.0
  %119 = vmatpush2.msra.mxu0 0.0
  %120 = vmatprep.subr.mxu0 0.0
  %121 = vmatpush2.msra.mxu0 0.0
  %122 = vmatprep.subr.mxu0 0.0
  %123 = vmatpush2.msra.mxu0 0.0
  %124 = vmatprep.mubr.f32.mxu0 0.0
  %125 = vmatmul.mubr.f32.gmra.mxu0 %v55
  %v126 = vpop.f32.mrf.mxu0
  %v127 = vadd.f32 %v51, %v126
  %v128 = vpop.f32.mrf.mxu0
  %129 = vmatprep.mubr.f32.mxu0 0.0
  %130 = vmatmul.mubr.f32.gmra.mxu0 %v58
  %v131 = vpop.f32.mrf.mxu0
  %v132 = vadd.f32 %v51, %v131
  %v133 = vpop.f32.mrf.mxu0
  %134 = vdwg.mxu0
  %vm135 = vcmask 261120
  %v137 = vsel %vm135, %v44, 0
  %v140 = vsel %vm135, %v127, 0
  %v143 = vsel %vm135, %v132, 0
  %145 = vmatprep.subr.mxu0 0.0
  %146 = vmatpush1.xpose.msra.mxu0 0.0
  %147 = vmatprep.subr.mxu0 0.0
  %148 = vmatpush1.xpose.msra.mxu0 0.0
  %149 = vmatprep.subr.mxu0 0.0
  %150 = vmatpush1.xpose.msra.mxu0 0.0
  %151 = vmatprep.subr.mxu0 0.0
  %152 = vmatpush1.xpose.msra.mxu0 0.0
  %153 = vmatprep.subr.mxu0 0.0
  %154 = vmatpush1.xpose.msra.mxu0 0.0
  %155 = vmatprep.subr.mxu0 0.0
  %156 = vmatpush1.xpose.msra.mxu0 0.0
  %157 = vmatprep.subr.mxu0 0.0
  %158 = vmatpush1.xpose.msra.mxu0 0.0
  %159 = vmatprep.subr.mxu0 0.0
  %160 = vmatpush1.xpose.msra.mxu0 0.0
  %161 = vmatprep.subr.mxu0 0.0
  %162 = vmatpush1.xpose.msra.mxu0 0.0
  %163 = vmatprep.subr.mxu0 0.0
  %164 = vmatpush1.xpose.msra.mxu0 0.0
  %165 = vmatprep.subr.mxu0 0.0
  %166 = vmatpush1.xpose.msra.mxu0 0.0
  %167 = vmatprep.subr.mxu0 0.0
  %168 = vmatpush1.xpose.msra.mxu0 0.0
  %169 = vmatprep.subr.mxu0 0.0
  %170 = vmatpush1.xpose.msra.mxu0 0.0
  %171 = vmatprep.subr.mxu0 0.0
  %172 = vmatpush1.xpose.msra.mxu0 0.0
  %173 = vmatprep.subr.mxu0 0.0
  %174 = vmatpush1.xpose.msra.mxu0 %v143
  %175 = vmatprep.subr.mxu0 0.0
  %176 = vmatpush1.xpose.msra.mxu0 %v140
  %177 = vmatprep.subr.mxu0 0.0
  %178 = vmatpush2.xpose.msra.mxu0 0.0
  %179 = vmatprep.subr.mxu0 0.0
  %180 = vmatpush2.xpose.msra.mxu0 0.0
  %181 = vmatprep.subr.mxu0 0.0
  %182 = vmatpush2.xpose.msra.mxu0 0.0
  %183 = vmatprep.subr.mxu0 0.0
  %184 = vmatpush2.xpose.msra.mxu0 0.0
  %185 = vmatprep.subr.mxu0 0.0
  %186 = vmatpush2.xpose.msra.mxu0 0.0
  %187 = vmatprep.subr.mxu0 0.0
  %188 = vmatpush2.xpose.msra.mxu0 0.0
  %189 = vmatprep.subr.mxu0 0.0
  %190 = vmatpush2.xpose.msra.mxu0 0.0
  %191 = vmatprep.subr.mxu0 0.0
  %192 = vmatpush2.xpose.msra.mxu0 0.0
  %193 = vmatprep.subr.mxu0 0.0
  %194 = vmatpush2.xpose.msra.mxu0 0.0
  %195 = vmatprep.subr.mxu0 0.0
  %196 = vmatpush2.xpose.msra.mxu0 0.0
  %197 = vmatprep.subr.mxu0 0.0
  %198 = vmatpush2.xpose.msra.mxu0 0.0
  %199 = vmatprep.subr.mxu0 0.0
  %200 = vmatpush2.xpose.msra.mxu0 0.0
  %201 = vmatprep.subr.mxu0 0.0
  %202 = vmatpush2.xpose.msra.mxu0 0.0
  %203 = vmatprep.subr.mxu0 0.0
  %204 = vmatpush2.xpose.msra.mxu0 0.0
  %205 = vmatprep.subr.mxu0 0.0
  %206 = vmatpush2.xpose.msra.mxu0 0.0
  %207 = vmatprep.subr.mxu0 0.0
  %208 = vmatpush2.xpose.msra.mxu0 0.0
  %209 = vmatprep.mubr.f32.mxu0 0.0
  %210 = vmatmul.mubr.f32.gmra.mxu0 %v137
  %v211 = vpop.f32.mrf.mxu0
  %v212 = vadd.f32 0.0, %v211
  %v213 = vpop.f32.mrf.mxu0
  %214 = vdwg.mxu0
  %vm215 = vcmask 80896
  %v217 = vsel %vm215, %v212, 0
  %vm219 = vcmask 1041408
  %v220 = vsel %vm219, %v132, 0
  %222 = vmatprep.subr.mxu0 0.0
  %223 = vmatpush1.msra.mxu0 0.0
  %224 = vmatprep.subr.mxu0 0.0
  %225 = vmatpush1.msra.mxu0 0.0
  %226 = vmatprep.subr.mxu0 0.0
  %227 = vmatpush1.msra.mxu0 0.0
  %228 = vmatprep.subr.mxu0 0.0
  %229 = vmatpush1.msra.mxu0 0.0
  %230 = vmatprep.subr.mxu0 0.0
  %231 = vmatpush1.msra.mxu0 0.0
  %232 = vmatprep.subr.mxu0 0.0
  %233 = vmatpush1.msra.mxu0 0.0
  %234 = vmatprep.subr.mxu0 0.0
  %235 = vmatpush1.msra.mxu0 0.0
  %236 = vmatprep.subr.mxu0 0.0
  %237 = vmatpush1.msra.mxu0 0.0
  %238 = vmatprep.subr.mxu0 0.0
  %239 = vmatpush1.msra.mxu0 0.0
  %240 = vmatprep.subr.mxu0 0.0
  %241 = vmatpush1.msra.mxu0 0.0
  %242 = vmatprep.subr.mxu0 0.0
  %243 = vmatpush1.msra.mxu0 0.0
  %244 = vmatprep.subr.mxu0 0.0
  %245 = vmatpush1.msra.mxu0 0.0
  %246 = vmatprep.subr.mxu0 0.0
  %247 = vmatpush1.msra.mxu0 0.0
  %248 = vmatprep.subr.mxu0 0.0
  %249 = vmatpush1.msra.mxu0 0.0
  %250 = vmatprep.subr.mxu0 0.0
  %251 = vmatpush1.msra.mxu0 %v220
  %252 = vmatprep.subr.mxu0 0.0
  %253 = vmatpush1.msra.mxu0 %v127
  %254 = vmatprep.subr.mxu0 0.0
  %255 = vmatpush2.msra.mxu0 0.0
  %256 = vmatprep.subr.mxu0 0.0
  %257 = vmatpush2.msra.mxu0 0.0
  %258 = vmatprep.subr.mxu0 0.0
  %259 = vmatpush2.msra.mxu0 0.0
  %260 = vmatprep.subr.mxu0 0.0
  %261 = vmatpush2.msra.mxu0 0.0
  %262 = vmatprep.subr.mxu0 0.0
  %263 = vmatpush2.msra.mxu0 0.0
  %264 = vmatprep.subr.mxu0 0.0
  %265 = vmatpush2.msra.mxu0 0.0
  %266 = vmatprep.subr.mxu0 0.0
  %267 = vmatpush2.msra.mxu0 0.0
  %268 = vmatprep.subr.mxu0 0.0
  %269 = vmatpush2.msra.mxu0 0.0
  %270 = vmatprep.subr.mxu0 0.0
  %271 = vmatpush2.msra.mxu0 0.0
  %272 = vmatprep.subr.mxu0 0.0
  %273 = vmatpush2.msra.mxu0 0.0
  %274 = vmatprep.subr.mxu0 0.0
  %275 = vmatpush2.msra.mxu0 0.0
  %276 = vmatprep.subr.mxu0 0.0
  %277 = vmatpush2.msra.mxu0 0.0
  %278 = vmatprep.subr.mxu0 0.0
  %279 = vmatpush2.msra.mxu0 0.0
  %280 = vmatprep.subr.mxu0 0.0
  %281 = vmatpush2.msra.mxu0 0.0
  %282 = vmatprep.subr.mxu0 0.0
  %283 = vmatpush2.msra.mxu0 0.0
  %284 = vmatprep.subr.mxu0 0.0
  %285 = vmatpush2.msra.mxu0 0.0
  %286 = vmatprep.mubr.f32.mxu0 0.0
  %287 = vmatmul.mubr.f32.gmra.mxu0 %v217
  %v288 = vpop.f32.mrf.mxu0
  %v289 = vadd.f32 0.0, %v288
  %v290 = vpop.f32.mrf.mxu0
  %291 = vdwg.mxu0
  %v293 = vsel %vm135, %v289, 0
  %295 = vmatprep.subr.mxu0 0.0
  %296 = vmatpush1.msra.mxu0 0.0
  %297 = vmatprep.subr.mxu0 0.0
  %298 = vmatpush1.msra.mxu0 0.0
  %299 = vmatprep.subr.mxu0 0.0
  %300 = vmatpush1.msra.mxu0 0.0
  %301 = vmatprep.subr.mxu0 0.0
  %302 = vmatpush1.msra.mxu0 0.0
  %303 = vmatprep.subr.mxu0 0.0
  %304 = vmatpush1.msra.mxu0 0.0
  %305 = vmatprep.subr.mxu0 0.0
  %306 = vmatpush1.msra.mxu0 0.0
  %307 = vmatprep.subr.mxu0 0.0
  %308 = vmatpush1.msra.mxu0 0.0
  %309 = vmatprep.subr.mxu0 0.0
  %310 = vmatpush1.msra.mxu0 0.0
  %311 = vmatprep.subr.mxu0 0.0
  %312 = vmatpush1.msra.mxu0 0.0
  %313 = vmatprep.subr.mxu0 0.0
  %314 = vmatpush1.msra.mxu0 0.0
  %315 = vmatprep.subr.mxu0 0.0
  %316 = vmatpush1.msra.mxu0 0.0
  %317 = vmatprep.subr.mxu0 0.0
  %318 = vmatpush1.msra.mxu0 0.0
  %319 = vmatprep.subr.mxu0 0.0
  %320 = vmatpush1.msra.mxu0 %v42
  %321 = vmatprep.subr.mxu0 0.0
  %322 = vmatpush1.msra.mxu0 %v41
  %323 = vmatprep.subr.mxu0 0.0
  %324 = vmatpush1.msra.mxu0 %v40
  %325 = vmatprep.subr.mxu0 0.0
  %326 = vmatpush1.msra.mxu0 %v39
  %327 = vmatprep.subr.mxu0 0.0
  %328 = vmatpush2.msra.mxu0 0.0
  %329 = vmatprep.subr.mxu0 0.0
  %330 = vmatpush2.msra.mxu0 0.0
  %331 = vmatprep.subr.mxu0 0.0
  %332 = vmatpush2.msra.mxu0 0.0
  %333 = vmatprep.subr.mxu0 0.0
  %334 = vmatpush2.msra.mxu0 0.0
  %335 = vmatprep.subr.mxu0 0.0
  %336 = vmatpush2.msra.mxu0 0.0
  %337 = vmatprep.subr.mxu0 0.0
  %338 = vmatpush2.msra.mxu0 0.0
  %339 = vmatprep.subr.mxu0 0.0
  %340 = vmatpush2.msra.mxu0 0.0
  %341 = vmatprep.subr.mxu0 0.0
  %342 = vmatpush2.msra.mxu0 0.0
  %343 = vmatprep.subr.mxu0 0.0
  %344 = vmatpush2.msra.mxu0 0.0
  %345 = vmatprep.subr.mxu0 0.0
  %346 = vmatpush2.msra.mxu0 0.0
  %347 = vmatprep.subr.mxu0 0.0
  %348 = vmatpush2.msra.mxu0 0.0
  %349 = vmatprep.subr.mxu0 0.0
  %350 = vmatpush2.msra.mxu0 0.0
  %351 = vmatprep.subr.mxu0 0.0
  %352 = vmatpush2.msra.mxu0 0.0
  %353 = vmatprep.subr.mxu0 0.0
  %354 = vmatpush2.msra.mxu0 0.0
  %355 = vmatprep.subr.mxu0 0.0
  %356 = vmatpush2.msra.mxu0 0.0
  %357 = vmatprep.subr.mxu0 0.0
  %358 = vmatpush2.msra.mxu0 0.0
  %359 = vmatprep.mubr.f32.mxu0 0.0
  %360 = vmatmul.mubr.f32.gmra.mxu0 %v293
  %v361 = vpop.f32.mrf.mxu0
  %v362 = vadd.f32 0.0, %v361
  %v363 = vpop.f32.mrf.mxu0
  %364 = vdwg.mxu0
  %365 = vmatprep.subr.mxu0 0.0
  %366 = vmatpush1.msra.mxu0 0.0
  %367 = vmatprep.subr.mxu0 0.0
  %368 = vmatpush1.msra.mxu0 0.0
  %369 = vmatprep.subr.mxu0 0.0
  %370 = vmatpush1.msra.mxu0 0.0
  %371 = vmatprep.subr.mxu0 0.0
  %372 = vmatpush1.msra.mxu0 0.0
  %373 = vmatprep.subr.mxu0 0.0
  %374 = vmatpush1.msra.mxu0 0.0
  %375 = vmatprep.subr.mxu0 0.0
  %376 = vmatpush1.msra.mxu0 0.0
  %377 = vmatprep.subr.mxu0 0.0
  %378 = vmatpush1.msra.mxu0 0.0
  %379 = vmatprep.subr.mxu0 0.0
  %380 = vmatpush1.msra.mxu0 0.0
  %381 = vmatprep.subr.mxu0 0.0
  %382 = vmatpush1.msra.mxu0 0.0
  %383 = vmatprep.subr.mxu0 0.0
  %384 = vmatpush1.msra.mxu0 0.0
  %385 = vmatprep.subr.mxu0 0.0
  %386 = vmatpush1.msra.mxu0 0.0
  %387 = vmatprep.subr.mxu0 0.0
  %388 = vmatpush1.msra.mxu0 0.0
  %389 = vmatprep.subr.mxu0 0.0
  %390 = vmatpush1.msra.mxu0 %v38
  %391 = vmatprep.subr.mxu0 0.0
  %392 = vmatpush1.msra.mxu0 %v37
  %393 = vmatprep.subr.mxu0 0.0
  %394 = vmatpush1.msra.mxu0 %v36
  %395 = vmatprep.subr.mxu0 0.0
  %396 = vmatpush1.msra.mxu0 %v35
  %397 = vmatprep.subr.mxu0 0.0
  %398 = vmatpush2.msra.mxu0 0.0
  %399 = vmatprep.subr.mxu0 0.0
  %400 = vmatpush2.msra.mxu0 0.0
  %401 = vmatprep.subr.mxu0 0.0
  %402 = vmatpush2.msra.mxu0 0.0
  %403 = vmatprep.subr.mxu0 0.0
  %404 = vmatpush2.msra.mxu0 0.0
  %405 = vmatprep.subr.mxu0 0.0
  %406 = vmatpush2.msra.mxu0 0.0
  %407 = vmatprep.subr.mxu0 0.0
  %408 = vmatpush2.msra.mxu0 0.0
  %409 = vmatprep.subr.mxu0 0.0
  %410 = vmatpush2.msra.mxu0 0.0
  %411 = vmatprep.subr.mxu0 0.0
  %412 = vmatpush2.msra.mxu0 0.0
  %413 = vmatprep.subr.mxu0 0.0
  %414 = vmatpush2.msra.mxu0 0.0
  %415 = vmatprep.subr.mxu0 0.0
  %416 = vmatpush2.msra.mxu0 0.0
  %417 = vmatprep.subr.mxu0 0.0
  %418 = vmatpush2.msra.mxu0 0.0
  %419 = vmatprep.subr.mxu0 0.0
  %420 = vmatpush2.msra.mxu0 0.0
  %421 = vmatprep.subr.mxu0 0.0
  %422 = vmatpush2.msra.mxu0 0.0
  %423 = vmatprep.subr.mxu0 0.0
  %424 = vmatpush2.msra.mxu0 0.0
  %425 = vmatprep.subr.mxu0 0.0
  %426 = vmatpush2.msra.mxu0 0.0
  %427 = vmatprep.subr.mxu0 0.0
  %428 = vmatpush2.msra.mxu0 0.0
  %429 = vmatprep.mubr.f32.mxu0 0.0
  %430 = vmatmul.mubr.f32.gmra.mxu0 %v137
  %v431 = vpop.f32.mrf.mxu0
  %v432 = vadd.f32 %v362, %v431
  %v433 = vpop.f32.mrf.mxu0
  %434 = vdwg.mxu0
  %v436 = vlaneseq
  %v437 = vshrl.u32 %v436, 7
  %v438 = vsub.s32 0, %v437
  %v439 = vrot.slane %v43, %v438
  %v441 = vadd.f32 %v432, %v439
  %vm442 = vcmask 490496
  %443 = vst.msk [vmem:[%s7] sm:$0xff] %vm442, %v441
  %s444 = scalar_lea.vmem %s0, 8
  %v445 = vld [vmem:[%s444] sm:$0xff]
  %s446 = scalar_lea.vmem %s1, 16
  %v447 = vld [vmem:[%s446] sm:$0xff]
  %v448 = vld [vmem:[%s446 + $0x8] sm:$0x3]
  %v450 = vsel %vm53, %v447, 0
  %v453 = vsel %vm53, %v448, 0
  %455 = vmatprep.subr.mxu0 0.0
  %456 = vmatpush1.msra.mxu0 0.0
  %457 = vmatprep.subr.mxu0 0.0
  %458 = vmatpush1.msra.mxu0 0.0
  %459 = vmatprep.subr.mxu0 0.0
  %460 = vmatpush1.msra.mxu0 0.0
  %461 = vmatprep.subr.mxu0 0.0
  %462 = vmatpush1.msra.mxu0 0.0
  %463 = vmatprep.subr.mxu0 0.0
  %464 = vmatpush1.msra.mxu0 0.0
  %465 = vmatprep.subr.mxu0 0.0
  %466 = vmatpush1.msra.mxu0 0.0
  %467 = vmatprep.subr.mxu0 0.0
  %468 = vmatpush1.msra.mxu0 0.0
  %469 = vmatprep.subr.mxu0 0.0
  %470 = vmatpush1.msra.mxu0 0.0
  %471 = vmatprep.subr.mxu0 0.0
  %472 = vmatpush1.msra.mxu0 %v33
  %473 = vmatprep.subr.mxu0 0.0
  %474 = vmatpush1.msra.mxu0 %v32
  %475 = vmatprep.subr.mxu0 0.0
  %476 = vmatpush1.msra.mxu0 %v31
  %477 = vmatprep.subr.mxu0 0.0
  %478 = vmatpush1.msra.mxu0 %v30
  %479 = vmatprep.subr.mxu0 0.0
  %480 = vmatpush1.msra.mxu0 %v29
  %481 = vmatprep.subr.mxu0 0.0
  %482 = vmatpush1.msra.mxu0 %v28
  %483 = vmatprep.subr.mxu0 0.0
  %484 = vmatpush1.msra.mxu0 %v27
  %485 = vmatprep.subr.mxu0 0.0
  %486 = vmatpush1.msra.mxu0 %v26
  %487 = vmatprep.subr.mxu0 0.0
  %488 = vmatpush2.msra.mxu0 0.0
  %489 = vmatprep.subr.mxu0 0.0
  %490 = vmatpush2.msra.mxu0 0.0
  %491 = vmatprep.subr.mxu0 0.0
  %492 = vmatpush2.msra.mxu0 0.0
  %493 = vmatprep.subr.mxu0 0.0
  %494 = vmatpush2.msra.mxu0 0.0
  %495 = vmatprep.subr.mxu0 0.0
  %496 = vmatpush2.msra.mxu0 0.0
  %497 = vmatprep.subr.mxu0 0.0
  %498 = vmatpush2.msra.mxu0 0.0
  %499 = vmatprep.subr.mxu0 0.0
  %500 = vmatpush2.msra.mxu0 0.0
  %501 = vmatprep.subr.mxu0 0.0
  %502 = vmatpush2.msra.mxu0 0.0
  %503 = vmatprep.subr.mxu0 0.0
  %504 = vmatpush2.msra.mxu0 0.0
  %505 = vmatprep.subr.mxu0 0.0
  %506 = vmatpush2.msra.mxu0 0.0
  %507 = vmatprep.subr.mxu0 0.0
  %508 = vmatpush2.msra.mxu0 0.0
  %509 = vmatprep.subr.mxu0 0.0
  %510 = vmatpush2.msra.mxu0 0.0
  %511 = vmatprep.subr.mxu0 0.0
  %512 = vmatpush2.msra.mxu0 0.0
  %513 = vmatprep.subr.mxu0 0.0
  %514 = vmatpush2.msra.mxu0 0.0
  %515 = vmatprep.subr.mxu0 0.0
  %516 = vmatpush2.msra.mxu0 0.0
  %517 = vmatprep.subr.mxu0 0.0
  %518 = vmatpush2.msra.mxu0 0.0
  %519 = vmatprep.mubr.f32.mxu0 0.0
  %520 = vmatmul.mubr.f32.gmra.mxu0 %v450
  %v521 = vpop.f32.mrf.mxu0
  %v522 = vadd.f32 %v51, %v521
  %v523 = vpop.f32.mrf.mxu0
  %524 = vmatprep.mubr.f32.mxu0 0.0
  %525 = vmatmul.mubr.f32.gmra.mxu0 %v453
  %v526 = vpop.f32.mrf.mxu0
  %v527 = vadd.f32 %v51, %v526
  %v528 = vpop.f32.mrf.mxu0
  %529 = vdwg.mxu0
  %v531 = vsel %vm135, %v445, 0
  %v534 = vsel %vm135, %v522, 0
  %v537 = vsel %vm135, %v527, 0
  %539 = vmatprep.subr.mxu0 0.0
  %540 = vmatpush1.xpose.msra.mxu0 0.0
  %541 = vmatprep.subr.mxu0 0.0
  %542 = vmatpush1.xpose.msra.mxu0 0.0
  %543 = vmatprep.subr.mxu0 0.0
  %544 = vmatpush1.xpose.msra.mxu0 0.0
  %545 = vmatprep.subr.mxu0 0.0
  %546 = vmatpush1.xpose.msra.mxu0 0.0
  %547 = vmatprep.subr.mxu0 0.0
  %548 = vmatpush1.xpose.msra.mxu0 0.0
  %549 = vmatprep.subr.mxu0 0.0
  %550 = vmatpush1.xpose.msra.mxu0 0.0
  %551 = vmatprep.subr.mxu0 0.0
  %552 = vmatpush1.xpose.msra.mxu0 0.0
  %553 = vmatprep.subr.mxu0 0.0
  %554 = vmatpush1.xpose.msra.mxu0 0.0
  %555 = vmatprep.subr.mxu0 0.0
  %556 = vmatpush1.xpose.msra.mxu0 0.0
  %557 = vmatprep.subr.mxu0 0.0
  %558 = vmatpush1.xpose.msra.mxu0 0.0
  %559 = vmatprep.subr.mxu0 0.0
  %560 = vmatpush1.xpose.msra.mxu0 0.0
  %561 = vmatprep.subr.mxu0 0.0
  %562 = vmatpush1.xpose.msra.mxu0 0.0
  %563 = vmatprep.subr.mxu0 0.0
  %564 = vmatpush1.xpose.msra.mxu0 0.0
  %565 = vmatprep.subr.mxu0 0.0
  %566 = vmatpush1.xpose.msra.mxu0 0.0
  %567 = vmatprep.subr.mxu0 0.0
  %568 = vmatpush1.xpose.msra.mxu0 %v537
  %569 = vmatprep.subr.mxu0 0.0
  %570 = vmatpush1.xpose.msra.mxu0 %v534
  %571 = vmatprep.subr.mxu0 0.0
  %572 = vmatpush2.xpose.msra.mxu0 0.0
  %573 = vmatprep.subr.mxu0 0.0
  %574 = vmatpush2.xpose.msra.mxu0 0.0
  %575 = vmatprep.subr.mxu0 0.0
  %576 = vmatpush2.xpose.msra.mxu0 0.0
  %577 = vmatprep.subr.mxu0 0.0
  %578 = vmatpush2.xpose.msra.mxu0 0.0
  %579 = vmatprep.subr.mxu0 0.0
  %580 = vmatpush2.xpose.msra.mxu0 0.0
  %581 = vmatprep.subr.mxu0 0.0
  %582 = vmatpush2.xpose.msra.mxu0 0.0
  %583 = vmatprep.subr.mxu0 0.0
  %584 = vmatpush2.xpose.msra.mxu0 0.0
  %585 = vmatprep.subr.mxu0 0.0
  %586 = vmatpush2.xpose.msra.mxu0 0.0
  %587 = vmatprep.subr.mxu0 0.0
  %588 = vmatpush2.xpose.msra.mxu0 0.0
  %589 = vmatprep.subr.mxu0 0.0
  %590 = vmatpush2.xpose.msra.mxu0 0.0
  %591 = vmatprep.subr.mxu0 0.0
  %592 = vmatpush2.xpose.msra.mxu0 0.0
  %593 = vmatprep.subr.mxu0 0.0
  %594 = vmatpush2.xpose.msra.mxu0 0.0
  %595 = vmatprep.subr.mxu0 0.0
  %596 = vmatpush2.xpose.msra.mxu0 0.0
  %597 = vmatprep.subr.mxu0 0.0
  %598 = vmatpush2.xpose.msra.mxu0 0.0
  %599 = vmatprep.subr.mxu0 0.0
  %600 = vmatpush2.xpose.msra.mxu0 0.0
  %601 = vmatprep.subr.mxu0 0.0
  %602 = vmatpush2.xpose.msra.mxu0 0.0
  %603 = vmatprep.mubr.f32.mxu0 0.0
  %604 = vmatmul.mubr.f32.gmra.mxu0 %v531
  %v605 = vpop.f32.mrf.mxu0
  %v606 = vadd.f32 0.0, %v605
  %v607 = vpop.f32.mrf.mxu0
  %608 = vdwg.mxu0
  %v610 = vsel %vm215, %v606, 0
  %v612 = vsel %vm219, %v527, 0
  %614 = vmatprep.subr.mxu0 0.0
  %615 = vmatpush1.msra.mxu0 0.0
  %616 = vmatprep.subr.mxu0 0.0
  %617 = vmatpush1.msra.mxu0 0.0
  %618 = vmatprep.subr.mxu0 0.0
  %619 = vmatpush1.msra.mxu0 0.0
  %620 = vmatprep.subr.mxu0 0.0
  %621 = vmatpush1.msra.mxu0 0.0
  %622 = vmatprep.subr.mxu0 0.0
  %623 = vmatpush1.msra.mxu0 0.0
  %624 = vmatprep.subr.mxu0 0.0
  %625 = vmatpush1.msra.mxu0 0.0
  %626 = vmatprep.subr.mxu0 0.0
  %627 = vmatpush1.msra.mxu0 0.0
  %628 = vmatprep.subr.mxu0 0.0
  %629 = vmatpush1.msra.mxu0 0.0
  %630 = vmatprep.subr.mxu0 0.0
  %631 = vmatpush1.msra.mxu0 0.0
  %632 = vmatprep.subr.mxu0 0.0
  %633 = vmatpush1.msra.mxu0 0.0
  %634 = vmatprep.subr.mxu0 0.0
  %635 = vmatpush1.msra.mxu0 0.0
  %636 = vmatprep.subr.mxu0 0.0
  %637 = vmatpush1.msra.mxu0 0.0
  %638 = vmatprep.subr.mxu0 0.0
  %639 = vmatpush1.msra.mxu0 0.0
  %640 = vmatprep.subr.mxu0 0.0
  %641 = vmatpush1.msra.mxu0 0.0
  %642 = vmatprep.subr.mxu0 0.0
  %643 = vmatpush1.msra.mxu0 %v612
  %644 = vmatprep.subr.mxu0 0.0
  %645 = vmatpush1.msra.mxu0 %v522
  %646 = vmatprep.subr.mxu0 0.0
  %647 = vmatpush2.msra.mxu0 0.0
  %648 = vmatprep.subr.mxu0 0.0
  %649 = vmatpush2.msra.mxu0 0.0
  %650 = vmatprep.subr.mxu0 0.0
  %651 = vmatpush2.msra.mxu0 0.0
  %652 = vmatprep.subr.mxu0 0.0
  %653 = vmatpush2.msra.mxu0 0.0
  %654 = vmatprep.subr.mxu0 0.0
  %655 = vmatpush2.msra.mxu0 0.0
  %656 = vmatprep.subr.mxu0 0.0
  %657 = vmatpush2.msra.mxu0 0.0
  %658 = vmatprep.subr.mxu0 0.0
  %659 = vmatpush2.msra.mxu0 0.0
  %660 = vmatprep.subr.mxu0 0.0
  %661 = vmatpush2.msra.mxu0 0.0
  %662 = vmatprep.subr.mxu0 0.0
  %663 = vmatpush2.msra.mxu0 0.0
  %664 = vmatprep.subr.mxu0 0.0
  %665 = vmatpush2.msra.mxu0 0.0
  %666 = vmatprep.subr.mxu0 0.0
  %667 = vmatpush2.msra.mxu0 0.0
  %668 = vmatprep.subr.mxu0 0.0
  %669 = vmatpush2.msra.mxu0 0.0
  %670 = vmatprep.subr.mxu0 0.0
  %671 = vmatpush2.msra.mxu0 0.0
  %672 = vmatprep.subr.mxu0 0.0
  %673 = vmatpush2.msra.mxu0 0.0
  %674 = vmatprep.subr.mxu0 0.0
  %675 = vmatpush2.msra.mxu0 0.0
  %676 = vmatprep.subr.mxu0 0.0
  %677 = vmatpush2.msra.mxu0 0.0
  %678 = vmatprep.mubr.f32.mxu0 0.0
  %679 = vmatmul.mubr.f32.gmra.mxu0 %v610
  %v680 = vpop.f32.mrf.mxu0
  %v681 = vadd.f32 0.0, %v680
  %v682 = vpop.f32.mrf.mxu0
  %683 = vdwg.mxu0
  %v685 = vsel %vm135, %v681, 0
  %687 = vmatprep.subr.mxu0 0.0
  %688 = vmatpush1.msra.mxu0 0.0
  %689 = vmatprep.subr.mxu0 0.0
  %690 = vmatpush1.msra.mxu0 0.0
  %691 = vmatprep.subr.mxu0 0.0
  %692 = vmatpush1.msra.mxu0 0.0
  %693 = vmatprep.subr.mxu0 0.0
  %694 = vmatpush1.msra.mxu0 0.0
  %695 = vmatprep.subr.mxu0 0.0
  %696 = vmatpush1.msra.mxu0 0.0
  %697 = vmatprep.subr.mxu0 0.0
  %698 = vmatpush1.msra.mxu0 0.0
  %699 = vmatprep.subr.mxu0 0.0
  %700 = vmatpush1.msra.mxu0 0.0
  %701 = vmatprep.subr.mxu0 0.0
  %702 = vmatpush1.msra.mxu0 0.0
  %703 = vmatprep.subr.mxu0 0.0
  %704 = vmatpush1.msra.mxu0 0.0
  %705 = vmatprep.subr.mxu0 0.0
  %706 = vmatpush1.msra.mxu0 0.0
  %707 = vmatprep.subr.mxu0 0.0
  %708 = vmatpush1.msra.mxu0 0.0
  %709 = vmatprep.subr.mxu0 0.0
  %710 = vmatpush1.msra.mxu0 0.0
  %711 = vmatprep.subr.mxu0 0.0
  %712 = vmatpush1.msra.mxu0 %v42
  %713 = vmatprep.subr.mxu0 0.0
  %714 = vmatpush1.msra.mxu0 %v41
  %715 = vmatprep.subr.mxu0 0.0
  %716 = vmatpush1.msra.mxu0 %v40
  %717 = vmatprep.subr.mxu0 0.0
  %718 = vmatpush1.msra.mxu0 %v39
  %719 = vmatprep.subr.mxu0 0.0
  %720 = vmatpush2.msra.mxu0 0.0
  %721 = vmatprep.subr.mxu0 0.0
  %722 = vmatpush2.msra.mxu0 0.0
  %723 = vmatprep.subr.mxu0 0.0
  %724 = vmatpush2.msra.mxu0 0.0
  %725 = vmatprep.subr.mxu0 0.0
  %726 = vmatpush2.msra.mxu0 0.0
  %727 = vmatprep.subr.mxu0 0.0
  %728 = vmatpush2.msra.mxu0 0.0
  %729 = vmatprep.subr.mxu0 0.0
  %730 = vmatpush2.msra.mxu0 0.0
  %731 = vmatprep.subr.mxu0 0.0
  %732 = vmatpush2.msra.mxu0 0.0
  %733 = vmatprep.subr.mxu0 0.0
  %734 = vmatpush2.msra.mxu0 0.0
  %735 = vmatprep.subr.mxu0 0.0
  %736 = vmatpush2.msra.mxu0 0.0
  %737 = vmatprep.subr.mxu0 0.0
  %738 = vmatpush2.msra.mxu0 0.0
  %739 = vmatprep.subr.mxu0 0.0
  %740 = vmatpush2.msra.mxu0 0.0
  %741 = vmatprep.subr.mxu0 0.0
  %742 = vmatpush2.msra.mxu0 0.0
  %743 = vmatprep.subr.mxu0 0.0
  %744 = vmatpush2.msra.mxu0 0.0
  %745 = vmatprep.subr.mxu0 0.0
  %746 = vmatpush2.msra.mxu0 0.0
  %747 = vmatprep.subr.mxu0 0.0
  %748 = vmatpush2.msra.mxu0 0.0
  %749 = vmatprep.subr.mxu0 0.0
  %750 = vmatpush2.msra.mxu0 0.0
  %751 = vmatprep.mubr.f32.mxu0 0.0
  %752 = vmatmul.mubr.f32.gmra.mxu0 %v685
  %v753 = vpop.f32.mrf.mxu0
  %v754 = vadd.f32 0.0, %v753
  %v755 = vpop.f32.mrf.mxu0
  %756 = vdwg.mxu0
  %757 = vmatprep.subr.mxu0 0.0
  %758 = vmatpush1.msra.mxu0 0.0
  %759 = vmatprep.subr.mxu0 0.0
  %760 = vmatpush1.msra.mxu0 0.0
  %761 = vmatprep.subr.mxu0 0.0
  %762 = vmatpush1.msra.mxu0 0.0
  %763 = vmatprep.subr.mxu0 0.0
  %764 = vmatpush1.msra.mxu0 0.0
  %765 = vmatprep.subr.mxu0 0.0
  %766 = vmatpush1.msra.mxu0 0.0
  %767 = vmatprep.subr.mxu0 0.0
  %768 = vmatpush1.msra.mxu0 0.0
  %769 = vmatprep.subr.mxu0 0.0
  %770 = vmatpush1.msra.mxu0 0.0
  %771 = vmatprep.subr.mxu0 0.0
  %772 = vmatpush1.msra.mxu0 0.0
  %773 = vmatprep.subr.mxu0 0.0
  %774 = vmatpush1.msra.mxu0 0.0
  %775 = vmatprep.subr.mxu0 0.0
  %776 = vmatpush1.msra.mxu0 0.0
  %777 = vmatprep.subr.mxu0 0.0
  %778 = vmatpush1.msra.mxu0 0.0
  %779 = vmatprep.subr.mxu0 0.0
  %780 = vmatpush1.msra.mxu0 0.0
  %781 = vmatprep.subr.mxu0 0.0
  %782 = vmatpush1.msra.mxu0 %v38
  %783 = vmatprep.subr.mxu0 0.0
  %784 = vmatpush1.msra.mxu0 %v37
  %785 = vmatprep.subr.mxu0 0.0
  %786 = vmatpush1.msra.mxu0 %v36
  %787 = vmatprep.subr.mxu0 0.0
  %788 = vmatpush1.msra.mxu0 %v35
  %789 = vmatprep.subr.mxu0 0.0
  %790 = vmatpush2.msra.mxu0 0.0
  %791 = vmatprep.subr.mxu0 0.0
  %792 = vmatpush2.msra.mxu0 0.0
  %793 = vmatprep.subr.mxu0 0.0
  %794 = vmatpush2.msra.mxu0 0.0
  %795 = vmatprep.subr.mxu0 0.0
  %796 = vmatpush2.msra.mxu0 0.0
  %797 = vmatprep.subr.mxu0 0.0
  %798 = vmatpush2.msra.mxu0 0.0
  %799 = vmatprep.subr.mxu0 0.0
  %800 = vmatpush2.msra.mxu0 0.0
  %801 = vmatprep.subr.mxu0 0.0
  %802 = vmatpush2.msra.mxu0 0.0
  %803 = vmatprep.subr.mxu0 0.0
  %804 = vmatpush2.msra.mxu0 0.0
  %805 = vmatprep.subr.mxu0 0.0
  %806 = vmatpush2.msra.mxu0 0.0
  %807 = vmatprep.subr.mxu0 0.0
  %808 = vmatpush2.msra.mxu0 0.0
  %809 = vmatprep.subr.mxu0 0.0
  %810 = vmatpush2.msra.mxu0 0.0
  %811 = vmatprep.subr.mxu0 0.0
  %812 = vmatpush2.msra.mxu0 0.0
  %813 = vmatprep.subr.mxu0 0.0
  %814 = vmatpush2.msra.mxu0 0.0
  %815 = vmatprep.subr.mxu0 0.0
  %816 = vmatpush2.msra.mxu0 0.0
  %817 = vmatprep.subr.mxu0 0.0
  %818 = vmatpush2.msra.mxu0 0.0
  %819 = vmatprep.subr.mxu0 0.0
  %820 = vmatpush2.msra.mxu0 0.0
  %821 = vmatprep.mubr.f32.mxu0 0.0
  %822 = vmatmul.mubr.f32.gmra.mxu0 %v531
  %v823 = vpop.f32.mrf.mxu0
  %v824 = vadd.f32 %v754, %v823
  %v825 = vpop.f32.mrf.mxu0
  %826 = vdwg.mxu0
  %v827 = vadd.f32 %v824, %v439
  %s828 = scalar_lea.vmem %s7, 8
  %829 = vst.msk [vmem:[%s828] sm:$0xff] %vm442, %v827
  %s830 = scalar_lea.vmem %s0, 16
  %v831 = vld [vmem:[%s830] sm:$0xff]
  %s832 = scalar_lea.vmem %s1, 32
  %v833 = vld [vmem:[%s832] sm:$0xff]
  %v834 = vld [vmem:[%s832 + $0x8] sm:$0x3]
  %v836 = vsel %vm53, %v833, 0
  %v839 = vsel %vm53, %v834, 0
  %841 = vmatprep.subr.mxu0 0.0
  %842 = vmatpush1.msra.mxu0 0.0
  %843 = vmatprep.subr.mxu0 0.0
  %844 = vmatpush1.msra.mxu0 0.0
  %845 = vmatprep.subr.mxu0 0.0
  %846 = vmatpush1.msra.mxu0 0.0
  %847 = vmatprep.subr.mxu0 0.0
  %848 = vmatpush1.msra.mxu0 0.0
  %849 = vmatprep.subr.mxu0 0.0
  %850 = vmatpush1.msra.mxu0 0.0
  %851 = vmatprep.subr.mxu0 0.0
  %852 = vmatpush1.msra.mxu0 0.0
  %853 = vmatprep.subr.mxu0 0.0
  %854 = vmatpush1.msra.mxu0 0.0
  %855 = vmatprep.subr.mxu0 0.0
  %856 = vmatpush1.msra.mxu0 0.0
  %857 = vmatprep.subr.mxu0 0.0
  %858 = vmatpush1.msra.mxu0 %v33
  %859 = vmatprep.subr.mxu0 0.0
  %860 = vmatpush1.msra.mxu0 %v32
  %861 = vmatprep.subr.mxu0 0.0
  %862 = vmatpush1.msra.mxu0 %v31
  %863 = vmatprep.subr.mxu0 0.0
  %864 = vmatpush1.msra.mxu0 %v30
  %865 = vmatprep.subr.mxu0 0.0
  %866 = vmatpush1.msra.mxu0 %v29
  %867 = vmatprep.subr.mxu0 0.0
  %868 = vmatpush1.msra.mxu0 %v28
  %869 = vmatprep.subr.mxu0 0.0
  %870 = vmatpush1.msra.mxu0 %v27
  %871 = vmatprep.subr.mxu0 0.0
  %872 = vmatpush1.msra.mxu0 %v26
  %873 = vmatprep.subr.mxu0 0.0
  %874 = vmatpush2.msra.mxu0 0.0
  %875 = vmatprep.subr.mxu0 0.0
  %876 = vmatpush2.msra.mxu0 0.0
  %877 = vmatprep.subr.mxu0 0.0
  %878 = vmatpush2.msra.mxu0 0.0
  %879 = vmatprep.subr.mxu0 0.0
  %880 = vmatpush2.msra.mxu0 0.0
  %881 = vmatprep.subr.mxu0 0.0
  %882 = vmatpush2.msra.mxu0 0.0
  %883 = vmatprep.subr.mxu0 0.0
  %884 = vmatpush2.msra.mxu0 0.0
  %885 = vmatprep.subr.mxu0 0.0
  %886 = vmatpush2.msra.mxu0 0.0
  %887 = vmatprep.subr.mxu0 0.0
  %888 = vmatpush2.msra.mxu0 0.0
  %889 = vmatprep.subr.mxu0 0.0
  %890 = vmatpush2.msra.mxu0 0.0
  %891 = vmatprep.subr.mxu0 0.0
  %892 = vmatpush2.msra.mxu0 0.0
  %893 = vmatprep.subr.mxu0 0.0
  %894 = vmatpush2.msra.mxu0 0.0
  %895 = vmatprep.subr.mxu0 0.0
  %896 = vmatpush2.msra.mxu0 0.0
  %897 = vmatprep.subr.mxu0 0.0
  %898 = vmatpush2.msra.mxu0 0.0
  %899 = vmatprep.subr.mxu0 0.0
  %900 = vmatpush2.msra.mxu0 0.0
  %901 = vmatprep.subr.mxu0 0.0
  %902 = vmatpush2.msra.mxu0 0.0
  %903 = vmatprep.subr.mxu0 0.0
  %904 = vmatpush2.msra.mxu0 0.0
  %905 = vmatprep.mubr.f32.mxu0 0.0
  %906 = vmatmul.mubr.f32.gmra.mxu0 %v836
  %v907 = vpop.f32.mrf.mxu0
  %v908 = vadd.f32 %v51, %v907
  %v909 = vpop.f32.mrf.mxu0
  %910 = vmatprep.mubr.f32.mxu0 0.0
  %911 = vmatmul.mubr.f32.gmra.mxu0 %v839
  %v912 = vpop.f32.mrf.mxu0
  %v913 = vadd.f32 %v51, %v912
  %v914 = vpop.f32.mrf.mxu0
  %915 = vdwg.mxu0
  %v917 = vsel %vm135, %v831, 0
  %v920 = vsel %vm135, %v908, 0
  %v923 = vsel %vm135, %v913, 0
  %925 = vmatprep.subr.mxu0 0.0
  %926 = vmatpush1.xpose.msra.mxu0 0.0
  %927 = vmatprep.subr.mxu0 0.0
  %928 = vmatpush1.xpose.msra.mxu0 0.0
  %929 = vmatprep.subr.mxu0 0.0
  %930 = vmatpush1.xpose.msra.mxu0 0.0
  %931 = vmatprep.subr.mxu0 0.0
  %932 = vmatpush1.xpose.msra.mxu0 0.0
  %933 = vmatprep.subr.mxu0 0.0
  %934 = vmatpush1.xpose.msra.mxu0 0.0
  %935 = vmatprep.subr.mxu0 0.0
  %936 = vmatpush1.xpose.msra.mxu0 0.0
  %937 = vmatprep.subr.mxu0 0.0
  %938 = vmatpush1.xpose.msra.mxu0 0.0
  %939 = vmatprep.subr.mxu0 0.0
  %940 = vmatpush1.xpose.msra.mxu0 0.0
  %941 = vmatprep.subr.mxu0 0.0
  %942 = vmatpush1.xpose.msra.mxu0 0.0
  %943 = vmatprep.subr.mxu0 0.0
  %944 = vmatpush1.xpose.msra.mxu0 0.0
  %945 = vmatprep.subr.mxu0 0.0
  %946 = vmatpush1.xpose.msra.mxu0 0.0
  %947 = vmatprep.subr.mxu0 0.0
  %948 = vmatpush1.xpose.msra.mxu0 0.0
  %949 = vmatprep.subr.mxu0 0.0
  %950 = vmatpush1.xpose.msra.mxu0 0.0
  %951 = vmatprep.subr.mxu0 0.0
  %952 = vmatpush1.xpose.msra.mxu0 0.0
  %953 = vmatprep.subr.mxu0 0.0
  %954 = vmatpush1.xpose.msra.mxu0 %v923
  %955 = vmatprep.subr.mxu0 0.0
  %956 = vmatpush1.xpose.msra.mxu0 %v920
  %957 = vmatprep.subr.mxu0 0.0
  %958 = vmatpush2.xpose.msra.mxu0 0.0
  %959 = vmatprep.subr.mxu0 0.0
  %960 = vmatpush2.xpose.msra.mxu0 0.0
  %961 = vmatprep.subr.mxu0 0.0
  %962 = vmatpush2.xpose.msra.mxu0 0.0
  %963 = vmatprep.subr.mxu0 0.0
  %964 = vmatpush2.xpose.msra.mxu0 0.0
  %965 = vmatprep.subr.mxu0 0.0
  %966 = vmatpush2.xpose.msra.mxu0 0.0
  %967 = vmatprep.subr.mxu0 0.0
  %968 = vmatpush2.xpose.msra.mxu0 0.0
  %969 = vmatprep.subr.mxu0 0.0
  %970 = vmatpush2.xpose.msra.mxu0 0.0
  %971 = vmatprep.subr.mxu0 0.0
  %972 = vmatpush2.xpose.msra.mxu0 0.0
  %973 = vmatprep.subr.mxu0 0.0
  %974 = vmatpush2.xpose.msra.mxu0 0.0
  %975 = vmatprep.subr.mxu0 0.0
  %976 = vmatpush2.xpose.msra.mxu0 0.0
  %977 = vmatprep.subr.mxu0 0.0
  %978 = vmatpush2.xpose.msra.mxu0 0.0
  %979 = vmatprep.subr.mxu0 0.0
  %980 = vmatpush2.xpose.msra.mxu0 0.0
  %981 = vmatprep.subr.mxu0 0.0
  %982 = vmatpush2.xpose.msra.mxu0 0.0
  %983 = vmatprep.subr.mxu0 0.0
  %984 = vmatpush2.xpose.msra.mxu0 0.0
  %985 = vmatprep.subr.mxu0 0.0
  %986 = vmatpush2.xpose.msra.mxu0 0.0
  %987 = vmatprep.subr.mxu0 0.0
  %988 = vmatpush2.xpose.msra.mxu0 0.0
  %989 = vmatprep.mubr.f32.mxu0 0.0
  %990 = vmatmul.mubr.f32.gmra.mxu0 %v917
  %v991 = vpop.f32.mrf.mxu0
  %v992 = vadd.f32 0.0, %v991
  %v993 = vpop.f32.mrf.mxu0
  %994 = vdwg.mxu0
  %v996 = vsel %vm215, %v992, 0
  %v998 = vsel %vm219, %v913, 0
  %1000 = vmatprep.subr.mxu0 0.0
  %1001 = vmatpush1.msra.mxu0 0.0
  %1002 = vmatprep.subr.mxu0 0.0
  %1003 = vmatpush1.msra.mxu0 0.0
  %1004 = vmatprep.subr.mxu0 0.0
  %1005 = vmatpush1.msra.mxu0 0.0
  %1006 = vmatprep.subr.mxu0 0.0
  %1007 = vmatpush1.msra.mxu0 0.0
  %1008 = vmatprep.subr.mxu0 0.0
  %1009 = vmatpush1.msra.mxu0 0.0
  %1010 = vmatprep.subr.mxu0 0.0
  %1011 = vmatpush1.msra.mxu0 0.0
  %1012 = vmatprep.subr.mxu0 0.0
  %1013 = vmatpush1.msra.mxu0 0.0
  %1014 = vmatprep.subr.mxu0 0.0
  %1015 = vmatpush1.msra.mxu0 0.0
  %1016 = vmatprep.subr.mxu0 0.0
  %1017 = vmatpush1.msra.mxu0 0.0
  %1018 = vmatprep.subr.mxu0 0.0
  %1019 = vmatpush1.msra.mxu0 0.0
  %1020 = vmatprep.subr.mxu0 0.0
  %1021 = vmatpush1.msra.mxu0 0.0
  %1022 = vmatprep.subr.mxu0 0.0
  %1023 = vmatpush1.msra.mxu0 0.0
  %1024 = vmatprep.subr.mxu0 0.0
  %1025 = vmatpush1.msra.mxu0 0.0
  %1026 = vmatprep.subr.mxu0 0.0
  %1027 = vmatpush1.msra.mxu0 0.0
  %1028 = vmatprep.subr.mxu0 0.0
  %1029 = vmatpush1.msra.mxu0 %v998
  %1030 = vmatprep.subr.mxu0 0.0
  %1031 = vmatpush1.msra.mxu0 %v908
  %1032 = vmatprep.subr.mxu0 0.0
  %1033 = vmatpush2.msra.mxu0 0.0
  %1034 = vmatprep.subr.mxu0 0.0
  %1035 = vmatpush2.msra.mxu0 0.0
  %1036 = vmatprep.subr.mxu0 0.0
  %1037 = vmatpush2.msra.mxu0 0.0
  %1038 = vmatprep.subr.mxu0 0.0
  %1039 = vmatpush2.msra.mxu0 0.0
  %1040 = vmatprep.subr.mxu0 0.0
  %1041 = vmatpush2.msra.mxu0 0.0
  %1042 = vmatprep.subr.mxu0 0.0
  %1043 = vmatpush2.msra.mxu0 0.0
  %1044 = vmatprep.subr.mxu0 0.0
  %1045 = vmatpush2.msra.mxu0 0.0
  %1046 = vmatprep.subr.mxu0 0.0
  %1047 = vmatpush2.msra.mxu0 0.0
  %1048 = vmatprep.subr.mxu0 0.0
  %1049 = vmatpush2.msra.mxu0 0.0
  %1050 = vmatprep.subr.mxu0 0.0
  %1051 = vmatpush2.msra.mxu0 0.0
  %1052 = vmatprep.subr.mxu0 0.0
  %1053 = vmatpush2.msra.mxu0 0.0
  %1054 = vmatprep.subr.mxu0 0.0
  %1055 = vmatpush2.msra.mxu0 0.0
  %1056 = vmatprep.subr.mxu0 0.0
  %1057 = vmatpush2.msra.mxu0 0.0
  %1058 = vmatprep.subr.mxu0 0.0
  %1059 = vmatpush2.msra.mxu0 0.0
  %1060 = vmatprep.subr.mxu0 0.0
  %1061 = vmatpush2.msra.mxu0 0.0
  %1062 = vmatprep.subr.mxu0 0.0
  %1063 = vmatpush2.msra.mxu0 0.0
  %1064 = vmatprep.mubr.f32.mxu0 0.0
  %1065 = vmatmul.mubr.f32.gmra.mxu0 %v996
  %v1066 = vpop.f32.mrf.mxu0
  %v1067 = vadd.f32 0.0, %v1066
  %v1068 = vpop.f32.mrf.mxu0
  %1069 = vdwg.mxu0
  %v1071 = vsel %vm135, %v1067, 0
  %1073 = vmatprep.subr.mxu0 0.0
  %1074 = vmatpush1.msra.mxu0 0.0
  %1075 = vmatprep.subr.mxu0 0.0
  %1076 = vmatpush1.msra.mxu0 0.0
  %1077 = vmatprep.subr.mxu0 0.0
  %1078 = vmatpush1.msra.mxu0 0.0
  %1079 = vmatprep.subr.mxu0 0.0
  %1080 = vmatpush1.msra.mxu0 0.0
  %1081 = vmatprep.subr.mxu0 0.0
  %1082 = vmatpush1.msra.mxu0 0.0
  %1083 = vmatprep.subr.mxu0 0.0
  %1084 = vmatpush1.msra.mxu0 0.0
  %1085 = vmatprep.subr.mxu0 0.0
  %1086 = vmatpush1.msra.mxu0 0.0
  %1087 = vmatprep.subr.mxu0 0.0
  %1088 = vmatpush1.msra.mxu0 0.0
  %1089 = vmatprep.subr.mxu0 0.0
  %1090 = vmatpush1.msra.mxu0 0.0
  %1091 = vmatprep.subr.mxu0 0.0
  %1092 = vmatpush1.msra.mxu0 0.0
  %1093 = vmatprep.subr.mxu0 0.0
  %1094 = vmatpush1.msra.mxu0 0.0
  %1095 = vmatprep.subr.mxu0 0.0
  %1096 = vmatpush1.msra.mxu0 0.0
  %1097 = vmatprep.subr.mxu0 0.0
  %1098 = vmatpush1.msra.mxu0 %v42
  %1099 = vmatprep.subr.mxu0 0.0
  %1100 = vmatpush1.msra.mxu0 %v41
  %1101 = vmatprep.subr.mxu0 0.0
  %1102 = vmatpush1.msra.mxu0 %v40
  %1103 = vmatprep.subr.mxu0 0.0
  %1104 = vmatpush1.msra.mxu0 %v39
  %1105 = vmatprep.subr.mxu0 0.0
  %1106 = vmatpush2.msra.mxu0 0.0
  %1107 = vmatprep.subr.mxu0 0.0
  %1108 = vmatpush2.msra.mxu0 0.0
  %1109 = vmatprep.subr.mxu0 0.0
  %1110 = vmatpush2.msra.mxu0 0.0
  %1111 = vmatprep.subr.mxu0 0.0
  %1112 = vmatpush2.msra.mxu0 0.0
  %1113 = vmatprep.subr.mxu0 0.0
  %1114 = vmatpush2.msra.mxu0 0.0
  %1115 = vmatprep.subr.mxu0 0.0
  %1116 = vmatpush2.msra.mxu0 0.0
  %1117 = vmatprep.subr.mxu0 0.0
  %1118 = vmatpush2.msra.mxu0 0.0
  %1119 = vmatprep.subr.mxu0 0.0
  %1120 = vmatpush2.msra.mxu0 0.0
  %1121 = vmatprep.subr.mxu0 0.0
  %1122 = vmatpush2.msra.mxu0 0.0
  %1123 = vmatprep.subr.mxu0 0.0
  %1124 = vmatpush2.msra.mxu0 0.0
  %1125 = vmatprep.subr.mxu0 0.0
  %1126 = vmatpush2.msra.mxu0 0.0
  %1127 = vmatprep.subr.mxu0 0.0
  %1128 = vmatpush2.msra.mxu0 0.0
  %1129 = vmatprep.subr.mxu0 0.0
  %1130 = vmatpush2.msra.mxu0 0.0
  %1131 = vmatprep.subr.mxu0 0.0
  %1132 = vmatpush2.msra.mxu0 0.0
  %1133 = vmatprep.subr.mxu0 0.0
  %1134 = vmatpush2.msra.mxu0 0.0
  %1135 = vmatprep.subr.mxu0 0.0
  %1136 = vmatpush2.msra.mxu0 0.0
  %1137 = vmatprep.mubr.f32.mxu0 0.0
  %1138 = vmatmul.mubr.f32.gmra.mxu0 %v1071
  %v1139 = vpop.f32.mrf.mxu0
  %v1140 = vadd.f32 0.0, %v1139
  %v1141 = vpop.f32.mrf.mxu0
  %1142 = vdwg.mxu0
  %1143 = vmatprep.subr.mxu0 0.0
  %1144 = vmatpush1.msra.mxu0 0.0
  %1145 = vmatprep.subr.mxu0 0.0
  %1146 = vmatpush1.msra.mxu0 0.0
  %1147 = vmatprep.subr.mxu0 0.0
  %1148 = vmatpush1.msra.mxu0 0.0
  %1149 = vmatprep.subr.mxu0 0.0
  %1150 = vmatpush1.msra.mxu0 0.0
  %1151 = vmatprep.subr.mxu0 0.0
  %1152 = vmatpush1.msra.mxu0 0.0
  %1153 = vmatprep.subr.mxu0 0.0
  %1154 = vmatpush1.msra.mxu0 0.0
  %1155 = vmatprep.subr.mxu0 0.0
  %1156 = vmatpush1.msra.mxu0 0.0
  %1157 = vmatprep.subr.mxu0 0.0
  %1158 = vmatpush1.msra.mxu0 0.0
  %1159 = vmatprep.subr.mxu0 0.0
  %1160 = vmatpush1.msra.mxu0 0.0
  %1161 = vmatprep.subr.mxu0 0.0
  %1162 = vmatpush1.msra.mxu0 0.0
  %1163 = vmatprep.subr.mxu0 0.0
  %1164 = vmatpush1.msra.mxu0 0.0
  %1165 = vmatprep.subr.mxu0 0.0
  %1166 = vmatpush1.msra.mxu0 0.0
  %1167 = vmatprep.subr.mxu0 0.0
  %1168 = vmatpush1.msra.mxu0 %v38
  %1169 = vmatprep.subr.mxu0 0.0
  %1170 = vmatpush1.msra.mxu0 %v37
  %1171 = vmatprep.subr.mxu0 0.0
  %1172 = vmatpush1.msra.mxu0 %v36
  %1173 = vmatprep.subr.mxu0 0.0
  %1174 = vmatpush1.msra.mxu0 %v35
  %1175 = vmatprep.subr.mxu0 0.0
  %1176 = vmatpush2.msra.mxu0 0.0
  %1177 = vmatprep.subr.mxu0 0.0
  %1178 = vmatpush2.msra.mxu0 0.0
  %1179 = vmatprep.subr.mxu0 0.0
  %1180 = vmatpush2.msra.mxu0 0.0
  %1181 = vmatprep.subr.mxu0 0.0
  %1182 = vmatpush2.msra.mxu0 0.0
  %1183 = vmatprep.subr.mxu0 0.0
  %1184 = vmatpush2.msra.mxu0 0.0
  %1185 = vmatprep.subr.mxu0 0.0
  %1186 = vmatpush2.msra.mxu0 0.0
  %1187 = vmatprep.subr.mxu0 0.0
  %1188 = vmatpush2.msra.mxu0 0.0
  %1189 = vmatprep.subr.mxu0 0.0
  %1190 = vmatpush2.msra.mxu0 0.0
  %1191 = vmatprep.subr.mxu0 0.0
  %1192 = vmatpush2.msra.mxu0 0.0
  %1193 = vmatprep.subr.mxu0 0.0
  %1194 = vmatpush2.msra.mxu0 0.0
  %1195 = vmatprep.subr.mxu0 0.0
  %1196 = vmatpush2.msra.mxu0 0.0
  %1197 = vmatprep.subr.mxu0 0.0
  %1198 = vmatpush2.msra.mxu0 0.0
  %1199 = vmatprep.subr.mxu0 0.0
  %1200 = vmatpush2.msra.mxu0 0.0
  %1201 = vmatprep.subr.mxu0 0.0
  %1202 = vmatpush2.msra.mxu0 0.0
  %1203 = vmatprep.subr.mxu0 0.0
  %1204 = vmatpush2.msra.mxu0 0.0
  %1205 = vmatprep.subr.mxu0 0.0
  %1206 = vmatpush2.msra.mxu0 0.0
  %1207 = vmatprep.mubr.f32.mxu0 0.0
  %1208 = vmatmul.mubr.f32.gmra.mxu0 %v917
  %v1209 = vpop.f32.mrf.mxu0
  %v1210 = vadd.f32 %v1140, %v1209
  %v1211 = vpop.f32.mrf.mxu0
  %1212 = vdwg.mxu0
  %v1213 = vadd.f32 %v1210, %v439
  %s1214 = scalar_lea.vmem %s7, 16
  %1215 = vst.msk [vmem:[%s1214] sm:$0xff] %vm442, %v1213
  %s1216 = scalar_lea.vmem %s0, 24
  %v1217 = vld [vmem:[%s1216] sm:$0xff]
  %s1218 = scalar_lea.vmem %s1, 48
  %v1219 = vld [vmem:[%s1218] sm:$0xff]
  %v1220 = vld [vmem:[%s1218 + $0x8] sm:$0x3]
  %v1222 = vsel %vm53, %v1219, 0
  %v1225 = vsel %vm53, %v1220, 0
  %1227 = vmatprep.subr.mxu0 0.0
  %1228 = vmatpush1.msra.mxu0 0.0
  %1229 = vmatprep.subr.mxu0 0.0
  %1230 = vmatpush1.msra.mxu0 0.0
  %1231 = vmatprep.subr.mxu0 0.0
  %1232 = vmatpush1.msra.mxu0 0.0
  %1233 = vmatprep.subr.mxu0 0.0
  %1234 = vmatpush1.msra.mxu0 0.0
  %1235 = vmatprep.subr.mxu0 0.0
  %1236 = vmatpush1.msra.mxu0 0.0
  %1237 = vmatprep.subr.mxu0 0.0
  %1238 = vmatpush1.msra.mxu0 0.0
  %1239 = vmatprep.subr.mxu0 0.0
  %1240 = vmatpush1.msra.mxu0 0.0
  %1241 = vmatprep.subr.mxu0 0.0
  %1242 = vmatpush1.msra.mxu0 0.0
  %1243 = vmatprep.subr.mxu0 0.0
  %1244 = vmatpush1.msra.mxu0 %v33
  %1245 = vmatprep.subr.mxu0 0.0
  %1246 = vmatpush1.msra.mxu0 %v32
  %1247 = vmatprep.subr.mxu0 0.0
  %1248 = vmatpush1.msra.mxu0 %v31
  %1249 = vmatprep.subr.mxu0 0.0
  %1250 = vmatpush1.msra.mxu0 %v30
  %1251 = vmatprep.subr.mxu0 0.0
  %1252 = vmatpush1.msra.mxu0 %v29
  %1253 = vmatprep.subr.mxu0 0.0
  %1254 = vmatpush1.msra.mxu0 %v28
  %1255 = vmatprep.subr.mxu0 0.0
  %1256 = vmatpush1.msra.mxu0 %v27
  %1257 = vmatprep.subr.mxu0 0.0
  %1258 = vmatpush1.msra.mxu0 %v26
  %1259 = vmatprep.subr.mxu0 0.0
  %1260 = vmatpush2.msra.mxu0 0.0
  %1261 = vmatprep.subr.mxu0 0.0
  %1262 = vmatpush2.msra.mxu0 0.0
  %1263 = vmatprep.subr.mxu0 0.0
  %1264 = vmatpush2.msra.mxu0 0.0
  %1265 = vmatprep.subr.mxu0 0.0
  %1266 = vmatpush2.msra.mxu0 0.0
  %1267 = vmatprep.subr.mxu0 0.0
  %1268 = vmatpush2.msra.mxu0 0.0
  %1269 = vmatprep.subr.mxu0 0.0
  %1270 = vmatpush2.msra.mxu0 0.0
  %1271 = vmatprep.subr.mxu0 0.0
  %1272 = vmatpush2.msra.mxu0 0.0
  %1273 = vmatprep.subr.mxu0 0.0
  %1274 = vmatpush2.msra.mxu0 0.0
  %1275 = vmatprep.subr.mxu0 0.0
  %1276 = vmatpush2.msra.mxu0 0.0
  %1277 = vmatprep.subr.mxu0 0.0
  %1278 = vmatpush2.msra.mxu0 0.0
  %1279 = vmatprep.subr.mxu0 0.0
  %1280 = vmatpush2.msra.mxu0 0.0
  %1281 = vmatprep.subr.mxu0 0.0
  %1282 = vmatpush2.msra.mxu0 0.0
  %1283 = vmatprep.subr.mxu0 0.0
  %1284 = vmatpush2.msra.mxu0 0.0
  %1285 = vmatprep.subr.mxu0 0.0
  %1286 = vmatpush2.msra.mxu0 0.0
  %1287 = vmatprep.subr.mxu0 0.0
  %1288 = vmatpush2.msra.mxu0 0.0
  %1289 = vmatprep.subr.mxu0 0.0
  %1290 = vmatpush2.msra.mxu0 0.0
  %1291 = vmatprep.mubr.f32.mxu0 0.0
  %1292 = vmatmul.mubr.f32.gmra.mxu0 %v1222
  %v1293 = vpop.f32.mrf.mxu0
  %v1294 = vadd.f32 %v51, %v1293
  %v1295 = vpop.f32.mrf.mxu0
  %1296 = vmatprep.mubr.f32.mxu0 0.0
  %1297 = vmatmul.mubr.f32.gmra.mxu0 %v1225
  %v1298 = vpop.f32.mrf.mxu0
  %v1299 = vadd.f32 %v51, %v1298
  %v1300 = vpop.f32.mrf.mxu0
  %1301 = vdwg.mxu0
  %v1303 = vsel %vm135, %v1217, 0
  %v1306 = vsel %vm135, %v1294, 0
  %v1309 = vsel %vm135, %v1299, 0
  %1311 = vmatprep.subr.mxu0 0.0
  %1312 = vmatpush1.xpose.msra.mxu0 0.0
  %1313 = vmatprep.subr.mxu0 0.0
  %1314 = vmatpush1.xpose.msra.mxu0 0.0
  %1315 = vmatprep.subr.mxu0 0.0
  %1316 = vmatpush1.xpose.msra.mxu0 0.0
  %1317 = vmatprep.subr.mxu0 0.0
  %1318 = vmatpush1.xpose.msra.mxu0 0.0
  %1319 = vmatprep.subr.mxu0 0.0
  %1320 = vmatpush1.xpose.msra.mxu0 0.0
  %1321 = vmatprep.subr.mxu0 0.0
  %1322 = vmatpush1.xpose.msra.mxu0 0.0
  %1323 = vmatprep.subr.mxu0 0.0
  %1324 = vmatpush1.xpose.msra.mxu0 0.0
  %1325 = vmatprep.subr.mxu0 0.0
  %1326 = vmatpush1.xpose.msra.mxu0 0.0
  %1327 = vmatprep.subr.mxu0 0.0
  %1328 = vmatpush1.xpose.msra.mxu0 0.0
  %1329 = vmatprep.subr.mxu0 0.0
  %1330 = vmatpush1.xpose.msra.mxu0 0.0
  %1331 = vmatprep.subr.mxu0 0.0
  %1332 = vmatpush1.xpose.msra.mxu0 0.0
  %1333 = vmatprep.subr.mxu0 0.0
  %1334 = vmatpush1.xpose.msra.mxu0 0.0
  %1335 = vmatprep.subr.mxu0 0.0
  %1336 = vmatpush1.xpose.msra.mxu0 0.0
  %1337 = vmatprep.subr.mxu0 0.0
  %1338 = vmatpush1.xpose.msra.mxu0 0.0
  %1339 = vmatprep.subr.mxu0 0.0
  %1340 = vmatpush1.xpose.msra.mxu0 %v1309
  %1341 = vmatprep.subr.mxu0 0.0
  %1342 = vmatpush1.xpose.msra.mxu0 %v1306
  %1343 = vmatprep.subr.mxu0 0.0
  %1344 = vmatpush2.xpose.msra.mxu0 0.0
  %1345 = vmatprep.subr.mxu0 0.0
  %1346 = vmatpush2.xpose.msra.mxu0 0.0
  %1347 = vmatprep.subr.mxu0 0.0
  %1348 = vmatpush2.xpose.msra.mxu0 0.0
  %1349 = vmatprep.subr.mxu0 0.0
  %1350 = vmatpush2.xpose.msra.mxu0 0.0
  %1351 = vmatprep.subr.mxu0 0.0
  %1352 = vmatpush2.xpose.msra.mxu0 0.0
  %1353 = vmatprep.subr.mxu0 0.0
  %1354 = vmatpush2.xpose.msra.mxu0 0.0
  %1355 = vmatprep.subr.mxu0 0.0
  %1356 = vmatpush2.xpose.msra.mxu0 0.0
  %1357 = vmatprep.subr.mxu0 0.0
  %1358 = vmatpush2.xpose.msra.mxu0 0.0
  %1359 = vmatprep.subr.mxu0 0.0
  %1360 = vmatpush2.xpose.msra.mxu0 0.0
  %1361 = vmatprep.subr.mxu0 0.0
  %1362 = vmatpush2.xpose.msra.mxu0 0.0
  %1363 = vmatprep.subr.mxu0 0.0
  %1364 = vmatpush2.xpose.msra.mxu0 0.0
  %1365 = vmatprep.subr.mxu0 0.0
  %1366 = vmatpush2.xpose.msra.mxu0 0.0
  %1367 = vmatprep.subr.mxu0 0.0
  %1368 = vmatpush2.xpose.msra.mxu0 0.0
  %1369 = vmatprep.subr.mxu0 0.0
  %1370 = vmatpush2.xpose.msra.mxu0 0.0
  %1371 = vmatprep.subr.mxu0 0.0
  %1372 = vmatpush2.xpose.msra.mxu0 0.0
  %1373 = vmatprep.subr.mxu0 0.0
  %1374 = vmatpush2.xpose.msra.mxu0 0.0
  %1375 = vmatprep.mubr.f32.mxu0 0.0
  %1376 = vmatmul.mubr.f32.gmra.mxu0 %v1303
  %v1377 = vpop.f32.mrf.mxu0
  %v1378 = vadd.f32 0.0, %v1377
  %v1379 = vpop.f32.mrf.mxu0
  %1380 = vdwg.mxu0
  %v1382 = vsel %vm215, %v1378, 0
  %v1384 = vsel %vm219, %v1299, 0
  %1386 = vmatprep.subr.mxu0 0.0
  %1387 = vmatpush1.msra.mxu0 0.0
  %1388 = vmatprep.subr.mxu0 0.0
  %1389 = vmatpush1.msra.mxu0 0.0
  %1390 = vmatprep.subr.mxu0 0.0
  %1391 = vmatpush1.msra.mxu0 0.0
  %1392 = vmatprep.subr.mxu0 0.0
  %1393 = vmatpush1.msra.mxu0 0.0
  %1394 = vmatprep.subr.mxu0 0.0
  %1395 = vmatpush1.msra.mxu0 0.0
  %1396 = vmatprep.subr.mxu0 0.0
  %1397 = vmatpush1.msra.mxu0 0.0
  %1398 = vmatprep.subr.mxu0 0.0
  %1399 = vmatpush1.msra.mxu0 0.0
  %1400 = vmatprep.subr.mxu0 0.0
  %1401 = vmatpush1.msra.mxu0 0.0
  %1402 = vmatprep.subr.mxu0 0.0
  %1403 = vmatpush1.msra.mxu0 0.0
  %1404 = vmatprep.subr.mxu0 0.0
  %1405 = vmatpush1.msra.mxu0 0.0
  %1406 = vmatprep.subr.mxu0 0.0
  %1407 = vmatpush1.msra.mxu0 0.0
  %1408 = vmatprep.subr.mxu0 0.0
  %1409 = vmatpush1.msra.mxu0 0.0
  %1410 = vmatprep.subr.mxu0 0.0
  %1411 = vmatpush1.msra.mxu0 0.0
  %1412 = vmatprep.subr.mxu0 0.0
  %1413 = vmatpush1.msra.mxu0 0.0
  %1414 = vmatprep.subr.mxu0 0.0
  %1415 = vmatpush1.msra.mxu0 %v1384
  %1416 = vmatprep.subr.mxu0 0.0
  %1417 = vmatpush1.msra.mxu0 %v1294
  %1418 = vmatprep.subr.mxu0 0.0
  %1419 = vmatpush2.msra.mxu0 0.0
  %1420 = vmatprep.subr.mxu0 0.0
  %1421 = vmatpush2.msra.mxu0 0.0
  %1422 = vmatprep.subr.mxu0 0.0
  %1423 = vmatpush2.msra.mxu0 0.0
  %1424 = vmatprep.subr.mxu0 0.0
  %1425 = vmatpush2.msra.mxu0 0.0
  %1426 = vmatprep.subr.mxu0 0.0
  %1427 = vmatpush2.msra.mxu0 0.0
  %1428 = vmatprep.subr.mxu0 0.0
  %1429 = vmatpush2.msra.mxu0 0.0
  %1430 = vmatprep.subr.mxu0 0.0
  %1431 = vmatpush2.msra.mxu0 0.0
  %1432 = vmatprep.subr.mxu0 0.0
  %1433 = vmatpush2.msra.mxu0 0.0
  %1434 = vmatprep.subr.mxu0 0.0
  %1435 = vmatpush2.msra.mxu0 0.0
  %1436 = vmatprep.subr.mxu0 0.0
  %1437 = vmatpush2.msra.mxu0 0.0
  %1438 = vmatprep.subr.mxu0 0.0
  %1439 = vmatpush2.msra.mxu0 0.0
  %1440 = vmatprep.subr.mxu0 0.0
  %1441 = vmatpush2.msra.mxu0 0.0
  %1442 = vmatprep.subr.mxu0 0.0
  %1443 = vmatpush2.msra.mxu0 0.0
  %1444 = vmatprep.subr.mxu0 0.0
  %1445 = vmatpush2.msra.mxu0 0.0
  %1446 = vmatprep.subr.mxu0 0.0
  %1447 = vmatpush2.msra.mxu0 0.0
  %1448 = vmatprep.subr.mxu0 0.0
  %1449 = vmatpush2.msra.mxu0 0.0
  %1450 = vmatprep.mubr.f32.mxu0 0.0
  %1451 = vmatmul.mubr.f32.gmra.mxu0 %v1382
  %v1452 = vpop.f32.mrf.mxu0
  %v1453 = vadd.f32 0.0, %v1452
  %v1454 = vpop.f32.mrf.mxu0
  %1455 = vdwg.mxu0
  %v1457 = vsel %vm135, %v1453, 0
  %1459 = vmatprep.subr.mxu0 0.0
  %1460 = vmatpush1.msra.mxu0 0.0
  %1461 = vmatprep.subr.mxu0 0.0
  %1462 = vmatpush1.msra.mxu0 0.0
  %1463 = vmatprep.subr.mxu0 0.0
  %1464 = vmatpush1.msra.mxu0 0.0
  %1465 = vmatprep.subr.mxu0 0.0
  %1466 = vmatpush1.msra.mxu0 0.0
  %1467 = vmatprep.subr.mxu0 0.0
  %1468 = vmatpush1.msra.mxu0 0.0
  %1469 = vmatprep.subr.mxu0 0.0
  %1470 = vmatpush1.msra.mxu0 0.0
  %1471 = vmatprep.subr.mxu0 0.0
  %1472 = vmatpush1.msra.mxu0 0.0
  %1473 = vmatprep.subr.mxu0 0.0
  %1474 = vmatpush1.msra.mxu0 0.0
  %1475 = vmatprep.subr.mxu0 0.0
  %1476 = vmatpush1.msra.mxu0 0.0
  %1477 = vmatprep.subr.mxu0 0.0
  %1478 = vmatpush1.msra.mxu0 0.0
  %1479 = vmatprep.subr.mxu0 0.0
  %1480 = vmatpush1.msra.mxu0 0.0
  %1481 = vmatprep.subr.mxu0 0.0
  %1482 = vmatpush1.msra.mxu0 0.0
  %1483 = vmatprep.subr.mxu0 0.0
  %1484 = vmatpush1.msra.mxu0 %v42
  %1485 = vmatprep.subr.mxu0 0.0
  %1486 = vmatpush1.msra.mxu0 %v41
  %1487 = vmatprep.subr.mxu0 0.0
  %1488 = vmatpush1.msra.mxu0 %v40
  %1489 = vmatprep.subr.mxu0 0.0
  %1490 = vmatpush1.msra.mxu0 %v39
  %1491 = vmatprep.subr.mxu0 0.0
  %1492 = vmatpush2.msra.mxu0 0.0
  %1493 = vmatprep.subr.mxu0 0.0
  %1494 = vmatpush2.msra.mxu0 0.0
  %1495 = vmatprep.subr.mxu0 0.0
  %1496 = vmatpush2.msra.mxu0 0.0
  %1497 = vmatprep.subr.mxu0 0.0
  %1498 = vmatpush2.msra.mxu0 0.0
  %1499 = vmatprep.subr.mxu0 0.0
  %1500 = vmatpush2.msra.mxu0 0.0
  %1501 = vmatprep.subr.mxu0 0.0
  %1502 = vmatpush2.msra.mxu0 0.0
  %1503 = vmatprep.subr.mxu0 0.0
  %1504 = vmatpush2.msra.mxu0 0.0
  %1505 = vmatprep.subr.mxu0 0.0
  %1506 = vmatpush2.msra.mxu0 0.0
  %1507 = vmatprep.subr.mxu0 0.0
  %1508 = vmatpush2.msra.mxu0 0.0
  %1509 = vmatprep.subr.mxu0 0.0
  %1510 = vmatpush2.msra.mxu0 0.0
  %1511 = vmatprep.subr.mxu0 0.0
  %1512 = vmatpush2.msra.mxu0 0.0
  %1513 = vmatprep.subr.mxu0 0.0
  %1514 = vmatpush2.msra.mxu0 0.0
  %1515 = vmatprep.subr.mxu0 0.0
  %1516 = vmatpush2.msra.mxu0 0.0
  %1517 = vmatprep.subr.mxu0 0.0
  %1518 = vmatpush2.msra.mxu0 0.0
  %1519 = vmatprep.subr.mxu0 0.0
  %1520 = vmatpush2.msra.mxu0 0.0
  %1521 = vmatprep.subr.mxu0 0.0
  %1522 = vmatpush2.msra.mxu0 0.0
  %1523 = vmatprep.mubr.f32.mxu0 0.0
  %1524 = vmatmul.mubr.f32.gmra.mxu0 %v1457
  %v1525 = vpop.f32.mrf.mxu0
  %v1526 = vadd.f32 0.0, %v1525
  %v1527 = vpop.f32.mrf.mxu0
  %1528 = vdwg.mxu0
  %1529 = vmatprep.subr.mxu0 0.0
  %1530 = vmatpush1.msra.mxu0 0.0
  %1531 = vmatprep.subr.mxu0 0.0
  %1532 = vmatpush1.msra.mxu0 0.0
  %1533 = vmatprep.subr.mxu0 0.0
  %1534 = vmatpush1.msra.mxu0 0.0
  %1535 = vmatprep.subr.mxu0 0.0
  %1536 = vmatpush1.msra.mxu0 0.0
  %1537 = vmatprep.subr.mxu0 0.0
  %1538 = vmatpush1.msra.mxu0 0.0
  %1539 = vmatprep.subr.mxu0 0.0
  %1540 = vmatpush1.msra.mxu0 0.0
  %1541 = vmatprep.subr.mxu0 0.0
  %1542 = vmatpush1.msra.mxu0 0.0
  %1543 = vmatprep.subr.mxu0 0.0
  %1544 = vmatpush1.msra.mxu0 0.0
  %1545 = vmatprep.subr.mxu0 0.0
  %1546 = vmatpush1.msra.mxu0 0.0
  %1547 = vmatprep.subr.mxu0 0.0
  %1548 = vmatpush1.msra.mxu0 0.0
  %1549 = vmatprep.subr.mxu0 0.0
  %1550 = vmatpush1.msra.mxu0 0.0
  %1551 = vmatprep.subr.mxu0 0.0
  %1552 = vmatpush1.msra.mxu0 0.0
  %1553 = vmatprep.subr.mxu0 0.0
  %1554 = vmatpush1.msra.mxu0 %v38
  %1555 = vmatprep.subr.mxu0 0.0
  %1556 = vmatpush1.msra.mxu0 %v37
  %1557 = vmatprep.subr.mxu0 0.0
  %1558 = vmatpush1.msra.mxu0 %v36
  %1559 = vmatprep.subr.mxu0 0.0
  %1560 = vmatpush1.msra.mxu0 %v35
  %1561 = vmatprep.subr.mxu0 0.0
  %1562 = vmatpush2.msra.mxu0 0.0
  %1563 = vmatprep.subr.mxu0 0.0
  %1564 = vmatpush2.msra.mxu0 0.0
  %1565 = vmatprep.subr.mxu0 0.0
  %1566 = vmatpush2.msra.mxu0 0.0
  %1567 = vmatprep.subr.mxu0 0.0
  %1568 = vmatpush2.msra.mxu0 0.0
  %1569 = vmatprep.subr.mxu0 0.0
  %1570 = vmatpush2.msra.mxu0 0.0
  %1571 = vmatprep.subr.mxu0 0.0
  %1572 = vmatpush2.msra.mxu0 0.0
  %1573 = vmatprep.subr.mxu0 0.0
  %1574 = vmatpush2.msra.mxu0 0.0
  %1575 = vmatprep.subr.mxu0 0.0
  %1576 = vmatpush2.msra.mxu0 0.0
  %1577 = vmatprep.subr.mxu0 0.0
  %1578 = vmatpush2.msra.mxu0 0.0
  %1579 = vmatprep.subr.mxu0 0.0
  %1580 = vmatpush2.msra.mxu0 0.0
  %1581 = vmatprep.subr.mxu0 0.0
  %1582 = vmatpush2.msra.mxu0 0.0
  %1583 = vmatprep.subr.mxu0 0.0
  %1584 = vmatpush2.msra.mxu0 0.0
  %1585 = vmatprep.subr.mxu0 0.0
  %1586 = vmatpush2.msra.mxu0 0.0
  %1587 = vmatprep.subr.mxu0 0.0
  %1588 = vmatpush2.msra.mxu0 0.0
  %1589 = vmatprep.subr.mxu0 0.0
  %1590 = vmatpush2.msra.mxu0 0.0
  %1591 = vmatprep.subr.mxu0 0.0
  %1592 = vmatpush2.msra.mxu0 0.0
  %1593 = vmatprep.mubr.f32.mxu0 0.0
  %1594 = vmatmul.mubr.f32.gmra.mxu0 %v1303
  %v1595 = vpop.f32.mrf.mxu0
  %v1596 = vadd.f32 %v1526, %v1595
  %v1597 = vpop.f32.mrf.mxu0
  %1598 = vdwg.mxu0
  %v1599 = vadd.f32 %v1596, %v439
  %s1600 = scalar_lea.vmem %s7, 24
  %1601 = vst.msk [vmem:[%s1600] sm:$0xff] %vm442, %v1599
  // Predicated region
  $region30: #{only_gru_forward.9} parent=0 // pred_check
    _
  $region31: #{only_gru_forward.9} parent=0 // pred_check_branch
    %1603 = sbr.rel (0) target = $region33
  $region32: #{only_gru_forward.9} parent=0 // pred_region
    _
  $region33: #{only_gru_forward.9} parent=0 // pred_fallthru
    _
  // Predicated region
  $region34: #{only_gru_forward.9} parent=0 // pred_check
    _
  $region35: #{only_gru_forward.9} parent=0 // pred_check_branch
    %1605 = sbr.rel (0) target = $region37
  $region36: #{only_gru_forward.9} parent=0 // pred_region
    _
  $region37: #{only_gru_forward.9} parent=0 // pred_fallthru
    _

// kernel: only_gru_forward.7
$region0: #{only_gru_forward.7}
  #allocation0 [shape = 'u32[]', space=smem, size = 0x4, offset = 0x4, fixed_abs, tag = 'smem constant byte address 0x4 - core index']
  #allocation1 [shape = 'u32[144,128]{1,0:T(1,128)}', space=vmem, size = 0x12000, scoped, tag = 'internal scratch']
  %s0 = inlined_call_operand.vmem [shape: f32[1,8,4,32], index: 0, kind: input, shape index: {}]
  %s1 = inlined_call_operand.vmem [shape: f32[1,8,4,32], index: 1, kind: input, shape index: {}]
  %s2 = inlined_call_operand.vmem [shape: f32[1,8,4,32], index: 2, kind: input, shape index: {}]
  %s3 = inlined_call_operand.vmem [shape: f32[1,3,32,32], index: 3, kind: input, shape index: {}]
  %s4 = inlined_call_operand.vmem [shape: f32[1,1,32], index: 4, kind: input, shape index: {}]
  %s5 = inlined_call_operand.vmem [shape: f32[1,4,32], index: 5, kind: input, shape index: {}]
  %s6 = inlined_call_operand.vmem [shape: f32[1,8,4,32], index: 6, kind: output, shape index: {}]
  %s7 = sld [smem:[#allocation0]]
  $region34: #{only_gru_forward.7} parent=0
    _
  %s9 = ssub.s32 1, %s7
  %s10 = scalar_select 0, %s9, %s7
  // Predicated region
  $region2: #{only_gru_forward.7} parent=0 // pred_check
    _
  $region3: #{only_gru_forward.7} parent=0 // pred_check_branch
    %12 = sbr.rel (0) target = $region5
  $region4: #{only_gru_forward.7} parent=0 // pred_region
    _
  $region5: #{only_gru_forward.7} parent=0 // pred_fallthru
    _
  // Predicated region
  $region6: #{only_gru_forward.7} parent=0 // pred_check
    _
  $region7: #{only_gru_forward.7} parent=0 // pred_check_branch
    %14 = sbr.rel (0) target = $region9
  $region8: #{only_gru_forward.7} parent=0 // pred_region
    _
  $region9: #{only_gru_forward.7} parent=0 // pred_fallthru
    _
  // Predicated region
  $region10: #{only_gru_forward.7} parent=0 // pred_check
    _
  $region11: #{only_gru_forward.7} parent=0 // pred_check_branch
    %16 = sbr.rel (0) target = $region13
  $region12: #{only_gru_forward.7} parent=0 // pred_region
    _
  $region13: #{only_gru_forward.7} parent=0 // pred_fallthru
    _
  // Predicated region
  $region14: #{only_gru_forward.7} parent=0 // pred_check
    _
  $region15: #{only_gru_forward.7} parent=0 // pred_check_branch
    %18 = sbr.rel (0) target = $region17
  $region16: #{only_gru_forward.7} parent=0 // pred_region
    _
  $region17: #{only_gru_forward.7} parent=0 // pred_fallthru
    _
  // Predicated region
  $region18: #{only_gru_forward.7} parent=0 // pred_check
    _
  $region19: #{only_gru_forward.7} parent=0 // pred_check_branch
    %20 = sbr.rel (0) target = $region21
  $region20: #{only_gru_forward.7} parent=0 // pred_region
    _
  $region21: #{only_gru_forward.7} parent=0 // pred_fallthru
    _
  // Predicated region
  $region22: #{only_gru_forward.7} parent=0 // pred_check
    _
  $region23: #{only_gru_forward.7} parent=0 // pred_check_branch
    %22 = sbr.rel (0) target = $region25
  $region24: #{only_gru_forward.7} parent=0 // pred_region
    _
  $region25: #{only_gru_forward.7} parent=0 // pred_fallthru
    _
  %v23 = vld [vmem:[%s3] sm:$0xff]
  %v24 = vld [vmem:[%s3 + $0x8] sm:$0xff]
  %v25 = vld [vmem:[%s3 + $0x10] sm:$0xff]
  %v26 = vld [vmem:[%s3 + $0x18] sm:$0xff]
  %s27 = scalar_lea.vmem %s3, 32
  %v28 = vld [vmem:[%s27] sm:$0xff]
  %v29 = vld [vmem:[%s27 + $0x8] sm:$0xff]
  %v30 = vld [vmem:[%s27 + $0x10] sm:$0xff]
  %v31 = vld [vmem:[%s27 + $0x18] sm:$0xff]
  %s32 = scalar_lea.vmem %s3, 64
  %v33 = vld [vmem:[%s32] sm:$0xff]
  %v34 = vld [vmem:[%s32 + $0x8] sm:$0xff]
  %v35 = vld [vmem:[%s32 + $0x10] sm:$0xff]
  %v36 = vld [vmem:[%s32 + $0x18] sm:$0xff]
  %v37 = vld [vmem:[%s4] sm:$0x1]
  %v38 = vld [vmem:[%s5] sm:$0xf]
  %vm39 = vcmask 261120
  %v41 = vsel %vm39, %v38, 0
  %43 = vmatprep.subr.mxu0 0.0
  %44 = vmatpush1.msra.mxu0 0.0
  %45 = vmatprep.subr.mxu0 0.0
  %46 = vmatpush1.msra.mxu0 0.0
  %47 = vmatprep.subr.mxu0 0.0
  %48 = vmatpush1.msra.mxu0 0.0
  %49 = vmatprep.subr.mxu0 0.0
  %50 = vmatpush1.msra.mxu0 0.0
  %51 = vmatprep.subr.mxu0 0.0
  %52 = vmatpush1.msra.mxu0 0.0
  %53 = vmatprep.subr.mxu0 0.0
  %54 = vmatpush1.msra.mxu0 0.0
  %55 = vmatprep.subr.mxu0 0.0
  %56 = vmatpush1.msra.mxu0 0.0
  %57 = vmatprep.subr.mxu0 0.0
  %58 = vmatpush1.msra.mxu0 0.0
  %59 = vmatprep.subr.mxu0 0.0
  %60 = vmatpush1.msra.mxu0 0.0
  %61 = vmatprep.subr.mxu0 0.0
  %62 = vmatpush1.msra.mxu0 0.0
  %63 = vmatprep.subr.mxu0 0.0
  %64 = vmatpush1.msra.mxu0 0.0
  %65 = vmatprep.subr.mxu0 0.0
  %66 = vmatpush1.msra.mxu0 0.0
  %67 = vmatprep.subr.mxu0 0.0
  %68 = vmatpush1.msra.mxu0 %v26
  %69 = vmatprep.subr.mxu0 0.0
  %70 = vmatpush1.msra.mxu0 %v25
  %71 = vmatprep.subr.mxu0 0.0
  %72 = vmatpush1.msra.mxu0 %v24
  %73 = vmatprep.subr.mxu0 0.0
  %74 = vmatpush1.msra.mxu0 %v23
  %75 = vmatprep.subr.mxu0 0.0
  %76 = vmatpush2.msra.mxu0 0.0
  %77 = vmatprep.subr.mxu0 0.0
  %78 = vmatpush2.msra.mxu0 0.0
  %79 = vmatprep.subr.mxu0 0.0
  %80 = vmatpush2.msra.mxu0 0.0
  %81 = vmatprep.subr.mxu0 0.0
  %82 = vmatpush2.msra.mxu0 0.0
  %83 = vmatprep.subr.mxu0 0.0
  %84 = vmatpush2.msra.mxu0 0.0
  %85 = vmatprep.subr.mxu0 0.0
  %86 = vmatpush2.msra.mxu0 0.0
  %87 = vmatprep.subr.mxu0 0.0
  %88 = vmatpush2.msra.mxu0 0.0
  %89 = vmatprep.subr.mxu0 0.0
  %90 = vmatpush2.msra.mxu0 0.0
  %91 = vmatprep.subr.mxu0 0.0
  %92 = vmatpush2.msra.mxu0 0.0
  %93 = vmatprep.subr.mxu0 0.0
  %94 = vmatpush2.msra.mxu0 0.0
  %95 = vmatprep.subr.mxu0 0.0
  %96 = vmatpush2.msra.mxu0 0.0
  %97 = vmatprep.subr.mxu0 0.0
  %98 = vmatpush2.msra.mxu0 0.0
  %99 = vmatprep.subr.mxu0 0.0
  %100 = vmatpush2.msra.mxu0 0.0
  %101 = vmatprep.subr.mxu0 0.0
  %102 = vmatpush2.msra.mxu0 0.0
  %103 = vmatprep.subr.mxu0 0.0
  %104 = vmatpush2.msra.mxu0 0.0
  %105 = vmatprep.subr.mxu0 0.0
  %106 = vmatpush2.msra.mxu0 0.0
  %107 = vmatprep.mubr.f32.mxu0 0.0
  %108 = vmatmul.mubr.f32.gmra.mxu0 %v41
  %v109 = vpop.f32.mrf.mxu0
  %v110 = vadd.f32 0.0, %v109
  %v111 = vpop.f32.mrf.mxu0
  %112 = vdwg.mxu0
  %113 = vmatprep.subr.mxu0 0.0
  %114 = vmatpush1.msra.mxu0 0.0
  %115 = vmatprep.subr.mxu0 0.0
  %116 = vmatpush1.msra.mxu0 0.0
  %117 = vmatprep.subr.mxu0 0.0
  %118 = vmatpush1.msra.mxu0 0.0
  %119 = vmatprep.subr.mxu0 0.0
  %120 = vmatpush1.msra.mxu0 0.0
  %121 = vmatprep.subr.mxu0 0.0
  %122 = vmatpush1.msra.mxu0 0.0
  %123 = vmatprep.subr.mxu0 0.0
  %124 = vmatpush1.msra.mxu0 0.0
  %125 = vmatprep.subr.mxu0 0.0
  %126 = vmatpush1.msra.mxu0 0.0
  %127 = vmatprep.subr.mxu0 0.0
  %128 = vmatpush1.msra.mxu0 0.0
  %129 = vmatprep.subr.mxu0 0.0
  %130 = vmatpush1.msra.mxu0 0.0
  %131 = vmatprep.subr.mxu0 0.0
  %132 = vmatpush1.msra.mxu0 0.0
  %133 = vmatprep.subr.mxu0 0.0
  %134 = vmatpush1.msra.mxu0 0.0
  %135 = vmatprep.subr.mxu0 0.0
  %136 = vmatpush1.msra.mxu0 0.0
  %137 = vmatprep.subr.mxu0 0.0
  %138 = vmatpush1.msra.mxu0 %v31
  %139 = vmatprep.subr.mxu0 0.0
  %140 = vmatpush1.msra.mxu0 %v30
  %141 = vmatprep.subr.mxu0 0.0
  %142 = vmatpush1.msra.mxu0 %v29
  %143 = vmatprep.subr.mxu0 0.0
  %144 = vmatpush1.msra.mxu0 %v28
  %145 = vmatprep.subr.mxu0 0.0
  %146 = vmatpush2.msra.mxu0 0.0
  %147 = vmatprep.subr.mxu0 0.0
  %148 = vmatpush2.msra.mxu0 0.0
  %149 = vmatprep.subr.mxu0 0.0
  %150 = vmatpush2.msra.mxu0 0.0
  %151 = vmatprep.subr.mxu0 0.0
  %152 = vmatpush2.msra.mxu0 0.0
  %153 = vmatprep.subr.mxu0 0.0
  %154 = vmatpush2.msra.mxu0 0.0
  %155 = vmatprep.subr.mxu0 0.0
  %156 = vmatpush2.msra.mxu0 0.0
  %157 = vmatprep.subr.mxu0 0.0
  %158 = vmatpush2.msra.mxu0 0.0
  %159 = vmatprep.subr.mxu0 0.0
  %160 = vmatpush2.msra.mxu0 0.0
  %161 = vmatprep.subr.mxu0 0.0
  %162 = vmatpush2.msra.mxu0 0.0
  %163 = vmatprep.subr.mxu0 0.0
  %164 = vmatpush2.msra.mxu0 0.0
  %165 = vmatprep.subr.mxu0 0.0
  %166 = vmatpush2.msra.mxu0 0.0
  %167 = vmatprep.subr.mxu0 0.0
  %168 = vmatpush2.msra.mxu0 0.0
  %169 = vmatprep.subr.mxu0 0.0
  %170 = vmatpush2.msra.mxu0 0.0
  %171 = vmatprep.subr.mxu0 0.0
  %172 = vmatpush2.msra.mxu0 0.0
  %173 = vmatprep.subr.mxu0 0.0
  %174 = vmatpush2.msra.mxu0 0.0
  %175 = vmatprep.subr.mxu0 0.0
  %176 = vmatpush2.msra.mxu0 0.0
  %177 = vmatprep.mubr.f32.mxu0 0.0
  %178 = vmatmul.mubr.f32.gmra.mxu0 %v41
  %v179 = vpop.f32.mrf.mxu0
  %v180 = vadd.f32 0.0, %v179
  %v181 = vpop.f32.mrf.mxu0
  %182 = vdwg.mxu0
  %v183 = vld [vmem:[%s0] sm:$0xf]
  %v184 = vadd.f32 %v183, %v110
  %v185 = vxor.u32 %v184, 2147483648
  %v186 = vmul.f32 %v185, 1.442695
  %v187 = vpow.pop %v186
  %v188 = vadd.f32 %v187, 1.0
  %v189 = vrcp.pop %v188
  %v190 = vmul.f32 1.0, %v189
  %v191 = vld [vmem:[%s1] sm:$0xf]
  %v192 = vadd.f32 %v191, %v180
  %v193 = vxor.u32 %v192, 2147483648
  %v194 = vmul.f32 %v193, 1.442695
  %v195 = vpow.pop %v194
  %v196 = vadd.f32 %v195, 1.0
  %v197 = vrcp.pop %v196
  %v198 = vmul.f32 1.0, %v197
  %v199 = vld [vmem:[%s2] sm:$0xf]
  %v201 = vlaneseq
  %v202 = vshrl.u32 %v201, 7
  %v203 = vsub.s32 0, %v202
  %v204 = vrot.slane %v37, %v203
  %206 = vmatprep.subr.mxu0 0.0
  %207 = vmatpush1.msra.mxu0 0.0
  %208 = vmatprep.subr.mxu0 0.0
  %209 = vmatpush1.msra.mxu0 0.0
  %210 = vmatprep.subr.mxu0 0.0
  %211 = vmatpush1.msra.mxu0 0.0
  %212 = vmatprep.subr.mxu0 0.0
  %213 = vmatpush1.msra.mxu0 0.0
  %214 = vmatprep.subr.mxu0 0.0
  %215 = vmatpush1.msra.mxu0 0.0
  %216 = vmatprep.subr.mxu0 0.0
  %217 = vmatpush1.msra.mxu0 0.0
  %218 = vmatprep.subr.mxu0 0.0
  %219 = vmatpush1.msra.mxu0 0.0
  %220 = vmatprep.subr.mxu0 0.0
  %221 = vmatpush1.msra.mxu0 0.0
  %222 = vmatprep.subr.mxu0 0.0
  %223 = vmatpush1.msra.mxu0 0.0
  %224 = vmatprep.subr.mxu0 0.0
  %225 = vmatpush1.msra.mxu0 0.0
  %226 = vmatprep.subr.mxu0 0.0
  %227 = vmatpush1.msra.mxu0 0.0
  %228 = vmatprep.subr.mxu0 0.0
  %229 = vmatpush1.msra.mxu0 0.0
  %230 = vmatprep.subr.mxu0 0.0
  %231 = vmatpush1.msra.mxu0 %v36
  %232 = vmatprep.subr.mxu0 0.0
  %233 = vmatpush1.msra.mxu0 %v35
  %234 = vmatprep.subr.mxu0 0.0
  %235 = vmatpush1.msra.mxu0 %v34
  %236 = vmatprep.subr.mxu0 0.0
  %237 = vmatpush1.msra.mxu0 %v33
  %238 = vmatprep.subr.mxu0 0.0
  %239 = vmatpush2.msra.mxu0 0.0
  %240 = vmatprep.subr.mxu0 0.0
  %241 = vmatpush2.msra.mxu0 0.0
  %242 = vmatprep.subr.mxu0 0.0
  %243 = vmatpush2.msra.mxu0 0.0
  %244 = vmatprep.subr.mxu0 0.0
  %245 = vmatpush2.msra.mxu0 0.0
  %246 = vmatprep.subr.mxu0 0.0
  %247 = vmatpush2.msra.mxu0 0.0
  %248 = vmatprep.subr.mxu0 0.0
  %249 = vmatpush2.msra.mxu0 0.0
  %250 = vmatprep.subr.mxu0 0.0
  %251 = vmatpush2.msra.mxu0 0.0
  %252 = vmatprep.subr.mxu0 0.0
  %253 = vmatpush2.msra.mxu0 0.0
  %254 = vmatprep.subr.mxu0 0.0
  %255 = vmatpush2.msra.mxu0 0.0
  %256 = vmatprep.subr.mxu0 0.0
  %257 = vmatpush2.msra.mxu0 0.0
  %258 = vmatprep.subr.mxu0 0.0
  %259 = vmatpush2.msra.mxu0 0.0
  %260 = vmatprep.subr.mxu0 0.0
  %261 = vmatpush2.msra.mxu0 0.0
  %262 = vmatprep.subr.mxu0 0.0
  %263 = vmatpush2.msra.mxu0 0.0
  %264 = vmatprep.subr.mxu0 0.0
  %265 = vmatpush2.msra.mxu0 0.0
  %266 = vmatprep.subr.mxu0 0.0
  %267 = vmatpush2.msra.mxu0 0.0
  %268 = vmatprep.subr.mxu0 0.0
  %269 = vmatpush2.msra.mxu0 0.0
  %270 = vmatprep.mubr.f32.mxu0 0.0
  %271 = vmatmul.mubr.f32.gmra.mxu0 %v41
  %v272 = vpop.f32.mrf.mxu0
  %v273 = vadd.f32 %v204, %v272
  %v274 = vpop.f32.mrf.mxu0
  %275 = vdwg.mxu0
  %v276 = vmul.f32 %v190, %v273
  %v277 = vadd.f32 %v199, %v276
  %v278 = vtanh.pop %v277
  %v279 = vsub.f32 %v38, %v278
  %v280 = vmul.f32 %v198, %v279
  %v281 = vadd.f32 %v278, %v280
  %vm282 = vcmask 257024
  %283 = vst.msk [vmem:[%s6] sm:$0xf] %vm282, %v281
  %v285 = vsel %vm39, %v281, 0
  %287 = vmatprep.subr.mxu0 0.0
  %288 = vmatpush1.msra.mxu0 0.0
  %289 = vmatprep.subr.mxu0 0.0
  %290 = vmatpush1.msra.mxu0 0.0
  %291 = vmatprep.subr.mxu0 0.0
  %292 = vmatpush1.msra.mxu0 0.0
  %293 = vmatprep.subr.mxu0 0.0
  %294 = vmatpush1.msra.mxu0 0.0
  %295 = vmatprep.subr.mxu0 0.0
  %296 = vmatpush1.msra.mxu0 0.0
  %297 = vmatprep.subr.mxu0 0.0
  %298 = vmatpush1.msra.mxu0 0.0
  %299 = vmatprep.subr.mxu0 0.0
  %300 = vmatpush1.msra.mxu0 0.0
  %301 = vmatprep.subr.mxu0 0.0
  %302 = vmatpush1.msra.mxu0 0.0
  %303 = vmatprep.subr.mxu0 0.0
  %304 = vmatpush1.msra.mxu0 0.0
  %305 = vmatprep.subr.mxu0 0.0
  %306 = vmatpush1.msra.mxu0 0.0
  %307 = vmatprep.subr.mxu0 0.0
  %308 = vmatpush1.msra.mxu0 0.0
  %309 = vmatprep.subr.mxu0 0.0
  %310 = vmatpush1.msra.mxu0 0.0
  %311 = vmatprep.subr.mxu0 0.0
  %312 = vmatpush1.msra.mxu0 %v26
  %313 = vmatprep.subr.mxu0 0.0
  %314 = vmatpush1.msra.mxu0 %v25
  %315 = vmatprep.subr.mxu0 0.0
  %316 = vmatpush1.msra.mxu0 %v24
  %317 = vmatprep.subr.mxu0 0.0
  %318 = vmatpush1.msra.mxu0 %v23
  %319 = vmatprep.subr.mxu0 0.0
  %320 = vmatpush2.msra.mxu0 0.0
  %321 = vmatprep.subr.mxu0 0.0
  %322 = vmatpush2.msra.mxu0 0.0
  %323 = vmatprep.subr.mxu0 0.0
  %324 = vmatpush2.msra.mxu0 0.0
  %325 = vmatprep.subr.mxu0 0.0
  %326 = vmatpush2.msra.mxu0 0.0
  %327 = vmatprep.subr.mxu0 0.0
  %328 = vmatpush2.msra.mxu0 0.0
  %329 = vmatprep.subr.mxu0 0.0
  %330 = vmatpush2.msra.mxu0 0.0
  %331 = vmatprep.subr.mxu0 0.0
  %332 = vmatpush2.msra.mxu0 0.0
  %333 = vmatprep.subr.mxu0 0.0
  %334 = vmatpush2.msra.mxu0 0.0
  %335 = vmatprep.subr.mxu0 0.0
  %336 = vmatpush2.msra.mxu0 0.0
  %337 = vmatprep.subr.mxu0 0.0
  %338 = vmatpush2.msra.mxu0 0.0
  %339 = vmatprep.subr.mxu0 0.0
  %340 = vmatpush2.msra.mxu0 0.0
  %341 = vmatprep.subr.mxu0 0.0
  %342 = vmatpush2.msra.mxu0 0.0
  %343 = vmatprep.subr.mxu0 0.0
  %344 = vmatpush2.msra.mxu0 0.0
  %345 = vmatprep.subr.mxu0 0.0
  %346 = vmatpush2.msra.mxu0 0.0
  %347 = vmatprep.subr.mxu0 0.0
  %348 = vmatpush2.msra.mxu0 0.0
  %349 = vmatprep.subr.mxu0 0.0
  %350 = vmatpush2.msra.mxu0 0.0
  %351 = vmatprep.mubr.f32.mxu0 0.0
  %352 = vmatmul.mubr.f32.gmra.mxu0 %v285
  %v353 = vpop.f32.mrf.mxu0
  %v354 = vadd.f32 0.0, %v353
  %v355 = vpop.f32.mrf.mxu0
  %356 = vdwg.mxu0
  %357 = vmatprep.subr.mxu0 0.0
  %358 = vmatpush1.msra.mxu0 0.0
  %359 = vmatprep.subr.mxu0 0.0
  %360 = vmatpush1.msra.mxu0 0.0
  %361 = vmatprep.subr.mxu0 0.0
  %362 = vmatpush1.msra.mxu0 0.0
  %363 = vmatprep.subr.mxu0 0.0
  %364 = vmatpush1.msra.mxu0 0.0
  %365 = vmatprep.subr.mxu0 0.0
  %366 = vmatpush1.msra.mxu0 0.0
  %367 = vmatprep.subr.mxu0 0.0
  %368 = vmatpush1.msra.mxu0 0.0
  %369 = vmatprep.subr.mxu0 0.0
  %370 = vmatpush1.msra.mxu0 0.0
  %371 = vmatprep.subr.mxu0 0.0
  %372 = vmatpush1.msra.mxu0 0.0
  %373 = vmatprep.subr.mxu0 0.0
  %374 = vmatpush1.msra.mxu0 0.0
  %375 = vmatprep.subr.mxu0 0.0
  %376 = vmatpush1.msra.mxu0 0.0
  %377 = vmatprep.subr.mxu0 0.0
  %378 = vmatpush1.msra.mxu0 0.0
  %379 = vmatprep.subr.mxu0 0.0
  %380 = vmatpush1.msra.mxu0 0.0
  %381 = vmatprep.subr.mxu0 0.0
  %382 = vmatpush1.msra.mxu0 %v31
  %383 = vmatprep.subr.mxu0 0.0
  %384 = vmatpush1.msra.mxu0 %v30
  %385 = vmatprep.subr.mxu0 0.0
  %386 = vmatpush1.msra.mxu0 %v29
  %387 = vmatprep.subr.mxu0 0.0
  %388 = vmatpush1.msra.mxu0 %v28
  %389 = vmatprep.subr.mxu0 0.0
  %390 = vmatpush2.msra.mxu0 0.0
  %391 = vmatprep.subr.mxu0 0.0
  %392 = vmatpush2.msra.mxu0 0.0
  %393 = vmatprep.subr.mxu0 0.0
  %394 = vmatpush2.msra.mxu0 0.0
  %395 = vmatprep.subr.mxu0 0.0
  %396 = vmatpush2.msra.mxu0 0.0
  %397 = vmatprep.subr.mxu0 0.0
  %398 = vmatpush2.msra.mxu0 0.0
  %399 = vmatprep.subr.mxu0 0.0
  %400 = vmatpush2.msra.mxu0 0.0
  %401 = vmatprep.subr.mxu0 0.0
  %402 = vmatpush2.msra.mxu0 0.0
  %403 = vmatprep.subr.mxu0 0.0
  %404 = vmatpush2.msra.mxu0 0.0
  %405 = vmatprep.subr.mxu0 0.0
  %406 = vmatpush2.msra.mxu0 0.0
  %407 = vmatprep.subr.mxu0 0.0
  %408 = vmatpush2.msra.mxu0 0.0
  %409 = vmatprep.subr.mxu0 0.0
  %410 = vmatpush2.msra.mxu0 0.0
  %411 = vmatprep.subr.mxu0 0.0
  %412 = vmatpush2.msra.mxu0 0.0
  %413 = vmatprep.subr.mxu0 0.0
  %414 = vmatpush2.msra.mxu0 0.0
  %415 = vmatprep.subr.mxu0 0.0
  %416 = vmatpush2.msra.mxu0 0.0
  %417 = vmatprep.subr.mxu0 0.0
  %418 = vmatpush2.msra.mxu0 0.0
  %419 = vmatprep.subr.mxu0 0.0
  %420 = vmatpush2.msra.mxu0 0.0
  %421 = vmatprep.mubr.f32.mxu0 0.0
  %422 = vmatmul.mubr.f32.gmra.mxu0 %v285
  %v423 = vpop.f32.mrf.mxu0
  %v424 = vadd.f32 0.0, %v423
  %v425 = vpop.f32.mrf.mxu0
  %426 = vdwg.mxu0
  %s427 = scalar_lea.vmem %s0, 4
  %v428 = vld [vmem:[%s427] sm:$0xf]
  %v429 = vadd.f32 %v428, %v354
  %v430 = vxor.u32 %v429, 2147483648
  %v431 = vmul.f32 %v430, 1.442695
  %v432 = vpow.pop %v431
  %v433 = vadd.f32 %v432, 1.0
  %v434 = vrcp.pop %v433
  %v435 = vmul.f32 1.0, %v434
  %s436 = scalar_lea.vmem %s1, 4
  %v437 = vld [vmem:[%s436] sm:$0xf]
  %v438 = vadd.f32 %v437, %v424
  %v439 = vxor.u32 %v438, 2147483648
  %v440 = vmul.f32 %v439, 1.442695
  %v441 = vpow.pop %v440
  %v442 = vadd.f32 %v441, 1.0
  %v443 = vrcp.pop %v442
  %v444 = vmul.f32 1.0, %v443
  %s445 = scalar_lea.vmem %s2, 4
  %v446 = vld [vmem:[%s445] sm:$0xf]
  %447 = vmatprep.subr.mxu0 0.0
  %448 = vmatpush1.msra.mxu0 0.0
  %449 = vmatprep.subr.mxu0 0.0
  %450 = vmatpush1.msra.mxu0 0.0
  %451 = vmatprep.subr.mxu0 0.0
  %452 = vmatpush1.msra.mxu0 0.0
  %453 = vmatprep.subr.mxu0 0.0
  %454 = vmatpush1.msra.mxu0 0.0
  %455 = vmatprep.subr.mxu0 0.0
  %456 = vmatpush1.msra.mxu0 0.0
  %457 = vmatprep.subr.mxu0 0.0
  %458 = vmatpush1.msra.mxu0 0.0
  %459 = vmatprep.subr.mxu0 0.0
  %460 = vmatpush1.msra.mxu0 0.0
  %461 = vmatprep.subr.mxu0 0.0
  %462 = vmatpush1.msra.mxu0 0.0
  %463 = vmatprep.subr.mxu0 0.0
  %464 = vmatpush1.msra.mxu0 0.0
  %465 = vmatprep.subr.mxu0 0.0
  %466 = vmatpush1.msra.mxu0 0.0
  %467 = vmatprep.subr.mxu0 0.0
  %468 = vmatpush1.msra.mxu0 0.0
  %469 = vmatprep.subr.mxu0 0.0
  %470 = vmatpush1.msra.mxu0 0.0
  %471 = vmatprep.subr.mxu0 0.0
  %472 = vmatpush1.msra.mxu0 %v36
  %473 = vmatprep.subr.mxu0 0.0
  %474 = vmatpush1.msra.mxu0 %v35
  %475 = vmatprep.subr.mxu0 0.0
  %476 = vmatpush1.msra.mxu0 %v34
  %477 = vmatprep.subr.mxu0 0.0
  %478 = vmatpush1.msra.mxu0 %v33
  %479 = vmatprep.subr.mxu0 0.0
  %480 = vmatpush2.msra.mxu0 0.0
  %481 = vmatprep.subr.mxu0 0.0
  %482 = vmatpush2.msra.mxu0 0.0
  %483 = vmatprep.subr.mxu0 0.0
  %484 = vmatpush2.msra.mxu0 0.0
  %485 = vmatprep.subr.mxu0 0.0
  %486 = vmatpush2.msra.mxu0 0.0
  %487 = vmatprep.subr.mxu0 0.0
  %488 = vmatpush2.msra.mxu0 0.0
  %489 = vmatprep.subr.mxu0 0.0
  %490 = vmatpush2.msra.mxu0 0.0
  %491 = vmatprep.subr.mxu0 0.0
  %492 = vmatpush2.msra.mxu0 0.0
  %493 = vmatprep.subr.mxu0 0.0
  %494 = vmatpush2.msra.mxu0 0.0
  %495 = vmatprep.subr.mxu0 0.0
  %496 = vmatpush2.msra.mxu0 0.0
  %497 = vmatprep.subr.mxu0 0.0
  %498 = vmatpush2.msra.mxu0 0.0
  %499 = vmatprep.subr.mxu0 0.0
  %500 = vmatpush2.msra.mxu0 0.0
  %501 = vmatprep.subr.mxu0 0.0
  %502 = vmatpush2.msra.mxu0 0.0
  %503 = vmatprep.subr.mxu0 0.0
  %504 = vmatpush2.msra.mxu0 0.0
  %505 = vmatprep.subr.mxu0 0.0
  %506 = vmatpush2.msra.mxu0 0.0
  %507 = vmatprep.subr.mxu0 0.0
  %508 = vmatpush2.msra.mxu0 0.0
  %509 = vmatprep.subr.mxu0 0.0
  %510 = vmatpush2.msra.mxu0 0.0
  %511 = vmatprep.mubr.f32.mxu0 0.0
  %512 = vmatmul.mubr.f32.gmra.mxu0 %v285
  %v513 = vpop.f32.mrf.mxu0
  %v514 = vadd.f32 %v204, %v513
  %v515 = vpop.f32.mrf.mxu0
  %516 = vdwg.mxu0
  %v517 = vmul.f32 %v435, %v514
  %v518 = vadd.f32 %v446, %v517
  %v519 = vtanh.pop %v518
  %v520 = vsub.f32 %v281, %v519
  %v521 = vmul.f32 %v444, %v520
  %v522 = vadd.f32 %v519, %v521
  %s523 = scalar_lea.vmem %s6, 4
  %524 = vst.msk [vmem:[%s523] sm:$0xf] %vm282, %v522
  %v526 = vsel %vm39, %v522, 0
  %528 = vmatprep.subr.mxu0 0.0
  %529 = vmatpush1.msra.mxu0 0.0
  %530 = vmatprep.subr.mxu0 0.0
  %531 = vmatpush1.msra.mxu0 0.0
  %532 = vmatprep.subr.mxu0 0.0
  %533 = vmatpush1.msra.mxu0 0.0
  %534 = vmatprep.subr.mxu0 0.0
  %535 = vmatpush1.msra.mxu0 0.0
  %536 = vmatprep.subr.mxu0 0.0
  %537 = vmatpush1.msra.mxu0 0.0
  %538 = vmatprep.subr.mxu0 0.0
  %539 = vmatpush1.msra.mxu0 0.0
  %540 = vmatprep.subr.mxu0 0.0
  %541 = vmatpush1.msra.mxu0 0.0
  %542 = vmatprep.subr.mxu0 0.0
  %543 = vmatpush1.msra.mxu0 0.0
  %544 = vmatprep.subr.mxu0 0.0
  %545 = vmatpush1.msra.mxu0 0.0
  %546 = vmatprep.subr.mxu0 0.0
  %547 = vmatpush1.msra.mxu0 0.0
  %548 = vmatprep.subr.mxu0 0.0
  %549 = vmatpush1.msra.mxu0 0.0
  %550 = vmatprep.subr.mxu0 0.0
  %551 = vmatpush1.msra.mxu0 0.0
  %552 = vmatprep.subr.mxu0 0.0
  %553 = vmatpush1.msra.mxu0 %v26
  %554 = vmatprep.subr.mxu0 0.0
  %555 = vmatpush1.msra.mxu0 %v25
  %556 = vmatprep.subr.mxu0 0.0
  %557 = vmatpush1.msra.mxu0 %v24
  %558 = vmatprep.subr.mxu0 0.0
  %559 = vmatpush1.msra.mxu0 %v23
  %560 = vmatprep.subr.mxu0 0.0
  %561 = vmatpush2.msra.mxu0 0.0
  %562 = vmatprep.subr.mxu0 0.0
  %563 = vmatpush2.msra.mxu0 0.0
  %564 = vmatprep.subr.mxu0 0.0
  %565 = vmatpush2.msra.mxu0 0.0
  %566 = vmatprep.subr.mxu0 0.0
  %567 = vmatpush2.msra.mxu0 0.0
  %568 = vmatprep.subr.mxu0 0.0
  %569 = vmatpush2.msra.mxu0 0.0
  %570 = vmatprep.subr.mxu0 0.0
  %571 = vmatpush2.msra.mxu0 0.0
  %572 = vmatprep.subr.mxu0 0.0
  %573 = vmatpush2.msra.mxu0 0.0
  %574 = vmatprep.subr.mxu0 0.0
  %575 = vmatpush2.msra.mxu0 0.0
  %576 = vmatprep.subr.mxu0 0.0
  %577 = vmatpush2.msra.mxu0 0.0
  %578 = vmatprep.subr.mxu0 0.0
  %579 = vmatpush2.msra.mxu0 0.0
  %580 = vmatprep.subr.mxu0 0.0
  %581 = vmatpush2.msra.mxu0 0.0
  %582 = vmatprep.subr.mxu0 0.0
  %583 = vmatpush2.msra.mxu0 0.0
  %584 = vmatprep.subr.mxu0 0.0
  %585 = vmatpush2.msra.mxu0 0.0
  %586 = vmatprep.subr.mxu0 0.0
  %587 = vmatpush2.msra.mxu0 0.0
  %588 = vmatprep.subr.mxu0 0.0
  %589 = vmatpush2.msra.mxu0 0.0
  %590 = vmatprep.subr.mxu0 0.0
  %591 = vmatpush2.msra.mxu0 0.0
  %592 = vmatprep.mubr.f32.mxu0 0.0
  %593 = vmatmul.mubr.f32.gmra.mxu0 %v526
  %v594 = vpop.f32.mrf.mxu0
  %v595 = vadd.f32 0.0, %v594
  %v596 = vpop.f32.mrf.mxu0
  %597 = vdwg.mxu0
  %598 = vmatprep.subr.mxu0 0.0
  %599 = vmatpush1.msra.mxu0 0.0
  %600 = vmatprep.subr.mxu0 0.0
  %601 = vmatpush1.msra.mxu0 0.0
  %602 = vmatprep.subr.mxu0 0.0
  %603 = vmatpush1.msra.mxu0 0.0
  %604 = vmatprep.subr.mxu0 0.0
  %605 = vmatpush1.msra.mxu0 0.0
  %606 = vmatprep.subr.mxu0 0.0
  %607 = vmatpush1.msra.mxu0 0.0
  %608 = vmatprep.subr.mxu0 0.0
  %609 = vmatpush1.msra.mxu0 0.0
  %610 = vmatprep.subr.mxu0 0.0
  %611 = vmatpush1.msra.mxu0 0.0
  %612 = vmatprep.subr.mxu0 0.0
  %613 = vmatpush1.msra.mxu0 0.0
  %614 = vmatprep.subr.mxu0 0.0
  %615 = vmatpush1.msra.mxu0 0.0
  %616 = vmatprep.subr.mxu0 0.0
  %617 = vmatpush1.msra.mxu0 0.0
  %618 = vmatprep.subr.mxu0 0.0
  %619 = vmatpush1.msra.mxu0 0.0
  %620 = vmatprep.subr.mxu0 0.0
  %621 = vmatpush1.msra.mxu0 0.0
  %622 = vmatprep.subr.mxu0 0.0
  %623 = vmatpush1.msra.mxu0 %v31
  %624 = vmatprep.subr.mxu0 0.0
  %625 = vmatpush1.msra.mxu0 %v30
  %626 = vmatprep.subr.mxu0 0.0
  %627 = vmatpush1.msra.mxu0 %v29
  %628 = vmatprep.subr.mxu0 0.0
  %629 = vmatpush1.msra.mxu0 %v28
  %630 = vmatprep.subr.mxu0 0.0
  %631 = vmatpush2.msra.mxu0 0.0
  %632 = vmatprep.subr.mxu0 0.0
  %633 = vmatpush2.msra.mxu0 0.0
  %634 = vmatprep.subr.mxu0 0.0
  %635 = vmatpush2.msra.mxu0 0.0
  %636 = vmatprep.subr.mxu0 0.0
  %637 = vmatpush2.msra.mxu0 0.0
  %638 = vmatprep.subr.mxu0 0.0
  %639 = vmatpush2.msra.mxu0 0.0
  %640 = vmatprep.subr.mxu0 0.0
  %641 = vmatpush2.msra.mxu0 0.0
  %642 = vmatprep.subr.mxu0 0.0
  %643 = vmatpush2.msra.mxu0 0.0
  %644 = vmatprep.subr.mxu0 0.0
  %645 = vmatpush2.msra.mxu0 0.0
  %646 = vmatprep.subr.mxu0 0.0
  %647 = vmatpush2.msra.mxu0 0.0
  %648 = vmatprep.subr.mxu0 0.0
  %649 = vmatpush2.msra.mxu0 0.0
  %650 = vmatprep.subr.mxu0 0.0
  %651 = vmatpush2.msra.mxu0 0.0
  %652 = vmatprep.subr.mxu0 0.0
  %653 = vmatpush2.msra.mxu0 0.0
  %654 = vmatprep.subr.mxu0 0.0
  %655 = vmatpush2.msra.mxu0 0.0
  %656 = vmatprep.subr.mxu0 0.0
  %657 = vmatpush2.msra.mxu0 0.0
  %658 = vmatprep.subr.mxu0 0.0
  %659 = vmatpush2.msra.mxu0 0.0
  %660 = vmatprep.subr.mxu0 0.0
  %661 = vmatpush2.msra.mxu0 0.0
  %662 = vmatprep.mubr.f32.mxu0 0.0
  %663 = vmatmul.mubr.f32.gmra.mxu0 %v526
  %v664 = vpop.f32.mrf.mxu0
  %v665 = vadd.f32 0.0, %v664
  %v666 = vpop.f32.mrf.mxu0
  %667 = vdwg.mxu0
  %s668 = scalar_lea.vmem %s0, 8
  %v669 = vld [vmem:[%s668] sm:$0xf]
  %v670 = vadd.f32 %v669, %v595
  %v671 = vxor.u32 %v670, 2147483648
  %v672 = vmul.f32 %v671, 1.442695
  %v673 = vpow.pop %v672
  %v674 = vadd.f32 %v673, 1.0
  %v675 = vrcp.pop %v674
  %v676 = vmul.f32 1.0, %v675
  %s677 = scalar_lea.vmem %s1, 8
  %v678 = vld [vmem:[%s677] sm:$0xf]
  %v679 = vadd.f32 %v678, %v665
  %v680 = vxor.u32 %v679, 2147483648
  %v681 = vmul.f32 %v680, 1.442695
  %v682 = vpow.pop %v681
  %v683 = vadd.f32 %v682, 1.0
  %v684 = vrcp.pop %v683
  %v685 = vmul.f32 1.0, %v684
  %s686 = scalar_lea.vmem %s2, 8
  %v687 = vld [vmem:[%s686] sm:$0xf]
  %688 = vmatprep.subr.mxu0 0.0
  %689 = vmatpush1.msra.mxu0 0.0
  %690 = vmatprep.subr.mxu0 0.0
  %691 = vmatpush1.msra.mxu0 0.0
  %692 = vmatprep.subr.mxu0 0.0
  %693 = vmatpush1.msra.mxu0 0.0
  %694 = vmatprep.subr.mxu0 0.0
  %695 = vmatpush1.msra.mxu0 0.0
  %696 = vmatprep.subr.mxu0 0.0
  %697 = vmatpush1.msra.mxu0 0.0
  %698 = vmatprep.subr.mxu0 0.0
  %699 = vmatpush1.msra.mxu0 0.0
  %700 = vmatprep.subr.mxu0 0.0
  %701 = vmatpush1.msra.mxu0 0.0
  %702 = vmatprep.subr.mxu0 0.0
  %703 = vmatpush1.msra.mxu0 0.0
  %704 = vmatprep.subr.mxu0 0.0
  %705 = vmatpush1.msra.mxu0 0.0
  %706 = vmatprep.subr.mxu0 0.0
  %707 = vmatpush1.msra.mxu0 0.0
  %708 = vmatprep.subr.mxu0 0.0
  %709 = vmatpush1.msra.mxu0 0.0
  %710 = vmatprep.subr.mxu0 0.0
  %711 = vmatpush1.msra.mxu0 0.0
  %712 = vmatprep.subr.mxu0 0.0
  %713 = vmatpush1.msra.mxu0 %v36
  %714 = vmatprep.subr.mxu0 0.0
  %715 = vmatpush1.msra.mxu0 %v35
  %716 = vmatprep.subr.mxu0 0.0
  %717 = vmatpush1.msra.mxu0 %v34
  %718 = vmatprep.subr.mxu0 0.0
  %719 = vmatpush1.msra.mxu0 %v33
  %720 = vmatprep.subr.mxu0 0.0
  %721 = vmatpush2.msra.mxu0 0.0
  %722 = vmatprep.subr.mxu0 0.0
  %723 = vmatpush2.msra.mxu0 0.0
  %724 = vmatprep.subr.mxu0 0.0
  %725 = vmatpush2.msra.mxu0 0.0
  %726 = vmatprep.subr.mxu0 0.0
  %727 = vmatpush2.msra.mxu0 0.0
  %728 = vmatprep.subr.mxu0 0.0
  %729 = vmatpush2.msra.mxu0 0.0
  %730 = vmatprep.subr.mxu0 0.0
  %731 = vmatpush2.msra.mxu0 0.0
  %732 = vmatprep.subr.mxu0 0.0
  %733 = vmatpush2.msra.mxu0 0.0
  %734 = vmatprep.subr.mxu0 0.0
  %735 = vmatpush2.msra.mxu0 0.0
  %736 = vmatprep.subr.mxu0 0.0
  %737 = vmatpush2.msra.mxu0 0.0
  %738 = vmatprep.subr.mxu0 0.0
  %739 = vmatpush2.msra.mxu0 0.0
  %740 = vmatprep.subr.mxu0 0.0
  %741 = vmatpush2.msra.mxu0 0.0
  %742 = vmatprep.subr.mxu0 0.0
  %743 = vmatpush2.msra.mxu0 0.0
  %744 = vmatprep.subr.mxu0 0.0
  %745 = vmatpush2.msra.mxu0 0.0
  %746 = vmatprep.subr.mxu0 0.0
  %747 = vmatpush2.msra.mxu0 0.0
  %748 = vmatprep.subr.mxu0 0.0
  %749 = vmatpush2.msra.mxu0 0.0
  %750 = vmatprep.subr.mxu0 0.0
  %751 = vmatpush2.msra.mxu0 0.0
  %752 = vmatprep.mubr.f32.mxu0 0.0
  %753 = vmatmul.mubr.f32.gmra.mxu0 %v526
  %v754 = vpop.f32.mrf.mxu0
  %v755 = vadd.f32 %v204, %v754
  %v756 = vpop.f32.mrf.mxu0
  %757 = vdwg.mxu0
  %v758 = vmul.f32 %v676, %v755
  %v759 = vadd.f32 %v687, %v758
  %v760 = vtanh.pop %v759
  %v761 = vsub.f32 %v522, %v760
  %v762 = vmul.f32 %v685, %v761
  %v763 = vadd.f32 %v760, %v762
  %s764 = scalar_lea.vmem %s6, 8
  %765 = vst.msk [vmem:[%s764] sm:$0xf] %vm282, %v763
  %v767 = vsel %vm39, %v763, 0
  %769 = vmatprep.subr.mxu0 0.0
  %770 = vmatpush1.msra.mxu0 0.0
  %771 = vmatprep.subr.mxu0 0.0
  %772 = vmatpush1.msra.mxu0 0.0
  %773 = vmatprep.subr.mxu0 0.0
  %774 = vmatpush1.msra.mxu0 0.0
  %775 = vmatprep.subr.mxu0 0.0
  %776 = vmatpush1.msra.mxu0 0.0
  %777 = vmatprep.subr.mxu0 0.0
  %778 = vmatpush1.msra.mxu0 0.0
  %779 = vmatprep.subr.mxu0 0.0
  %780 = vmatpush1.msra.mxu0 0.0
  %781 = vmatprep.subr.mxu0 0.0
  %782 = vmatpush1.msra.mxu0 0.0
  %783 = vmatprep.subr.mxu0 0.0
  %784 = vmatpush1.msra.mxu0 0.0
  %785 = vmatprep.subr.mxu0 0.0
  %786 = vmatpush1.msra.mxu0 0.0
  %787 = vmatprep.subr.mxu0 0.0
  %788 = vmatpush1.msra.mxu0 0.0
  %789 = vmatprep.subr.mxu0 0.0
  %790 = vmatpush1.msra.mxu0 0.0
  %791 = vmatprep.subr.mxu0 0.0
  %792 = vmatpush1.msra.mxu0 0.0
  %793 = vmatprep.subr.mxu0 0.0
  %794 = vmatpush1.msra.mxu0 %v26
  %795 = vmatprep.subr.mxu0 0.0
  %796 = vmatpush1.msra.mxu0 %v25
  %797 = vmatprep.subr.mxu0 0.0
  %798 = vmatpush1.msra.mxu0 %v24
  %799 = vmatprep.subr.mxu0 0.0
  %800 = vmatpush1.msra.mxu0 %v23
  %801 = vmatprep.subr.mxu0 0.0
  %802 = vmatpush2.msra.mxu0 0.0
  %803 = vmatprep.subr.mxu0 0.0
  %804 = vmatpush2.msra.mxu0 0.0
  %805 = vmatprep.subr.mxu0 0.0
  %806 = vmatpush2.msra.mxu0 0.0
  %807 = vmatprep.subr.mxu0 0.0
  %808 = vmatpush2.msra.mxu0 0.0
  %809 = vmatprep.subr.mxu0 0.0
  %810 = vmatpush2.msra.mxu0 0.0
  %811 = vmatprep.subr.mxu0 0.0
  %812 = vmatpush2.msra.mxu0 0.0
  %813 = vmatprep.subr.mxu0 0.0
  %814 = vmatpush2.msra.mxu0 0.0
  %815 = vmatprep.subr.mxu0 0.0
  %816 = vmatpush2.msra.mxu0 0.0
  %817 = vmatprep.subr.mxu0 0.0
  %818 = vmatpush2.msra.mxu0 0.0
  %819 = vmatprep.subr.mxu0 0.0
  %820 = vmatpush2.msra.mxu0 0.0
  %821 = vmatprep.subr.mxu0 0.0
  %822 = vmatpush2.msra.mxu0 0.0
  %823 = vmatprep.subr.mxu0 0.0
  %824 = vmatpush2.msra.mxu0 0.0
  %825 = vmatprep.subr.mxu0 0.0
  %826 = vmatpush2.msra.mxu0 0.0
  %827 = vmatprep.subr.mxu0 0.0
  %828 = vmatpush2.msra.mxu0 0.0
  %829 = vmatprep.subr.mxu0 0.0
  %830 = vmatpush2.msra.mxu0 0.0
  %831 = vmatprep.subr.mxu0 0.0
  %832 = vmatpush2.msra.mxu0 0.0
  %833 = vmatprep.mubr.f32.mxu0 0.0
  %834 = vmatmul.mubr.f32.gmra.mxu0 %v767
  %v835 = vpop.f32.mrf.mxu0
  %v836 = vadd.f32 0.0, %v835
  %v837 = vpop.f32.mrf.mxu0
  %838 = vdwg.mxu0
  %839 = vmatprep.subr.mxu0 0.0
  %840 = vmatpush1.msra.mxu0 0.0
  %841 = vmatprep.subr.mxu0 0.0
  %842 = vmatpush1.msra.mxu0 0.0
  %843 = vmatprep.subr.mxu0 0.0
  %844 = vmatpush1.msra.mxu0 0.0
  %845 = vmatprep.subr.mxu0 0.0
  %846 = vmatpush1.msra.mxu0 0.0
  %847 = vmatprep.subr.mxu0 0.0
  %848 = vmatpush1.msra.mxu0 0.0
  %849 = vmatprep.subr.mxu0 0.0
  %850 = vmatpush1.msra.mxu0 0.0
  %851 = vmatprep.subr.mxu0 0.0
  %852 = vmatpush1.msra.mxu0 0.0
  %853 = vmatprep.subr.mxu0 0.0
  %854 = vmatpush1.msra.mxu0 0.0
  %855 = vmatprep.subr.mxu0 0.0
  %856 = vmatpush1.msra.mxu0 0.0
  %857 = vmatprep.subr.mxu0 0.0
  %858 = vmatpush1.msra.mxu0 0.0
  %859 = vmatprep.subr.mxu0 0.0
  %860 = vmatpush1.msra.mxu0 0.0
  %861 = vmatprep.subr.mxu0 0.0
  %862 = vmatpush1.msra.mxu0 0.0
  %863 = vmatprep.subr.mxu0 0.0
  %864 = vmatpush1.msra.mxu0 %v31
  %865 = vmatprep.subr.mxu0 0.0
  %866 = vmatpush1.msra.mxu0 %v30
  %867 = vmatprep.subr.mxu0 0.0
  %868 = vmatpush1.msra.mxu0 %v29
  %869 = vmatprep.subr.mxu0 0.0
  %870 = vmatpush1.msra.mxu0 %v28
  %871 = vmatprep.subr.mxu0 0.0
  %872 = vmatpush2.msra.mxu0 0.0
  %873 = vmatprep.subr.mxu0 0.0
  %874 = vmatpush2.msra.mxu0 0.0
  %875 = vmatprep.subr.mxu0 0.0
  %876 = vmatpush2.msra.mxu0 0.0
  %877 = vmatprep.subr.mxu0 0.0
  %878 = vmatpush2.msra.mxu0 0.0
  %879 = vmatprep.subr.mxu0 0.0
  %880 = vmatpush2.msra.mxu0 0.0
  %881 = vmatprep.subr.mxu0 0.0
  %882 = vmatpush2.msra.mxu0 0.0
  %883 = vmatprep.subr.mxu0 0.0
  %884 = vmatpush2.msra.mxu0 0.0
  %885 = vmatprep.subr.mxu0 0.0
  %886 = vmatpush2.msra.mxu0 0.0
  %887 = vmatprep.subr.mxu0 0.0
  %888 = vmatpush2.msra.mxu0 0.0
  %889 = vmatprep.subr.mxu0 0.0
  %890 = vmatpush2.msra.mxu0 0.0
  %891 = vmatprep.subr.mxu0 0.0
  %892 = vmatpush2.msra.mxu0 0.0
  %893 = vmatprep.subr.mxu0 0.0
  %894 = vmatpush2.msra.mxu0 0.0
  %895 = vmatprep.subr.mxu0 0.0
  %896 = vmatpush2.msra.mxu0 0.0
  %897 = vmatprep.subr.mxu0 0.0
  %898 = vmatpush2.msra.mxu0 0.0
  %899 = vmatprep.subr.mxu0 0.0
  %900 = vmatpush2.msra.mxu0 0.0
  %901 = vmatprep.subr.mxu0 0.0
  %902 = vmatpush2.msra.mxu0 0.0
  %903 = vmatprep.mubr.f32.mxu0 0.0
  %904 = vmatmul.mubr.f32.gmra.mxu0 %v767
  %v905 = vpop.f32.mrf.mxu0
  %v906 = vadd.f32 0.0, %v905
  %v907 = vpop.f32.mrf.mxu0
  %908 = vdwg.mxu0
  %s909 = scalar_lea.vmem %s0, 12
  %v910 = vld [vmem:[%s909] sm:$0xf]
  %v911 = vadd.f32 %v910, %v836
  %v912 = vxor.u32 %v911, 2147483648
  %v913 = vmul.f32 %v912, 1.442695
  %v914 = vpow.pop %v913
  %v915 = vadd.f32 %v914, 1.0
  %v916 = vrcp.pop %v915
  %v917 = vmul.f32 1.0, %v916
  %s918 = scalar_lea.vmem %s1, 12
  %v919 = vld [vmem:[%s918] sm:$0xf]
  %v920 = vadd.f32 %v919, %v906
  %v921 = vxor.u32 %v920, 2147483648
  %v922 = vmul.f32 %v921, 1.442695
  %v923 = vpow.pop %v922
  %v924 = vadd.f32 %v923, 1.0
  %v925 = vrcp.pop %v924
  %v926 = vmul.f32 1.0, %v925
  %s927 = scalar_lea.vmem %s2, 12
  %v928 = vld [vmem:[%s927] sm:$0xf]
  %929 = vmatprep.subr.mxu0 0.0
  %930 = vmatpush1.msra.mxu0 0.0
  %931 = vmatprep.subr.mxu0 0.0
  %932 = vmatpush1.msra.mxu0 0.0
  %933 = vmatprep.subr.mxu0 0.0
  %934 = vmatpush1.msra.mxu0 0.0
  %935 = vmatprep.subr.mxu0 0.0
  %936 = vmatpush1.msra.mxu0 0.0
  %937 = vmatprep.subr.mxu0 0.0
  %938 = vmatpush1.msra.mxu0 0.0
  %939 = vmatprep.subr.mxu0 0.0
  %940 = vmatpush1.msra.mxu0 0.0
  %941 = vmatprep.subr.mxu0 0.0
  %942 = vmatpush1.msra.mxu0 0.0
  %943 = vmatprep.subr.mxu0 0.0
  %944 = vmatpush1.msra.mxu0 0.0
  %945 = vmatprep.subr.mxu0 0.0
  %946 = vmatpush1.msra.mxu0 0.0
  %947 = vmatprep.subr.mxu0 0.0
  %948 = vmatpush1.msra.mxu0 0.0
  %949 = vmatprep.subr.mxu0 0.0
  %950 = vmatpush1.msra.mxu0 0.0
  %951 = vmatprep.subr.mxu0 0.0
  %952 = vmatpush1.msra.mxu0 0.0
  %953 = vmatprep.subr.mxu0 0.0
  %954 = vmatpush1.msra.mxu0 %v36
  %955 = vmatprep.subr.mxu0 0.0
  %956 = vmatpush1.msra.mxu0 %v35
  %957 = vmatprep.subr.mxu0 0.0
  %958 = vmatpush1.msra.mxu0 %v34
  %959 = vmatprep.subr.mxu0 0.0
  %960 = vmatpush1.msra.mxu0 %v33
  %961 = vmatprep.subr.mxu0 0.0
  %962 = vmatpush2.msra.mxu0 0.0
  %963 = vmatprep.subr.mxu0 0.0
  %964 = vmatpush2.msra.mxu0 0.0
  %965 = vmatprep.subr.mxu0 0.0
  %966 = vmatpush2.msra.mxu0 0.0
  %967 = vmatprep.subr.mxu0 0.0
  %968 = vmatpush2.msra.mxu0 0.0
  %969 = vmatprep.subr.mxu0 0.0
  %970 = vmatpush2.msra.mxu0 0.0
  %971 = vmatprep.subr.mxu0 0.0
  %972 = vmatpush2.msra.mxu0 0.0
  %973 = vmatprep.subr.mxu0 0.0
  %974 = vmatpush2.msra.mxu0 0.0
  %975 = vmatprep.subr.mxu0 0.0
  %976 = vmatpush2.msra.mxu0 0.0
  %977 = vmatprep.subr.mxu0 0.0
  %978 = vmatpush2.msra.mxu0 0.0
  %979 = vmatprep.subr.mxu0 0.0
  %980 = vmatpush2.msra.mxu0 0.0
  %981 = vmatprep.subr.mxu0 0.0
  %982 = vmatpush2.msra.mxu0 0.0
  %983 = vmatprep.subr.mxu0 0.0
  %984 = vmatpush2.msra.mxu0 0.0
  %985 = vmatprep.subr.mxu0 0.0
  %986 = vmatpush2.msra.mxu0 0.0
  %987 = vmatprep.subr.mxu0 0.0
  %988 = vmatpush2.msra.mxu0 0.0
  %989 = vmatprep.subr.mxu0 0.0
  %990 = vmatpush2.msra.mxu0 0.0
  %991 = vmatprep.subr.mxu0 0.0
  %992 = vmatpush2.msra.mxu0 0.0
  %993 = vmatprep.mubr.f32.mxu0 0.0
  %994 = vmatmul.mubr.f32.gmra.mxu0 %v767
  %v995 = vpop.f32.mrf.mxu0
  %v996 = vadd.f32 %v204, %v995
  %v997 = vpop.f32.mrf.mxu0
  %998 = vdwg.mxu0
  %v999 = vmul.f32 %v917, %v996
  %v1000 = vadd.f32 %v928, %v999
  %v1001 = vtanh.pop %v1000
  %v1002 = vsub.f32 %v763, %v1001
  %v1003 = vmul.f32 %v926, %v1002
  %v1004 = vadd.f32 %v1001, %v1003
  %s1005 = scalar_lea.vmem %s6, 12
  %1006 = vst.msk [vmem:[%s1005] sm:$0xf] %vm282, %v1004
  %v1008 = vsel %vm39, %v1004, 0
  %1010 = vmatprep.subr.mxu0 0.0
  %1011 = vmatpush1.msra.mxu0 0.0
  %1012 = vmatprep.subr.mxu0 0.0
  %1013 = vmatpush1.msra.mxu0 0.0
  %1014 = vmatprep.subr.mxu0 0.0
  %1015 = vmatpush1.msra.mxu0 0.0
  %1016 = vmatprep.subr.mxu0 0.0
  %1017 = vmatpush1.msra.mxu0 0.0
  %1018 = vmatprep.subr.mxu0 0.0
  %1019 = vmatpush1.msra.mxu0 0.0
  %1020 = vmatprep.subr.mxu0 0.0
  %1021 = vmatpush1.msra.mxu0 0.0
  %1022 = vmatprep.subr.mxu0 0.0
  %1023 = vmatpush1.msra.mxu0 0.0
  %1024 = vmatprep.subr.mxu0 0.0
  %1025 = vmatpush1.msra.mxu0 0.0
  %1026 = vmatprep.subr.mxu0 0.0
  %1027 = vmatpush1.msra.mxu0 0.0
  %1028 = vmatprep.subr.mxu0 0.0
  %1029 = vmatpush1.msra.mxu0 0.0
  %1030 = vmatprep.subr.mxu0 0.0
  %1031 = vmatpush1.msra.mxu0 0.0
  %1032 = vmatprep.subr.mxu0 0.0
  %1033 = vmatpush1.msra.mxu0 0.0
  %1034 = vmatprep.subr.mxu0 0.0
  %1035 = vmatpush1.msra.mxu0 %v26
  %1036 = vmatprep.subr.mxu0 0.0
  %1037 = vmatpush1.msra.mxu0 %v25
  %1038 = vmatprep.subr.mxu0 0.0
  %1039 = vmatpush1.msra.mxu0 %v24
  %1040 = vmatprep.subr.mxu0 0.0
  %1041 = vmatpush1.msra.mxu0 %v23
  %1042 = vmatprep.subr.mxu0 0.0
  %1043 = vmatpush2.msra.mxu0 0.0
  %1044 = vmatprep.subr.mxu0 0.0
  %1045 = vmatpush2.msra.mxu0 0.0
  %1046 = vmatprep.subr.mxu0 0.0
  %1047 = vmatpush2.msra.mxu0 0.0
  %1048 = vmatprep.subr.mxu0 0.0
  %1049 = vmatpush2.msra.mxu0 0.0
  %1050 = vmatprep.subr.mxu0 0.0
  %1051 = vmatpush2.msra.mxu0 0.0
  %1052 = vmatprep.subr.mxu0 0.0
  %1053 = vmatpush2.msra.mxu0 0.0
  %1054 = vmatprep.subr.mxu0 0.0
  %1055 = vmatpush2.msra.mxu0 0.0
  %1056 = vmatprep.subr.mxu0 0.0
  %1057 = vmatpush2.msra.mxu0 0.0
  %1058 = vmatprep.subr.mxu0 0.0
  %1059 = vmatpush2.msra.mxu0 0.0
  %1060 = vmatprep.subr.mxu0 0.0
  %1061 = vmatpush2.msra.mxu0 0.0
  %1062 = vmatprep.subr.mxu0 0.0
  %1063 = vmatpush2.msra.mxu0 0.0
  %1064 = vmatprep.subr.mxu0 0.0
  %1065 = vmatpush2.msra.mxu0 0.0
  %1066 = vmatprep.subr.mxu0 0.0
  %1067 = vmatpush2.msra.mxu0 0.0
  %1068 = vmatprep.subr.mxu0 0.0
  %1069 = vmatpush2.msra.mxu0 0.0
  %1070 = vmatprep.subr.mxu0 0.0
  %1071 = vmatpush2.msra.mxu0 0.0
  %1072 = vmatprep.subr.mxu0 0.0
  %1073 = vmatpush2.msra.mxu0 0.0
  %1074 = vmatprep.mubr.f32.mxu0 0.0
  %1075 = vmatmul.mubr.f32.gmra.mxu0 %v1008
  %v1076 = vpop.f32.mrf.mxu0
  %v1077 = vadd.f32 0.0, %v1076
  %v1078 = vpop.f32.mrf.mxu0
  %1079 = vdwg.mxu0
  %1080 = vmatprep.subr.mxu0 0.0
  %1081 = vmatpush1.msra.mxu0 0.0
  %1082 = vmatprep.subr.mxu0 0.0
  %1083 = vmatpush1.msra.mxu0 0.0
  %1084 = vmatprep.subr.mxu0 0.0
  %1085 = vmatpush1.msra.mxu0 0.0
  %1086 = vmatprep.subr.mxu0 0.0
  %1087 = vmatpush1.msra.mxu0 0.0
  %1088 = vmatprep.subr.mxu0 0.0
  %1089 = vmatpush1.msra.mxu0 0.0
  %1090 = vmatprep.subr.mxu0 0.0
  %1091 = vmatpush1.msra.mxu0 0.0
  %1092 = vmatprep.subr.mxu0 0.0
  %1093 = vmatpush1.msra.mxu0 0.0
  %1094 = vmatprep.subr.mxu0 0.0
  %1095 = vmatpush1.msra.mxu0 0.0
  %1096 = vmatprep.subr.mxu0 0.0
  %1097 = vmatpush1.msra.mxu0 0.0
  %1098 = vmatprep.subr.mxu0 0.0
  %1099 = vmatpush1.msra.mxu0 0.0
  %1100 = vmatprep.subr.mxu0 0.0
  %1101 = vmatpush1.msra.mxu0 0.0
  %1102 = vmatprep.subr.mxu0 0.0
  %1103 = vmatpush1.msra.mxu0 0.0
  %1104 = vmatprep.subr.mxu0 0.0
  %1105 = vmatpush1.msra.mxu0 %v31
  %1106 = vmatprep.subr.mxu0 0.0
  %1107 = vmatpush1.msra.mxu0 %v30
  %1108 = vmatprep.subr.mxu0 0.0
  %1109 = vmatpush1.msra.mxu0 %v29
  %1110 = vmatprep.subr.mxu0 0.0
  %1111 = vmatpush1.msra.mxu0 %v28
  %1112 = vmatprep.subr.mxu0 0.0
  %1113 = vmatpush2.msra.mxu0 0.0
  %1114 = vmatprep.subr.mxu0 0.0
  %1115 = vmatpush2.msra.mxu0 0.0
  %1116 = vmatprep.subr.mxu0 0.0
  %1117 = vmatpush2.msra.mxu0 0.0
  %1118 = vmatprep.subr.mxu0 0.0
  %1119 = vmatpush2.msra.mxu0 0.0
  %1120 = vmatprep.subr.mxu0 0.0
  %1121 = vmatpush2.msra.mxu0 0.0
  %1122 = vmatprep.subr.mxu0 0.0
  %1123 = vmatpush2.msra.mxu0 0.0
  %1124 = vmatprep.subr.mxu0 0.0
  %1125 = vmatpush2.msra.mxu0 0.0
  %1126 = vmatprep.subr.mxu0 0.0
  %1127 = vmatpush2.msra.mxu0 0.0
  %1128 = vmatprep.subr.mxu0 0.0
  %1129 = vmatpush2.msra.mxu0 0.0
  %1130 = vmatprep.subr.mxu0 0.0
  %1131 = vmatpush2.msra.mxu0 0.0
  %1132 = vmatprep.subr.mxu0 0.0
  %1133 = vmatpush2.msra.mxu0 0.0
  %1134 = vmatprep.subr.mxu0 0.0
  %1135 = vmatpush2.msra.mxu0 0.0
  %1136 = vmatprep.subr.mxu0 0.0
  %1137 = vmatpush2.msra.mxu0 0.0
  %1138 = vmatprep.subr.mxu0 0.0
  %1139 = vmatpush2.msra.mxu0 0.0
  %1140 = vmatprep.subr.mxu0 0.0
  %1141 = vmatpush2.msra.mxu0 0.0
  %1142 = vmatprep.subr.mxu0 0.0
  %1143 = vmatpush2.msra.mxu0 0.0
  %1144 = vmatprep.mubr.f32.mxu0 0.0
  %1145 = vmatmul.mubr.f32.gmra.mxu0 %v1008
  %v1146 = vpop.f32.mrf.mxu0
  %v1147 = vadd.f32 0.0, %v1146
  %v1148 = vpop.f32.mrf.mxu0
  %1149 = vdwg.mxu0
  %s1150 = scalar_lea.vmem %s0, 16
  %v1151 = vld [vmem:[%s1150] sm:$0xf]
  %v1152 = vadd.f32 %v1151, %v1077
  %v1153 = vxor.u32 %v1152, 2147483648
  %v1154 = vmul.f32 %v1153, 1.442695
  %v1155 = vpow.pop %v1154
  %v1156 = vadd.f32 %v1155, 1.0
  %v1157 = vrcp.pop %v1156
  %v1158 = vmul.f32 1.0, %v1157
  %s1159 = scalar_lea.vmem %s1, 16
  %v1160 = vld [vmem:[%s1159] sm:$0xf]
  %v1161 = vadd.f32 %v1160, %v1147
  %v1162 = vxor.u32 %v1161, 2147483648
  %v1163 = vmul.f32 %v1162, 1.442695
  %v1164 = vpow.pop %v1163
  %v1165 = vadd.f32 %v1164, 1.0
  %v1166 = vrcp.pop %v1165
  %v1167 = vmul.f32 1.0, %v1166
  %s1168 = scalar_lea.vmem %s2, 16
  %v1169 = vld [vmem:[%s1168] sm:$0xf]
  %1170 = vmatprep.subr.mxu0 0.0
  %1171 = vmatpush1.msra.mxu0 0.0
  %1172 = vmatprep.subr.mxu0 0.0
  %1173 = vmatpush1.msra.mxu0 0.0
  %1174 = vmatprep.subr.mxu0 0.0
  %1175 = vmatpush1.msra.mxu0 0.0
  %1176 = vmatprep.subr.mxu0 0.0
  %1177 = vmatpush1.msra.mxu0 0.0
  %1178 = vmatprep.subr.mxu0 0.0
  %1179 = vmatpush1.msra.mxu0 0.0
  %1180 = vmatprep.subr.mxu0 0.0
  %1181 = vmatpush1.msra.mxu0 0.0
  %1182 = vmatprep.subr.mxu0 0.0
  %1183 = vmatpush1.msra.mxu0 0.0
  %1184 = vmatprep.subr.mxu0 0.0
  %1185 = vmatpush1.msra.mxu0 0.0
  %1186 = vmatprep.subr.mxu0 0.0
  %1187 = vmatpush1.msra.mxu0 0.0
  %1188 = vmatprep.subr.mxu0 0.0
  %1189 = vmatpush1.msra.mxu0 0.0
  %1190 = vmatprep.subr.mxu0 0.0
  %1191 = vmatpush1.msra.mxu0 0.0
  %1192 = vmatprep.subr.mxu0 0.0
  %1193 = vmatpush1.msra.mxu0 0.0
  %1194 = vmatprep.subr.mxu0 0.0
  %1195 = vmatpush1.msra.mxu0 %v36
  %1196 = vmatprep.subr.mxu0 0.0
  %1197 = vmatpush1.msra.mxu0 %v35
  %1198 = vmatprep.subr.mxu0 0.0
  %1199 = vmatpush1.msra.mxu0 %v34
  %1200 = vmatprep.subr.mxu0 0.0
  %1201 = vmatpush1.msra.mxu0 %v33
  %1202 = vmatprep.subr.mxu0 0.0
  %1203 = vmatpush2.msra.mxu0 0.0
  %1204 = vmatprep.subr.mxu0 0.0
  %1205 = vmatpush2.msra.mxu0 0.0
  %1206 = vmatprep.subr.mxu0 0.0
  %1207 = vmatpush2.msra.mxu0 0.0
  %1208 = vmatprep.subr.mxu0 0.0
  %1209 = vmatpush2.msra.mxu0 0.0
  %1210 = vmatprep.subr.mxu0 0.0
  %1211 = vmatpush2.msra.mxu0 0.0
  %1212 = vmatprep.subr.mxu0 0.0
  %1213 = vmatpush2.msra.mxu0 0.0
  %1214 = vmatprep.subr.mxu0 0.0
  %1215 = vmatpush2.msra.mxu0 0.0
  %1216 = vmatprep.subr.mxu0 0.0
  %1217 = vmatpush2.msra.mxu0 0.0
  %1218 = vmatprep.subr.mxu0 0.0
  %1219 = vmatpush2.msra.mxu0 0.0
  %1220 = vmatprep.subr.mxu0 0.0
  %1221 = vmatpush2.msra.mxu0 0.0
  %1222 = vmatprep.subr.mxu0 0.0
  %1223 = vmatpush2.msra.mxu0 0.0
  %1224 = vmatprep.subr.mxu0 0.0
  %1225 = vmatpush2.msra.mxu0 0.0
  %1226 = vmatprep.subr.mxu0 0.0
  %1227 = vmatpush2.msra.mxu0 0.0
  %1228 = vmatprep.subr.mxu0 0.0
  %1229 = vmatpush2.msra.mxu0 0.0
  %1230 = vmatprep.subr.mxu0 0.0
  %1231 = vmatpush2.msra.mxu0 0.0
  %1232 = vmatprep.subr.mxu0 0.0
  %1233 = vmatpush2.msra.mxu0 0.0
  %1234 = vmatprep.mubr.f32.mxu0 0.0
  %1235 = vmatmul.mubr.f32.gmra.mxu0 %v1008
  %v1236 = vpop.f32.mrf.mxu0
  %v1237 = vadd.f32 %v204, %v1236
  %v1238 = vpop.f32.mrf.mxu0
  %1239 = vdwg.mxu0
  %v1240 = vmul.f32 %v1158, %v1237
  %v1241 = vadd.f32 %v1169, %v1240
  %v1242 = vtanh.pop %v1241
  %v1243 = vsub.f32 %v1004, %v1242
  %v1244 = vmul.f32 %v1167, %v1243
  %v1245 = vadd.f32 %v1242, %v1244
  %s1246 = scalar_lea.vmem %s6, 16
  %1247 = vst.msk [vmem:[%s1246] sm:$0xf] %vm282, %v1245
  %v1249 = vsel %vm39, %v1245, 0
  %1251 = vmatprep.subr.mxu0 0.0
  %1252 = vmatpush1.msra.mxu0 0.0
  %1253 = vmatprep.subr.mxu0 0.0
  %1254 = vmatpush1.msra.mxu0 0.0
  %1255 = vmatprep.subr.mxu0 0.0
  %1256 = vmatpush1.msra.mxu0 0.0
  %1257 = vmatprep.subr.mxu0 0.0
  %1258 = vmatpush1.msra.mxu0 0.0
  %1259 = vmatprep.subr.mxu0 0.0
  %1260 = vmatpush1.msra.mxu0 0.0
  %1261 = vmatprep.subr.mxu0 0.0
  %1262 = vmatpush1.msra.mxu0 0.0
  %1263 = vmatprep.subr.mxu0 0.0
  %1264 = vmatpush1.msra.mxu0 0.0
  %1265 = vmatprep.subr.mxu0 0.0
  %1266 = vmatpush1.msra.mxu0 0.0
  %1267 = vmatprep.subr.mxu0 0.0
  %1268 = vmatpush1.msra.mxu0 0.0
  %1269 = vmatprep.subr.mxu0 0.0
  %1270 = vmatpush1.msra.mxu0 0.0
  %1271 = vmatprep.subr.mxu0 0.0
  %1272 = vmatpush1.msra.mxu0 0.0
  %1273 = vmatprep.subr.mxu0 0.0
  %1274 = vmatpush1.msra.mxu0 0.0
  %1275 = vmatprep.subr.mxu0 0.0
  %1276 = vmatpush1.msra.mxu0 %v26
  %1277 = vmatprep.subr.mxu0 0.0
  %1278 = vmatpush1.msra.mxu0 %v25
  %1279 = vmatprep.subr.mxu0 0.0
  %1280 = vmatpush1.msra.mxu0 %v24
  %1281 = vmatprep.subr.mxu0 0.0
  %1282 = vmatpush1.msra.mxu0 %v23
  %1283 = vmatprep.subr.mxu0 0.0
  %1284 = vmatpush2.msra.mxu0 0.0
  %1285 = vmatprep.subr.mxu0 0.0
  %1286 = vmatpush2.msra.mxu0 0.0
  %1287 = vmatprep.subr.mxu0 0.0
  %1288 = vmatpush2.msra.mxu0 0.0
  %1289 = vmatprep.subr.mxu0 0.0
  %1290 = vmatpush2.msra.mxu0 0.0
  %1291 = vmatprep.subr.mxu0 0.0
  %1292 = vmatpush2.msra.mxu0 0.0
  %1293 = vmatprep.subr.mxu0 0.0
  %1294 = vmatpush2.msra.mxu0 0.0
  %1295 = vmatprep.subr.mxu0 0.0
  %1296 = vmatpush2.msra.mxu0 0.0
  %1297 = vmatprep.subr.mxu0 0.0
  %1298 = vmatpush2.msra.mxu0 0.0
  %1299 = vmatprep.subr.mxu0 0.0
  %1300 = vmatpush2.msra.mxu0 0.0
  %1301 = vmatprep.subr.mxu0 0.0
  %1302 = vmatpush2.msra.mxu0 0.0
  %1303 = vmatprep.subr.mxu0 0.0
  %1304 = vmatpush2.msra.mxu0 0.0
  %1305 = vmatprep.subr.mxu0 0.0
  %1306 = vmatpush2.msra.mxu0 0.0
  %1307 = vmatprep.subr.mxu0 0.0
  %1308 = vmatpush2.msra.mxu0 0.0
  %1309 = vmatprep.subr.mxu0 0.0
  %1310 = vmatpush2.msra.mxu0 0.0
  %1311 = vmatprep.subr.mxu0 0.0
  %1312 = vmatpush2.msra.mxu0 0.0
  %1313 = vmatprep.subr.mxu0 0.0
  %1314 = vmatpush2.msra.mxu0 0.0
  %1315 = vmatprep.mubr.f32.mxu0 0.0
  %1316 = vmatmul.mubr.f32.gmra.mxu0 %v1249
  %v1317 = vpop.f32.mrf.mxu0
  %v1318 = vadd.f32 0.0, %v1317
  %v1319 = vpop.f32.mrf.mxu0
  %1320 = vdwg.mxu0
  %1321 = vmatprep.subr.mxu0 0.0
  %1322 = vmatpush1.msra.mxu0 0.0
  %1323 = vmatprep.subr.mxu0 0.0
  %1324 = vmatpush1.msra.mxu0 0.0
  %1325 = vmatprep.subr.mxu0 0.0
  %1326 = vmatpush1.msra.mxu0 0.0
  %1327 = vmatprep.subr.mxu0 0.0
  %1328 = vmatpush1.msra.mxu0 0.0
  %1329 = vmatprep.subr.mxu0 0.0
  %1330 = vmatpush1.msra.mxu0 0.0
  %1331 = vmatprep.subr.mxu0 0.0
  %1332 = vmatpush1.msra.mxu0 0.0
  %1333 = vmatprep.subr.mxu0 0.0
  %1334 = vmatpush1.msra.mxu0 0.0
  %1335 = vmatprep.subr.mxu0 0.0
  %1336 = vmatpush1.msra.mxu0 0.0
  %1337 = vmatprep.subr.mxu0 0.0
  %1338 = vmatpush1.msra.mxu0 0.0
  %1339 = vmatprep.subr.mxu0 0.0
  %1340 = vmatpush1.msra.mxu0 0.0
  %1341 = vmatprep.subr.mxu0 0.0
  %1342 = vmatpush1.msra.mxu0 0.0
  %1343 = vmatprep.subr.mxu0 0.0
  %1344 = vmatpush1.msra.mxu0 0.0
  %1345 = vmatprep.subr.mxu0 0.0
  %1346 = vmatpush1.msra.mxu0 %v31
  %1347 = vmatprep.subr.mxu0 0.0
  %1348 = vmatpush1.msra.mxu0 %v30
  %1349 = vmatprep.subr.mxu0 0.0
  %1350 = vmatpush1.msra.mxu0 %v29
  %1351 = vmatprep.subr.mxu0 0.0
  %1352 = vmatpush1.msra.mxu0 %v28
  %1353 = vmatprep.subr.mxu0 0.0
  %1354 = vmatpush2.msra.mxu0 0.0
  %1355 = vmatprep.subr.mxu0 0.0
  %1356 = vmatpush2.msra.mxu0 0.0
  %1357 = vmatprep.subr.mxu0 0.0
  %1358 = vmatpush2.msra.mxu0 0.0
  %1359 = vmatprep.subr.mxu0 0.0
  %1360 = vmatpush2.msra.mxu0 0.0
  %1361 = vmatprep.subr.mxu0 0.0
  %1362 = vmatpush2.msra.mxu0 0.0
  %1363 = vmatprep.subr.mxu0 0.0
  %1364 = vmatpush2.msra.mxu0 0.0
  %1365 = vmatprep.subr.mxu0 0.0
  %1366 = vmatpush2.msra.mxu0 0.0
  %1367 = vmatprep.subr.mxu0 0.0
  %1368 = vmatpush2.msra.mxu0 0.0
  %1369 = vmatprep.subr.mxu0 0.0
  %1370 = vmatpush2.msra.mxu0 0.0
  %1371 = vmatprep.subr.mxu0 0.0
  %1372 = vmatpush2.msra.mxu0 0.0
  %1373 = vmatprep.subr.mxu0 0.0
  %1374 = vmatpush2.msra.mxu0 0.0
  %1375 = vmatprep.subr.mxu0 0.0
  %1376 = vmatpush2.msra.mxu0 0.0
  %1377 = vmatprep.subr.mxu0 0.0
  %1378 = vmatpush2.msra.mxu0 0.0
  %1379 = vmatprep.subr.mxu0 0.0
  %1380 = vmatpush2.msra.mxu0 0.0
  %1381 = vmatprep.subr.mxu0 0.0
  %1382 = vmatpush2.msra.mxu0 0.0
  %1383 = vmatprep.subr.mxu0 0.0
  %1384 = vmatpush2.msra.mxu0 0.0
  %1385 = vmatprep.mubr.f32.mxu0 0.0
  %1386 = vmatmul.mubr.f32.gmra.mxu0 %v1249
  %v1387 = vpop.f32.mrf.mxu0
  %v1388 = vadd.f32 0.0, %v1387
  %v1389 = vpop.f32.mrf.mxu0
  %1390 = vdwg.mxu0
  %s1391 = scalar_lea.vmem %s0, 20
  %v1392 = vld [vmem:[%s1391] sm:$0xf]
  %v1393 = vadd.f32 %v1392, %v1318
  %v1394 = vxor.u32 %v1393, 2147483648
  %v1395 = vmul.f32 %v1394, 1.442695
  %v1396 = vpow.pop %v1395
  %v1397 = vadd.f32 %v1396, 1.0
  %v1398 = vrcp.pop %v1397
  %v1399 = vmul.f32 1.0, %v1398
  %s1400 = scalar_lea.vmem %s1, 20
  %v1401 = vld [vmem:[%s1400] sm:$0xf]
  %v1402 = vadd.f32 %v1401, %v1388
  %v1403 = vxor.u32 %v1402, 2147483648
  %v1404 = vmul.f32 %v1403, 1.442695
  %v1405 = vpow.pop %v1404
  %v1406 = vadd.f32 %v1405, 1.0
  %v1407 = vrcp.pop %v1406
  %v1408 = vmul.f32 1.0, %v1407
  %s1409 = scalar_lea.vmem %s2, 20
  %v1410 = vld [vmem:[%s1409] sm:$0xf]
  %1411 = vmatprep.subr.mxu0 0.0
  %1412 = vmatpush1.msra.mxu0 0.0
  %1413 = vmatprep.subr.mxu0 0.0
  %1414 = vmatpush1.msra.mxu0 0.0
  %1415 = vmatprep.subr.mxu0 0.0
  %1416 = vmatpush1.msra.mxu0 0.0
  %1417 = vmatprep.subr.mxu0 0.0
  %1418 = vmatpush1.msra.mxu0 0.0
  %1419 = vmatprep.subr.mxu0 0.0
  %1420 = vmatpush1.msra.mxu0 0.0
  %1421 = vmatprep.subr.mxu0 0.0
  %1422 = vmatpush1.msra.mxu0 0.0
  %1423 = vmatprep.subr.mxu0 0.0
  %1424 = vmatpush1.msra.mxu0 0.0
  %1425 = vmatprep.subr.mxu0 0.0
  %1426 = vmatpush1.msra.mxu0 0.0
  %1427 = vmatprep.subr.mxu0 0.0
  %1428 = vmatpush1.msra.mxu0 0.0
  %1429 = vmatprep.subr.mxu0 0.0
  %1430 = vmatpush1.msra.mxu0 0.0
  %1431 = vmatprep.subr.mxu0 0.0
  %1432 = vmatpush1.msra.mxu0 0.0
  %1433 = vmatprep.subr.mxu0 0.0
  %1434 = vmatpush1.msra.mxu0 0.0
  %1435 = vmatprep.subr.mxu0 0.0
  %1436 = vmatpush1.msra.mxu0 %v36
  %1437 = vmatprep.subr.mxu0 0.0
  %1438 = vmatpush1.msra.mxu0 %v35
  %1439 = vmatprep.subr.mxu0 0.0
  %1440 = vmatpush1.msra.mxu0 %v34
  %1441 = vmatprep.subr.mxu0 0.0
  %1442 = vmatpush1.msra.mxu0 %v33
  %1443 = vmatprep.subr.mxu0 0.0
  %1444 = vmatpush2.msra.mxu0 0.0
  %1445 = vmatprep.subr.mxu0 0.0
  %1446 = vmatpush2.msra.mxu0 0.0
  %1447 = vmatprep.subr.mxu0 0.0
  %1448 = vmatpush2.msra.mxu0 0.0
  %1449 = vmatprep.subr.mxu0 0.0
  %1450 = vmatpush2.msra.mxu0 0.0
  %1451 = vmatprep.subr.mxu0 0.0
  %1452 = vmatpush2.msra.mxu0 0.0
  %1453 = vmatprep.subr.mxu0 0.0
  %1454 = vmatpush2.msra.mxu0 0.0
  %1455 = vmatprep.subr.mxu0 0.0
  %1456 = vmatpush2.msra.mxu0 0.0
  %1457 = vmatprep.subr.mxu0 0.0
  %1458 = vmatpush2.msra.mxu0 0.0
  %1459 = vmatprep.subr.mxu0 0.0
  %1460 = vmatpush2.msra.mxu0 0.0
  %1461 = vmatprep.subr.mxu0 0.0
  %1462 = vmatpush2.msra.mxu0 0.0
  %1463 = vmatprep.subr.mxu0 0.0
  %1464 = vmatpush2.msra.mxu0 0.0
  %1465 = vmatprep.subr.mxu0 0.0
  %1466 = vmatpush2.msra.mxu0 0.0
  %1467 = vmatprep.subr.mxu0 0.0
  %1468 = vmatpush2.msra.mxu0 0.0
  %1469 = vmatprep.subr.mxu0 0.0
  %1470 = vmatpush2.msra.mxu0 0.0
  %1471 = vmatprep.subr.mxu0 0.0
  %1472 = vmatpush2.msra.mxu0 0.0
  %1473 = vmatprep.subr.mxu0 0.0
  %1474 = vmatpush2.msra.mxu0 0.0
  %1475 = vmatprep.mubr.f32.mxu0 0.0
  %1476 = vmatmul.mubr.f32.gmra.mxu0 %v1249
  %v1477 = vpop.f32.mrf.mxu0
  %v1478 = vadd.f32 %v204, %v1477
  %v1479 = vpop.f32.mrf.mxu0
  %1480 = vdwg.mxu0
  %v1481 = vmul.f32 %v1399, %v1478
  %v1482 = vadd.f32 %v1410, %v1481
  %v1483 = vtanh.pop %v1482
  %v1484 = vsub.f32 %v1245, %v1483
  %v1485 = vmul.f32 %v1408, %v1484
  %v1486 = vadd.f32 %v1483, %v1485
  %s1487 = scalar_lea.vmem %s6, 20
  %1488 = vst.msk [vmem:[%s1487] sm:$0xf] %vm282, %v1486
  %v1490 = vsel %vm39, %v1486, 0
  %1492 = vmatprep.subr.mxu0 0.0
  %1493 = vmatpush1.msra.mxu0 0.0
  %1494 = vmatprep.subr.mxu0 0.0
  %1495 = vmatpush1.msra.mxu0 0.0
  %1496 = vmatprep.subr.mxu0 0.0
  %1497 = vmatpush1.msra.mxu0 0.0
  %1498 = vmatprep.subr.mxu0 0.0
  %1499 = vmatpush1.msra.mxu0 0.0
  %1500 = vmatprep.subr.mxu0 0.0
  %1501 = vmatpush1.msra.mxu0 0.0
  %1502 = vmatprep.subr.mxu0 0.0
  %1503 = vmatpush1.msra.mxu0 0.0
  %1504 = vmatprep.subr.mxu0 0.0
  %1505 = vmatpush1.msra.mxu0 0.0
  %1506 = vmatprep.subr.mxu0 0.0
  %1507 = vmatpush1.msra.mxu0 0.0
  %1508 = vmatprep.subr.mxu0 0.0
  %1509 = vmatpush1.msra.mxu0 0.0
  %1510 = vmatprep.subr.mxu0 0.0
  %1511 = vmatpush1.msra.mxu0 0.0
  %1512 = vmatprep.subr.mxu0 0.0
  %1513 = vmatpush1.msra.mxu0 0.0
  %1514 = vmatprep.subr.mxu0 0.0
  %1515 = vmatpush1.msra.mxu0 0.0
  %1516 = vmatprep.subr.mxu0 0.0
  %1517 = vmatpush1.msra.mxu0 %v26
  %1518 = vmatprep.subr.mxu0 0.0
  %1519 = vmatpush1.msra.mxu0 %v25
  %1520 = vmatprep.subr.mxu0 0.0
  %1521 = vmatpush1.msra.mxu0 %v24
  %1522 = vmatprep.subr.mxu0 0.0
  %1523 = vmatpush1.msra.mxu0 %v23
  %1524 = vmatprep.subr.mxu0 0.0
  %1525 = vmatpush2.msra.mxu0 0.0
  %1526 = vmatprep.subr.mxu0 0.0
  %1527 = vmatpush2.msra.mxu0 0.0
  %1528 = vmatprep.subr.mxu0 0.0
  %1529 = vmatpush2.msra.mxu0 0.0
  %1530 = vmatprep.subr.mxu0 0.0
  %1531 = vmatpush2.msra.mxu0 0.0
  %1532 = vmatprep.subr.mxu0 0.0
  %1533 = vmatpush2.msra.mxu0 0.0
  %1534 = vmatprep.subr.mxu0 0.0
  %1535 = vmatpush2.msra.mxu0 0.0
  %1536 = vmatprep.subr.mxu0 0.0
  %1537 = vmatpush2.msra.mxu0 0.0
  %1538 = vmatprep.subr.mxu0 0.0
  %1539 = vmatpush2.msra.mxu0 0.0
  %1540 = vmatprep.subr.mxu0 0.0
  %1541 = vmatpush2.msra.mxu0 0.0
  %1542 = vmatprep.subr.mxu0 0.0
  %1543 = vmatpush2.msra.mxu0 0.0
  %1544 = vmatprep.subr.mxu0 0.0
  %1545 = vmatpush2.msra.mxu0 0.0
  %1546 = vmatprep.subr.mxu0 0.0
  %1547 = vmatpush2.msra.mxu0 0.0
  %1548 = vmatprep.subr.mxu0 0.0
  %1549 = vmatpush2.msra.mxu0 0.0
  %1550 = vmatprep.subr.mxu0 0.0
  %1551 = vmatpush2.msra.mxu0 0.0
  %1552 = vmatprep.subr.mxu0 0.0
  %1553 = vmatpush2.msra.mxu0 0.0
  %1554 = vmatprep.subr.mxu0 0.0
  %1555 = vmatpush2.msra.mxu0 0.0
  %1556 = vmatprep.mubr.f32.mxu0 0.0
  %1557 = vmatmul.mubr.f32.gmra.mxu0 %v1490
  %v1558 = vpop.f32.mrf.mxu0
  %v1559 = vadd.f32 0.0, %v1558
  %v1560 = vpop.f32.mrf.mxu0
  %1561 = vdwg.mxu0
  %1562 = vmatprep.subr.mxu0 0.0
  %1563 = vmatpush1.msra.mxu0 0.0
  %1564 = vmatprep.subr.mxu0 0.0
  %1565 = vmatpush1.msra.mxu0 0.0
  %1566 = vmatprep.subr.mxu0 0.0
  %1567 = vmatpush1.msra.mxu0 0.0
  %1568 = vmatprep.subr.mxu0 0.0
  %1569 = vmatpush1.msra.mxu0 0.0
  %1570 = vmatprep.subr.mxu0 0.0
  %1571 = vmatpush1.msra.mxu0 0.0
  %1572 = vmatprep.subr.mxu0 0.0
  %1573 = vmatpush1.msra.mxu0 0.0
  %1574 = vmatprep.subr.mxu0 0.0
  %1575 = vmatpush1.msra.mxu0 0.0
  %1576 = vmatprep.subr.mxu0 0.0
  %1577 = vmatpush1.msra.mxu0 0.0
  %1578 = vmatprep.subr.mxu0 0.0
  %1579 = vmatpush1.msra.mxu0 0.0
  %1580 = vmatprep.subr.mxu0 0.0
  %1581 = vmatpush1.msra.mxu0 0.0
  %1582 = vmatprep.subr.mxu0 0.0
  %1583 = vmatpush1.msra.mxu0 0.0
  %1584 = vmatprep.subr.mxu0 0.0
  %1585 = vmatpush1.msra.mxu0 0.0
  %1586 = vmatprep.subr.mxu0 0.0
  %1587 = vmatpush1.msra.mxu0 %v31
  %1588 = vmatprep.subr.mxu0 0.0
  %1589 = vmatpush1.msra.mxu0 %v30
  %1590 = vmatprep.subr.mxu0 0.0
  %1591 = vmatpush1.msra.mxu0 %v29
  %1592 = vmatprep.subr.mxu0 0.0
  %1593 = vmatpush1.msra.mxu0 %v28
  %1594 = vmatprep.subr.mxu0 0.0
  %1595 = vmatpush2.msra.mxu0 0.0
  %1596 = vmatprep.subr.mxu0 0.0
  %1597 = vmatpush2.msra.mxu0 0.0
  %1598 = vmatprep.subr.mxu0 0.0
  %1599 = vmatpush2.msra.mxu0 0.0
  %1600 = vmatprep.subr.mxu0 0.0
  %1601 = vmatpush2.msra.mxu0 0.0
  %1602 = vmatprep.subr.mxu0 0.0
  %1603 = vmatpush2.msra.mxu0 0.0
  %1604 = vmatprep.subr.mxu0 0.0
  %1605 = vmatpush2.msra.mxu0 0.0
  %1606 = vmatprep.subr.mxu0 0.0
  %1607 = vmatpush2.msra.mxu0 0.0
  %1608 = vmatprep.subr.mxu0 0.0
  %1609 = vmatpush2.msra.mxu0 0.0
  %1610 = vmatprep.subr.mxu0 0.0
  %1611 = vmatpush2.msra.mxu0 0.0
  %1612 = vmatprep.subr.mxu0 0.0
  %1613 = vmatpush2.msra.mxu0 0.0
  %1614 = vmatprep.subr.mxu0 0.0
  %1615 = vmatpush2.msra.mxu0 0.0
  %1616 = vmatprep.subr.mxu0 0.0
  %1617 = vmatpush2.msra.mxu0 0.0
  %1618 = vmatprep.subr.mxu0 0.0
  %1619 = vmatpush2.msra.mxu0 0.0
  %1620 = vmatprep.subr.mxu0 0.0
  %1621 = vmatpush2.msra.mxu0 0.0
  %1622 = vmatprep.subr.mxu0 0.0
  %1623 = vmatpush2.msra.mxu0 0.0
  %1624 = vmatprep.subr.mxu0 0.0
  %1625 = vmatpush2.msra.mxu0 0.0
  %1626 = vmatprep.mubr.f32.mxu0 0.0
  %1627 = vmatmul.mubr.f32.gmra.mxu0 %v1490
  %v1628 = vpop.f32.mrf.mxu0
  %v1629 = vadd.f32 0.0, %v1628
  %v1630 = vpop.f32.mrf.mxu0
  %1631 = vdwg.mxu0
  %s1632 = scalar_lea.vmem %s0, 24
  %v1633 = vld [vmem:[%s1632] sm:$0xf]
  %v1634 = vadd.f32 %v1633, %v1559
  %v1635 = vxor.u32 %v1634, 2147483648
  %v1636 = vmul.f32 %v1635, 1.442695
  %v1637 = vpow.pop %v1636
  %v1638 = vadd.f32 %v1637, 1.0
  %v1639 = vrcp.pop %v1638
  %v1640 = vmul.f32 1.0, %v1639
  %s1641 = scalar_lea.vmem %s1, 24
  %v1642 = vld [vmem:[%s1641] sm:$0xf]
  %v1643 = vadd.f32 %v1642, %v1629
  %v1644 = vxor.u32 %v1643, 2147483648
  %v1645 = vmul.f32 %v1644, 1.442695
  %v1646 = vpow.pop %v1645
  %v1647 = vadd.f32 %v1646, 1.0
  %v1648 = vrcp.pop %v1647
  %v1649 = vmul.f32 1.0, %v1648
  %s1650 = scalar_lea.vmem %s2, 24
  %v1651 = vld [vmem:[%s1650] sm:$0xf]
  %1652 = vmatprep.subr.mxu0 0.0
  %1653 = vmatpush1.msra.mxu0 0.0
  %1654 = vmatprep.subr.mxu0 0.0
  %1655 = vmatpush1.msra.mxu0 0.0
  %1656 = vmatprep.subr.mxu0 0.0
  %1657 = vmatpush1.msra.mxu0 0.0
  %1658 = vmatprep.subr.mxu0 0.0
  %1659 = vmatpush1.msra.mxu0 0.0
  %1660 = vmatprep.subr.mxu0 0.0
  %1661 = vmatpush1.msra.mxu0 0.0
  %1662 = vmatprep.subr.mxu0 0.0
  %1663 = vmatpush1.msra.mxu0 0.0
  %1664 = vmatprep.subr.mxu0 0.0
  %1665 = vmatpush1.msra.mxu0 0.0
  %1666 = vmatprep.subr.mxu0 0.0
  %1667 = vmatpush1.msra.mxu0 0.0
  %1668 = vmatprep.subr.mxu0 0.0
  %1669 = vmatpush1.msra.mxu0 0.0
  %1670 = vmatprep.subr.mxu0 0.0
  %1671 = vmatpush1.msra.mxu0 0.0
  %1672 = vmatprep.subr.mxu0 0.0
  %1673 = vmatpush1.msra.mxu0 0.0
  %1674 = vmatprep.subr.mxu0 0.0
  %1675 = vmatpush1.msra.mxu0 0.0
  %1676 = vmatprep.subr.mxu0 0.0
  %1677 = vmatpush1.msra.mxu0 %v36
  %1678 = vmatprep.subr.mxu0 0.0
  %1679 = vmatpush1.msra.mxu0 %v35
  %1680 = vmatprep.subr.mxu0 0.0
  %1681 = vmatpush1.msra.mxu0 %v34
  %1682 = vmatprep.subr.mxu0 0.0
  %1683 = vmatpush1.msra.mxu0 %v33
  %1684 = vmatprep.subr.mxu0 0.0
  %1685 = vmatpush2.msra.mxu0 0.0
  %1686 = vmatprep.subr.mxu0 0.0
  %1687 = vmatpush2.msra.mxu0 0.0
  %1688 = vmatprep.subr.mxu0 0.0
  %1689 = vmatpush2.msra.mxu0 0.0
  %1690 = vmatprep.subr.mxu0 0.0
  %1691 = vmatpush2.msra.mxu0 0.0
  %1692 = vmatprep.subr.mxu0 0.0
  %1693 = vmatpush2.msra.mxu0 0.0
  %1694 = vmatprep.subr.mxu0 0.0
  %1695 = vmatpush2.msra.mxu0 0.0
  %1696 = vmatprep.subr.mxu0 0.0
  %1697 = vmatpush2.msra.mxu0 0.0
  %1698 = vmatprep.subr.mxu0 0.0
  %1699 = vmatpush2.msra.mxu0 0.0
  %1700 = vmatprep.subr.mxu0 0.0
  %1701 = vmatpush2.msra.mxu0 0.0
  %1702 = vmatprep.subr.mxu0 0.0
  %1703 = vmatpush2.msra.mxu0 0.0
  %1704 = vmatprep.subr.mxu0 0.0
  %1705 = vmatpush2.msra.mxu0 0.0
  %1706 = vmatprep.subr.mxu0 0.0
  %1707 = vmatpush2.msra.mxu0 0.0
  %1708 = vmatprep.subr.mxu0 0.0
  %1709 = vmatpush2.msra.mxu0 0.0
  %1710 = vmatprep.subr.mxu0 0.0
  %1711 = vmatpush2.msra.mxu0 0.0
  %1712 = vmatprep.subr.mxu0 0.0
  %1713 = vmatpush2.msra.mxu0 0.0
  %1714 = vmatprep.subr.mxu0 0.0
  %1715 = vmatpush2.msra.mxu0 0.0
  %1716 = vmatprep.mubr.f32.mxu0 0.0
  %1717 = vmatmul.mubr.f32.gmra.mxu0 %v1490
  %v1718 = vpop.f32.mrf.mxu0
  %v1719 = vadd.f32 %v204, %v1718
  %v1720 = vpop.f32.mrf.mxu0
  %1721 = vdwg.mxu0
  %v1722 = vmul.f32 %v1640, %v1719
  %v1723 = vadd.f32 %v1651, %v1722
  %v1724 = vtanh.pop %v1723
  %v1725 = vsub.f32 %v1486, %v1724
  %v1726 = vmul.f32 %v1649, %v1725
  %v1727 = vadd.f32 %v1724, %v1726
  %s1728 = scalar_lea.vmem %s6, 24
  %1729 = vst.msk [vmem:[%s1728] sm:$0xf] %vm282, %v1727
  %v1731 = vsel %vm39, %v1727, 0
  %1733 = vmatprep.subr.mxu0 0.0
  %1734 = vmatpush1.msra.mxu0 0.0
  %1735 = vmatprep.subr.mxu0 0.0
  %1736 = vmatpush1.msra.mxu0 0.0
  %1737 = vmatprep.subr.mxu0 0.0
  %1738 = vmatpush1.msra.mxu0 0.0
  %1739 = vmatprep.subr.mxu0 0.0
  %1740 = vmatpush1.msra.mxu0 0.0
  %1741 = vmatprep.subr.mxu0 0.0
  %1742 = vmatpush1.msra.mxu0 0.0
  %1743 = vmatprep.subr.mxu0 0.0
  %1744 = vmatpush1.msra.mxu0 0.0
  %1745 = vmatprep.subr.mxu0 0.0
  %1746 = vmatpush1.msra.mxu0 0.0
  %1747 = vmatprep.subr.mxu0 0.0
  %1748 = vmatpush1.msra.mxu0 0.0
  %1749 = vmatprep.subr.mxu0 0.0
  %1750 = vmatpush1.msra.mxu0 0.0
  %1751 = vmatprep.subr.mxu0 0.0
  %1752 = vmatpush1.msra.mxu0 0.0
  %1753 = vmatprep.subr.mxu0 0.0
  %1754 = vmatpush1.msra.mxu0 0.0
  %1755 = vmatprep.subr.mxu0 0.0
  %1756 = vmatpush1.msra.mxu0 0.0
  %1757 = vmatprep.subr.mxu0 0.0
  %1758 = vmatpush1.msra.mxu0 %v26
  %1759 = vmatprep.subr.mxu0 0.0
  %1760 = vmatpush1.msra.mxu0 %v25
  %1761 = vmatprep.subr.mxu0 0.0
  %1762 = vmatpush1.msra.mxu0 %v24
  %1763 = vmatprep.subr.mxu0 0.0
  %1764 = vmatpush1.msra.mxu0 %v23
  %1765 = vmatprep.subr.mxu0 0.0
  %1766 = vmatpush2.msra.mxu0 0.0
  %1767 = vmatprep.subr.mxu0 0.0
  %1768 = vmatpush2.msra.mxu0 0.0
  %1769 = vmatprep.subr.mxu0 0.0
  %1770 = vmatpush2.msra.mxu0 0.0
  %1771 = vmatprep.subr.mxu0 0.0
  %1772 = vmatpush2.msra.mxu0 0.0
  %1773 = vmatprep.subr.mxu0 0.0
  %1774 = vmatpush2.msra.mxu0 0.0
  %1775 = vmatprep.subr.mxu0 0.0
  %1776 = vmatpush2.msra.mxu0 0.0
  %1777 = vmatprep.subr.mxu0 0.0
  %1778 = vmatpush2.msra.mxu0 0.0
  %1779 = vmatprep.subr.mxu0 0.0
  %1780 = vmatpush2.msra.mxu0 0.0
  %1781 = vmatprep.subr.mxu0 0.0
  %1782 = vmatpush2.msra.mxu0 0.0
  %1783 = vmatprep.subr.mxu0 0.0
  %1784 = vmatpush2.msra.mxu0 0.0
  %1785 = vmatprep.subr.mxu0 0.0
  %1786 = vmatpush2.msra.mxu0 0.0
  %1787 = vmatprep.subr.mxu0 0.0
  %1788 = vmatpush2.msra.mxu0 0.0
  %1789 = vmatprep.subr.mxu0 0.0
  %1790 = vmatpush2.msra.mxu0 0.0
  %1791 = vmatprep.subr.mxu0 0.0
  %1792 = vmatpush2.msra.mxu0 0.0
  %1793 = vmatprep.subr.mxu0 0.0
  %1794 = vmatpush2.msra.mxu0 0.0
  %1795 = vmatprep.subr.mxu0 0.0
  %1796 = vmatpush2.msra.mxu0 0.0
  %1797 = vmatprep.mubr.f32.mxu0 0.0
  %1798 = vmatmul.mubr.f32.gmra.mxu0 %v1731
  %v1799 = vpop.f32.mrf.mxu0
  %v1800 = vadd.f32 0.0, %v1799
  %v1801 = vpop.f32.mrf.mxu0
  %1802 = vdwg.mxu0
  %1803 = vmatprep.subr.mxu0 0.0
  %1804 = vmatpush1.msra.mxu0 0.0
  %1805 = vmatprep.subr.mxu0 0.0
  %1806 = vmatpush1.msra.mxu0 0.0
  %1807 = vmatprep.subr.mxu0 0.0
  %1808 = vmatpush1.msra.mxu0 0.0
  %1809 = vmatprep.subr.mxu0 0.0
  %1810 = vmatpush1.msra.mxu0 0.0
  %1811 = vmatprep.subr.mxu0 0.0
  %1812 = vmatpush1.msra.mxu0 0.0
  %1813 = vmatprep.subr.mxu0 0.0
  %1814 = vmatpush1.msra.mxu0 0.0
  %1815 = vmatprep.subr.mxu0 0.0
  %1816 = vmatpush1.msra.mxu0 0.0
  %1817 = vmatprep.subr.mxu0 0.0
  %1818 = vmatpush1.msra.mxu0 0.0
  %1819 = vmatprep.subr.mxu0 0.0
  %1820 = vmatpush1.msra.mxu0 0.0
  %1821 = vmatprep.subr.mxu0 0.0
  %1822 = vmatpush1.msra.mxu0 0.0
  %1823 = vmatprep.subr.mxu0 0.0
  %1824 = vmatpush1.msra.mxu0 0.0
  %1825 = vmatprep.subr.mxu0 0.0
  %1826 = vmatpush1.msra.mxu0 0.0
  %1827 = vmatprep.subr.mxu0 0.0
  %1828 = vmatpush1.msra.mxu0 %v31
  %1829 = vmatprep.subr.mxu0 0.0
  %1830 = vmatpush1.msra.mxu0 %v30
  %1831 = vmatprep.subr.mxu0 0.0
  %1832 = vmatpush1.msra.mxu0 %v29
  %1833 = vmatprep.subr.mxu0 0.0
  %1834 = vmatpush1.msra.mxu0 %v28
  %1835 = vmatprep.subr.mxu0 0.0
  %1836 = vmatpush2.msra.mxu0 0.0
  %1837 = vmatprep.subr.mxu0 0.0
  %1838 = vmatpush2.msra.mxu0 0.0
  %1839 = vmatprep.subr.mxu0 0.0
  %1840 = vmatpush2.msra.mxu0 0.0
  %1841 = vmatprep.subr.mxu0 0.0
  %1842 = vmatpush2.msra.mxu0 0.0
  %1843 = vmatprep.subr.mxu0 0.0
  %1844 = vmatpush2.msra.mxu0 0.0
  %1845 = vmatprep.subr.mxu0 0.0
  %1846 = vmatpush2.msra.mxu0 0.0
  %1847 = vmatprep.subr.mxu0 0.0
  %1848 = vmatpush2.msra.mxu0 0.0
  %1849 = vmatprep.subr.mxu0 0.0
  %1850 = vmatpush2.msra.mxu0 0.0
  %1851 = vmatprep.subr.mxu0 0.0
  %1852 = vmatpush2.msra.mxu0 0.0
  %1853 = vmatprep.subr.mxu0 0.0
  %1854 = vmatpush2.msra.mxu0 0.0
  %1855 = vmatprep.subr.mxu0 0.0
  %1856 = vmatpush2.msra.mxu0 0.0
  %1857 = vmatprep.subr.mxu0 0.0
  %1858 = vmatpush2.msra.mxu0 0.0
  %1859 = vmatprep.subr.mxu0 0.0
  %1860 = vmatpush2.msra.mxu0 0.0
  %1861 = vmatprep.subr.mxu0 0.0
  %1862 = vmatpush2.msra.mxu0 0.0
  %1863 = vmatprep.subr.mxu0 0.0
  %1864 = vmatpush2.msra.mxu0 0.0
  %1865 = vmatprep.subr.mxu0 0.0
  %1866 = vmatpush2.msra.mxu0 0.0
  %1867 = vmatprep.mubr.f32.mxu0 0.0
  %1868 = vmatmul.mubr.f32.gmra.mxu0 %v1731
  %v1869 = vpop.f32.mrf.mxu0
  %v1870 = vadd.f32 0.0, %v1869
  %v1871 = vpop.f32.mrf.mxu0
  %1872 = vdwg.mxu0
  %s1873 = scalar_lea.vmem %s0, 28
  %v1874 = vld [vmem:[%s1873] sm:$0xf]
  %v1875 = vadd.f32 %v1874, %v1800
  %v1876 = vxor.u32 %v1875, 2147483648
  %v1877 = vmul.f32 %v1876, 1.442695
  %v1878 = vpow.pop %v1877
  %v1879 = vadd.f32 %v1878, 1.0
  %v1880 = vrcp.pop %v1879
  %v1881 = vmul.f32 1.0, %v1880
  %s1882 = scalar_lea.vmem %s1, 28
  %v1883 = vld [vmem:[%s1882] sm:$0xf]
  %v1884 = vadd.f32 %v1883, %v1870
  %v1885 = vxor.u32 %v1884, 2147483648
  %v1886 = vmul.f32 %v1885, 1.442695
  %v1887 = vpow.pop %v1886
  %v1888 = vadd.f32 %v1887, 1.0
  %v1889 = vrcp.pop %v1888
  %v1890 = vmul.f32 1.0, %v1889
  %s1891 = scalar_lea.vmem %s2, 28
  %v1892 = vld [vmem:[%s1891] sm:$0xf]
  %1893 = vmatprep.subr.mxu0 0.0
  %1894 = vmatpush1.msra.mxu0 0.0
  %1895 = vmatprep.subr.mxu0 0.0
  %1896 = vmatpush1.msra.mxu0 0.0
  %1897 = vmatprep.subr.mxu0 0.0
  %1898 = vmatpush1.msra.mxu0 0.0
  %1899 = vmatprep.subr.mxu0 0.0
  %1900 = vmatpush1.msra.mxu0 0.0
  %1901 = vmatprep.subr.mxu0 0.0
  %1902 = vmatpush1.msra.mxu0 0.0
  %1903 = vmatprep.subr.mxu0 0.0
  %1904 = vmatpush1.msra.mxu0 0.0
  %1905 = vmatprep.subr.mxu0 0.0
  %1906 = vmatpush1.msra.mxu0 0.0
  %1907 = vmatprep.subr.mxu0 0.0
  %1908 = vmatpush1.msra.mxu0 0.0
  %1909 = vmatprep.subr.mxu0 0.0
  %1910 = vmatpush1.msra.mxu0 0.0
  %1911 = vmatprep.subr.mxu0 0.0
  %1912 = vmatpush1.msra.mxu0 0.0
  %1913 = vmatprep.subr.mxu0 0.0
  %1914 = vmatpush1.msra.mxu0 0.0
  %1915 = vmatprep.subr.mxu0 0.0
  %1916 = vmatpush1.msra.mxu0 0.0
  %1917 = vmatprep.subr.mxu0 0.0
  %1918 = vmatpush1.msra.mxu0 %v36
  %1919 = vmatprep.subr.mxu0 0.0
  %1920 = vmatpush1.msra.mxu0 %v35
  %1921 = vmatprep.subr.mxu0 0.0
  %1922 = vmatpush1.msra.mxu0 %v34
  %1923 = vmatprep.subr.mxu0 0.0
  %1924 = vmatpush1.msra.mxu0 %v33
  %1925 = vmatprep.subr.mxu0 0.0
  %1926 = vmatpush2.msra.mxu0 0.0
  %1927 = vmatprep.subr.mxu0 0.0
  %1928 = vmatpush2.msra.mxu0 0.0
  %1929 = vmatprep.subr.mxu0 0.0
  %1930 = vmatpush2.msra.mxu0 0.0
  %1931 = vmatprep.subr.mxu0 0.0
  %1932 = vmatpush2.msra.mxu0 0.0
  %1933 = vmatprep.subr.mxu0 0.0
  %1934 = vmatpush2.msra.mxu0 0.0
  %1935 = vmatprep.subr.mxu0 0.0
  %1936 = vmatpush2.msra.mxu0 0.0
  %1937 = vmatprep.subr.mxu0 0.0
  %1938 = vmatpush2.msra.mxu0 0.0
  %1939 = vmatprep.subr.mxu0 0.0
  %1940 = vmatpush2.msra.mxu0 0.0
  %1941 = vmatprep.subr.mxu0 0.0
  %1942 = vmatpush2.msra.mxu0 0.0
  %1943 = vmatprep.subr.mxu0 0.0
  %1944 = vmatpush2.msra.mxu0 0.0
  %1945 = vmatprep.subr.mxu0 0.0
  %1946 = vmatpush2.msra.mxu0 0.0
  %1947 = vmatprep.subr.mxu0 0.0
  %1948 = vmatpush2.msra.mxu0 0.0
  %1949 = vmatprep.subr.mxu0 0.0
  %1950 = vmatpush2.msra.mxu0 0.0
  %1951 = vmatprep.subr.mxu0 0.0
  %1952 = vmatpush2.msra.mxu0 0.0
  %1953 = vmatprep.subr.mxu0 0.0
  %1954 = vmatpush2.msra.mxu0 0.0
  %1955 = vmatprep.subr.mxu0 0.0
  %1956 = vmatpush2.msra.mxu0 0.0
  %1957 = vmatprep.mubr.f32.mxu0 0.0
  %1958 = vmatmul.mubr.f32.gmra.mxu0 %v1731
  %v1959 = vpop.f32.mrf.mxu0
  %v1960 = vadd.f32 %v204, %v1959
  %v1961 = vpop.f32.mrf.mxu0
  %1962 = vdwg.mxu0
  %v1963 = vmul.f32 %v1881, %v1960
  %v1964 = vadd.f32 %v1892, %v1963
  %v1965 = vtanh.pop %v1964
  %v1966 = vsub.f32 %v1727, %v1965
  %v1967 = vmul.f32 %v1890, %v1966
  %v1968 = vadd.f32 %v1965, %v1967
  %s1969 = scalar_lea.vmem %s6, 28
  %1970 = vst.msk [vmem:[%s1969] sm:$0xf] %vm282, %v1968
  // Predicated region
  $region26: #{only_gru_forward.7} parent=0 // pred_check
    _
  $region27: #{only_gru_forward.7} parent=0 // pred_check_branch
    %1972 = sbr.rel (0) target = $region29
  $region28: #{only_gru_forward.7} parent=0 // pred_region
    _
  $region29: #{only_gru_forward.7} parent=0 // pred_fallthru
    _
  // Predicated region
  $region30: #{only_gru_forward.7} parent=0 // pred_check
    _
  $region31: #{only_gru_forward.7} parent=0 // pred_check_branch
    %1974 = sbr.rel (0) target = $region33
  $region32: #{only_gru_forward.7} parent=0 // pred_region
    _
  $region33: #{only_gru_forward.7} parent=0 // pred_fallthru
    _

// kernel: only_gru_forward.5
$region0: #{only_gru_forward.5}
  #allocation0 [shape = 'u32[]', space=smem, size = 0x4, offset = 0x4, fixed_abs, tag = 'smem constant byte address 0x4 - core index']
  #allocation1 [shape = 'u32[144,128]{1,0:T(1,128)}', space=vmem, size = 0x12000, scoped, tag = 'internal scratch']
  %s0 = inlined_call_operand.vmem [shape: f32[2,10,4,32], index: 0, kind: input, shape index: {}]
  %s1 = inlined_call_operand.vmem [shape: f32[2,10,4,32], index: 1, kind: input, shape index: {}]
  %s2 = inlined_call_operand.vmem [shape: f32[2,10,4,32], index: 2, kind: input, shape index: {}]
  %s3 = inlined_call_operand.vmem [shape: f32[2,3,32,32], index: 3, kind: input, shape index: {}]
  %s4 = inlined_call_operand.vmem [shape: f32[2,1,32], index: 4, kind: input, shape index: {}]
  %s5 = inlined_call_operand.vmem [shape: f32[2,4,32], index: 5, kind: input, shape index: {}]
  %s6 = inlined_call_operand.vmem [shape: f32[2,10,4,32], index: 6, kind: output, shape index: {}]
  %s7 = sld [smem:[#allocation0]]
  $region57: #{only_gru_forward.5} parent=0
    _
  %s9 = ssub.s32 1, %s7
  %s10 = scalar_select 0, %s9, %s7
  loop: start=0, step=1, limit=4
  $region2: #{only_gru_forward.5} parent=0 // loop_pre_header
    _
  $region3: #{only_gru_forward.5} parent=0 // loop_header
    %s12 = sphi 0, %s16
    %p13 = scmp.ge.s32.totalorder %s12, 4
    %s22 = sphi 0, %s24
    %s25 = sphi 0, %s22
    %s26 = sphi 0, %s25
    %s42 = sphi 0, %s26
    %s48 = sphi 0, %s50
    %s51 = sphi 0, %s48
    %s52 = sphi 0, %s51
    %s68 = sphi 0, %s52
    %s74 = sphi 0, %s76
    %s77 = sphi 0, %s74
    %s78 = sphi 0, %s77
    %s94 = sphi 0, %s78
    %s100 = sphi 0, %s102
    %s103 = sphi 0, %s100
    %s104 = sphi 0, %s103
    %s120 = sphi 0, %s104
    %s126 = sphi 0, %s128
    %s129 = sphi 0, %s126
    %s130 = sphi 0, %s129
    %s146 = sphi 0, %s130
    %s152 = sphi 0, %s154
    %s155 = sphi 0, %s152
    %s156 = sphi 0, %s155
    %s172 = sphi 0, %s156
    %s178 = sphi 0, %s180
    %s181 = sphi 0, %s178
    %s182 = sphi 0, %s181
    %s198 = sphi 0, %s182
  $region4: #{only_gru_forward.5} parent=0 // loop_header_branch
    %15 = sbr.rel (%p13) target = $region8
  $region5: #{only_gru_forward.5} parent=0 // loop_body
    %s17 = ssub.s32 %s12, 1
    %s18 = ssub.s32 %s12, 2
    %s19 = sadd.s32 %s12, 1
    %s20 = ssub.s32 %s12, %s19
    %p21 = scmp.eq.s32.totalorder %s20, 0
    %s23 = sadd.s32 %s22, 1
    %s24 = scalar_select %p21, %s22, %s23
    %p27 = pneg %p21
    %p28 = scmp.eq.s32.totalorder %s12, 1
    %p29 = por %p27, %p28
    %p30 = scmp.ne.s32.totalorder %s22, %s25
    %p31 = scmp.eq.s32.totalorder %s12, 0
    %p32 = por %p30, %p31
    %p33 = scmp.ne.s32.totalorder %s22, %s25
    %p34 = scmp.eq.s32.totalorder %s17, 1
    %p35 = por %p33, %p34
    %p36 = scmp.ne.s32.totalorder %s25, %s26
    %p37 = scmp.eq.s32.totalorder %s17, 0
    %p38 = por %p36, %p37
    %p39 = scmp.ne.s32.totalorder %s25, %s26
    %p40 = scmp.eq.s32.totalorder %s18, 1
    %p41 = por %p39, %p40
    %p43 = scmp.ne.s32.totalorder %s26, %s42
    %p44 = scmp.eq.s32.totalorder %s18, 0
    %p45 = por %p43, %p44
    %s46 = ssub.s32 %s12, %s19
    %p47 = scmp.eq.s32.totalorder %s46, 0
    %s49 = sadd.s32 %s48, 1
    %s50 = scalar_select %p47, %s48, %s49
    %p53 = pneg %p47
    %p54 = scmp.eq.s32.totalorder %s12, 1
    %p55 = por %p53, %p54
    %p56 = scmp.ne.s32.totalorder %s48, %s51
    %p57 = scmp.eq.s32.totalorder %s12, 0
    %p58 = por %p56, %p57
    %p59 = scmp.ne.s32.totalorder %s48, %s51
    %p60 = scmp.eq.s32.totalorder %s17, 1
    %p61 = por %p59, %p60
    %p62 = scmp.ne.s32.totalorder %s51, %s52
    %p63 = scmp.eq.s32.totalorder %s17, 0
    %p64 = por %p62, %p63
    %p65 = scmp.ne.s32.totalorder %s51, %s52
    %p66 = scmp.eq.s32.totalorder %s18, 1
    %p67 = por %p65, %p66
    %p69 = scmp.ne.s32.totalorder %s52, %s68
    %p70 = scmp.eq.s32.totalorder %s18, 0
    %p71 = por %p69, %p70
    %s72 = ssub.s32 %s12, %s19
    %p73 = scmp.eq.s32.totalorder %s72, 0
    %s75 = sadd.s32 %s74, 1
    %s76 = scalar_select %p73, %s74, %s75
    %p79 = pneg %p73
    %p80 = scmp.eq.s32.totalorder %s12, 1
    %p81 = por %p79, %p80
    %p82 = scmp.ne.s32.totalorder %s74, %s77
    %p83 = scmp.eq.s32.totalorder %s12, 0
    %p84 = por %p82, %p83
    %p85 = scmp.ne.s32.totalorder %s74, %s77
    %p86 = scmp.eq.s32.totalorder %s17, 1
    %p87 = por %p85, %p86
    %p88 = scmp.ne.s32.totalorder %s77, %s78
    %p89 = scmp.eq.s32.totalorder %s17, 0
    %p90 = por %p88, %p89
    %p91 = scmp.ne.s32.totalorder %s77, %s78
    %p92 = scmp.eq.s32.totalorder %s18, 1
    %p93 = por %p91, %p92
    %p95 = scmp.ne.s32.totalorder %s78, %s94
    %p96 = scmp.eq.s32.totalorder %s18, 0
    %p97 = por %p95, %p96
    %s98 = ssub.s32 %s12, %s19
    %p99 = scmp.eq.s32.totalorder %s98, 0
    %s101 = sadd.s32 %s100, 1
    %s102 = scalar_select %p99, %s100, %s101
    %p105 = pneg %p99
    %p106 = scmp.eq.s32.totalorder %s12, 1
    %p107 = por %p105, %p106
    %p108 = scmp.ne.s32.totalorder %s100, %s103
    %p109 = scmp.eq.s32.totalorder %s12, 0
    %p110 = por %p108, %p109
    %p111 = scmp.ne.s32.totalorder %s100, %s103
    %p112 = scmp.eq.s32.totalorder %s17, 1
    %p113 = por %p111, %p112
    %p114 = scmp.ne.s32.totalorder %s103, %s104
    %p115 = scmp.eq.s32.totalorder %s17, 0
    %p116 = por %p114, %p115
    %p117 = scmp.ne.s32.totalorder %s103, %s104
    %p118 = scmp.eq.s32.totalorder %s18, 1
    %p119 = por %p117, %p118
    %p121 = scmp.ne.s32.totalorder %s104, %s120
    %p122 = scmp.eq.s32.totalorder %s18, 0
    %p123 = por %p121, %p122
    %s124 = ssub.s32 %s12, %s19
    %p125 = scmp.eq.s32.totalorder %s124, 0
    %s127 = sadd.s32 %s126, 1
    %s128 = scalar_select %p125, %s126, %s127
    %p131 = pneg %p125
    %p132 = scmp.eq.s32.totalorder %s12, 1
    %p133 = por %p131, %p132
    %p134 = scmp.ne.s32.totalorder %s126, %s129
    %p135 = scmp.eq.s32.totalorder %s12, 0
    %p136 = por %p134, %p135
    %p137 = scmp.ne.s32.totalorder %s126, %s129
    %p138 = scmp.eq.s32.totalorder %s17, 1
    %p139 = por %p137, %p138
    %p140 = scmp.ne.s32.totalorder %s129, %s130
    %p141 = scmp.eq.s32.totalorder %s17, 0
    %p142 = por %p140, %p141
    %p143 = scmp.ne.s32.totalorder %s129, %s130
    %p144 = scmp.eq.s32.totalorder %s18, 1
    %p145 = por %p143, %p144
    %p147 = scmp.ne.s32.totalorder %s130, %s146
    %p148 = scmp.eq.s32.totalorder %s18, 0
    %p149 = por %p147, %p148
    %s150 = ssub.s32 %s12, %s19
    %p151 = scmp.eq.s32.totalorder %s150, 0
    %s153 = sadd.s32 %s152, 1
    %s154 = scalar_select %p151, %s152, %s153
    %p157 = pneg %p151
    %p158 = scmp.eq.s32.totalorder %s12, 1
    %p159 = por %p157, %p158
    %p160 = scmp.ne.s32.totalorder %s152, %s155
    %p161 = scmp.eq.s32.totalorder %s12, 0
    %p162 = por %p160, %p161
    %p163 = scmp.ne.s32.totalorder %s152, %s155
    %p164 = scmp.eq.s32.totalorder %s17, 1
    %p165 = por %p163, %p164
    %p166 = scmp.ne.s32.totalorder %s155, %s156
    %p167 = scmp.eq.s32.totalorder %s17, 0
    %p168 = por %p166, %p167
    %p169 = scmp.ne.s32.totalorder %s155, %s156
    %p170 = scmp.eq.s32.totalorder %s18, 1
    %p171 = por %p169, %p170
    %p173 = scmp.ne.s32.totalorder %s156, %s172
    %p174 = scmp.eq.s32.totalorder %s18, 0
    %p175 = por %p173, %p174
    %s176 = ssub.s32 %s12, %s19
    %p177 = scmp.eq.s32.totalorder %s176, 0
    %s179 = sadd.s32 %s178, 1
    %s180 = scalar_select %p177, %s178, %s179
    %p183 = pneg %p177
    %p184 = scmp.eq.s32.totalorder %s12, 1
    %p185 = por %p183, %p184
    %p186 = scmp.ne.s32.totalorder %s178, %s181
    %p187 = scmp.eq.s32.totalorder %s12, 0
    %p188 = por %p186, %p187
    %p189 = scmp.ne.s32.totalorder %s178, %s181
    %p190 = scmp.eq.s32.totalorder %s17, 1
    %p191 = por %p189, %p190
    %p192 = scmp.ne.s32.totalorder %s181, %s182
    %p193 = scmp.eq.s32.totalorder %s17, 0
    %p194 = por %p192, %p193
    %p195 = scmp.ne.s32.totalorder %s181, %s182
    %p196 = scmp.eq.s32.totalorder %s18, 1
    %p197 = por %p195, %p196
    %p199 = scmp.ne.s32.totalorder %s182, %s198
    %p200 = scmp.eq.s32.totalorder %s18, 0
    %p201 = por %p199, %p200
    %p202 = scmp.le.s32.totalorder 1, %s12
    %p203 = scmp.lt.s32.totalorder %s12, 3
    %p204 = pnand %p202, %p203
    %p205 = pneg %p204
    // Predicated region
    $region9: #{only_gru_forward.5} parent=5 // pred_check
      _
    $region10: #{only_gru_forward.5} parent=5 // pred_check_branch
      %207 = sbr.rel (%p204) target = $region12
    $region11: #{only_gru_forward.5} parent=5 // pred_region
      %s208 = ssub.s32 %s12, 1
    $region12: #{only_gru_forward.5} parent=5 // pred_fallthru
      _
    %p209 = scmp.lt.s32.totalorder %s12, 2
    // Predicated region
    $region13: #{only_gru_forward.5} parent=5 // pred_check
      %p210 = pneg %p209
    $region14: #{only_gru_forward.5} parent=5 // pred_check_branch
      %212 = sbr.rel (%p210) target = $region16
    $region15: #{only_gru_forward.5} parent=5 // pred_region
      // Predicated region
      $region17: #{only_gru_forward.5} parent=15 // pred_check
        %p213 = pneg %p32
      $region18: #{only_gru_forward.5} parent=15 // pred_check_branch
        %215 = sbr.rel (%p213) target = $region20
      $region19: #{only_gru_forward.5} parent=15 // pred_region
        %p216 = scmp.lt.s32.totalorder %s12, 1
        %s217 = scalar_select %p216, %s12, 1
        %s218 = smul.addr %s217, 10
        %s219 = smul.addr %s218, 4
        %s220 = scalar_lea.vmem %s0, %s219
      $region20: #{only_gru_forward.5} parent=15 // pred_fallthru
        _
      // Predicated region
      $region21: #{only_gru_forward.5} parent=15 // pred_check
        %p221 = pneg %p58
      $region22: #{only_gru_forward.5} parent=15 // pred_check_branch
        %223 = sbr.rel (%p221) target = $region24
      $region23: #{only_gru_forward.5} parent=15 // pred_region
        %p224 = scmp.lt.s32.totalorder %s12, 1
        %s225 = scalar_select %p224, %s12, 1
        %s226 = smul.addr %s225, 10
        %s227 = smul.addr %s226, 4
        %s228 = scalar_lea.vmem %s1, %s227
      $region24: #{only_gru_forward.5} parent=15 // pred_fallthru
        _
      // Predicated region
      $region25: #{only_gru_forward.5} parent=15 // pred_check
        %p229 = pneg %p84
      $region26: #{only_gru_forward.5} parent=15 // pred_check_branch
        %231 = sbr.rel (%p229) target = $region28
      $region27: #{only_gru_forward.5} parent=15 // pred_region
        %p232 = scmp.lt.s32.totalorder %s12, 1
        %s233 = scalar_select %p232, %s12, 1
        %s234 = smul.addr %s233, 10
        %s235 = smul.addr %s234, 4
        %s236 = scalar_lea.vmem %s2, %s235
      $region28: #{only_gru_forward.5} parent=15 // pred_fallthru
        _
      // Predicated region
      $region29: #{only_gru_forward.5} parent=15 // pred_check
        %p237 = pneg %p110
      $region30: #{only_gru_forward.5} parent=15 // pred_check_branch
        %239 = sbr.rel (%p237) target = $region32
      $region31: #{only_gru_forward.5} parent=15 // pred_region
        %p240 = scmp.lt.s32.totalorder %s12, 1
        %s241 = scalar_select %p240, %s12, 1
        %s242 = smul.addr %s241, 12
        %s243 = smul.addr %s242, 8
        %s244 = scalar_lea.vmem %s3, %s243
      $region32: #{only_gru_forward.5} parent=15 // pred_fallthru
        _
      // Predicated region
      $region33: #{only_gru_forward.5} parent=15 // pred_check
        %p245 = pneg %p136
      $region34: #{only_gru_forward.5} parent=15 // pred_check_branch
        %247 = sbr.rel (%p245) target = $region36
      $region35: #{only_gru_forward.5} parent=15 // pred_region
        %p248 = scmp.lt.s32.totalorder %s12, 1
        %s249 = scalar_select %p248, %s12, 1
        %s250 = scalar_lea.vmem %s4, %s249
      $region36: #{only_gru_forward.5} parent=15 // pred_fallthru
        _
      // Predicated region
      $region37: #{only_gru_forward.5} parent=15 // pred_check
        %p251 = pneg %p162
      $region38: #{only_gru_forward.5} parent=15 // pred_check_branch
        %253 = sbr.rel (%p251) target = $region40
      $region39: #{only_gru_forward.5} parent=15 // pred_region
        %p254 = scmp.lt.s32.totalorder %s12, 1
        %s255 = scalar_select %p254, %s12, 1
        %s256 = smul.addr %s255, 4
        %s257 = scalar_lea.vmem %s5, %s256
      $region40: #{only_gru_forward.5} parent=15 // pred_fallthru
        _
    $region16: #{only_gru_forward.5} parent=5 // pred_fallthru
      _
    %p258 = scmp.le.s32.totalorder 1, %s12
    %p259 = scmp.lt.s32.totalorder %s12, 3
    %p260 = pnand %p258, %p259
    %p261 = pneg %p260
    // Predicated region
    $region41: #{only_gru_forward.5} parent=5 // pred_check
      _
    $region42: #{only_gru_forward.5} parent=5 // pred_check_branch
      %263 = sbr.rel (%p260) target = $region44
    $region43: #{only_gru_forward.5} parent=5 // pred_region
      %s264 = ssub.s32 %s12, 1
      %p265 = scmp.lt.s32.totalorder %s17, 1
      %s266 = scalar_select %p265, %s17, 1
      %s267 = smul.addr %s266, 10
      %s268 = smul.addr %s267, 4
      %s269 = scalar_lea.vmem %s0, %s268
      %p270 = pneg %p38
      %p271 = pneg %p35
      %p272 = scmp.lt.s32.totalorder %s17, 1
      %s273 = scalar_select %p272, %s17, 1
      %s274 = smul.addr %s273, 10
      %s275 = smul.addr %s274, 4
      %s276 = scalar_lea.vmem %s1, %s275
      %p277 = pneg %p64
      %p278 = pneg %p61
      %p279 = scmp.lt.s32.totalorder %s17, 1
      %s280 = scalar_select %p279, %s17, 1
      %s281 = smul.addr %s280, 10
      %s282 = smul.addr %s281, 4
      %s283 = scalar_lea.vmem %s2, %s282
      %p284 = pneg %p90
      %p285 = pneg %p87
      %p286 = scmp.lt.s32.totalorder %s17, 1
      %s287 = scalar_select %p286, %s17, 1
      %s288 = smul.addr %s287, 12
      %s289 = smul.addr %s288, 8
      %s290 = scalar_lea.vmem %s3, %s289
      %p291 = pneg %p116
      %p292 = pneg %p113
      %p293 = scmp.lt.s32.totalorder %s17, 1
      %s294 = scalar_select %p293, %s17, 1
      %s295 = scalar_lea.vmem %s4, %s294
      %p296 = pneg %p142
      %p297 = pneg %p139
      %p298 = scmp.lt.s32.totalorder %s17, 1
      %s299 = scalar_select %p298, %s17, 1
      %s300 = smul.addr %s299, 4
      %s301 = scalar_lea.vmem %s5, %s300
      %p302 = pneg %p168
      %p303 = pneg %p165
      %p304 = pneg %p194
      %p305 = pneg %p191
      %p306 = scmp.lt.s32.totalorder %s17, 1
      %s307 = scalar_select %p306, %s17, 1
      %s308 = smul.addr %s307, 10
      %s309 = smul.addr %s308, 4
      %s310 = scalar_lea.vmem %s6, %s309
      %p311 = scmp.lt.s32.totalorder %s17, 1
      %s312 = scalar_select %p311, %s17, 1
      %s313 = smul.addr %s312, 10
      %s314 = smul.addr %s313, 4
      %s315 = scalar_lea.vmem %s0, %s314
      %p316 = scmp.lt.s32.totalorder %s17, 1
      %s317 = scalar_select %p316, %s17, 1
      %s318 = smul.addr %s317, 10
      %s319 = smul.addr %s318, 4
      %s320 = scalar_lea.vmem %s1, %s319
      %p321 = scmp.lt.s32.totalorder %s17, 1
      %s322 = scalar_select %p321, %s17, 1
      %s323 = smul.addr %s322, 10
      %s324 = smul.addr %s323, 4
      %s325 = scalar_lea.vmem %s2, %s324
      %p326 = scmp.lt.s32.totalorder %s17, 1
      %s327 = scalar_select %p326, %s17, 1
      %s328 = smul.addr %s327, 12
      %s329 = smul.addr %s328, 8
      %s330 = scalar_lea.vmem %s3, %s329
      %p331 = scmp.lt.s32.totalorder %s17, 1
      %s332 = scalar_select %p331, %s17, 1
      %s333 = scalar_lea.vmem %s4, %s332
      %p334 = scmp.lt.s32.totalorder %s17, 1
      %s335 = scalar_select %p334, %s17, 1
      %s336 = smul.addr %s335, 4
      %s337 = scalar_lea.vmem %s5, %s336
      %p338 = scmp.lt.s32.totalorder %s17, 1
      %s339 = scalar_select %p338, %s17, 1
      %s340 = smul.addr %s339, 10
      %s341 = smul.addr %s340, 4
      %s342 = scalar_lea.vmem %s6, %s341
      %v343 = vld [vmem:[%s330] sm:$0xff]
      %v344 = vld [vmem:[%s330 + $0x8] sm:$0xff]
      %v345 = vld [vmem:[%s330 + $0x10] sm:$0xff]
      %v346 = vld [vmem:[%s330 + $0x18] sm:$0xff]
      %s347 = scalar_lea.vmem %s330, 32
      %v348 = vld [vmem:[%s347] sm:$0xff]
      %v349 = vld [vmem:[%s347 + $0x8] sm:$0xff]
      %v350 = vld [vmem:[%s347 + $0x10] sm:$0xff]
      %v351 = vld [vmem:[%s347 + $0x18] sm:$0xff]
      %s352 = scalar_lea.vmem %s330, 64
      %v353 = vld [vmem:[%s352] sm:$0xff]
      %v354 = vld [vmem:[%s352 + $0x8] sm:$0xff]
      %v355 = vld [vmem:[%s352 + $0x10] sm:$0xff]
      %v356 = vld [vmem:[%s352 + $0x18] sm:$0xff]
      %v357 = vld [vmem:[%s333] sm:$0x1]
      %v358 = vld [vmem:[%s337] sm:$0xf]
      %vm359 = vcmask 261120
      %v361 = vsel %vm359, %v358, 0
      %363 = vmatprep.subr.mxu0 0.0
      %364 = vmatpush1.msra.mxu0 0.0
      %365 = vmatprep.subr.mxu0 0.0
      %366 = vmatpush1.msra.mxu0 0.0
      %367 = vmatprep.subr.mxu0 0.0
      %368 = vmatpush1.msra.mxu0 0.0
      %369 = vmatprep.subr.mxu0 0.0
      %370 = vmatpush1.msra.mxu0 0.0
      %371 = vmatprep.subr.mxu0 0.0
      %372 = vmatpush1.msra.mxu0 0.0
      %373 = vmatprep.subr.mxu0 0.0
      %374 = vmatpush1.msra.mxu0 0.0
      %375 = vmatprep.subr.mxu0 0.0
      %376 = vmatpush1.msra.mxu0 0.0
      %377 = vmatprep.subr.mxu0 0.0
      %378 = vmatpush1.msra.mxu0 0.0
      %379 = vmatprep.subr.mxu0 0.0
      %380 = vmatpush1.msra.mxu0 0.0
      %381 = vmatprep.subr.mxu0 0.0
      %382 = vmatpush1.msra.mxu0 0.0
      %383 = vmatprep.subr.mxu0 0.0
      %384 = vmatpush1.msra.mxu0 0.0
      %385 = vmatprep.subr.mxu0 0.0
      %386 = vmatpush1.msra.mxu0 0.0
      %387 = vmatprep.subr.mxu0 0.0
      %388 = vmatpush1.msra.mxu0 %v346
      %389 = vmatprep.subr.mxu0 0.0
      %390 = vmatpush1.msra.mxu0 %v345
      %391 = vmatprep.subr.mxu0 0.0
      %392 = vmatpush1.msra.mxu0 %v344
      %393 = vmatprep.subr.mxu0 0.0
      %394 = vmatpush1.msra.mxu0 %v343
      %395 = vmatprep.subr.mxu0 0.0
      %396 = vmatpush2.msra.mxu0 0.0
      %397 = vmatprep.subr.mxu0 0.0
      %398 = vmatpush2.msra.mxu0 0.0
      %399 = vmatprep.subr.mxu0 0.0
      %400 = vmatpush2.msra.mxu0 0.0
      %401 = vmatprep.subr.mxu0 0.0
      %402 = vmatpush2.msra.mxu0 0.0
      %403 = vmatprep.subr.mxu0 0.0
      %404 = vmatpush2.msra.mxu0 0.0
      %405 = vmatprep.subr.mxu0 0.0
      %406 = vmatpush2.msra.mxu0 0.0
      %407 = vmatprep.subr.mxu0 0.0
      %408 = vmatpush2.msra.mxu0 0.0
      %409 = vmatprep.subr.mxu0 0.0
      %410 = vmatpush2.msra.mxu0 0.0
      %411 = vmatprep.subr.mxu0 0.0
      %412 = vmatpush2.msra.mxu0 0.0
      %413 = vmatprep.subr.mxu0 0.0
      %414 = vmatpush2.msra.mxu0 0.0
      %415 = vmatprep.subr.mxu0 0.0
      %416 = vmatpush2.msra.mxu0 0.0
      %417 = vmatprep.subr.mxu0 0.0
      %418 = vmatpush2.msra.mxu0 0.0
      %419 = vmatprep.subr.mxu0 0.0
      %420 = vmatpush2.msra.mxu0 0.0
      %421 = vmatprep.subr.mxu0 0.0
      %422 = vmatpush2.msra.mxu0 0.0
      %423 = vmatprep.subr.mxu0 0.0
      %424 = vmatpush2.msra.mxu0 0.0
      %425 = vmatprep.subr.mxu0 0.0
      %426 = vmatpush2.msra.mxu0 0.0
      %427 = vmatprep.mubr.f32.mxu0 0.0
      %428 = vmatmul.mubr.f32.gmra.mxu0 %v361
      %v429 = vpop.f32.mrf.mxu0
      %v430 = vadd.f32 0.0, %v429
      %v431 = vpop.f32.mrf.mxu0
      %432 = vdwg.mxu0
      %433 = vmatprep.subr.mxu0 0.0
      %434 = vmatpush1.msra.mxu0 0.0
      %435 = vmatprep.subr.mxu0 0.0
      %436 = vmatpush1.msra.mxu0 0.0
      %437 = vmatprep.subr.mxu0 0.0
      %438 = vmatpush1.msra.mxu0 0.0
      %439 = vmatprep.subr.mxu0 0.0
      %440 = vmatpush1.msra.mxu0 0.0
      %441 = vmatprep.subr.mxu0 0.0
      %442 = vmatpush1.msra.mxu0 0.0
      %443 = vmatprep.subr.mxu0 0.0
      %444 = vmatpush1.msra.mxu0 0.0
      %445 = vmatprep.subr.mxu0 0.0
      %446 = vmatpush1.msra.mxu0 0.0
      %447 = vmatprep.subr.mxu0 0.0
      %448 = vmatpush1.msra.mxu0 0.0
      %449 = vmatprep.subr.mxu0 0.0
      %450 = vmatpush1.msra.mxu0 0.0
      %451 = vmatprep.subr.mxu0 0.0
      %452 = vmatpush1.msra.mxu0 0.0
      %453 = vmatprep.subr.mxu0 0.0
      %454 = vmatpush1.msra.mxu0 0.0
      %455 = vmatprep.subr.mxu0 0.0
      %456 = vmatpush1.msra.mxu0 0.0
      %457 = vmatprep.subr.mxu0 0.0
      %458 = vmatpush1.msra.mxu0 %v351
      %459 = vmatprep.subr.mxu0 0.0
      %460 = vmatpush1.msra.mxu0 %v350
      %461 = vmatprep.subr.mxu0 0.0
      %462 = vmatpush1.msra.mxu0 %v349
      %463 = vmatprep.subr.mxu0 0.0
      %464 = vmatpush1.msra.mxu0 %v348
      %465 = vmatprep.subr.mxu0 0.0
      %466 = vmatpush2.msra.mxu0 0.0
      %467 = vmatprep.subr.mxu0 0.0
      %468 = vmatpush2.msra.mxu0 0.0
      %469 = vmatprep.subr.mxu0 0.0
      %470 = vmatpush2.msra.mxu0 0.0
      %471 = vmatprep.subr.mxu0 0.0
      %472 = vmatpush2.msra.mxu0 0.0
      %473 = vmatprep.subr.mxu0 0.0
      %474 = vmatpush2.msra.mxu0 0.0
      %475 = vmatprep.subr.mxu0 0.0
      %476 = vmatpush2.msra.mxu0 0.0
      %477 = vmatprep.subr.mxu0 0.0
      %478 = vmatpush2.msra.mxu0 0.0
      %479 = vmatprep.subr.mxu0 0.0
      %480 = vmatpush2.msra.mxu0 0.0
      %481 = vmatprep.subr.mxu0 0.0
      %482 = vmatpush2.msra.mxu0 0.0
      %483 = vmatprep.subr.mxu0 0.0
      %484 = vmatpush2.msra.mxu0 0.0
      %485 = vmatprep.subr.mxu0 0.0
      %486 = vmatpush2.msra.mxu0 0.0
      %487 = vmatprep.subr.mxu0 0.0
      %488 = vmatpush2.msra.mxu0 0.0
      %489 = vmatprep.subr.mxu0 0.0
      %490 = vmatpush2.msra.mxu0 0.0
      %491 = vmatprep.subr.mxu0 0.0
      %492 = vmatpush2.msra.mxu0 0.0
      %493 = vmatprep.subr.mxu0 0.0
      %494 = vmatpush2.msra.mxu0 0.0
      %495 = vmatprep.subr.mxu0 0.0
      %496 = vmatpush2.msra.mxu0 0.0
      %497 = vmatprep.mubr.f32.mxu0 0.0
      %498 = vmatmul.mubr.f32.gmra.mxu0 %v361
      %v499 = vpop.f32.mrf.mxu0
      %v500 = vadd.f32 0.0, %v499
      %v501 = vpop.f32.mrf.mxu0
      %502 = vdwg.mxu0
      %v503 = vld [vmem:[%s315] sm:$0xf]
      %v504 = vadd.f32 %v503, %v430
      %v505 = vxor.u32 %v504, 2147483648
      %v506 = vmul.f32 %v505, 1.442695
      %v507 = vpow.pop %v506
      %v508 = vadd.f32 %v507, 1.0
      %v509 = vrcp.pop %v508
      %v510 = vmul.f32 1.0, %v509
      %v511 = vld [vmem:[%s320] sm:$0xf]
      %v512 = vadd.f32 %v511, %v500
      %v513 = vxor.u32 %v512, 2147483648
      %v514 = vmul.f32 %v513, 1.442695
      %v515 = vpow.pop %v514
      %v516 = vadd.f32 %v515, 1.0
      %v517 = vrcp.pop %v516
      %v518 = vmul.f32 1.0, %v517
      %v519 = vld [vmem:[%s325] sm:$0xf]
      %v521 = vlaneseq
      %v522 = vshrl.u32 %v521, 7
      %v523 = vsub.s32 0, %v522
      %v524 = vrot.slane %v357, %v523
      %526 = vmatprep.subr.mxu0 0.0
      %527 = vmatpush1.msra.mxu0 0.0
      %528 = vmatprep.subr.mxu0 0.0
      %529 = vmatpush1.msra.mxu0 0.0
      %530 = vmatprep.subr.mxu0 0.0
      %531 = vmatpush1.msra.mxu0 0.0
      %532 = vmatprep.subr.mxu0 0.0
      %533 = vmatpush1.msra.mxu0 0.0
      %534 = vmatprep.subr.mxu0 0.0
      %535 = vmatpush1.msra.mxu0 0.0
      %536 = vmatprep.subr.mxu0 0.0
      %537 = vmatpush1.msra.mxu0 0.0
      %538 = vmatprep.subr.mxu0 0.0
      %539 = vmatpush1.msra.mxu0 0.0
      %540 = vmatprep.subr.mxu0 0.0
      %541 = vmatpush1.msra.mxu0 0.0
      %542 = vmatprep.subr.mxu0 0.0
      %543 = vmatpush1.msra.mxu0 0.0
      %544 = vmatprep.subr.mxu0 0.0
      %545 = vmatpush1.msra.mxu0 0.0
      %546 = vmatprep.subr.mxu0 0.0
      %547 = vmatpush1.msra.mxu0 0.0
      %548 = vmatprep.subr.mxu0 0.0
      %549 = vmatpush1.msra.mxu0 0.0
      %550 = vmatprep.subr.mxu0 0.0
      %551 = vmatpush1.msra.mxu0 %v356
      %552 = vmatprep.subr.mxu0 0.0
      %553 = vmatpush1.msra.mxu0 %v355
      %554 = vmatprep.subr.mxu0 0.0
      %555 = vmatpush1.msra.mxu0 %v354
      %556 = vmatprep.subr.mxu0 0.0
      %557 = vmatpush1.msra.mxu0 %v353
      %558 = vmatprep.subr.mxu0 0.0
      %559 = vmatpush2.msra.mxu0 0.0
      %560 = vmatprep.subr.mxu0 0.0
      %561 = vmatpush2.msra.mxu0 0.0
      %562 = vmatprep.subr.mxu0 0.0
      %563 = vmatpush2.msra.mxu0 0.0
      %564 = vmatprep.subr.mxu0 0.0
      %565 = vmatpush2.msra.mxu0 0.0
      %566 = vmatprep.subr.mxu0 0.0
      %567 = vmatpush2.msra.mxu0 0.0
      %568 = vmatprep.subr.mxu0 0.0
      %569 = vmatpush2.msra.mxu0 0.0
      %570 = vmatprep.subr.mxu0 0.0
      %571 = vmatpush2.msra.mxu0 0.0
      %572 = vmatprep.subr.mxu0 0.0
      %573 = vmatpush2.msra.mxu0 0.0
      %574 = vmatprep.subr.mxu0 0.0
      %575 = vmatpush2.msra.mxu0 0.0
      %576 = vmatprep.subr.mxu0 0.0
      %577 = vmatpush2.msra.mxu0 0.0
      %578 = vmatprep.subr.mxu0 0.0
      %579 = vmatpush2.msra.mxu0 0.0
      %580 = vmatprep.subr.mxu0 0.0
      %581 = vmatpush2.msra.mxu0 0.0
      %582 = vmatprep.subr.mxu0 0.0
      %583 = vmatpush2.msra.mxu0 0.0
      %584 = vmatprep.subr.mxu0 0.0
      %585 = vmatpush2.msra.mxu0 0.0
      %586 = vmatprep.subr.mxu0 0.0
      %587 = vmatpush2.msra.mxu0 0.0
      %588 = vmatprep.subr.mxu0 0.0
      %589 = vmatpush2.msra.mxu0 0.0
      %590 = vmatprep.mubr.f32.mxu0 0.0
      %591 = vmatmul.mubr.f32.gmra.mxu0 %v361
      %v592 = vpop.f32.mrf.mxu0
      %v593 = vadd.f32 %v524, %v592
      %v594 = vpop.f32.mrf.mxu0
      %595 = vdwg.mxu0
      %v596 = vmul.f32 %v510, %v593
      %v597 = vadd.f32 %v519, %v596
      %v598 = vtanh.pop %v597
      %v599 = vsub.f32 %v358, %v598
      %v600 = vmul.f32 %v518, %v599
      %v601 = vadd.f32 %v598, %v600
      %vm602 = vcmask 257024
      %603 = vst.msk [vmem:[%s342] sm:$0xf] %vm602, %v601
      %v605 = vsel %vm359, %v601, 0
      %607 = vmatprep.subr.mxu0 0.0
      %608 = vmatpush1.msra.mxu0 0.0
      %609 = vmatprep.subr.mxu0 0.0
      %610 = vmatpush1.msra.mxu0 0.0
      %611 = vmatprep.subr.mxu0 0.0
      %612 = vmatpush1.msra.mxu0 0.0
      %613 = vmatprep.subr.mxu0 0.0
      %614 = vmatpush1.msra.mxu0 0.0
      %615 = vmatprep.subr.mxu0 0.0
      %616 = vmatpush1.msra.mxu0 0.0
      %617 = vmatprep.subr.mxu0 0.0
      %618 = vmatpush1.msra.mxu0 0.0
      %619 = vmatprep.subr.mxu0 0.0
      %620 = vmatpush1.msra.mxu0 0.0
      %621 = vmatprep.subr.mxu0 0.0
      %622 = vmatpush1.msra.mxu0 0.0
      %623 = vmatprep.subr.mxu0 0.0
      %624 = vmatpush1.msra.mxu0 0.0
      %625 = vmatprep.subr.mxu0 0.0
      %626 = vmatpush1.msra.mxu0 0.0
      %627 = vmatprep.subr.mxu0 0.0
      %628 = vmatpush1.msra.mxu0 0.0
      %629 = vmatprep.subr.mxu0 0.0
      %630 = vmatpush1.msra.mxu0 0.0
      %631 = vmatprep.subr.mxu0 0.0
      %632 = vmatpush1.msra.mxu0 %v346
      %633 = vmatprep.subr.mxu0 0.0
      %634 = vmatpush1.msra.mxu0 %v345
      %635 = vmatprep.subr.mxu0 0.0
      %636 = vmatpush1.msra.mxu0 %v344
      %637 = vmatprep.subr.mxu0 0.0
      %638 = vmatpush1.msra.mxu0 %v343
      %639 = vmatprep.subr.mxu0 0.0
      %640 = vmatpush2.msra.mxu0 0.0
      %641 = vmatprep.subr.mxu0 0.0
      %642 = vmatpush2.msra.mxu0 0.0
      %643 = vmatprep.subr.mxu0 0.0
      %644 = vmatpush2.msra.mxu0 0.0
      %645 = vmatprep.subr.mxu0 0.0
      %646 = vmatpush2.msra.mxu0 0.0
      %647 = vmatprep.subr.mxu0 0.0
      %648 = vmatpush2.msra.mxu0 0.0
      %649 = vmatprep.subr.mxu0 0.0
      %650 = vmatpush2.msra.mxu0 0.0
      %651 = vmatprep.subr.mxu0 0.0
      %652 = vmatpush2.msra.mxu0 0.0
      %653 = vmatprep.subr.mxu0 0.0
      %654 = vmatpush2.msra.mxu0 0.0
      %655 = vmatprep.subr.mxu0 0.0
      %656 = vmatpush2.msra.mxu0 0.0
      %657 = vmatprep.subr.mxu0 0.0
      %658 = vmatpush2.msra.mxu0 0.0
      %659 = vmatprep.subr.mxu0 0.0
      %660 = vmatpush2.msra.mxu0 0.0
      %661 = vmatprep.subr.mxu0 0.0
      %662 = vmatpush2.msra.mxu0 0.0
      %663 = vmatprep.subr.mxu0 0.0
      %664 = vmatpush2.msra.mxu0 0.0
      %665 = vmatprep.subr.mxu0 0.0
      %666 = vmatpush2.msra.mxu0 0.0
      %667 = vmatprep.subr.mxu0 0.0
      %668 = vmatpush2.msra.mxu0 0.0
      %669 = vmatprep.subr.mxu0 0.0
      %670 = vmatpush2.msra.mxu0 0.0
      %671 = vmatprep.mubr.f32.mxu0 0.0
      %672 = vmatmul.mubr.f32.gmra.mxu0 %v605
      %v673 = vpop.f32.mrf.mxu0
      %v674 = vadd.f32 0.0, %v673
      %v675 = vpop.f32.mrf.mxu0
      %676 = vdwg.mxu0
      %677 = vmatprep.subr.mxu0 0.0
      %678 = vmatpush1.msra.mxu0 0.0
      %679 = vmatprep.subr.mxu0 0.0
      %680 = vmatpush1.msra.mxu0 0.0
      %681 = vmatprep.subr.mxu0 0.0
      %682 = vmatpush1.msra.mxu0 0.0
      %683 = vmatprep.subr.mxu0 0.0
      %684 = vmatpush1.msra.mxu0 0.0
      %685 = vmatprep.subr.mxu0 0.0
      %686 = vmatpush1.msra.mxu0 0.0
      %687 = vmatprep.subr.mxu0 0.0
      %688 = vmatpush1.msra.mxu0 0.0
      %689 = vmatprep.subr.mxu0 0.0
      %690 = vmatpush1.msra.mxu0 0.0
      %691 = vmatprep.subr.mxu0 0.0
      %692 = vmatpush1.msra.mxu0 0.0
      %693 = vmatprep.subr.mxu0 0.0
      %694 = vmatpush1.msra.mxu0 0.0
      %695 = vmatprep.subr.mxu0 0.0
      %696 = vmatpush1.msra.mxu0 0.0
      %697 = vmatprep.subr.mxu0 0.0
      %698 = vmatpush1.msra.mxu0 0.0
      %699 = vmatprep.subr.mxu0 0.0
      %700 = vmatpush1.msra.mxu0 0.0
      %701 = vmatprep.subr.mxu0 0.0
      %702 = vmatpush1.msra.mxu0 %v351
      %703 = vmatprep.subr.mxu0 0.0
      %704 = vmatpush1.msra.mxu0 %v350
      %705 = vmatprep.subr.mxu0 0.0
      %706 = vmatpush1.msra.mxu0 %v349
      %707 = vmatprep.subr.mxu0 0.0
      %708 = vmatpush1.msra.mxu0 %v348
      %709 = vmatprep.subr.mxu0 0.0
      %710 = vmatpush2.msra.mxu0 0.0
      %711 = vmatprep.subr.mxu0 0.0
      %712 = vmatpush2.msra.mxu0 0.0
      %713 = vmatprep.subr.mxu0 0.0
      %714 = vmatpush2.msra.mxu0 0.0
      %715 = vmatprep.subr.mxu0 0.0
      %716 = vmatpush2.msra.mxu0 0.0
      %717 = vmatprep.subr.mxu0 0.0
      %718 = vmatpush2.msra.mxu0 0.0
      %719 = vmatprep.subr.mxu0 0.0
      %720 = vmatpush2.msra.mxu0 0.0
      %721 = vmatprep.subr.mxu0 0.0
      %722 = vmatpush2.msra.mxu0 0.0
      %723 = vmatprep.subr.mxu0 0.0
      %724 = vmatpush2.msra.mxu0 0.0
      %725 = vmatprep.subr.mxu0 0.0
      %726 = vmatpush2.msra.mxu0 0.0
      %727 = vmatprep.subr.mxu0 0.0
      %728 = vmatpush2.msra.mxu0 0.0
      %729 = vmatprep.subr.mxu0 0.0
      %730 = vmatpush2.msra.mxu0 0.0
      %731 = vmatprep.subr.mxu0 0.0
      %732 = vmatpush2.msra.mxu0 0.0
      %733 = vmatprep.subr.mxu0 0.0
      %734 = vmatpush2.msra.mxu0 0.0
      %735 = vmatprep.subr.mxu0 0.0
      %736 = vmatpush2.msra.mxu0 0.0
      %737 = vmatprep.subr.mxu0 0.0
      %738 = vmatpush2.msra.mxu0 0.0
      %739 = vmatprep.subr.mxu0 0.0
      %740 = vmatpush2.msra.mxu0 0.0
      %741 = vmatprep.mubr.f32.mxu0 0.0
      %742 = vmatmul.mubr.f32.gmra.mxu0 %v605
      %v743 = vpop.f32.mrf.mxu0
      %v744 = vadd.f32 0.0, %v743
      %v745 = vpop.f32.mrf.mxu0
      %746 = vdwg.mxu0
      %s747 = scalar_lea.vmem %s315, 4
      %v748 = vld [vmem:[%s747] sm:$0xf]
      %v749 = vadd.f32 %v748, %v674
      %v750 = vxor.u32 %v749, 2147483648
      %v751 = vmul.f32 %v750, 1.442695
      %v752 = vpow.pop %v751
      %v753 = vadd.f32 %v752, 1.0
      %v754 = vrcp.pop %v753
      %v755 = vmul.f32 1.0, %v754
      %s756 = scalar_lea.vmem %s320, 4
      %v757 = vld [vmem:[%s756] sm:$0xf]
      %v758 = vadd.f32 %v757, %v744
      %v759 = vxor.u32 %v758, 2147483648
      %v760 = vmul.f32 %v759, 1.442695
      %v761 = vpow.pop %v760
      %v762 = vadd.f32 %v761, 1.0
      %v763 = vrcp.pop %v762
      %v764 = vmul.f32 1.0, %v763
      %s765 = scalar_lea.vmem %s325, 4
      %v766 = vld [vmem:[%s765] sm:$0xf]
      %767 = vmatprep.subr.mxu0 0.0
      %768 = vmatpush1.msra.mxu0 0.0
      %769 = vmatprep.subr.mxu0 0.0
      %770 = vmatpush1.msra.mxu0 0.0
      %771 = vmatprep.subr.mxu0 0.0
      %772 = vmatpush1.msra.mxu0 0.0
      %773 = vmatprep.subr.mxu0 0.0
      %774 = vmatpush1.msra.mxu0 0.0
      %775 = vmatprep.subr.mxu0 0.0
      %776 = vmatpush1.msra.mxu0 0.0
      %777 = vmatprep.subr.mxu0 0.0
      %778 = vmatpush1.msra.mxu0 0.0
      %779 = vmatprep.subr.mxu0 0.0
      %780 = vmatpush1.msra.mxu0 0.0
      %781 = vmatprep.subr.mxu0 0.0
      %782 = vmatpush1.msra.mxu0 0.0
      %783 = vmatprep.subr.mxu0 0.0
      %784 = vmatpush1.msra.mxu0 0.0
      %785 = vmatprep.subr.mxu0 0.0
      %786 = vmatpush1.msra.mxu0 0.0
      %787 = vmatprep.subr.mxu0 0.0
      %788 = vmatpush1.msra.mxu0 0.0
      %789 = vmatprep.subr.mxu0 0.0
      %790 = vmatpush1.msra.mxu0 0.0
      %791 = vmatprep.subr.mxu0 0.0
      %792 = vmatpush1.msra.mxu0 %v356
      %793 = vmatprep.subr.mxu0 0.0
      %794 = vmatpush1.msra.mxu0 %v355
      %795 = vmatprep.subr.mxu0 0.0
      %796 = vmatpush1.msra.mxu0 %v354
      %797 = vmatprep.subr.mxu0 0.0
      %798 = vmatpush1.msra.mxu0 %v353
      %799 = vmatprep.subr.mxu0 0.0
      %800 = vmatpush2.msra.mxu0 0.0
      %801 = vmatprep.subr.mxu0 0.0
      %802 = vmatpush2.msra.mxu0 0.0
      %803 = vmatprep.subr.mxu0 0.0
      %804 = vmatpush2.msra.mxu0 0.0
      %805 = vmatprep.subr.mxu0 0.0
      %806 = vmatpush2.msra.mxu0 0.0
      %807 = vmatprep.subr.mxu0 0.0
      %808 = vmatpush2.msra.mxu0 0.0
      %809 = vmatprep.subr.mxu0 0.0
      %810 = vmatpush2.msra.mxu0 0.0
      %811 = vmatprep.subr.mxu0 0.0
      %812 = vmatpush2.msra.mxu0 0.0
      %813 = vmatprep.subr.mxu0 0.0
      %814 = vmatpush2.msra.mxu0 0.0
      %815 = vmatprep.subr.mxu0 0.0
      %816 = vmatpush2.msra.mxu0 0.0
      %817 = vmatprep.subr.mxu0 0.0
      %818 = vmatpush2.msra.mxu0 0.0
      %819 = vmatprep.subr.mxu0 0.0
      %820 = vmatpush2.msra.mxu0 0.0
      %821 = vmatprep.subr.mxu0 0.0
      %822 = vmatpush2.msra.mxu0 0.0
      %823 = vmatprep.subr.mxu0 0.0
      %824 = vmatpush2.msra.mxu0 0.0
      %825 = vmatprep.subr.mxu0 0.0
      %826 = vmatpush2.msra.mxu0 0.0
      %827 = vmatprep.subr.mxu0 0.0
      %828 = vmatpush2.msra.mxu0 0.0
      %829 = vmatprep.subr.mxu0 0.0
      %830 = vmatpush2.msra.mxu0 0.0
      %831 = vmatprep.mubr.f32.mxu0 0.0
      %832 = vmatmul.mubr.f32.gmra.mxu0 %v605
      %v833 = vpop.f32.mrf.mxu0
      %v834 = vadd.f32 %v524, %v833
      %v835 = vpop.f32.mrf.mxu0
      %836 = vdwg.mxu0
      %v837 = vmul.f32 %v755, %v834
      %v838 = vadd.f32 %v766, %v837
      %v839 = vtanh.pop %v838
      %v840 = vsub.f32 %v601, %v839
      %v841 = vmul.f32 %v764, %v840
      %v842 = vadd.f32 %v839, %v841
      %s843 = scalar_lea.vmem %s342, 4
      %844 = vst.msk [vmem:[%s843] sm:$0xf] %vm602, %v842
      %v846 = vsel %vm359, %v842, 0
      %848 = vmatprep.subr.mxu0 0.0
      %849 = vmatpush1.msra.mxu0 0.0
      %850 = vmatprep.subr.mxu0 0.0
      %851 = vmatpush1.msra.mxu0 0.0
      %852 = vmatprep.subr.mxu0 0.0
      %853 = vmatpush1.msra.mxu0 0.0
      %854 = vmatprep.subr.mxu0 0.0
      %855 = vmatpush1.msra.mxu0 0.0
      %856 = vmatprep.subr.mxu0 0.0
      %857 = vmatpush1.msra.mxu0 0.0
      %858 = vmatprep.subr.mxu0 0.0
      %859 = vmatpush1.msra.mxu0 0.0
      %860 = vmatprep.subr.mxu0 0.0
      %861 = vmatpush1.msra.mxu0 0.0
      %862 = vmatprep.subr.mxu0 0.0
      %863 = vmatpush1.msra.mxu0 0.0
      %864 = vmatprep.subr.mxu0 0.0
      %865 = vmatpush1.msra.mxu0 0.0
      %866 = vmatprep.subr.mxu0 0.0
      %867 = vmatpush1.msra.mxu0 0.0
      %868 = vmatprep.subr.mxu0 0.0
      %869 = vmatpush1.msra.mxu0 0.0
      %870 = vmatprep.subr.mxu0 0.0
      %871 = vmatpush1.msra.mxu0 0.0
      %872 = vmatprep.subr.mxu0 0.0
      %873 = vmatpush1.msra.mxu0 %v346
      %874 = vmatprep.subr.mxu0 0.0
      %875 = vmatpush1.msra.mxu0 %v345
      %876 = vmatprep.subr.mxu0 0.0
      %877 = vmatpush1.msra.mxu0 %v344
      %878 = vmatprep.subr.mxu0 0.0
      %879 = vmatpush1.msra.mxu0 %v343
      %880 = vmatprep.subr.mxu0 0.0
      %881 = vmatpush2.msra.mxu0 0.0
      %882 = vmatprep.subr.mxu0 0.0
      %883 = vmatpush2.msra.mxu0 0.0
      %884 = vmatprep.subr.mxu0 0.0
      %885 = vmatpush2.msra.mxu0 0.0
      %886 = vmatprep.subr.mxu0 0.0
      %887 = vmatpush2.msra.mxu0 0.0
      %888 = vmatprep.subr.mxu0 0.0
      %889 = vmatpush2.msra.mxu0 0.0
      %890 = vmatprep.subr.mxu0 0.0
      %891 = vmatpush2.msra.mxu0 0.0
      %892 = vmatprep.subr.mxu0 0.0
      %893 = vmatpush2.msra.mxu0 0.0
      %894 = vmatprep.subr.mxu0 0.0
      %895 = vmatpush2.msra.mxu0 0.0
      %896 = vmatprep.subr.mxu0 0.0
      %897 = vmatpush2.msra.mxu0 0.0
      %898 = vmatprep.subr.mxu0 0.0
      %899 = vmatpush2.msra.mxu0 0.0
      %900 = vmatprep.subr.mxu0 0.0
      %901 = vmatpush2.msra.mxu0 0.0
      %902 = vmatprep.subr.mxu0 0.0
      %903 = vmatpush2.msra.mxu0 0.0
      %904 = vmatprep.subr.mxu0 0.0
      %905 = vmatpush2.msra.mxu0 0.0
      %906 = vmatprep.subr.mxu0 0.0
      %907 = vmatpush2.msra.mxu0 0.0
      %908 = vmatprep.subr.mxu0 0.0
      %909 = vmatpush2.msra.mxu0 0.0
      %910 = vmatprep.subr.mxu0 0.0
      %911 = vmatpush2.msra.mxu0 0.0
      %912 = vmatprep.mubr.f32.mxu0 0.0
      %913 = vmatmul.mubr.f32.gmra.mxu0 %v846
      %v914 = vpop.f32.mrf.mxu0
      %v915 = vadd.f32 0.0, %v914
      %v916 = vpop.f32.mrf.mxu0
      %917 = vdwg.mxu0
      %918 = vmatprep.subr.mxu0 0.0
      %919 = vmatpush1.msra.mxu0 0.0
      %920 = vmatprep.subr.mxu0 0.0
      %921 = vmatpush1.msra.mxu0 0.0
      %922 = vmatprep.subr.mxu0 0.0
      %923 = vmatpush1.msra.mxu0 0.0
      %924 = vmatprep.subr.mxu0 0.0
      %925 = vmatpush1.msra.mxu0 0.0
      %926 = vmatprep.subr.mxu0 0.0
      %927 = vmatpush1.msra.mxu0 0.0
      %928 = vmatprep.subr.mxu0 0.0
      %929 = vmatpush1.msra.mxu0 0.0
      %930 = vmatprep.subr.mxu0 0.0
      %931 = vmatpush1.msra.mxu0 0.0
      %932 = vmatprep.subr.mxu0 0.0
      %933 = vmatpush1.msra.mxu0 0.0
      %934 = vmatprep.subr.mxu0 0.0
      %935 = vmatpush1.msra.mxu0 0.0
      %936 = vmatprep.subr.mxu0 0.0
      %937 = vmatpush1.msra.mxu0 0.0
      %938 = vmatprep.subr.mxu0 0.0
      %939 = vmatpush1.msra.mxu0 0.0
      %940 = vmatprep.subr.mxu0 0.0
      %941 = vmatpush1.msra.mxu0 0.0
      %942 = vmatprep.subr.mxu0 0.0
      %943 = vmatpush1.msra.mxu0 %v351
      %944 = vmatprep.subr.mxu0 0.0
      %945 = vmatpush1.msra.mxu0 %v350
      %946 = vmatprep.subr.mxu0 0.0
      %947 = vmatpush1.msra.mxu0 %v349
      %948 = vmatprep.subr.mxu0 0.0
      %949 = vmatpush1.msra.mxu0 %v348
      %950 = vmatprep.subr.mxu0 0.0
      %951 = vmatpush2.msra.mxu0 0.0
      %952 = vmatprep.subr.mxu0 0.0
      %953 = vmatpush2.msra.mxu0 0.0
      %954 = vmatprep.subr.mxu0 0.0
      %955 = vmatpush2.msra.mxu0 0.0
      %956 = vmatprep.subr.mxu0 0.0
      %957 = vmatpush2.msra.mxu0 0.0
      %958 = vmatprep.subr.mxu0 0.0
      %959 = vmatpush2.msra.mxu0 0.0
      %960 = vmatprep.subr.mxu0 0.0
      %961 = vmatpush2.msra.mxu0 0.0
      %962 = vmatprep.subr.mxu0 0.0
      %963 = vmatpush2.msra.mxu0 0.0
      %964 = vmatprep.subr.mxu0 0.0
      %965 = vmatpush2.msra.mxu0 0.0
      %966 = vmatprep.subr.mxu0 0.0
      %967 = vmatpush2.msra.mxu0 0.0
      %968 = vmatprep.subr.mxu0 0.0
      %969 = vmatpush2.msra.mxu0 0.0
      %970 = vmatprep.subr.mxu0 0.0
      %971 = vmatpush2.msra.mxu0 0.0
      %972 = vmatprep.subr.mxu0 0.0
      %973 = vmatpush2.msra.mxu0 0.0
      %974 = vmatprep.subr.mxu0 0.0
      %975 = vmatpush2.msra.mxu0 0.0
      %976 = vmatprep.subr.mxu0 0.0
      %977 = vmatpush2.msra.mxu0 0.0
      %978 = vmatprep.subr.mxu0 0.0
      %979 = vmatpush2.msra.mxu0 0.0
      %980 = vmatprep.subr.mxu0 0.0
      %981 = vmatpush2.msra.mxu0 0.0
      %982 = vmatprep.mubr.f32.mxu0 0.0
      %983 = vmatmul.mubr.f32.gmra.mxu0 %v846
      %v984 = vpop.f32.mrf.mxu0
      %v985 = vadd.f32 0.0, %v984
      %v986 = vpop.f32.mrf.mxu0
      %987 = vdwg.mxu0
      %s988 = scalar_lea.vmem %s315, 8
      %v989 = vld [vmem:[%s988] sm:$0xf]
      %v990 = vadd.f32 %v989, %v915
      %v991 = vxor.u32 %v990, 2147483648
      %v992 = vmul.f32 %v991, 1.442695
      %v993 = vpow.pop %v992
      %v994 = vadd.f32 %v993, 1.0
      %v995 = vrcp.pop %v994
      %v996 = vmul.f32 1.0, %v995
      %s997 = scalar_lea.vmem %s320, 8
      %v998 = vld [vmem:[%s997] sm:$0xf]
      %v999 = vadd.f32 %v998, %v985
      %v1000 = vxor.u32 %v999, 2147483648
      %v1001 = vmul.f32 %v1000, 1.442695
      %v1002 = vpow.pop %v1001
      %v1003 = vadd.f32 %v1002, 1.0
      %v1004 = vrcp.pop %v1003
      %v1005 = vmul.f32 1.0, %v1004
      %s1006 = scalar_lea.vmem %s325, 8
      %v1007 = vld [vmem:[%s1006] sm:$0xf]
      %1008 = vmatprep.subr.mxu0 0.0
      %1009 = vmatpush1.msra.mxu0 0.0
      %1010 = vmatprep.subr.mxu0 0.0
      %1011 = vmatpush1.msra.mxu0 0.0
      %1012 = vmatprep.subr.mxu0 0.0
      %1013 = vmatpush1.msra.mxu0 0.0
      %1014 = vmatprep.subr.mxu0 0.0
      %1015 = vmatpush1.msra.mxu0 0.0
      %1016 = vmatprep.subr.mxu0 0.0
      %1017 = vmatpush1.msra.mxu0 0.0
      %1018 = vmatprep.subr.mxu0 0.0
      %1019 = vmatpush1.msra.mxu0 0.0
      %1020 = vmatprep.subr.mxu0 0.0
      %1021 = vmatpush1.msra.mxu0 0.0
      %1022 = vmatprep.subr.mxu0 0.0
      %1023 = vmatpush1.msra.mxu0 0.0
      %1024 = vmatprep.subr.mxu0 0.0
      %1025 = vmatpush1.msra.mxu0 0.0
      %1026 = vmatprep.subr.mxu0 0.0
      %1027 = vmatpush1.msra.mxu0 0.0
      %1028 = vmatprep.subr.mxu0 0.0
      %1029 = vmatpush1.msra.mxu0 0.0
      %1030 = vmatprep.subr.mxu0 0.0
      %1031 = vmatpush1.msra.mxu0 0.0
      %1032 = vmatprep.subr.mxu0 0.0
      %1033 = vmatpush1.msra.mxu0 %v356
      %1034 = vmatprep.subr.mxu0 0.0
      %1035 = vmatpush1.msra.mxu0 %v355
      %1036 = vmatprep.subr.mxu0 0.0
      %1037 = vmatpush1.msra.mxu0 %v354
      %1038 = vmatprep.subr.mxu0 0.0
      %1039 = vmatpush1.msra.mxu0 %v353
      %1040 = vmatprep.subr.mxu0 0.0
      %1041 = vmatpush2.msra.mxu0 0.0
      %1042 = vmatprep.subr.mxu0 0.0
      %1043 = vmatpush2.msra.mxu0 0.0
      %1044 = vmatprep.subr.mxu0 0.0
      %1045 = vmatpush2.msra.mxu0 0.0
      %1046 = vmatprep.subr.mxu0 0.0
      %1047 = vmatpush2.msra.mxu0 0.0
      %1048 = vmatprep.subr.mxu0 0.0
      %1049 = vmatpush2.msra.mxu0 0.0
      %1050 = vmatprep.subr.mxu0 0.0
      %1051 = vmatpush2.msra.mxu0 0.0
      %1052 = vmatprep.subr.mxu0 0.0
      %1053 = vmatpush2.msra.mxu0 0.0
      %1054 = vmatprep.subr.mxu0 0.0
      %1055 = vmatpush2.msra.mxu0 0.0
      %1056 = vmatprep.subr.mxu0 0.0
      %1057 = vmatpush2.msra.mxu0 0.0
      %1058 = vmatprep.subr.mxu0 0.0
      %1059 = vmatpush2.msra.mxu0 0.0
      %1060 = vmatprep.subr.mxu0 0.0
      %1061 = vmatpush2.msra.mxu0 0.0
      %1062 = vmatprep.subr.mxu0 0.0
      %1063 = vmatpush2.msra.mxu0 0.0
      %1064 = vmatprep.subr.mxu0 0.0
      %1065 = vmatpush2.msra.mxu0 0.0
      %1066 = vmatprep.subr.mxu0 0.0
      %1067 = vmatpush2.msra.mxu0 0.0
      %1068 = vmatprep.subr.mxu0 0.0
      %1069 = vmatpush2.msra.mxu0 0.0
      %1070 = vmatprep.subr.mxu0 0.0
      %1071 = vmatpush2.msra.mxu0 0.0
      %1072 = vmatprep.mubr.f32.mxu0 0.0
      %1073 = vmatmul.mubr.f32.gmra.mxu0 %v846
      %v1074 = vpop.f32.mrf.mxu0
      %v1075 = vadd.f32 %v524, %v1074
      %v1076 = vpop.f32.mrf.mxu0
      %1077 = vdwg.mxu0
      %v1078 = vmul.f32 %v996, %v1075
      %v1079 = vadd.f32 %v1007, %v1078
      %v1080 = vtanh.pop %v1079
      %v1081 = vsub.f32 %v842, %v1080
      %v1082 = vmul.f32 %v1005, %v1081
      %v1083 = vadd.f32 %v1080, %v1082
      %s1084 = scalar_lea.vmem %s342, 8
      %1085 = vst.msk [vmem:[%s1084] sm:$0xf] %vm602, %v1083
      %v1087 = vsel %vm359, %v1083, 0
      %1089 = vmatprep.subr.mxu0 0.0
      %1090 = vmatpush1.msra.mxu0 0.0
      %1091 = vmatprep.subr.mxu0 0.0
      %1092 = vmatpush1.msra.mxu0 0.0
      %1093 = vmatprep.subr.mxu0 0.0
      %1094 = vmatpush1.msra.mxu0 0.0
      %1095 = vmatprep.subr.mxu0 0.0
      %1096 = vmatpush1.msra.mxu0 0.0
      %1097 = vmatprep.subr.mxu0 0.0
      %1098 = vmatpush1.msra.mxu0 0.0
      %1099 = vmatprep.subr.mxu0 0.0
      %1100 = vmatpush1.msra.mxu0 0.0
      %1101 = vmatprep.subr.mxu0 0.0
      %1102 = vmatpush1.msra.mxu0 0.0
      %1103 = vmatprep.subr.mxu0 0.0
      %1104 = vmatpush1.msra.mxu0 0.0
      %1105 = vmatprep.subr.mxu0 0.0
      %1106 = vmatpush1.msra.mxu0 0.0
      %1107 = vmatprep.subr.mxu0 0.0
      %1108 = vmatpush1.msra.mxu0 0.0
      %1109 = vmatprep.subr.mxu0 0.0
      %1110 = vmatpush1.msra.mxu0 0.0
      %1111 = vmatprep.subr.mxu0 0.0
      %1112 = vmatpush1.msra.mxu0 0.0
      %1113 = vmatprep.subr.mxu0 0.0
      %1114 = vmatpush1.msra.mxu0 %v346
      %1115 = vmatprep.subr.mxu0 0.0
      %1116 = vmatpush1.msra.mxu0 %v345
      %1117 = vmatprep.subr.mxu0 0.0
      %1118 = vmatpush1.msra.mxu0 %v344
      %1119 = vmatprep.subr.mxu0 0.0
      %1120 = vmatpush1.msra.mxu0 %v343
      %1121 = vmatprep.subr.mxu0 0.0
      %1122 = vmatpush2.msra.mxu0 0.0
      %1123 = vmatprep.subr.mxu0 0.0
      %1124 = vmatpush2.msra.mxu0 0.0
      %1125 = vmatprep.subr.mxu0 0.0
      %1126 = vmatpush2.msra.mxu0 0.0
      %1127 = vmatprep.subr.mxu0 0.0
      %1128 = vmatpush2.msra.mxu0 0.0
      %1129 = vmatprep.subr.mxu0 0.0
      %1130 = vmatpush2.msra.mxu0 0.0
      %1131 = vmatprep.subr.mxu0 0.0
      %1132 = vmatpush2.msra.mxu0 0.0
      %1133 = vmatprep.subr.mxu0 0.0
      %1134 = vmatpush2.msra.mxu0 0.0
      %1135 = vmatprep.subr.mxu0 0.0
      %1136 = vmatpush2.msra.mxu0 0.0
      %1137 = vmatprep.subr.mxu0 0.0
      %1138 = vmatpush2.msra.mxu0 0.0
      %1139 = vmatprep.subr.mxu0 0.0
      %1140 = vmatpush2.msra.mxu0 0.0
      %1141 = vmatprep.subr.mxu0 0.0
      %1142 = vmatpush2.msra.mxu0 0.0
      %1143 = vmatprep.subr.mxu0 0.0
      %1144 = vmatpush2.msra.mxu0 0.0
      %1145 = vmatprep.subr.mxu0 0.0
      %1146 = vmatpush2.msra.mxu0 0.0
      %1147 = vmatprep.subr.mxu0 0.0
      %1148 = vmatpush2.msra.mxu0 0.0
      %1149 = vmatprep.subr.mxu0 0.0
      %1150 = vmatpush2.msra.mxu0 0.0
      %1151 = vmatprep.subr.mxu0 0.0
      %1152 = vmatpush2.msra.mxu0 0.0
      %1153 = vmatprep.mubr.f32.mxu0 0.0
      %1154 = vmatmul.mubr.f32.gmra.mxu0 %v1087
      %v1155 = vpop.f32.mrf.mxu0
      %v1156 = vadd.f32 0.0, %v1155
      %v1157 = vpop.f32.mrf.mxu0
      %1158 = vdwg.mxu0
      %1159 = vmatprep.subr.mxu0 0.0
      %1160 = vmatpush1.msra.mxu0 0.0
      %1161 = vmatprep.subr.mxu0 0.0
      %1162 = vmatpush1.msra.mxu0 0.0
      %1163 = vmatprep.subr.mxu0 0.0
      %1164 = vmatpush1.msra.mxu0 0.0
      %1165 = vmatprep.subr.mxu0 0.0
      %1166 = vmatpush1.msra.mxu0 0.0
      %1167 = vmatprep.subr.mxu0 0.0
      %1168 = vmatpush1.msra.mxu0 0.0
      %1169 = vmatprep.subr.mxu0 0.0
      %1170 = vmatpush1.msra.mxu0 0.0
      %1171 = vmatprep.subr.mxu0 0.0
      %1172 = vmatpush1.msra.mxu0 0.0
      %1173 = vmatprep.subr.mxu0 0.0
      %1174 = vmatpush1.msra.mxu0 0.0
      %1175 = vmatprep.subr.mxu0 0.0
      %1176 = vmatpush1.msra.mxu0 0.0
      %1177 = vmatprep.subr.mxu0 0.0
      %1178 = vmatpush1.msra.mxu0 0.0
      %1179 = vmatprep.subr.mxu0 0.0
      %1180 = vmatpush1.msra.mxu0 0.0
      %1181 = vmatprep.subr.mxu0 0.0
      %1182 = vmatpush1.msra.mxu0 0.0
      %1183 = vmatprep.subr.mxu0 0.0
      %1184 = vmatpush1.msra.mxu0 %v351
      %1185 = vmatprep.subr.mxu0 0.0
      %1186 = vmatpush1.msra.mxu0 %v350
      %1187 = vmatprep.subr.mxu0 0.0
      %1188 = vmatpush1.msra.mxu0 %v349
      %1189 = vmatprep.subr.mxu0 0.0
      %1190 = vmatpush1.msra.mxu0 %v348
      %1191 = vmatprep.subr.mxu0 0.0
      %1192 = vmatpush2.msra.mxu0 0.0
      %1193 = vmatprep.subr.mxu0 0.0
      %1194 = vmatpush2.msra.mxu0 0.0
      %1195 = vmatprep.subr.mxu0 0.0
      %1196 = vmatpush2.msra.mxu0 0.0
      %1197 = vmatprep.subr.mxu0 0.0
      %1198 = vmatpush2.msra.mxu0 0.0
      %1199 = vmatprep.subr.mxu0 0.0
      %1200 = vmatpush2.msra.mxu0 0.0
      %1201 = vmatprep.subr.mxu0 0.0
      %1202 = vmatpush2.msra.mxu0 0.0
      %1203 = vmatprep.subr.mxu0 0.0
      %1204 = vmatpush2.msra.mxu0 0.0
      %1205 = vmatprep.subr.mxu0 0.0
      %1206 = vmatpush2.msra.mxu0 0.0
      %1207 = vmatprep.subr.mxu0 0.0
      %1208 = vmatpush2.msra.mxu0 0.0
      %1209 = vmatprep.subr.mxu0 0.0
      %1210 = vmatpush2.msra.mxu0 0.0
      %1211 = vmatprep.subr.mxu0 0.0
      %1212 = vmatpush2.msra.mxu0 0.0
      %1213 = vmatprep.subr.mxu0 0.0
      %1214 = vmatpush2.msra.mxu0 0.0
      %1215 = vmatprep.subr.mxu0 0.0
      %1216 = vmatpush2.msra.mxu0 0.0
      %1217 = vmatprep.subr.mxu0 0.0
      %1218 = vmatpush2.msra.mxu0 0.0
      %1219 = vmatprep.subr.mxu0 0.0
      %1220 = vmatpush2.msra.mxu0 0.0
      %1221 = vmatprep.subr.mxu0 0.0
      %1222 = vmatpush2.msra.mxu0 0.0
      %1223 = vmatprep.mubr.f32.mxu0 0.0
      %1224 = vmatmul.mubr.f32.gmra.mxu0 %v1087
      %v1225 = vpop.f32.mrf.mxu0
      %v1226 = vadd.f32 0.0, %v1225
      %v1227 = vpop.f32.mrf.mxu0
      %1228 = vdwg.mxu0
      %s1229 = scalar_lea.vmem %s315, 12
      %v1230 = vld [vmem:[%s1229] sm:$0xf]
      %v1231 = vadd.f32 %v1230, %v1156
      %v1232 = vxor.u32 %v1231, 2147483648
      %v1233 = vmul.f32 %v1232, 1.442695
      %v1234 = vpow.pop %v1233
      %v1235 = vadd.f32 %v1234, 1.0
      %v1236 = vrcp.pop %v1235
      %v1237 = vmul.f32 1.0, %v1236
      %s1238 = scalar_lea.vmem %s320, 12
      %v1239 = vld [vmem:[%s1238] sm:$0xf]
      %v1240 = vadd.f32 %v1239, %v1226
      %v1241 = vxor.u32 %v1240, 2147483648
      %v1242 = vmul.f32 %v1241, 1.442695
      %v1243 = vpow.pop %v1242
      %v1244 = vadd.f32 %v1243, 1.0
      %v1245 = vrcp.pop %v1244
      %v1246 = vmul.f32 1.0, %v1245
      %s1247 = scalar_lea.vmem %s325, 12
      %v1248 = vld [vmem:[%s1247] sm:$0xf]
      %1249 = vmatprep.subr.mxu0 0.0
      %1250 = vmatpush1.msra.mxu0 0.0
      %1251 = vmatprep.subr.mxu0 0.0
      %1252 = vmatpush1.msra.mxu0 0.0
      %1253 = vmatprep.subr.mxu0 0.0
      %1254 = vmatpush1.msra.mxu0 0.0
      %1255 = vmatprep.subr.mxu0 0.0
      %1256 = vmatpush1.msra.mxu0 0.0
      %1257 = vmatprep.subr.mxu0 0.0
      %1258 = vmatpush1.msra.mxu0 0.0
      %1259 = vmatprep.subr.mxu0 0.0
      %1260 = vmatpush1.msra.mxu0 0.0
      %1261 = vmatprep.subr.mxu0 0.0
      %1262 = vmatpush1.msra.mxu0 0.0
      %1263 = vmatprep.subr.mxu0 0.0
      %1264 = vmatpush1.msra.mxu0 0.0
      %1265 = vmatprep.subr.mxu0 0.0
      %1266 = vmatpush1.msra.mxu0 0.0
      %1267 = vmatprep.subr.mxu0 0.0
      %1268 = vmatpush1.msra.mxu0 0.0
      %1269 = vmatprep.subr.mxu0 0.0
      %1270 = vmatpush1.msra.mxu0 0.0
      %1271 = vmatprep.subr.mxu0 0.0
      %1272 = vmatpush1.msra.mxu0 0.0
      %1273 = vmatprep.subr.mxu0 0.0
      %1274 = vmatpush1.msra.mxu0 %v356
      %1275 = vmatprep.subr.mxu0 0.0
      %1276 = vmatpush1.msra.mxu0 %v355
      %1277 = vmatprep.subr.mxu0 0.0
      %1278 = vmatpush1.msra.mxu0 %v354
      %1279 = vmatprep.subr.mxu0 0.0
      %1280 = vmatpush1.msra.mxu0 %v353
      %1281 = vmatprep.subr.mxu0 0.0
      %1282 = vmatpush2.msra.mxu0 0.0
      %1283 = vmatprep.subr.mxu0 0.0
      %1284 = vmatpush2.msra.mxu0 0.0
      %1285 = vmatprep.subr.mxu0 0.0
      %1286 = vmatpush2.msra.mxu0 0.0
      %1287 = vmatprep.subr.mxu0 0.0
      %1288 = vmatpush2.msra.mxu0 0.0
      %1289 = vmatprep.subr.mxu0 0.0
      %1290 = vmatpush2.msra.mxu0 0.0
      %1291 = vmatprep.subr.mxu0 0.0
      %1292 = vmatpush2.msra.mxu0 0.0
      %1293 = vmatprep.subr.mxu0 0.0
      %1294 = vmatpush2.msra.mxu0 0.0
      %1295 = vmatprep.subr.mxu0 0.0
      %1296 = vmatpush2.msra.mxu0 0.0
      %1297 = vmatprep.subr.mxu0 0.0
      %1298 = vmatpush2.msra.mxu0 0.0
      %1299 = vmatprep.subr.mxu0 0.0
      %1300 = vmatpush2.msra.mxu0 0.0
      %1301 = vmatprep.subr.mxu0 0.0
      %1302 = vmatpush2.msra.mxu0 0.0
      %1303 = vmatprep.subr.mxu0 0.0
      %1304 = vmatpush2.msra.mxu0 0.0
      %1305 = vmatprep.subr.mxu0 0.0
      %1306 = vmatpush2.msra.mxu0 0.0
      %1307 = vmatprep.subr.mxu0 0.0
      %1308 = vmatpush2.msra.mxu0 0.0
      %1309 = vmatprep.subr.mxu0 0.0
      %1310 = vmatpush2.msra.mxu0 0.0
      %1311 = vmatprep.subr.mxu0 0.0
      %1312 = vmatpush2.msra.mxu0 0.0
      %1313 = vmatprep.mubr.f32.mxu0 0.0
      %1314 = vmatmul.mubr.f32.gmra.mxu0 %v1087
      %v1315 = vpop.f32.mrf.mxu0
      %v1316 = vadd.f32 %v524, %v1315
      %v1317 = vpop.f32.mrf.mxu0
      %1318 = vdwg.mxu0
      %v1319 = vmul.f32 %v1237, %v1316
      %v1320 = vadd.f32 %v1248, %v1319
      %v1321 = vtanh.pop %v1320
      %v1322 = vsub.f32 %v1083, %v1321
      %v1323 = vmul.f32 %v1246, %v1322
      %v1324 = vadd.f32 %v1321, %v1323
      %s1325 = scalar_lea.vmem %s342, 12
      %1326 = vst.msk [vmem:[%s1325] sm:$0xf] %vm602, %v1324
      %v1328 = vsel %vm359, %v1324, 0
      %1330 = vmatprep.subr.mxu0 0.0
      %1331 = vmatpush1.msra.mxu0 0.0
      %1332 = vmatprep.subr.mxu0 0.0
      %1333 = vmatpush1.msra.mxu0 0.0
      %1334 = vmatprep.subr.mxu0 0.0
      %1335 = vmatpush1.msra.mxu0 0.0
      %1336 = vmatprep.subr.mxu0 0.0
      %1337 = vmatpush1.msra.mxu0 0.0
      %1338 = vmatprep.subr.mxu0 0.0
      %1339 = vmatpush1.msra.mxu0 0.0
      %1340 = vmatprep.subr.mxu0 0.0
      %1341 = vmatpush1.msra.mxu0 0.0
      %1342 = vmatprep.subr.mxu0 0.0
      %1343 = vmatpush1.msra.mxu0 0.0
      %1344 = vmatprep.subr.mxu0 0.0
      %1345 = vmatpush1.msra.mxu0 0.0
      %1346 = vmatprep.subr.mxu0 0.0
      %1347 = vmatpush1.msra.mxu0 0.0
      %1348 = vmatprep.subr.mxu0 0.0
      %1349 = vmatpush1.msra.mxu0 0.0
      %1350 = vmatprep.subr.mxu0 0.0
      %1351 = vmatpush1.msra.mxu0 0.0
      %1352 = vmatprep.subr.mxu0 0.0
      %1353 = vmatpush1.msra.mxu0 0.0
      %1354 = vmatprep.subr.mxu0 0.0
      %1355 = vmatpush1.msra.mxu0 %v346
      %1356 = vmatprep.subr.mxu0 0.0
      %1357 = vmatpush1.msra.mxu0 %v345
      %1358 = vmatprep.subr.mxu0 0.0
      %1359 = vmatpush1.msra.mxu0 %v344
      %1360 = vmatprep.subr.mxu0 0.0
      %1361 = vmatpush1.msra.mxu0 %v343
      %1362 = vmatprep.subr.mxu0 0.0
      %1363 = vmatpush2.msra.mxu0 0.0
      %1364 = vmatprep.subr.mxu0 0.0
      %1365 = vmatpush2.msra.mxu0 0.0
      %1366 = vmatprep.subr.mxu0 0.0
      %1367 = vmatpush2.msra.mxu0 0.0
      %1368 = vmatprep.subr.mxu0 0.0
      %1369 = vmatpush2.msra.mxu0 0.0
      %1370 = vmatprep.subr.mxu0 0.0
      %1371 = vmatpush2.msra.mxu0 0.0
      %1372 = vmatprep.subr.mxu0 0.0
      %1373 = vmatpush2.msra.mxu0 0.0
      %1374 = vmatprep.subr.mxu0 0.0
      %1375 = vmatpush2.msra.mxu0 0.0
      %1376 = vmatprep.subr.mxu0 0.0
      %1377 = vmatpush2.msra.mxu0 0.0
      %1378 = vmatprep.subr.mxu0 0.0
      %1379 = vmatpush2.msra.mxu0 0.0
      %1380 = vmatprep.subr.mxu0 0.0
      %1381 = vmatpush2.msra.mxu0 0.0
      %1382 = vmatprep.subr.mxu0 0.0
      %1383 = vmatpush2.msra.mxu0 0.0
      %1384 = vmatprep.subr.mxu0 0.0
      %1385 = vmatpush2.msra.mxu0 0.0
      %1386 = vmatprep.subr.mxu0 0.0
      %1387 = vmatpush2.msra.mxu0 0.0
      %1388 = vmatprep.subr.mxu0 0.0
      %1389 = vmatpush2.msra.mxu0 0.0
      %1390 = vmatprep.subr.mxu0 0.0
      %1391 = vmatpush2.msra.mxu0 0.0
      %1392 = vmatprep.subr.mxu0 0.0
      %1393 = vmatpush2.msra.mxu0 0.0
      %1394 = vmatprep.mubr.f32.mxu0 0.0
      %1395 = vmatmul.mubr.f32.gmra.mxu0 %v1328
      %v1396 = vpop.f32.mrf.mxu0
      %v1397 = vadd.f32 0.0, %v1396
      %v1398 = vpop.f32.mrf.mxu0
      %1399 = vdwg.mxu0
      %1400 = vmatprep.subr.mxu0 0.0
      %1401 = vmatpush1.msra.mxu0 0.0
      %1402 = vmatprep.subr.mxu0 0.0
      %1403 = vmatpush1.msra.mxu0 0.0
      %1404 = vmatprep.subr.mxu0 0.0
      %1405 = vmatpush1.msra.mxu0 0.0
      %1406 = vmatprep.subr.mxu0 0.0
      %1407 = vmatpush1.msra.mxu0 0.0
      %1408 = vmatprep.subr.mxu0 0.0
      %1409 = vmatpush1.msra.mxu0 0.0
      %1410 = vmatprep.subr.mxu0 0.0
      %1411 = vmatpush1.msra.mxu0 0.0
      %1412 = vmatprep.subr.mxu0 0.0
      %1413 = vmatpush1.msra.mxu0 0.0
      %1414 = vmatprep.subr.mxu0 0.0
      %1415 = vmatpush1.msra.mxu0 0.0
      %1416 = vmatprep.subr.mxu0 0.0
      %1417 = vmatpush1.msra.mxu0 0.0
      %1418 = vmatprep.subr.mxu0 0.0
      %1419 = vmatpush1.msra.mxu0 0.0
      %1420 = vmatprep.subr.mxu0 0.0
      %1421 = vmatpush1.msra.mxu0 0.0
      %1422 = vmatprep.subr.mxu0 0.0
      %1423 = vmatpush1.msra.mxu0 0.0
      %1424 = vmatprep.subr.mxu0 0.0
      %1425 = vmatpush1.msra.mxu0 %v351
      %1426 = vmatprep.subr.mxu0 0.0
      %1427 = vmatpush1.msra.mxu0 %v350
      %1428 = vmatprep.subr.mxu0 0.0
      %1429 = vmatpush1.msra.mxu0 %v349
      %1430 = vmatprep.subr.mxu0 0.0
      %1431 = vmatpush1.msra.mxu0 %v348
      %1432 = vmatprep.subr.mxu0 0.0
      %1433 = vmatpush2.msra.mxu0 0.0
      %1434 = vmatprep.subr.mxu0 0.0
      %1435 = vmatpush2.msra.mxu0 0.0
      %1436 = vmatprep.subr.mxu0 0.0
      %1437 = vmatpush2.msra.mxu0 0.0
      %1438 = vmatprep.subr.mxu0 0.0
      %1439 = vmatpush2.msra.mxu0 0.0
      %1440 = vmatprep.subr.mxu0 0.0
      %1441 = vmatpush2.msra.mxu0 0.0
      %1442 = vmatprep.subr.mxu0 0.0
      %1443 = vmatpush2.msra.mxu0 0.0
      %1444 = vmatprep.subr.mxu0 0.0
      %1445 = vmatpush2.msra.mxu0 0.0
      %1446 = vmatprep.subr.mxu0 0.0
      %1447 = vmatpush2.msra.mxu0 0.0
      %1448 = vmatprep.subr.mxu0 0.0
      %1449 = vmatpush2.msra.mxu0 0.0
      %1450 = vmatprep.subr.mxu0 0.0
      %1451 = vmatpush2.msra.mxu0 0.0
      %1452 = vmatprep.subr.mxu0 0.0
      %1453 = vmatpush2.msra.mxu0 0.0
      %1454 = vmatprep.subr.mxu0 0.0
      %1455 = vmatpush2.msra.mxu0 0.0
      %1456 = vmatprep.subr.mxu0 0.0
      %1457 = vmatpush2.msra.mxu0 0.0
      %1458 = vmatprep.subr.mxu0 0.0
      %1459 = vmatpush2.msra.mxu0 0.0
      %1460 = vmatprep.subr.mxu0 0.0
      %1461 = vmatpush2.msra.mxu0 0.0
      %1462 = vmatprep.subr.mxu0 0.0
      %1463 = vmatpush2.msra.mxu0 0.0
      %1464 = vmatprep.mubr.f32.mxu0 0.0
      %1465 = vmatmul.mubr.f32.gmra.mxu0 %v1328
      %v1466 = vpop.f32.mrf.mxu0
      %v1467 = vadd.f32 0.0, %v1466
      %v1468 = vpop.f32.mrf.mxu0
      %1469 = vdwg.mxu0
      %s1470 = scalar_lea.vmem %s315, 16
      %v1471 = vld [vmem:[%s1470] sm:$0xf]
      %v1472 = vadd.f32 %v1471, %v1397
      %v1473 = vxor.u32 %v1472, 2147483648
      %v1474 = vmul.f32 %v1473, 1.442695
      %v1475 = vpow.pop %v1474
      %v1476 = vadd.f32 %v1475, 1.0
      %v1477 = vrcp.pop %v1476
      %v1478 = vmul.f32 1.0, %v1477
      %s1479 = scalar_lea.vmem %s320, 16
      %v1480 = vld [vmem:[%s1479] sm:$0xf]
      %v1481 = vadd.f32 %v1480, %v1467
      %v1482 = vxor.u32 %v1481, 2147483648
      %v1483 = vmul.f32 %v1482, 1.442695
      %v1484 = vpow.pop %v1483
      %v1485 = vadd.f32 %v1484, 1.0
      %v1486 = vrcp.pop %v1485
      %v1487 = vmul.f32 1.0, %v1486
      %s1488 = scalar_lea.vmem %s325, 16
      %v1489 = vld [vmem:[%s1488] sm:$0xf]
      %1490 = vmatprep.subr.mxu0 0.0
      %1491 = vmatpush1.msra.mxu0 0.0
      %1492 = vmatprep.subr.mxu0 0.0
      %1493 = vmatpush1.msra.mxu0 0.0
      %1494 = vmatprep.subr.mxu0 0.0
      %1495 = vmatpush1.msra.mxu0 0.0
      %1496 = vmatprep.subr.mxu0 0.0
      %1497 = vmatpush1.msra.mxu0 0.0
      %1498 = vmatprep.subr.mxu0 0.0
      %1499 = vmatpush1.msra.mxu0 0.0
      %1500 = vmatprep.subr.mxu0 0.0
      %1501 = vmatpush1.msra.mxu0 0.0
      %1502 = vmatprep.subr.mxu0 0.0
      %1503 = vmatpush1.msra.mxu0 0.0
      %1504 = vmatprep.subr.mxu0 0.0
      %1505 = vmatpush1.msra.mxu0 0.0
      %1506 = vmatprep.subr.mxu0 0.0
      %1507 = vmatpush1.msra.mxu0 0.0
      %1508 = vmatprep.subr.mxu0 0.0
      %1509 = vmatpush1.msra.mxu0 0.0
      %1510 = vmatprep.subr.mxu0 0.0
      %1511 = vmatpush1.msra.mxu0 0.0
      %1512 = vmatprep.subr.mxu0 0.0
      %1513 = vmatpush1.msra.mxu0 0.0
      %1514 = vmatprep.subr.mxu0 0.0
      %1515 = vmatpush1.msra.mxu0 %v356
      %1516 = vmatprep.subr.mxu0 0.0
      %1517 = vmatpush1.msra.mxu0 %v355
      %1518 = vmatprep.subr.mxu0 0.0
      %1519 = vmatpush1.msra.mxu0 %v354
      %1520 = vmatprep.subr.mxu0 0.0
      %1521 = vmatpush1.msra.mxu0 %v353
      %1522 = vmatprep.subr.mxu0 0.0
      %1523 = vmatpush2.msra.mxu0 0.0
      %1524 = vmatprep.subr.mxu0 0.0
      %1525 = vmatpush2.msra.mxu0 0.0
      %1526 = vmatprep.subr.mxu0 0.0
      %1527 = vmatpush2.msra.mxu0 0.0
      %1528 = vmatprep.subr.mxu0 0.0
      %1529 = vmatpush2.msra.mxu0 0.0
      %1530 = vmatprep.subr.mxu0 0.0
      %1531 = vmatpush2.msra.mxu0 0.0
      %1532 = vmatprep.subr.mxu0 0.0
      %1533 = vmatpush2.msra.mxu0 0.0
      %1534 = vmatprep.subr.mxu0 0.0
      %1535 = vmatpush2.msra.mxu0 0.0
      %1536 = vmatprep.subr.mxu0 0.0
      %1537 = vmatpush2.msra.mxu0 0.0
      %1538 = vmatprep.subr.mxu0 0.0
      %1539 = vmatpush2.msra.mxu0 0.0
      %1540 = vmatprep.subr.mxu0 0.0
      %1541 = vmatpush2.msra.mxu0 0.0
      %1542 = vmatprep.subr.mxu0 0.0
      %1543 = vmatpush2.msra.mxu0 0.0
      %1544 = vmatprep.subr.mxu0 0.0
      %1545 = vmatpush2.msra.mxu0 0.0
      %1546 = vmatprep.subr.mxu0 0.0
      %1547 = vmatpush2.msra.mxu0 0.0
      %1548 = vmatprep.subr.mxu0 0.0
      %1549 = vmatpush2.msra.mxu0 0.0
      %1550 = vmatprep.subr.mxu0 0.0
      %1551 = vmatpush2.msra.mxu0 0.0
      %1552 = vmatprep.subr.mxu0 0.0
      %1553 = vmatpush2.msra.mxu0 0.0
      %1554 = vmatprep.mubr.f32.mxu0 0.0
      %1555 = vmatmul.mubr.f32.gmra.mxu0 %v1328
      %v1556 = vpop.f32.mrf.mxu0
      %v1557 = vadd.f32 %v524, %v1556
      %v1558 = vpop.f32.mrf.mxu0
      %1559 = vdwg.mxu0
      %v1560 = vmul.f32 %v1478, %v1557
      %v1561 = vadd.f32 %v1489, %v1560
      %v1562 = vtanh.pop %v1561
      %v1563 = vsub.f32 %v1324, %v1562
      %v1564 = vmul.f32 %v1487, %v1563
      %v1565 = vadd.f32 %v1562, %v1564
      %s1566 = scalar_lea.vmem %s342, 16
      %1567 = vst.msk [vmem:[%s1566] sm:$0xf] %vm602, %v1565
      %v1569 = vsel %vm359, %v1565, 0
      %1571 = vmatprep.subr.mxu0 0.0
      %1572 = vmatpush1.msra.mxu0 0.0
      %1573 = vmatprep.subr.mxu0 0.0
      %1574 = vmatpush1.msra.mxu0 0.0
      %1575 = vmatprep.subr.mxu0 0.0
      %1576 = vmatpush1.msra.mxu0 0.0
      %1577 = vmatprep.subr.mxu0 0.0
      %1578 = vmatpush1.msra.mxu0 0.0
      %1579 = vmatprep.subr.mxu0 0.0
      %1580 = vmatpush1.msra.mxu0 0.0
      %1581 = vmatprep.subr.mxu0 0.0
      %1582 = vmatpush1.msra.mxu0 0.0
      %1583 = vmatprep.subr.mxu0 0.0
      %1584 = vmatpush1.msra.mxu0 0.0
      %1585 = vmatprep.subr.mxu0 0.0
      %1586 = vmatpush1.msra.mxu0 0.0
      %1587 = vmatprep.subr.mxu0 0.0
      %1588 = vmatpush1.msra.mxu0 0.0
      %1589 = vmatprep.subr.mxu0 0.0
      %1590 = vmatpush1.msra.mxu0 0.0
      %1591 = vmatprep.subr.mxu0 0.0
      %1592 = vmatpush1.msra.mxu0 0.0
      %1593 = vmatprep.subr.mxu0 0.0
      %1594 = vmatpush1.msra.mxu0 0.0
      %1595 = vmatprep.subr.mxu0 0.0
      %1596 = vmatpush1.msra.mxu0 %v346
      %1597 = vmatprep.subr.mxu0 0.0
      %1598 = vmatpush1.msra.mxu0 %v345
      %1599 = vmatprep.subr.mxu0 0.0
      %1600 = vmatpush1.msra.mxu0 %v344
      %1601 = vmatprep.subr.mxu0 0.0
      %1602 = vmatpush1.msra.mxu0 %v343
      %1603 = vmatprep.subr.mxu0 0.0
      %1604 = vmatpush2.msra.mxu0 0.0
      %1605 = vmatprep.subr.mxu0 0.0
      %1606 = vmatpush2.msra.mxu0 0.0
      %1607 = vmatprep.subr.mxu0 0.0
      %1608 = vmatpush2.msra.mxu0 0.0
      %1609 = vmatprep.subr.mxu0 0.0
      %1610 = vmatpush2.msra.mxu0 0.0
      %1611 = vmatprep.subr.mxu0 0.0
      %1612 = vmatpush2.msra.mxu0 0.0
      %1613 = vmatprep.subr.mxu0 0.0
      %1614 = vmatpush2.msra.mxu0 0.0
      %1615 = vmatprep.subr.mxu0 0.0
      %1616 = vmatpush2.msra.mxu0 0.0
      %1617 = vmatprep.subr.mxu0 0.0
      %1618 = vmatpush2.msra.mxu0 0.0
      %1619 = vmatprep.subr.mxu0 0.0
      %1620 = vmatpush2.msra.mxu0 0.0
      %1621 = vmatprep.subr.mxu0 0.0
      %1622 = vmatpush2.msra.mxu0 0.0
      %1623 = vmatprep.subr.mxu0 0.0
      %1624 = vmatpush2.msra.mxu0 0.0
      %1625 = vmatprep.subr.mxu0 0.0
      %1626 = vmatpush2.msra.mxu0 0.0
      %1627 = vmatprep.subr.mxu0 0.0
      %1628 = vmatpush2.msra.mxu0 0.0
      %1629 = vmatprep.subr.mxu0 0.0
      %1630 = vmatpush2.msra.mxu0 0.0
      %1631 = vmatprep.subr.mxu0 0.0
      %1632 = vmatpush2.msra.mxu0 0.0
      %1633 = vmatprep.subr.mxu0 0.0
      %1634 = vmatpush2.msra.mxu0 0.0
      %1635 = vmatprep.mubr.f32.mxu0 0.0
      %1636 = vmatmul.mubr.f32.gmra.mxu0 %v1569
      %v1637 = vpop.f32.mrf.mxu0
      %v1638 = vadd.f32 0.0, %v1637
      %v1639 = vpop.f32.mrf.mxu0
      %1640 = vdwg.mxu0
      %1641 = vmatprep.subr.mxu0 0.0
      %1642 = vmatpush1.msra.mxu0 0.0
      %1643 = vmatprep.subr.mxu0 0.0
      %1644 = vmatpush1.msra.mxu0 0.0
      %1645 = vmatprep.subr.mxu0 0.0
      %1646 = vmatpush1.msra.mxu0 0.0
      %1647 = vmatprep.subr.mxu0 0.0
      %1648 = vmatpush1.msra.mxu0 0.0
      %1649 = vmatprep.subr.mxu0 0.0
      %1650 = vmatpush1.msra.mxu0 0.0
      %1651 = vmatprep.subr.mxu0 0.0
      %1652 = vmatpush1.msra.mxu0 0.0
      %1653 = vmatprep.subr.mxu0 0.0
      %1654 = vmatpush1.msra.mxu0 0.0
      %1655 = vmatprep.subr.mxu0 0.0
      %1656 = vmatpush1.msra.mxu0 0.0
      %1657 = vmatprep.subr.mxu0 0.0
      %1658 = vmatpush1.msra.mxu0 0.0
      %1659 = vmatprep.subr.mxu0 0.0
      %1660 = vmatpush1.msra.mxu0 0.0
      %1661 = vmatprep.subr.mxu0 0.0
      %1662 = vmatpush1.msra.mxu0 0.0
      %1663 = vmatprep.subr.mxu0 0.0
      %1664 = vmatpush1.msra.mxu0 0.0
      %1665 = vmatprep.subr.mxu0 0.0
      %1666 = vmatpush1.msra.mxu0 %v351
      %1667 = vmatprep.subr.mxu0 0.0
      %1668 = vmatpush1.msra.mxu0 %v350
      %1669 = vmatprep.subr.mxu0 0.0
      %1670 = vmatpush1.msra.mxu0 %v349
      %1671 = vmatprep.subr.mxu0 0.0
      %1672 = vmatpush1.msra.mxu0 %v348
      %1673 = vmatprep.subr.mxu0 0.0
      %1674 = vmatpush2.msra.mxu0 0.0
      %1675 = vmatprep.subr.mxu0 0.0
      %1676 = vmatpush2.msra.mxu0 0.0
      %1677 = vmatprep.subr.mxu0 0.0
      %1678 = vmatpush2.msra.mxu0 0.0
      %1679 = vmatprep.subr.mxu0 0.0
      %1680 = vmatpush2.msra.mxu0 0.0
      %1681 = vmatprep.subr.mxu0 0.0
      %1682 = vmatpush2.msra.mxu0 0.0
      %1683 = vmatprep.subr.mxu0 0.0
      %1684 = vmatpush2.msra.mxu0 0.0
      %1685 = vmatprep.subr.mxu0 0.0
      %1686 = vmatpush2.msra.mxu0 0.0
      %1687 = vmatprep.subr.mxu0 0.0
      %1688 = vmatpush2.msra.mxu0 0.0
      %1689 = vmatprep.subr.mxu0 0.0
      %1690 = vmatpush2.msra.mxu0 0.0
      %1691 = vmatprep.subr.mxu0 0.0
      %1692 = vmatpush2.msra.mxu0 0.0
      %1693 = vmatprep.subr.mxu0 0.0
      %1694 = vmatpush2.msra.mxu0 0.0
      %1695 = vmatprep.subr.mxu0 0.0
      %1696 = vmatpush2.msra.mxu0 0.0
      %1697 = vmatprep.subr.mxu0 0.0
      %1698 = vmatpush2.msra.mxu0 0.0
      %1699 = vmatprep.subr.mxu0 0.0
      %1700 = vmatpush2.msra.mxu0 0.0
      %1701 = vmatprep.subr.mxu0 0.0
      %1702 = vmatpush2.msra.mxu0 0.0
      %1703 = vmatprep.subr.mxu0 0.0
      %1704 = vmatpush2.msra.mxu0 0.0
      %1705 = vmatprep.mubr.f32.mxu0 0.0
      %1706 = vmatmul.mubr.f32.gmra.mxu0 %v1569
      %v1707 = vpop.f32.mrf.mxu0
      %v1708 = vadd.f32 0.0, %v1707
      %v1709 = vpop.f32.mrf.mxu0
      %1710 = vdwg.mxu0
      %s1711 = scalar_lea.vmem %s315, 20
      %v1712 = vld [vmem:[%s1711] sm:$0xf]
      %v1713 = vadd.f32 %v1712, %v1638
      %v1714 = vxor.u32 %v1713, 2147483648
      %v1715 = vmul.f32 %v1714, 1.442695
      %v1716 = vpow.pop %v1715
      %v1717 = vadd.f32 %v1716, 1.0
      %v1718 = vrcp.pop %v1717
      %v1719 = vmul.f32 1.0, %v1718
      %s1720 = scalar_lea.vmem %s320, 20
      %v1721 = vld [vmem:[%s1720] sm:$0xf]
      %v1722 = vadd.f32 %v1721, %v1708
      %v1723 = vxor.u32 %v1722, 2147483648
      %v1724 = vmul.f32 %v1723, 1.442695
      %v1725 = vpow.pop %v1724
      %v1726 = vadd.f32 %v1725, 1.0
      %v1727 = vrcp.pop %v1726
      %v1728 = vmul.f32 1.0, %v1727
      %s1729 = scalar_lea.vmem %s325, 20
      %v1730 = vld [vmem:[%s1729] sm:$0xf]
      %1731 = vmatprep.subr.mxu0 0.0
      %1732 = vmatpush1.msra.mxu0 0.0
      %1733 = vmatprep.subr.mxu0 0.0
      %1734 = vmatpush1.msra.mxu0 0.0
      %1735 = vmatprep.subr.mxu0 0.0
      %1736 = vmatpush1.msra.mxu0 0.0
      %1737 = vmatprep.subr.mxu0 0.0
      %1738 = vmatpush1.msra.mxu0 0.0
      %1739 = vmatprep.subr.mxu0 0.0
      %1740 = vmatpush1.msra.mxu0 0.0
      %1741 = vmatprep.subr.mxu0 0.0
      %1742 = vmatpush1.msra.mxu0 0.0
      %1743 = vmatprep.subr.mxu0 0.0
      %1744 = vmatpush1.msra.mxu0 0.0
      %1745 = vmatprep.subr.mxu0 0.0
      %1746 = vmatpush1.msra.mxu0 0.0
      %1747 = vmatprep.subr.mxu0 0.0
      %1748 = vmatpush1.msra.mxu0 0.0
      %1749 = vmatprep.subr.mxu0 0.0
      %1750 = vmatpush1.msra.mxu0 0.0
      %1751 = vmatprep.subr.mxu0 0.0
      %1752 = vmatpush1.msra.mxu0 0.0
      %1753 = vmatprep.subr.mxu0 0.0
      %1754 = vmatpush1.msra.mxu0 0.0
      %1755 = vmatprep.subr.mxu0 0.0
      %1756 = vmatpush1.msra.mxu0 %v356
      %1757 = vmatprep.subr.mxu0 0.0
      %1758 = vmatpush1.msra.mxu0 %v355
      %1759 = vmatprep.subr.mxu0 0.0
      %1760 = vmatpush1.msra.mxu0 %v354
      %1761 = vmatprep.subr.mxu0 0.0
      %1762 = vmatpush1.msra.mxu0 %v353
      %1763 = vmatprep.subr.mxu0 0.0
      %1764 = vmatpush2.msra.mxu0 0.0
      %1765 = vmatprep.subr.mxu0 0.0
      %1766 = vmatpush2.msra.mxu0 0.0
      %1767 = vmatprep.subr.mxu0 0.0
      %1768 = vmatpush2.msra.mxu0 0.0
      %1769 = vmatprep.subr.mxu0 0.0
      %1770 = vmatpush2.msra.mxu0 0.0
      %1771 = vmatprep.subr.mxu0 0.0
      %1772 = vmatpush2.msra.mxu0 0.0
      %1773 = vmatprep.subr.mxu0 0.0
      %1774 = vmatpush2.msra.mxu0 0.0
      %1775 = vmatprep.subr.mxu0 0.0
      %1776 = vmatpush2.msra.mxu0 0.0
      %1777 = vmatprep.subr.mxu0 0.0
      %1778 = vmatpush2.msra.mxu0 0.0
      %1779 = vmatprep.subr.mxu0 0.0
      %1780 = vmatpush2.msra.mxu0 0.0
      %1781 = vmatprep.subr.mxu0 0.0
      %1782 = vmatpush2.msra.mxu0 0.0
      %1783 = vmatprep.subr.mxu0 0.0
      %1784 = vmatpush2.msra.mxu0 0.0
      %1785 = vmatprep.subr.mxu0 0.0
      %1786 = vmatpush2.msra.mxu0 0.0
      %1787 = vmatprep.subr.mxu0 0.0
      %1788 = vmatpush2.msra.mxu0 0.0
      %1789 = vmatprep.subr.mxu0 0.0
      %1790 = vmatpush2.msra.mxu0 0.0
      %1791 = vmatprep.subr.mxu0 0.0
      %1792 = vmatpush2.msra.mxu0 0.0
      %1793 = vmatprep.subr.mxu0 0.0
      %1794 = vmatpush2.msra.mxu0 0.0
      %1795 = vmatprep.mubr.f32.mxu0 0.0
      %1796 = vmatmul.mubr.f32.gmra.mxu0 %v1569
      %v1797 = vpop.f32.mrf.mxu0
      %v1798 = vadd.f32 %v524, %v1797
      %v1799 = vpop.f32.mrf.mxu0
      %1800 = vdwg.mxu0
      %v1801 = vmul.f32 %v1719, %v1798
      %v1802 = vadd.f32 %v1730, %v1801
      %v1803 = vtanh.pop %v1802
      %v1804 = vsub.f32 %v1565, %v1803
      %v1805 = vmul.f32 %v1728, %v1804
      %v1806 = vadd.f32 %v1803, %v1805
      %s1807 = scalar_lea.vmem %s342, 20
      %1808 = vst.msk [vmem:[%s1807] sm:$0xf] %vm602, %v1806
      %v1810 = vsel %vm359, %v1806, 0
      %1812 = vmatprep.subr.mxu0 0.0
      %1813 = vmatpush1.msra.mxu0 0.0
      %1814 = vmatprep.subr.mxu0 0.0
      %1815 = vmatpush1.msra.mxu0 0.0
      %1816 = vmatprep.subr.mxu0 0.0
      %1817 = vmatpush1.msra.mxu0 0.0
      %1818 = vmatprep.subr.mxu0 0.0
      %1819 = vmatpush1.msra.mxu0 0.0
      %1820 = vmatprep.subr.mxu0 0.0
      %1821 = vmatpush1.msra.mxu0 0.0
      %1822 = vmatprep.subr.mxu0 0.0
      %1823 = vmatpush1.msra.mxu0 0.0
      %1824 = vmatprep.subr.mxu0 0.0
      %1825 = vmatpush1.msra.mxu0 0.0
      %1826 = vmatprep.subr.mxu0 0.0
      %1827 = vmatpush1.msra.mxu0 0.0
      %1828 = vmatprep.subr.mxu0 0.0
      %1829 = vmatpush1.msra.mxu0 0.0
      %1830 = vmatprep.subr.mxu0 0.0
      %1831 = vmatpush1.msra.mxu0 0.0
      %1832 = vmatprep.subr.mxu0 0.0
      %1833 = vmatpush1.msra.mxu0 0.0
      %1834 = vmatprep.subr.mxu0 0.0
      %1835 = vmatpush1.msra.mxu0 0.0
      %1836 = vmatprep.subr.mxu0 0.0
      %1837 = vmatpush1.msra.mxu0 %v346
      %1838 = vmatprep.subr.mxu0 0.0
      %1839 = vmatpush1.msra.mxu0 %v345
      %1840 = vmatprep.subr.mxu0 0.0
      %1841 = vmatpush1.msra.mxu0 %v344
      %1842 = vmatprep.subr.mxu0 0.0
      %1843 = vmatpush1.msra.mxu0 %v343
      %1844 = vmatprep.subr.mxu0 0.0
      %1845 = vmatpush2.msra.mxu0 0.0
      %1846 = vmatprep.subr.mxu0 0.0
      %1847 = vmatpush2.msra.mxu0 0.0
      %1848 = vmatprep.subr.mxu0 0.0
      %1849 = vmatpush2.msra.mxu0 0.0
      %1850 = vmatprep.subr.mxu0 0.0
      %1851 = vmatpush2.msra.mxu0 0.0
      %1852 = vmatprep.subr.mxu0 0.0
      %1853 = vmatpush2.msra.mxu0 0.0
      %1854 = vmatprep.subr.mxu0 0.0
      %1855 = vmatpush2.msra.mxu0 0.0
      %1856 = vmatprep.subr.mxu0 0.0
      %1857 = vmatpush2.msra.mxu0 0.0
      %1858 = vmatprep.subr.mxu0 0.0
      %1859 = vmatpush2.msra.mxu0 0.0
      %1860 = vmatprep.subr.mxu0 0.0
      %1861 = vmatpush2.msra.mxu0 0.0
      %1862 = vmatprep.subr.mxu0 0.0
      %1863 = vmatpush2.msra.mxu0 0.0
      %1864 = vmatprep.subr.mxu0 0.0
      %1865 = vmatpush2.msra.mxu0 0.0
      %1866 = vmatprep.subr.mxu0 0.0
      %1867 = vmatpush2.msra.mxu0 0.0
      %1868 = vmatprep.subr.mxu0 0.0
      %1869 = vmatpush2.msra.mxu0 0.0
      %1870 = vmatprep.subr.mxu0 0.0
      %1871 = vmatpush2.msra.mxu0 0.0
      %1872 = vmatprep.subr.mxu0 0.0
      %1873 = vmatpush2.msra.mxu0 0.0
      %1874 = vmatprep.subr.mxu0 0.0
      %1875 = vmatpush2.msra.mxu0 0.0
      %1876 = vmatprep.mubr.f32.mxu0 0.0
      %1877 = vmatmul.mubr.f32.gmra.mxu0 %v1810
      %v1878 = vpop.f32.mrf.mxu0
      %v1879 = vadd.f32 0.0, %v1878
      %v1880 = vpop.f32.mrf.mxu0
      %1881 = vdwg.mxu0
      %1882 = vmatprep.subr.mxu0 0.0
      %1883 = vmatpush1.msra.mxu0 0.0
      %1884 = vmatprep.subr.mxu0 0.0
      %1885 = vmatpush1.msra.mxu0 0.0
      %1886 = vmatprep.subr.mxu0 0.0
      %1887 = vmatpush1.msra.mxu0 0.0
      %1888 = vmatprep.subr.mxu0 0.0
      %1889 = vmatpush1.msra.mxu0 0.0
      %1890 = vmatprep.subr.mxu0 0.0
      %1891 = vmatpush1.msra.mxu0 0.0
      %1892 = vmatprep.subr.mxu0 0.0
      %1893 = vmatpush1.msra.mxu0 0.0
      %1894 = vmatprep.subr.mxu0 0.0
      %1895 = vmatpush1.msra.mxu0 0.0
      %1896 = vmatprep.subr.mxu0 0.0
      %1897 = vmatpush1.msra.mxu0 0.0
      %1898 = vmatprep.subr.mxu0 0.0
      %1899 = vmatpush1.msra.mxu0 0.0
      %1900 = vmatprep.subr.mxu0 0.0
      %1901 = vmatpush1.msra.mxu0 0.0
      %1902 = vmatprep.subr.mxu0 0.0
      %1903 = vmatpush1.msra.mxu0 0.0
      %1904 = vmatprep.subr.mxu0 0.0
      %1905 = vmatpush1.msra.mxu0 0.0
      %1906 = vmatprep.subr.mxu0 0.0
      %1907 = vmatpush1.msra.mxu0 %v351
      %1908 = vmatprep.subr.mxu0 0.0
      %1909 = vmatpush1.msra.mxu0 %v350
      %1910 = vmatprep.subr.mxu0 0.0
      %1911 = vmatpush1.msra.mxu0 %v349
      %1912 = vmatprep.subr.mxu0 0.0
      %1913 = vmatpush1.msra.mxu0 %v348
      %1914 = vmatprep.subr.mxu0 0.0
      %1915 = vmatpush2.msra.mxu0 0.0
      %1916 = vmatprep.subr.mxu0 0.0
      %1917 = vmatpush2.msra.mxu0 0.0
      %1918 = vmatprep.subr.mxu0 0.0
      %1919 = vmatpush2.msra.mxu0 0.0
      %1920 = vmatprep.subr.mxu0 0.0
      %1921 = vmatpush2.msra.mxu0 0.0
      %1922 = vmatprep.subr.mxu0 0.0
      %1923 = vmatpush2.msra.mxu0 0.0
      %1924 = vmatprep.subr.mxu0 0.0
      %1925 = vmatpush2.msra.mxu0 0.0
      %1926 = vmatprep.subr.mxu0 0.0
      %1927 = vmatpush2.msra.mxu0 0.0
      %1928 = vmatprep.subr.mxu0 0.0
      %1929 = vmatpush2.msra.mxu0 0.0
      %1930 = vmatprep.subr.mxu0 0.0
      %1931 = vmatpush2.msra.mxu0 0.0
      %1932 = vmatprep.subr.mxu0 0.0
      %1933 = vmatpush2.msra.mxu0 0.0
      %1934 = vmatprep.subr.mxu0 0.0
      %1935 = vmatpush2.msra.mxu0 0.0
      %1936 = vmatprep.subr.mxu0 0.0
      %1937 = vmatpush2.msra.mxu0 0.0
      %1938 = vmatprep.subr.mxu0 0.0
      %1939 = vmatpush2.msra.mxu0 0.0
      %1940 = vmatprep.subr.mxu0 0.0
      %1941 = vmatpush2.msra.mxu0 0.0
      %1942 = vmatprep.subr.mxu0 0.0
      %1943 = vmatpush2.msra.mxu0 0.0
      %1944 = vmatprep.subr.mxu0 0.0
      %1945 = vmatpush2.msra.mxu0 0.0
      %1946 = vmatprep.mubr.f32.mxu0 0.0
      %1947 = vmatmul.mubr.f32.gmra.mxu0 %v1810
      %v1948 = vpop.f32.mrf.mxu0
      %v1949 = vadd.f32 0.0, %v1948
      %v1950 = vpop.f32.mrf.mxu0
      %1951 = vdwg.mxu0
      %s1952 = scalar_lea.vmem %s315, 24
      %v1953 = vld [vmem:[%s1952] sm:$0xf]
      %v1954 = vadd.f32 %v1953, %v1879
      %v1955 = vxor.u32 %v1954, 2147483648
      %v1956 = vmul.f32 %v1955, 1.442695
      %v1957 = vpow.pop %v1956
      %v1958 = vadd.f32 %v1957, 1.0
      %v1959 = vrcp.pop %v1958
      %v1960 = vmul.f32 1.0, %v1959
      %s1961 = scalar_lea.vmem %s320, 24
      %v1962 = vld [vmem:[%s1961] sm:$0xf]
      %v1963 = vadd.f32 %v1962, %v1949
      %v1964 = vxor.u32 %v1963, 2147483648
      %v1965 = vmul.f32 %v1964, 1.442695
      %v1966 = vpow.pop %v1965
      %v1967 = vadd.f32 %v1966, 1.0
      %v1968 = vrcp.pop %v1967
      %v1969 = vmul.f32 1.0, %v1968
      %s1970 = scalar_lea.vmem %s325, 24
      %v1971 = vld [vmem:[%s1970] sm:$0xf]
      %1972 = vmatprep.subr.mxu0 0.0
      %1973 = vmatpush1.msra.mxu0 0.0
      %1974 = vmatprep.subr.mxu0 0.0
      %1975 = vmatpush1.msra.mxu0 0.0
      %1976 = vmatprep.subr.mxu0 0.0
      %1977 = vmatpush1.msra.mxu0 0.0
      %1978 = vmatprep.subr.mxu0 0.0
      %1979 = vmatpush1.msra.mxu0 0.0
      %1980 = vmatprep.subr.mxu0 0.0
      %1981 = vmatpush1.msra.mxu0 0.0
      %1982 = vmatprep.subr.mxu0 0.0
      %1983 = vmatpush1.msra.mxu0 0.0
      %1984 = vmatprep.subr.mxu0 0.0
      %1985 = vmatpush1.msra.mxu0 0.0
      %1986 = vmatprep.subr.mxu0 0.0
      %1987 = vmatpush1.msra.mxu0 0.0
      %1988 = vmatprep.subr.mxu0 0.0
      %1989 = vmatpush1.msra.mxu0 0.0
      %1990 = vmatprep.subr.mxu0 0.0
      %1991 = vmatpush1.msra.mxu0 0.0
      %1992 = vmatprep.subr.mxu0 0.0
      %1993 = vmatpush1.msra.mxu0 0.0
      %1994 = vmatprep.subr.mxu0 0.0
      %1995 = vmatpush1.msra.mxu0 0.0
      %1996 = vmatprep.subr.mxu0 0.0
      %1997 = vmatpush1.msra.mxu0 %v356
      %1998 = vmatprep.subr.mxu0 0.0
      %1999 = vmatpush1.msra.mxu0 %v355
      %2000 = vmatprep.subr.mxu0 0.0
      %2001 = vmatpush1.msra.mxu0 %v354
      %2002 = vmatprep.subr.mxu0 0.0
      %2003 = vmatpush1.msra.mxu0 %v353
      %2004 = vmatprep.subr.mxu0 0.0
      %2005 = vmatpush2.msra.mxu0 0.0
      %2006 = vmatprep.subr.mxu0 0.0
      %2007 = vmatpush2.msra.mxu0 0.0
      %2008 = vmatprep.subr.mxu0 0.0
      %2009 = vmatpush2.msra.mxu0 0.0
      %2010 = vmatprep.subr.mxu0 0.0
      %2011 = vmatpush2.msra.mxu0 0.0
      %2012 = vmatprep.subr.mxu0 0.0
      %2013 = vmatpush2.msra.mxu0 0.0
      %2014 = vmatprep.subr.mxu0 0.0
      %2015 = vmatpush2.msra.mxu0 0.0
      %2016 = vmatprep.subr.mxu0 0.0
      %2017 = vmatpush2.msra.mxu0 0.0
      %2018 = vmatprep.subr.mxu0 0.0
      %2019 = vmatpush2.msra.mxu0 0.0
      %2020 = vmatprep.subr.mxu0 0.0
      %2021 = vmatpush2.msra.mxu0 0.0
      %2022 = vmatprep.subr.mxu0 0.0
      %2023 = vmatpush2.msra.mxu0 0.0
      %2024 = vmatprep.subr.mxu0 0.0
      %2025 = vmatpush2.msra.mxu0 0.0
      %2026 = vmatprep.subr.mxu0 0.0
      %2027 = vmatpush2.msra.mxu0 0.0
      %2028 = vmatprep.subr.mxu0 0.0
      %2029 = vmatpush2.msra.mxu0 0.0
      %2030 = vmatprep.subr.mxu0 0.0
      %2031 = vmatpush2.msra.mxu0 0.0
      %2032 = vmatprep.subr.mxu0 0.0
      %2033 = vmatpush2.msra.mxu0 0.0
      %2034 = vmatprep.subr.mxu0 0.0
      %2035 = vmatpush2.msra.mxu0 0.0
      %2036 = vmatprep.mubr.f32.mxu0 0.0
      %2037 = vmatmul.mubr.f32.gmra.mxu0 %v1810
      %v2038 = vpop.f32.mrf.mxu0
      %v2039 = vadd.f32 %v524, %v2038
      %v2040 = vpop.f32.mrf.mxu0
      %2041 = vdwg.mxu0
      %v2042 = vmul.f32 %v1960, %v2039
      %v2043 = vadd.f32 %v1971, %v2042
      %v2044 = vtanh.pop %v2043
      %v2045 = vsub.f32 %v1806, %v2044
      %v2046 = vmul.f32 %v1969, %v2045
      %v2047 = vadd.f32 %v2044, %v2046
      %s2048 = scalar_lea.vmem %s342, 24
      %2049 = vst.msk [vmem:[%s2048] sm:$0xf] %vm602, %v2047
      %v2051 = vsel %vm359, %v2047, 0
      %2053 = vmatprep.subr.mxu0 0.0
      %2054 = vmatpush1.msra.mxu0 0.0
      %2055 = vmatprep.subr.mxu0 0.0
      %2056 = vmatpush1.msra.mxu0 0.0
      %2057 = vmatprep.subr.mxu0 0.0
      %2058 = vmatpush1.msra.mxu0 0.0
      %2059 = vmatprep.subr.mxu0 0.0
      %2060 = vmatpush1.msra.mxu0 0.0
      %2061 = vmatprep.subr.mxu0 0.0
      %2062 = vmatpush1.msra.mxu0 0.0
      %2063 = vmatprep.subr.mxu0 0.0
      %2064 = vmatpush1.msra.mxu0 0.0
      %2065 = vmatprep.subr.mxu0 0.0
      %2066 = vmatpush1.msra.mxu0 0.0
      %2067 = vmatprep.subr.mxu0 0.0
      %2068 = vmatpush1.msra.mxu0 0.0
      %2069 = vmatprep.subr.mxu0 0.0
      %2070 = vmatpush1.msra.mxu0 0.0
      %2071 = vmatprep.subr.mxu0 0.0
      %2072 = vmatpush1.msra.mxu0 0.0
      %2073 = vmatprep.subr.mxu0 0.0
      %2074 = vmatpush1.msra.mxu0 0.0
      %2075 = vmatprep.subr.mxu0 0.0
      %2076 = vmatpush1.msra.mxu0 0.0
      %2077 = vmatprep.subr.mxu0 0.0
      %2078 = vmatpush1.msra.mxu0 %v346
      %2079 = vmatprep.subr.mxu0 0.0
      %2080 = vmatpush1.msra.mxu0 %v345
      %2081 = vmatprep.subr.mxu0 0.0
      %2082 = vmatpush1.msra.mxu0 %v344
      %2083 = vmatprep.subr.mxu0 0.0
      %2084 = vmatpush1.msra.mxu0 %v343
      %2085 = vmatprep.subr.mxu0 0.0
      %2086 = vmatpush2.msra.mxu0 0.0
      %2087 = vmatprep.subr.mxu0 0.0
      %2088 = vmatpush2.msra.mxu0 0.0
      %2089 = vmatprep.subr.mxu0 0.0
      %2090 = vmatpush2.msra.mxu0 0.0
      %2091 = vmatprep.subr.mxu0 0.0
      %2092 = vmatpush2.msra.mxu0 0.0
      %2093 = vmatprep.subr.mxu0 0.0
      %2094 = vmatpush2.msra.mxu0 0.0
      %2095 = vmatprep.subr.mxu0 0.0
      %2096 = vmatpush2.msra.mxu0 0.0
      %2097 = vmatprep.subr.mxu0 0.0
      %2098 = vmatpush2.msra.mxu0 0.0
      %2099 = vmatprep.subr.mxu0 0.0
      %2100 = vmatpush2.msra.mxu0 0.0
      %2101 = vmatprep.subr.mxu0 0.0
      %2102 = vmatpush2.msra.mxu0 0.0
      %2103 = vmatprep.subr.mxu0 0.0
      %2104 = vmatpush2.msra.mxu0 0.0
      %2105 = vmatprep.subr.mxu0 0.0
      %2106 = vmatpush2.msra.mxu0 0.0
      %2107 = vmatprep.subr.mxu0 0.0
      %2108 = vmatpush2.msra.mxu0 0.0
      %2109 = vmatprep.subr.mxu0 0.0
      %2110 = vmatpush2.msra.mxu0 0.0
      %2111 = vmatprep.subr.mxu0 0.0
      %2112 = vmatpush2.msra.mxu0 0.0
      %2113 = vmatprep.subr.mxu0 0.0
      %2114 = vmatpush2.msra.mxu0 0.0
      %2115 = vmatprep.subr.mxu0 0.0
      %2116 = vmatpush2.msra.mxu0 0.0
      %2117 = vmatprep.mubr.f32.mxu0 0.0
      %2118 = vmatmul.mubr.f32.gmra.mxu0 %v2051
      %v2119 = vpop.f32.mrf.mxu0
      %v2120 = vadd.f32 0.0, %v2119
      %v2121 = vpop.f32.mrf.mxu0
      %2122 = vdwg.mxu0
      %2123 = vmatprep.subr.mxu0 0.0
      %2124 = vmatpush1.msra.mxu0 0.0
      %2125 = vmatprep.subr.mxu0 0.0
      %2126 = vmatpush1.msra.mxu0 0.0
      %2127 = vmatprep.subr.mxu0 0.0
      %2128 = vmatpush1.msra.mxu0 0.0
      %2129 = vmatprep.subr.mxu0 0.0
      %2130 = vmatpush1.msra.mxu0 0.0
      %2131 = vmatprep.subr.mxu0 0.0
      %2132 = vmatpush1.msra.mxu0 0.0
      %2133 = vmatprep.subr.mxu0 0.0
      %2134 = vmatpush1.msra.mxu0 0.0
      %2135 = vmatprep.subr.mxu0 0.0
      %2136 = vmatpush1.msra.mxu0 0.0
      %2137 = vmatprep.subr.mxu0 0.0
      %2138 = vmatpush1.msra.mxu0 0.0
      %2139 = vmatprep.subr.mxu0 0.0
      %2140 = vmatpush1.msra.mxu0 0.0
      %2141 = vmatprep.subr.mxu0 0.0
      %2142 = vmatpush1.msra.mxu0 0.0
      %2143 = vmatprep.subr.mxu0 0.0
      %2144 = vmatpush1.msra.mxu0 0.0
      %2145 = vmatprep.subr.mxu0 0.0
      %2146 = vmatpush1.msra.mxu0 0.0
      %2147 = vmatprep.subr.mxu0 0.0
      %2148 = vmatpush1.msra.mxu0 %v351
      %2149 = vmatprep.subr.mxu0 0.0
      %2150 = vmatpush1.msra.mxu0 %v350
      %2151 = vmatprep.subr.mxu0 0.0
      %2152 = vmatpush1.msra.mxu0 %v349
      %2153 = vmatprep.subr.mxu0 0.0
      %2154 = vmatpush1.msra.mxu0 %v348
      %2155 = vmatprep.subr.mxu0 0.0
      %2156 = vmatpush2.msra.mxu0 0.0
      %2157 = vmatprep.subr.mxu0 0.0
      %2158 = vmatpush2.msra.mxu0 0.0
      %2159 = vmatprep.subr.mxu0 0.0
      %2160 = vmatpush2.msra.mxu0 0.0
      %2161 = vmatprep.subr.mxu0 0.0
      %2162 = vmatpush2.msra.mxu0 0.0
      %2163 = vmatprep.subr.mxu0 0.0
      %2164 = vmatpush2.msra.mxu0 0.0
      %2165 = vmatprep.subr.mxu0 0.0
      %2166 = vmatpush2.msra.mxu0 0.0
      %2167 = vmatprep.subr.mxu0 0.0
      %2168 = vmatpush2.msra.mxu0 0.0
      %2169 = vmatprep.subr.mxu0 0.0
      %2170 = vmatpush2.msra.mxu0 0.0
      %2171 = vmatprep.subr.mxu0 0.0
      %2172 = vmatpush2.msra.mxu0 0.0
      %2173 = vmatprep.subr.mxu0 0.0
      %2174 = vmatpush2.msra.mxu0 0.0
      %2175 = vmatprep.subr.mxu0 0.0
      %2176 = vmatpush2.msra.mxu0 0.0
      %2177 = vmatprep.subr.mxu0 0.0
      %2178 = vmatpush2.msra.mxu0 0.0
      %2179 = vmatprep.subr.mxu0 0.0
      %2180 = vmatpush2.msra.mxu0 0.0
      %2181 = vmatprep.subr.mxu0 0.0
      %2182 = vmatpush2.msra.mxu0 0.0
      %2183 = vmatprep.subr.mxu0 0.0
      %2184 = vmatpush2.msra.mxu0 0.0
      %2185 = vmatprep.subr.mxu0 0.0
      %2186 = vmatpush2.msra.mxu0 0.0
      %2187 = vmatprep.mubr.f32.mxu0 0.0
      %2188 = vmatmul.mubr.f32.gmra.mxu0 %v2051
      %v2189 = vpop.f32.mrf.mxu0
      %v2190 = vadd.f32 0.0, %v2189
      %v2191 = vpop.f32.mrf.mxu0
      %2192 = vdwg.mxu0
      %s2193 = scalar_lea.vmem %s315, 28
      %v2194 = vld [vmem:[%s2193] sm:$0xf]
      %v2195 = vadd.f32 %v2194, %v2120
      %v2196 = vxor.u32 %v2195, 2147483648
      %v2197 = vmul.f32 %v2196, 1.442695
      %v2198 = vpow.pop %v2197
      %v2199 = vadd.f32 %v2198, 1.0
      %v2200 = vrcp.pop %v2199
      %v2201 = vmul.f32 1.0, %v2200
      %s2202 = scalar_lea.vmem %s320, 28
      %v2203 = vld [vmem:[%s2202] sm:$0xf]
      %v2204 = vadd.f32 %v2203, %v2190
      %v2205 = vxor.u32 %v2204, 2147483648
      %v2206 = vmul.f32 %v2205, 1.442695
      %v2207 = vpow.pop %v2206
      %v2208 = vadd.f32 %v2207, 1.0
      %v2209 = vrcp.pop %v2208
      %v2210 = vmul.f32 1.0, %v2209
      %s2211 = scalar_lea.vmem %s325, 28
      %v2212 = vld [vmem:[%s2211] sm:$0xf]
      %2213 = vmatprep.subr.mxu0 0.0
      %2214 = vmatpush1.msra.mxu0 0.0
      %2215 = vmatprep.subr.mxu0 0.0
      %2216 = vmatpush1.msra.mxu0 0.0
      %2217 = vmatprep.subr.mxu0 0.0
      %2218 = vmatpush1.msra.mxu0 0.0
      %2219 = vmatprep.subr.mxu0 0.0
      %2220 = vmatpush1.msra.mxu0 0.0
      %2221 = vmatprep.subr.mxu0 0.0
      %2222 = vmatpush1.msra.mxu0 0.0
      %2223 = vmatprep.subr.mxu0 0.0
      %2224 = vmatpush1.msra.mxu0 0.0
      %2225 = vmatprep.subr.mxu0 0.0
      %2226 = vmatpush1.msra.mxu0 0.0
      %2227 = vmatprep.subr.mxu0 0.0
      %2228 = vmatpush1.msra.mxu0 0.0
      %2229 = vmatprep.subr.mxu0 0.0
      %2230 = vmatpush1.msra.mxu0 0.0
      %2231 = vmatprep.subr.mxu0 0.0
      %2232 = vmatpush1.msra.mxu0 0.0
      %2233 = vmatprep.subr.mxu0 0.0
      %2234 = vmatpush1.msra.mxu0 0.0
      %2235 = vmatprep.subr.mxu0 0.0
      %2236 = vmatpush1.msra.mxu0 0.0
      %2237 = vmatprep.subr.mxu0 0.0
      %2238 = vmatpush1.msra.mxu0 %v356
      %2239 = vmatprep.subr.mxu0 0.0
      %2240 = vmatpush1.msra.mxu0 %v355
      %2241 = vmatprep.subr.mxu0 0.0
      %2242 = vmatpush1.msra.mxu0 %v354
      %2243 = vmatprep.subr.mxu0 0.0
      %2244 = vmatpush1.msra.mxu0 %v353
      %2245 = vmatprep.subr.mxu0 0.0
      %2246 = vmatpush2.msra.mxu0 0.0
      %2247 = vmatprep.subr.mxu0 0.0
      %2248 = vmatpush2.msra.mxu0 0.0
      %2249 = vmatprep.subr.mxu0 0.0
      %2250 = vmatpush2.msra.mxu0 0.0
      %2251 = vmatprep.subr.mxu0 0.0
      %2252 = vmatpush2.msra.mxu0 0.0
      %2253 = vmatprep.subr.mxu0 0.0
      %2254 = vmatpush2.msra.mxu0 0.0
      %2255 = vmatprep.subr.mxu0 0.0
      %2256 = vmatpush2.msra.mxu0 0.0
      %2257 = vmatprep.subr.mxu0 0.0
      %2258 = vmatpush2.msra.mxu0 0.0
      %2259 = vmatprep.subr.mxu0 0.0
      %2260 = vmatpush2.msra.mxu0 0.0
      %2261 = vmatprep.subr.mxu0 0.0
      %2262 = vmatpush2.msra.mxu0 0.0
      %2263 = vmatprep.subr.mxu0 0.0
      %2264 = vmatpush2.msra.mxu0 0.0
      %2265 = vmatprep.subr.mxu0 0.0
      %2266 = vmatpush2.msra.mxu0 0.0
      %2267 = vmatprep.subr.mxu0 0.0
      %2268 = vmatpush2.msra.mxu0 0.0
      %2269 = vmatprep.subr.mxu0 0.0
      %2270 = vmatpush2.msra.mxu0 0.0
      %2271 = vmatprep.subr.mxu0 0.0
      %2272 = vmatpush2.msra.mxu0 0.0
      %2273 = vmatprep.subr.mxu0 0.0
      %2274 = vmatpush2.msra.mxu0 0.0
      %2275 = vmatprep.subr.mxu0 0.0
      %2276 = vmatpush2.msra.mxu0 0.0
      %2277 = vmatprep.mubr.f32.mxu0 0.0
      %2278 = vmatmul.mubr.f32.gmra.mxu0 %v2051
      %v2279 = vpop.f32.mrf.mxu0
      %v2280 = vadd.f32 %v524, %v2279
      %v2281 = vpop.f32.mrf.mxu0
      %2282 = vdwg.mxu0
      %v2283 = vmul.f32 %v2201, %v2280
      %v2284 = vadd.f32 %v2212, %v2283
      %v2285 = vtanh.pop %v2284
      %v2286 = vsub.f32 %v2047, %v2285
      %v2287 = vmul.f32 %v2210, %v2286
      %v2288 = vadd.f32 %v2285, %v2287
      %s2289 = scalar_lea.vmem %s342, 28
      %2290 = vst.msk [vmem:[%s2289] sm:$0xf] %vm602, %v2288
      %v2292 = vsel %vm359, %v2288, 0
      %2294 = vmatprep.subr.mxu0 0.0
      %2295 = vmatpush1.msra.mxu0 0.0
      %2296 = vmatprep.subr.mxu0 0.0
      %2297 = vmatpush1.msra.mxu0 0.0
      %2298 = vmatprep.subr.mxu0 0.0
      %2299 = vmatpush1.msra.mxu0 0.0
      %2300 = vmatprep.subr.mxu0 0.0
      %2301 = vmatpush1.msra.mxu0 0.0
      %2302 = vmatprep.subr.mxu0 0.0
      %2303 = vmatpush1.msra.mxu0 0.0
      %2304 = vmatprep.subr.mxu0 0.0
      %2305 = vmatpush1.msra.mxu0 0.0
      %2306 = vmatprep.subr.mxu0 0.0
      %2307 = vmatpush1.msra.mxu0 0.0
      %2308 = vmatprep.subr.mxu0 0.0
      %2309 = vmatpush1.msra.mxu0 0.0
      %2310 = vmatprep.subr.mxu0 0.0
      %2311 = vmatpush1.msra.mxu0 0.0
      %2312 = vmatprep.subr.mxu0 0.0
      %2313 = vmatpush1.msra.mxu0 0.0
      %2314 = vmatprep.subr.mxu0 0.0
      %2315 = vmatpush1.msra.mxu0 0.0
      %2316 = vmatprep.subr.mxu0 0.0
      %2317 = vmatpush1.msra.mxu0 0.0
      %2318 = vmatprep.subr.mxu0 0.0
      %2319 = vmatpush1.msra.mxu0 %v346
      %2320 = vmatprep.subr.mxu0 0.0
      %2321 = vmatpush1.msra.mxu0 %v345
      %2322 = vmatprep.subr.mxu0 0.0
      %2323 = vmatpush1.msra.mxu0 %v344
      %2324 = vmatprep.subr.mxu0 0.0
      %2325 = vmatpush1.msra.mxu0 %v343
      %2326 = vmatprep.subr.mxu0 0.0
      %2327 = vmatpush2.msra.mxu0 0.0
      %2328 = vmatprep.subr.mxu0 0.0
      %2329 = vmatpush2.msra.mxu0 0.0
      %2330 = vmatprep.subr.mxu0 0.0
      %2331 = vmatpush2.msra.mxu0 0.0
      %2332 = vmatprep.subr.mxu0 0.0
      %2333 = vmatpush2.msra.mxu0 0.0
      %2334 = vmatprep.subr.mxu0 0.0
      %2335 = vmatpush2.msra.mxu0 0.0
      %2336 = vmatprep.subr.mxu0 0.0
      %2337 = vmatpush2.msra.mxu0 0.0
      %2338 = vmatprep.subr.mxu0 0.0
      %2339 = vmatpush2.msra.mxu0 0.0
      %2340 = vmatprep.subr.mxu0 0.0
      %2341 = vmatpush2.msra.mxu0 0.0
      %2342 = vmatprep.subr.mxu0 0.0
      %2343 = vmatpush2.msra.mxu0 0.0
      %2344 = vmatprep.subr.mxu0 0.0
      %2345 = vmatpush2.msra.mxu0 0.0
      %2346 = vmatprep.subr.mxu0 0.0
      %2347 = vmatpush2.msra.mxu0 0.0
      %2348 = vmatprep.subr.mxu0 0.0
      %2349 = vmatpush2.msra.mxu0 0.0
      %2350 = vmatprep.subr.mxu0 0.0
      %2351 = vmatpush2.msra.mxu0 0.0
      %2352 = vmatprep.subr.mxu0 0.0
      %2353 = vmatpush2.msra.mxu0 0.0
      %2354 = vmatprep.subr.mxu0 0.0
      %2355 = vmatpush2.msra.mxu0 0.0
      %2356 = vmatprep.subr.mxu0 0.0
      %2357 = vmatpush2.msra.mxu0 0.0
      %2358 = vmatprep.mubr.f32.mxu0 0.0
      %2359 = vmatmul.mubr.f32.gmra.mxu0 %v2292
      %v2360 = vpop.f32.mrf.mxu0
      %v2361 = vadd.f32 0.0, %v2360
      %v2362 = vpop.f32.mrf.mxu0
      %2363 = vdwg.mxu0
      %2364 = vmatprep.subr.mxu0 0.0
      %2365 = vmatpush1.msra.mxu0 0.0
      %2366 = vmatprep.subr.mxu0 0.0
      %2367 = vmatpush1.msra.mxu0 0.0
      %2368 = vmatprep.subr.mxu0 0.0
      %2369 = vmatpush1.msra.mxu0 0.0
      %2370 = vmatprep.subr.mxu0 0.0
      %2371 = vmatpush1.msra.mxu0 0.0
      %2372 = vmatprep.subr.mxu0 0.0
      %2373 = vmatpush1.msra.mxu0 0.0
      %2374 = vmatprep.subr.mxu0 0.0
      %2375 = vmatpush1.msra.mxu0 0.0
      %2376 = vmatprep.subr.mxu0 0.0
      %2377 = vmatpush1.msra.mxu0 0.0
      %2378 = vmatprep.subr.mxu0 0.0
      %2379 = vmatpush1.msra.mxu0 0.0
      %2380 = vmatprep.subr.mxu0 0.0
      %2381 = vmatpush1.msra.mxu0 0.0
      %2382 = vmatprep.subr.mxu0 0.0
      %2383 = vmatpush1.msra.mxu0 0.0
      %2384 = vmatprep.subr.mxu0 0.0
      %2385 = vmatpush1.msra.mxu0 0.0
      %2386 = vmatprep.subr.mxu0 0.0
      %2387 = vmatpush1.msra.mxu0 0.0
      %2388 = vmatprep.subr.mxu0 0.0
      %2389 = vmatpush1.msra.mxu0 %v351
      %2390 = vmatprep.subr.mxu0 0.0
      %2391 = vmatpush1.msra.mxu0 %v350
      %2392 = vmatprep.subr.mxu0 0.0
      %2393 = vmatpush1.msra.mxu0 %v349
      %2394 = vmatprep.subr.mxu0 0.0
      %2395 = vmatpush1.msra.mxu0 %v348
      %2396 = vmatprep.subr.mxu0 0.0
      %2397 = vmatpush2.msra.mxu0 0.0
      %2398 = vmatprep.subr.mxu0 0.0
      %2399 = vmatpush2.msra.mxu0 0.0
      %2400 = vmatprep.subr.mxu0 0.0
      %2401 = vmatpush2.msra.mxu0 0.0
      %2402 = vmatprep.subr.mxu0 0.0
      %2403 = vmatpush2.msra.mxu0 0.0
      %2404 = vmatprep.subr.mxu0 0.0
      %2405 = vmatpush2.msra.mxu0 0.0
      %2406 = vmatprep.subr.mxu0 0.0
      %2407 = vmatpush2.msra.mxu0 0.0
      %2408 = vmatprep.subr.mxu0 0.0
      %2409 = vmatpush2.msra.mxu0 0.0
      %2410 = vmatprep.subr.mxu0 0.0
      %2411 = vmatpush2.msra.mxu0 0.0
      %2412 = vmatprep.subr.mxu0 0.0
      %2413 = vmatpush2.msra.mxu0 0.0
      %2414 = vmatprep.subr.mxu0 0.0
      %2415 = vmatpush2.msra.mxu0 0.0
      %2416 = vmatprep.subr.mxu0 0.0
      %2417 = vmatpush2.msra.mxu0 0.0
      %2418 = vmatprep.subr.mxu0 0.0
      %2419 = vmatpush2.msra.mxu0 0.0
      %2420 = vmatprep.subr.mxu0 0.0
      %2421 = vmatpush2.msra.mxu0 0.0
      %2422 = vmatprep.subr.mxu0 0.0
      %2423 = vmatpush2.msra.mxu0 0.0
      %2424 = vmatprep.subr.mxu0 0.0
      %2425 = vmatpush2.msra.mxu0 0.0
      %2426 = vmatprep.subr.mxu0 0.0
      %2427 = vmatpush2.msra.mxu0 0.0
      %2428 = vmatprep.mubr.f32.mxu0 0.0
      %2429 = vmatmul.mubr.f32.gmra.mxu0 %v2292
      %v2430 = vpop.f32.mrf.mxu0
      %v2431 = vadd.f32 0.0, %v2430
      %v2432 = vpop.f32.mrf.mxu0
      %2433 = vdwg.mxu0
      %s2434 = scalar_lea.vmem %s315, 32
      %v2435 = vld [vmem:[%s2434] sm:$0xf]
      %v2436 = vadd.f32 %v2435, %v2361
      %v2437 = vxor.u32 %v2436, 2147483648
      %v2438 = vmul.f32 %v2437, 1.442695
      %v2439 = vpow.pop %v2438
      %v2440 = vadd.f32 %v2439, 1.0
      %v2441 = vrcp.pop %v2440
      %v2442 = vmul.f32 1.0, %v2441
      %s2443 = scalar_lea.vmem %s320, 32
      %v2444 = vld [vmem:[%s2443] sm:$0xf]
      %v2445 = vadd.f32 %v2444, %v2431
      %v2446 = vxor.u32 %v2445, 2147483648
      %v2447 = vmul.f32 %v2446, 1.442695
      %v2448 = vpow.pop %v2447
      %v2449 = vadd.f32 %v2448, 1.0
      %v2450 = vrcp.pop %v2449
      %v2451 = vmul.f32 1.0, %v2450
      %s2452 = scalar_lea.vmem %s325, 32
      %v2453 = vld [vmem:[%s2452] sm:$0xf]
      %2454 = vmatprep.subr.mxu0 0.0
      %2455 = vmatpush1.msra.mxu0 0.0
      %2456 = vmatprep.subr.mxu0 0.0
      %2457 = vmatpush1.msra.mxu0 0.0
      %2458 = vmatprep.subr.mxu0 0.0
      %2459 = vmatpush1.msra.mxu0 0.0
      %2460 = vmatprep.subr.mxu0 0.0
      %2461 = vmatpush1.msra.mxu0 0.0
      %2462 = vmatprep.subr.mxu0 0.0
      %2463 = vmatpush1.msra.mxu0 0.0
      %2464 = vmatprep.subr.mxu0 0.0
      %2465 = vmatpush1.msra.mxu0 0.0
      %2466 = vmatprep.subr.mxu0 0.0
      %2467 = vmatpush1.msra.mxu0 0.0
      %2468 = vmatprep.subr.mxu0 0.0
      %2469 = vmatpush1.msra.mxu0 0.0
      %2470 = vmatprep.subr.mxu0 0.0
      %2471 = vmatpush1.msra.mxu0 0.0
      %2472 = vmatprep.subr.mxu0 0.0
      %2473 = vmatpush1.msra.mxu0 0.0
      %2474 = vmatprep.subr.mxu0 0.0
      %2475 = vmatpush1.msra.mxu0 0.0
      %2476 = vmatprep.subr.mxu0 0.0
      %2477 = vmatpush1.msra.mxu0 0.0
      %2478 = vmatprep.subr.mxu0 0.0
      %2479 = vmatpush1.msra.mxu0 %v356
      %2480 = vmatprep.subr.mxu0 0.0
      %2481 = vmatpush1.msra.mxu0 %v355
      %2482 = vmatprep.subr.mxu0 0.0
      %2483 = vmatpush1.msra.mxu0 %v354
      %2484 = vmatprep.subr.mxu0 0.0
      %2485 = vmatpush1.msra.mxu0 %v353
      %2486 = vmatprep.subr.mxu0 0.0
      %2487 = vmatpush2.msra.mxu0 0.0
      %2488 = vmatprep.subr.mxu0 0.0
      %2489 = vmatpush2.msra.mxu0 0.0
      %2490 = vmatprep.subr.mxu0 0.0
      %2491 = vmatpush2.msra.mxu0 0.0
      %2492 = vmatprep.subr.mxu0 0.0
      %2493 = vmatpush2.msra.mxu0 0.0
      %2494 = vmatprep.subr.mxu0 0.0
      %2495 = vmatpush2.msra.mxu0 0.0
      %2496 = vmatprep.subr.mxu0 0.0
      %2497 = vmatpush2.msra.mxu0 0.0
      %2498 = vmatprep.subr.mxu0 0.0
      %2499 = vmatpush2.msra.mxu0 0.0
      %2500 = vmatprep.subr.mxu0 0.0
      %2501 = vmatpush2.msra.mxu0 0.0
      %2502 = vmatprep.subr.mxu0 0.0
      %2503 = vmatpush2.msra.mxu0 0.0
      %2504 = vmatprep.subr.mxu0 0.0
      %2505 = vmatpush2.msra.mxu0 0.0
      %2506 = vmatprep.subr.mxu0 0.0
      %2507 = vmatpush2.msra.mxu0 0.0
      %2508 = vmatprep.subr.mxu0 0.0
      %2509 = vmatpush2.msra.mxu0 0.0
      %2510 = vmatprep.subr.mxu0 0.0
      %2511 = vmatpush2.msra.mxu0 0.0
      %2512 = vmatprep.subr.mxu0 0.0
      %2513 = vmatpush2.msra.mxu0 0.0
      %2514 = vmatprep.subr.mxu0 0.0
      %2515 = vmatpush2.msra.mxu0 0.0
      %2516 = vmatprep.subr.mxu0 0.0
      %2517 = vmatpush2.msra.mxu0 0.0
      %2518 = vmatprep.mubr.f32.mxu0 0.0
      %2519 = vmatmul.mubr.f32.gmra.mxu0 %v2292
      %v2520 = vpop.f32.mrf.mxu0
      %v2521 = vadd.f32 %v524, %v2520
      %v2522 = vpop.f32.mrf.mxu0
      %2523 = vdwg.mxu0
      %v2524 = vmul.f32 %v2442, %v2521
      %v2525 = vadd.f32 %v2453, %v2524
      %v2526 = vtanh.pop %v2525
      %v2527 = vsub.f32 %v2288, %v2526
      %v2528 = vmul.f32 %v2451, %v2527
      %v2529 = vadd.f32 %v2526, %v2528
      %s2530 = scalar_lea.vmem %s342, 32
      %2531 = vst.msk [vmem:[%s2530] sm:$0xf] %vm602, %v2529
      %v2533 = vsel %vm359, %v2529, 0
      %2535 = vmatprep.subr.mxu0 0.0
      %2536 = vmatpush1.msra.mxu0 0.0
      %2537 = vmatprep.subr.mxu0 0.0
      %2538 = vmatpush1.msra.mxu0 0.0
      %2539 = vmatprep.subr.mxu0 0.0
      %2540 = vmatpush1.msra.mxu0 0.0
      %2541 = vmatprep.subr.mxu0 0.0
      %2542 = vmatpush1.msra.mxu0 0.0
      %2543 = vmatprep.subr.mxu0 0.0
      %2544 = vmatpush1.msra.mxu0 0.0
      %2545 = vmatprep.subr.mxu0 0.0
      %2546 = vmatpush1.msra.mxu0 0.0
      %2547 = vmatprep.subr.mxu0 0.0
      %2548 = vmatpush1.msra.mxu0 0.0
      %2549 = vmatprep.subr.mxu0 0.0
      %2550 = vmatpush1.msra.mxu0 0.0
      %2551 = vmatprep.subr.mxu0 0.0
      %2552 = vmatpush1.msra.mxu0 0.0
      %2553 = vmatprep.subr.mxu0 0.0
      %2554 = vmatpush1.msra.mxu0 0.0
      %2555 = vmatprep.subr.mxu0 0.0
      %2556 = vmatpush1.msra.mxu0 0.0
      %2557 = vmatprep.subr.mxu0 0.0
      %2558 = vmatpush1.msra.mxu0 0.0
      %2559 = vmatprep.subr.mxu0 0.0
      %2560 = vmatpush1.msra.mxu0 %v346
      %2561 = vmatprep.subr.mxu0 0.0
      %2562 = vmatpush1.msra.mxu0 %v345
      %2563 = vmatprep.subr.mxu0 0.0
      %2564 = vmatpush1.msra.mxu0 %v344
      %2565 = vmatprep.subr.mxu0 0.0
      %2566 = vmatpush1.msra.mxu0 %v343
      %2567 = vmatprep.subr.mxu0 0.0
      %2568 = vmatpush2.msra.mxu0 0.0
      %2569 = vmatprep.subr.mxu0 0.0
      %2570 = vmatpush2.msra.mxu0 0.0
      %2571 = vmatprep.subr.mxu0 0.0
      %2572 = vmatpush2.msra.mxu0 0.0
      %2573 = vmatprep.subr.mxu0 0.0
      %2574 = vmatpush2.msra.mxu0 0.0
      %2575 = vmatprep.subr.mxu0 0.0
      %2576 = vmatpush2.msra.mxu0 0.0
      %2577 = vmatprep.subr.mxu0 0.0
      %2578 = vmatpush2.msra.mxu0 0.0
      %2579 = vmatprep.subr.mxu0 0.0
      %2580 = vmatpush2.msra.mxu0 0.0
      %2581 = vmatprep.subr.mxu0 0.0
      %2582 = vmatpush2.msra.mxu0 0.0
      %2583 = vmatprep.subr.mxu0 0.0
      %2584 = vmatpush2.msra.mxu0 0.0
      %2585 = vmatprep.subr.mxu0 0.0
      %2586 = vmatpush2.msra.mxu0 0.0
      %2587 = vmatprep.subr.mxu0 0.0
      %2588 = vmatpush2.msra.mxu0 0.0
      %2589 = vmatprep.subr.mxu0 0.0
      %2590 = vmatpush2.msra.mxu0 0.0
      %2591 = vmatprep.subr.mxu0 0.0
      %2592 = vmatpush2.msra.mxu0 0.0
      %2593 = vmatprep.subr.mxu0 0.0
      %2594 = vmatpush2.msra.mxu0 0.0
      %2595 = vmatprep.subr.mxu0 0.0
      %2596 = vmatpush2.msra.mxu0 0.0
      %2597 = vmatprep.subr.mxu0 0.0
      %2598 = vmatpush2.msra.mxu0 0.0
      %2599 = vmatprep.mubr.f32.mxu0 0.0
      %2600 = vmatmul.mubr.f32.gmra.mxu0 %v2533
      %v2601 = vpop.f32.mrf.mxu0
      %v2602 = vadd.f32 0.0, %v2601
      %v2603 = vpop.f32.mrf.mxu0
      %2604 = vdwg.mxu0
      %2605 = vmatprep.subr.mxu0 0.0
      %2606 = vmatpush1.msra.mxu0 0.0
      %2607 = vmatprep.subr.mxu0 0.0
      %2608 = vmatpush1.msra.mxu0 0.0
      %2609 = vmatprep.subr.mxu0 0.0
      %2610 = vmatpush1.msra.mxu0 0.0
      %2611 = vmatprep.subr.mxu0 0.0
      %2612 = vmatpush1.msra.mxu0 0.0
      %2613 = vmatprep.subr.mxu0 0.0
      %2614 = vmatpush1.msra.mxu0 0.0
      %2615 = vmatprep.subr.mxu0 0.0
      %2616 = vmatpush1.msra.mxu0 0.0
      %2617 = vmatprep.subr.mxu0 0.0
      %2618 = vmatpush1.msra.mxu0 0.0
      %2619 = vmatprep.subr.mxu0 0.0
      %2620 = vmatpush1.msra.mxu0 0.0
      %2621 = vmatprep.subr.mxu0 0.0
      %2622 = vmatpush1.msra.mxu0 0.0
      %2623 = vmatprep.subr.mxu0 0.0
      %2624 = vmatpush1.msra.mxu0 0.0
      %2625 = vmatprep.subr.mxu0 0.0
      %2626 = vmatpush1.msra.mxu0 0.0
      %2627 = vmatprep.subr.mxu0 0.0
      %2628 = vmatpush1.msra.mxu0 0.0
      %2629 = vmatprep.subr.mxu0 0.0
      %2630 = vmatpush1.msra.mxu0 %v351
      %2631 = vmatprep.subr.mxu0 0.0
      %2632 = vmatpush1.msra.mxu0 %v350
      %2633 = vmatprep.subr.mxu0 0.0
      %2634 = vmatpush1.msra.mxu0 %v349
      %2635 = vmatprep.subr.mxu0 0.0
      %2636 = vmatpush1.msra.mxu0 %v348
      %2637 = vmatprep.subr.mxu0 0.0
      %2638 = vmatpush2.msra.mxu0 0.0
      %2639 = vmatprep.subr.mxu0 0.0
      %2640 = vmatpush2.msra.mxu0 0.0
      %2641 = vmatprep.subr.mxu0 0.0
      %2642 = vmatpush2.msra.mxu0 0.0
      %2643 = vmatprep.subr.mxu0 0.0
      %2644 = vmatpush2.msra.mxu0 0.0
      %2645 = vmatprep.subr.mxu0 0.0
      %2646 = vmatpush2.msra.mxu0 0.0
      %2647 = vmatprep.subr.mxu0 0.0
      %2648 = vmatpush2.msra.mxu0 0.0
      %2649 = vmatprep.subr.mxu0 0.0
      %2650 = vmatpush2.msra.mxu0 0.0
      %2651 = vmatprep.subr.mxu0 0.0
      %2652 = vmatpush2.msra.mxu0 0.0
      %2653 = vmatprep.subr.mxu0 0.0
      %2654 = vmatpush2.msra.mxu0 0.0
      %2655 = vmatprep.subr.mxu0 0.0
      %2656 = vmatpush2.msra.mxu0 0.0
      %2657 = vmatprep.subr.mxu0 0.0
      %2658 = vmatpush2.msra.mxu0 0.0
      %2659 = vmatprep.subr.mxu0 0.0
      %2660 = vmatpush2.msra.mxu0 0.0
      %2661 = vmatprep.subr.mxu0 0.0
      %2662 = vmatpush2.msra.mxu0 0.0
      %2663 = vmatprep.subr.mxu0 0.0
      %2664 = vmatpush2.msra.mxu0 0.0
      %2665 = vmatprep.subr.mxu0 0.0
      %2666 = vmatpush2.msra.mxu0 0.0
      %2667 = vmatprep.subr.mxu0 0.0
      %2668 = vmatpush2.msra.mxu0 0.0
      %2669 = vmatprep.mubr.f32.mxu0 0.0
      %2670 = vmatmul.mubr.f32.gmra.mxu0 %v2533
      %v2671 = vpop.f32.mrf.mxu0
      %v2672 = vadd.f32 0.0, %v2671
      %v2673 = vpop.f32.mrf.mxu0
      %2674 = vdwg.mxu0
      %s2675 = scalar_lea.vmem %s315, 36
      %v2676 = vld [vmem:[%s2675] sm:$0xf]
      %v2677 = vadd.f32 %v2676, %v2602
      %v2678 = vxor.u32 %v2677, 2147483648
      %v2679 = vmul.f32 %v2678, 1.442695
      %v2680 = vpow.pop %v2679
      %v2681 = vadd.f32 %v2680, 1.0
      %v2682 = vrcp.pop %v2681
      %v2683 = vmul.f32 1.0, %v2682
      %s2684 = scalar_lea.vmem %s320, 36
      %v2685 = vld [vmem:[%s2684] sm:$0xf]
      %v2686 = vadd.f32 %v2685, %v2672
      %v2687 = vxor.u32 %v2686, 2147483648
      %v2688 = vmul.f32 %v2687, 1.442695
      %v2689 = vpow.pop %v2688
      %v2690 = vadd.f32 %v2689, 1.0
      %v2691 = vrcp.pop %v2690
      %v2692 = vmul.f32 1.0, %v2691
      %s2693 = scalar_lea.vmem %s325, 36
      %v2694 = vld [vmem:[%s2693] sm:$0xf]
      %2695 = vmatprep.subr.mxu0 0.0
      %2696 = vmatpush1.msra.mxu0 0.0
      %2697 = vmatprep.subr.mxu0 0.0
      %2698 = vmatpush1.msra.mxu0 0.0
      %2699 = vmatprep.subr.mxu0 0.0
      %2700 = vmatpush1.msra.mxu0 0.0
      %2701 = vmatprep.subr.mxu0 0.0
      %2702 = vmatpush1.msra.mxu0 0.0
      %2703 = vmatprep.subr.mxu0 0.0
      %2704 = vmatpush1.msra.mxu0 0.0
      %2705 = vmatprep.subr.mxu0 0.0
      %2706 = vmatpush1.msra.mxu0 0.0
      %2707 = vmatprep.subr.mxu0 0.0
      %2708 = vmatpush1.msra.mxu0 0.0
      %2709 = vmatprep.subr.mxu0 0.0
      %2710 = vmatpush1.msra.mxu0 0.0
      %2711 = vmatprep.subr.mxu0 0.0
      %2712 = vmatpush1.msra.mxu0 0.0
      %2713 = vmatprep.subr.mxu0 0.0
      %2714 = vmatpush1.msra.mxu0 0.0
      %2715 = vmatprep.subr.mxu0 0.0
      %2716 = vmatpush1.msra.mxu0 0.0
      %2717 = vmatprep.subr.mxu0 0.0
      %2718 = vmatpush1.msra.mxu0 0.0
      %2719 = vmatprep.subr.mxu0 0.0
      %2720 = vmatpush1.msra.mxu0 %v356
      %2721 = vmatprep.subr.mxu0 0.0
      %2722 = vmatpush1.msra.mxu0 %v355
      %2723 = vmatprep.subr.mxu0 0.0
      %2724 = vmatpush1.msra.mxu0 %v354
      %2725 = vmatprep.subr.mxu0 0.0
      %2726 = vmatpush1.msra.mxu0 %v353
      %2727 = vmatprep.subr.mxu0 0.0
      %2728 = vmatpush2.msra.mxu0 0.0
      %2729 = vmatprep.subr.mxu0 0.0
      %2730 = vmatpush2.msra.mxu0 0.0
      %2731 = vmatprep.subr.mxu0 0.0
      %2732 = vmatpush2.msra.mxu0 0.0
      %2733 = vmatprep.subr.mxu0 0.0
      %2734 = vmatpush2.msra.mxu0 0.0
      %2735 = vmatprep.subr.mxu0 0.0
      %2736 = vmatpush2.msra.mxu0 0.0
      %2737 = vmatprep.subr.mxu0 0.0
      %2738 = vmatpush2.msra.mxu0 0.0
      %2739 = vmatprep.subr.mxu0 0.0
      %2740 = vmatpush2.msra.mxu0 0.0
      %2741 = vmatprep.subr.mxu0 0.0
      %2742 = vmatpush2.msra.mxu0 0.0
      %2743 = vmatprep.subr.mxu0 0.0
      %2744 = vmatpush2.msra.mxu0 0.0
      %2745 = vmatprep.subr.mxu0 0.0
      %2746 = vmatpush2.msra.mxu0 0.0
      %2747 = vmatprep.subr.mxu0 0.0
      %2748 = vmatpush2.msra.mxu0 0.0
      %2749 = vmatprep.subr.mxu0 0.0
      %2750 = vmatpush2.msra.mxu0 0.0
      %2751 = vmatprep.subr.mxu0 0.0
      %2752 = vmatpush2.msra.mxu0 0.0
      %2753 = vmatprep.subr.mxu0 0.0
      %2754 = vmatpush2.msra.mxu0 0.0
      %2755 = vmatprep.subr.mxu0 0.0
      %2756 = vmatpush2.msra.mxu0 0.0
      %2757 = vmatprep.subr.mxu0 0.0
      %2758 = vmatpush2.msra.mxu0 0.0
      %2759 = vmatprep.mubr.f32.mxu0 0.0
      %2760 = vmatmul.mubr.f32.gmra.mxu0 %v2533
      %v2761 = vpop.f32.mrf.mxu0
      %v2762 = vadd.f32 %v524, %v2761
      %v2763 = vpop.f32.mrf.mxu0
      %2764 = vdwg.mxu0
      %v2765 = vmul.f32 %v2683, %v2762
      %v2766 = vadd.f32 %v2694, %v2765
      %v2767 = vtanh.pop %v2766
      %v2768 = vsub.f32 %v2529, %v2767
      %v2769 = vmul.f32 %v2692, %v2768
      %v2770 = vadd.f32 %v2767, %v2769
      %s2771 = scalar_lea.vmem %s342, 36
      %2772 = vst.msk [vmem:[%s2771] sm:$0xf] %vm602, %v2770
      %p2773 = scmp.lt.s32.totalorder %s17, 1
      %s2774 = scalar_select %p2773, %s17, 1
      %s2775 = smul.addr %s2774, 10
      %s2776 = smul.addr %s2775, 4
      %s2777 = scalar_lea.vmem %s6, %s2776
      // Predicated region
      $region45: #{only_gru_forward.5} parent=43 // pred_check
        %p2778 = pneg %p191
      $region46: #{only_gru_forward.5} parent=43 // pred_check_branch
        %2780 = sbr.rel (%p2778) target = $region48
      $region47: #{only_gru_forward.5} parent=43 // pred_region
        _
      $region48: #{only_gru_forward.5} parent=43 // pred_fallthru
        _
    $region44: #{only_gru_forward.5} parent=5 // pred_fallthru
      _
    %p2781 = scmp.le.s32.totalorder 2, %s12
    // Predicated region
    $region49: #{only_gru_forward.5} parent=5 // pred_check
      %p2782 = pneg %p2781
    $region50: #{only_gru_forward.5} parent=5 // pred_check_branch
      %2784 = sbr.rel (%p2782) target = $region52
    $region51: #{only_gru_forward.5} parent=5 // pred_region
      %s2785 = ssub.s32 %s12, 2
      // Predicated region
      $region53: #{only_gru_forward.5} parent=51 // pred_check
        %p2786 = pneg %p197
      $region54: #{only_gru_forward.5} parent=51 // pred_check_branch
        %2788 = sbr.rel (%p2786) target = $region56
      $region55: #{only_gru_forward.5} parent=51 // pred_region
        %p2789 = scmp.lt.s32.totalorder %s18, 1
        %s2790 = scalar_select %p2789, %s18, 1
        %s2791 = smul.addr %s2790, 10
        %s2792 = smul.addr %s2791, 4
        %s2793 = scalar_lea.vmem %s6, %s2792
      $region56: #{only_gru_forward.5} parent=51 // pred_fallthru
        _
    $region52: #{only_gru_forward.5} parent=5 // pred_fallthru
      _
  $region6: #{only_gru_forward.5} parent=0 // loop_footer
    %s16 = sadd.s32 1, %s12
  $region7: #{only_gru_forward.5} parent=0 // loop_footer_branch
    %11 = sbr.rel target = $region3
  $region8: #{only_gru_forward.5} parent=0 // loop_exit
    _

</llo_original>
